<compile_context>
chip_gen: v5e
topology: v5e:2x2
jax: 0.10.0
libtpu: 0.0.40
codegen_flags: <defaults>
</compile_context>

<pallas_src>
import functools

import numpy as np
import jax
import jax.numpy as jnp
from jax.experimental import pallas as pl
from jax.experimental.pallas import tpu as pltpu


_VMEM = pl.BlockSpec(memory_space=pltpu.MemorySpace.VMEM)


# ----------------------------------------------------------------------------
# Pallas kernel: fused 2-layer conv encoder
# ----------------------------------------------------------------------------
def _encoder_kernel(p1_ref, w1_ref, b1_ref, gsel_ref, w2_ref, b2_ref,
                    f1_ref, f2_ref, *, taps):
    # conv1: im2col patches (prepared in JAX) @ W1 + b1, ReLU.
    f1 = jnp.dot(p1_ref[...], w1_ref[...], preferred_element_type=jnp.float32)
    f1 = jnp.maximum(f1 + b1_ref[...], 0.0)                  # [B*Ho*Wo, C1]
    f1_ref[...] = f1

    # conv2: sum over 3x3 taps of (selection-matrix @ (f1 @ W2_tap)).
    acc = None
    for k in range(taps):
        t = jnp.dot(f1, w2_ref[k], preferred_element_type=jnp.float32)
        t = jnp.dot(gsel_ref[k], t, preferred_element_type=jnp.float32)
        acc = t if acc is None else acc + t
    f2_ref[...] = jnp.maximum(acc + b2_ref[...], 0.0)


def _im2col_nhwc(x, kh, kw, stride, pad):
    """x: [B, H, W, C] -> patches [B*Ho*Wo, kh*kw*C] (tap-major columns)."""
    B, H, W, C = x.shape
    xp = jnp.pad(x, ((0, 0), (pad, pad), (pad, pad), (0, 0)))
    Ho = (H + 2 * pad - kh) // stride + 1
    Wo = (W + 2 * pad - kw) // stride + 1
    cols = []
    for i in range(kh):
        for j in range(kw):
            cols.append(xp[:, i:i + stride * Ho:stride, j:j + stride * Wo:stride, :])
    patches = jnp.stack(cols, axis=3)                 # [B, Ho, Wo, kh*kw, C]
    return patches.reshape(B * Ho * Wo, kh * kw * C)


def encoder_forward(p, consts, img):
    """img: [B, 3, 16, 16] -> [(fm_flat [B, H*W, C], H, W), ...] for 2 stages."""
    B = img.shape[0]
    x = jnp.transpose(img, (0, 2, 3, 1))              # NHWC
    patches = _im2col_nhwc(x, 3, 3, stride=2, pad=1)  # [B*64, 27]
    k_real = patches.shape[1]
    k_pad = p["w1m"].shape[0]                         # 32 (sublane-friendly)
    patches = jnp.pad(patches, ((0, 0), (0, k_pad - k_real)))

    # Block-diagonal (over batch) tap-selection matrices for conv2.
    gsel_bd = jax.vmap(lambda g: jnp.kron(jnp.eye(B, dtype=g.dtype), g))(consts["gsel"])

    c1 = p["b1"].shape[1]
    c2 = p["b2"].shape[1]
    f1, f2 = pl.pallas_call(
        functools.partial(_encoder_kernel, taps=consts["gsel"].shape[0]),
        out_shape=(jax.ShapeDtypeStruct((B * 64, c1), jnp.float32),
                   jax.ShapeDtypeStruct((B * 16, c2), jnp.float32)),
        in_specs=[_VMEM] * 6,
        out_specs=(_VMEM, _VMEM),
    )(patches, p["w1m"], p["b1"], gsel_bd, p["w2s"], p["b2"])

    return [(f1.reshape(B, 64, c1), 8, 8),
            (f2.reshape(B, 16, c2), 4, 4)]


# ----------------------------------------------------------------------------
# Pallas kernel: fused GBottleneck (conv1 + 6 GResBlocks + conv2 = 14 gconvs)
# ----------------------------------------------------------------------------
def _gbottleneck_kernel(x_ref, a_ref, w1_ref, b1_ref, wblk_ref, bblk_ref,
                        w2_ref, b2_ref, hid_ref, out_ref, *, n_blocks):
    a = a_ref[...]                                    # block-diag adjacency [BN, BN]

    def gconv(x, w_cat, b, relu=True):
        # w_cat = [W | W_loop] -> single MXU pass, then split columns.
        dout = w_cat.shape[1] // 2
        xw = jnp.dot(x, w_cat, preferred_element_type=jnp.float32)
        out = (jnp.dot(a, xw[:, :dout], preferred_element_type=jnp.float32)
               + xw[:, dout:] + b)
        return jnp.maximum(out, 0.0) if relu else out

    h = gconv(x_ref[...], w1_ref[...], b1_ref[...])
    for i in range(n_blocks):                         # GResBlocks, unrolled
        t = gconv(h, wblk_ref[2 * i], bblk_ref[2 * i])
        t = gconv(t, wblk_ref[2 * i + 1], bblk_ref[2 * i + 1])
        h = (h + t) * 0.5
    hid_ref[...] = h
    # Final gconv: lane-dense 128-wide (zero-padded) output; sliced in wrapper.
    out_ref[...] = gconv(h, w2_ref[...], b2_ref[...], relu=False)


def gbottleneck(p, x, adj_bd, coord_dim=3):
    """x: [B, N, Din], adj_bd: [B*N, B*N] block-diag -> ([B,N,3], [B,N,H])."""
    B, N, Din = x.shape
    din_pad = p["w1"].shape[0]
    H = p["wblk"].shape[1]
    out_pad = p["b2"].shape[1]
    n_blocks = p["wblk"].shape[0] // 2

    x_flat = x.reshape(B * N, Din)
    if Din < din_pad:
        x_flat = jnp.pad(x_flat, ((0, 0), (0, din_pad - Din)))

    hid, out = pl.pallas_call(
        functools.partial(_gbottleneck_kernel, n_blocks=n_blocks),
        out_shape=(jax.ShapeDtypeStruct((B * N, H), jnp.float32),
                   jax.ShapeDtypeStruct((B * N, out_pad), jnp.float32)),
        in_specs=[_VMEM] * 8,
        out_specs=(_VMEM, _VMEM),
    )(x_flat, adj_bd, p["w1"], p["b1"], p["wblk"], p["bblk"], p["w2"], p["b2"])

    x_out = out[:, :coord_dim].reshape(B, N, coord_dim)
    x_hidden = hid.reshape(B, N, H)
    return x_out, x_hidden


# ----------------------------------------------------------------------------
# GraphProjection -- bilinear sampling as one-hot-weight matmul (no gather)
# ----------------------------------------------------------------------------
def graph_projection(pts, feat_maps, camera_mat):
    """pts: [B, N, 3], feat_maps: [(fm_flat [B,H*W,C], H, W)] -> [B, N, feat_dim]."""
    p = pts + jnp.array([0.0, 0.0, 2.2], dtype=pts.dtype)      # camera offset
    proj = jnp.einsum("bij,bnj->bni", camera_mat, p)
    z = jnp.maximum(proj[..., 2], 1e-3)
    u = proj[..., 0] / z
    v = proj[..., 1] / z

    feats = [pts]
    for fm_flat, Hm, Wm in feat_maps:
        xs = jnp.clip((u * 0.5 + 0.5) * (Wm - 1), 0.0, Wm - 1.0)
        ys = jnp.clip((v * 0.5 + 0.5) * (Hm - 1), 0.0, Hm - 1.0)
        x0 = jnp.floor(xs).astype(jnp.int32)
        y0 = jnp.floor(ys).astype(jnp.int32)
        x1 = jnp.minimum(x0 + 1, Wm - 1)
        y1 = jnp.minimum(y0 + 1, Hm - 1)
        wx = xs - x0
        wy = ys - y0

        iota = jnp.arange(Hm * Wm, dtype=jnp.int32)

        def onehot(yy, xx):
            return ((yy * Wm + xx)[..., None] == iota).astype(jnp.float32)

        wmat = (((1 - wx) * (1 - wy))[..., None] * onehot(y0, x0)
                + (wx * (1 - wy))[..., None] * onehot(y0, x1)
                + ((1 - wx) * wy)[..., None] * onehot(y1, x0)
                + (wx * wy)[..., None] * onehot(y1, x1))       # [B, N, H*W]
        feats.append(jnp.einsum("bnp,bpc->bnc", wmat, fm_flat))
    return jnp.concatenate(feats, axis=-1)


# ----------------------------------------------------------------------------
# GUnpooling
# ----------------------------------------------------------------------------
def gunpool(x, unpool_idx):
    new = (x[:, unpool_idx[:, 0], :] + x[:, unpool_idx[:, 1], :]) * 0.5
    return jnp.concatenate([x, new], axis=1)


# ----------------------------------------------------------------------------
# Parameter / constant construction (deterministic)
# ----------------------------------------------------------------------------
def _init_gconv_packed(key, din, din_pad, dout, dout_pad):
    k1, k2 = jax.random.split(key)
    lim = (6.0 / (din + dout)) ** 0.5
    w = jax.random.uniform(k1, (din, dout), jnp.float32, -lim, lim)
    wl = jax.random.uniform(k2, (din, dout), jnp.float32, -lim, lim)
    w_cat = jnp.zeros((din_pad, 2 * dout_pad), jnp.float32)
    w_cat = w_cat.at[:din, :dout].set(w)
    w_cat = w_cat.at[:din, dout_pad:dout_pad + dout].set(wl)
    return w_cat, jnp.zeros((1, dout_pad), jnp.float32)


def _init_gbottleneck(key, in_dim, in_pad, hidden, out_dim, out_pad, n_blocks=6):
    keys = jax.random.split(key, 2 + 2 * n_blocks)
    w1, b1 = _init_gconv_packed(keys[0], in_dim, in_pad, hidden, hidden)
    w2, b2 = _init_gconv_packed(keys[1], hidden, hidden, out_dim, out_pad)
    wblk, bblk = [], []
    for i in range(2 * n_blocks):
        w, b = _init_gconv_packed(keys[2 + i], hidden, hidden, hidden, hidden)
        wblk.append(w)
        bblk.append(b)
    return {"w1": w1, "b1": b1, "w2": w2, "b2": b2,
            "wblk": jnp.stack(wblk), "bblk": jnp.stack(bblk)}


def _ring_adj(n):
    a = np.eye(n, dtype=np.float32)
    for i in range(n):
        a[i, (i + 1) % n] = 1.0
        a[i, (i - 1) % n] = 1.0
    a = a / a.sum(axis=1, keepdims=True)
    return jnp.asarray(a)


def _conv_select(h_in, w_in, h_out, w_out, kh, kw, stride, pad):
    """Per-tap 0/1 selection matrices: [kh*kw, h_out*w_out, h_in*w_in]."""
    sel = np.zeros((kh * kw, h_out * w_out, h_in * w_in), np.float32)
    for oy in range(h_out):
        for ox in range(w_out):
            for dy in range(kh):
                for dx in range(kw):
                    iy = oy * stride + dy - pad
                    ix = ox * stride + dx - pad
                    if 0 <= iy < h_in and 0 <= ix < w_in:
                        sel[dy * kw + dx, oy * w_out + ox, iy * w_in + ix] = 1.0
    return jnp.asarray(sel)


def _pad8(n):
    return ((n + 7) // 8) * 8


def build_model(key, hidden_dim=32, coord_dim=3, n_blocks=6):
    # Ellipsoid-like constants (3 levels: 16 -> 32 -> 48 vertices).
    N0, E = 16, 16
    theta = jnp.arange(N0, dtype=jnp.float32) * (2.0 * jnp.pi / N0)
    init_coords = jnp.stack(
        [0.35 * jnp.cos(theta), 0.25 * jnp.sin(theta), 0.20 * jnp.sin(2 * theta)],
        axis=1)                                               # [16, 3]
    adj = [_ring_adj(16), _ring_adj(32), _ring_adj(48)]
    unpool_idx = [
        jnp.asarray(np.stack([np.arange(E), (np.arange(E) + 1) % N0], 1), jnp.int32),
        jnp.asarray(np.stack([2 * np.arange(E), 2 * np.arange(E) + 1], 1), jnp.int32),
    ]

    feat_dim = coord_dim + 16 + 32    # coords + encoder stage channels = 51
    dout_pad = 128                    # lane-dense final gconv output

    ks = jax.random.split(key, 6)
    # Encoder weights kept in torch layout for init, packed for the kernel.
    w1 = jax.random.normal(ks[0], (16, 3, 3, 3), jnp.float32) * 0.1
    w2 = jax.random.normal(ks[1], (32, 16, 3, 3), jnp.float32) * 0.1
    w1_mat = jnp.transpose(w1, (2, 3, 1, 0)).reshape(27, 16)      # (tap, cin) rows
    w1_mat = jnp.pad(w1_mat, ((0, _pad8(27) - 27), (0, 0)))       # 27 -> 32 rows
    w2_taps = jnp.transpose(w2, (2, 3, 1, 0)).reshape(9, 16, 32)  # [tap, cin, cout]
    encoder = {
        "w1m": w1_mat,
        "b1": jnp.zeros((1, 16), jnp.float32),
        "w2s": w2_taps,
        "b2": jnp.zeros((1, 32), jnp.float32),
    }

    params = {
        "encoder": encoder,
        "initial_coordinates": init_coords,
        "gcn0": _init_gbottleneck(ks[2], feat_dim, _pad8(feat_dim),
                                  hidden_dim, coord_dim, dout_pad, n_blocks),
        "gcn1": _init_gbottleneck(ks[3], feat_dim + hidden_dim,
                                  _pad8(feat_dim + hidden_dim),
                                  hidden_dim, coord_dim, dout_pad, n_blocks),
        "gcn2": _init_gbottleneck(ks[4], feat_dim + hidden_dim,
                                  _pad8(feat_dim + hidden_dim),
                                  hidden_dim, coord_dim, dout_pad, n_blocks),
    }
    consts = {
        "adj": adj,
        "unpool_idx": unpool_idx,
        # conv2 tap-selection matrices: 8x8 -> 4x4, 3x3 kernel, stride 2, pad 1.
        "gsel": _conv_select(8, 8, 4, 4, 3, 3, 2, 1),
    }
    return params, consts


# ----------------------------------------------------------------------------
# Full forward pass (mirrors the PyTorch module's forward)
# ----------------------------------------------------------------------------
def pixel2mesh_forward(params, consts, img, camera_mat):
    adj = consts["adj"]
    unpool_idx = consts["unpool_idx"]
    B = img.shape[0]

    img_feat = encoder_forward(params["encoder"], consts, img)
    init_pts = jnp.broadcast_to(params["initial_coordinates"][None],
                                (B,) + params["initial_coordinates"].shape)

    # Block-diagonal adjacency so the whole batch is one [B*N, B*N] matmul.
    adj_bd = [jnp.kron(jnp.eye(B, dtype=a.dtype), a) for a in adj]

    x = graph_projection(init_pts, img_feat, camera_mat)
    x1, x_hidden = gbottleneck(params["gcn0"], x, adj_bd[0])
    x1_up = gunpool(x1, unpool_idx[0])

    # original code uses undefined `cam`; camera_mat is the intended argument.
    x = graph_projection(x1, img_feat, camera_mat)
    x = gunpool(jnp.concatenate([x, x_hidden], axis=2), unpool_idx[0])
    x2, x_hidden = gbottleneck(params["gcn1"], x, adj_bd[1])
    x2_up = gunpool(x2, unpool_idx[1])

    x = graph_projection(x2, img_feat, camera_mat)
    # original code re-uses unpooling[0] here; reproduced as written.
    x = gunpool(jnp.concatenate([x, x_hidden], axis=2), unpool_idx[0])
    x3, _ = gbottleneck(params["gcn2"], x, adj_bd[2])

    return {
        "pred_coord": [x1, x2, x3],
        "pred_coord_before_deform": [init_pts, x1_up, x2_up],
    }


# ----------------------------------------------------------------------------
if __name__ == "__main__":
    key = jax.random.PRNGKey(0)
    k_model, k_img = jax.random.split(key)

    params, consts = build_model(k_model)

    B = 2
    img = jax.random.normal(k_img, (B, 3, 16, 16), jnp.float32)
    f = 1.2
    camera_mat = jnp.tile(
        jnp.array([[f, 0.0, 0.0], [0.0, f, 0.0], [0.0, 0.0, 1.0]], jnp.float32)[None],
        (B, 1, 1))

    fwd = jax.jit(pixel2mesh_forward)
    out = fwd(params, consts, img, camera_mat)
    out = jax.tree_util.tree_map(jax.block_until_ready, out)

    assert out["pred_coord"][0].shape == (B, 16, 3)
    assert out["pred_coord"][1].shape == (B, 32, 3)
    assert out["pred_coord"][2].shape == (B, 48, 3)
    assert out["pred_coord_before_deform"][0].shape == (B, 16, 3)
    assert out["pred_coord_before_deform"][1].shape == (B, 32, 3)
    assert out["pred_coord_before_deform"][2].shape == (B, 48, 3)
    assert all(jnp.all(jnp.isfinite(a)) for a in out["pred_coord"])

    print("KERNEL_OK")
</pallas_src>

<mosaic_0001>
module attributes {stable_mosaic.version = 11 : i64} {
  func.func @_encoder_kernel(%arg0: memref<128x32xf32, #tpu.memory_space<vmem>>, %arg1: memref<32x16xf32, #tpu.memory_space<vmem>>, %arg2: memref<1x16xf32, #tpu.memory_space<vmem>>, %arg3: memref<9x32x128xf32, #tpu.memory_space<vmem>>, %arg4: memref<9x16x32xf32, #tpu.memory_space<vmem>>, %arg5: memref<1x32xf32, #tpu.memory_space<vmem>>, %arg6: memref<128x16xf32, #tpu.memory_space<vmem>>, %arg7: memref<32x32xf32, #tpu.memory_space<vmem>>) attributes {dimension_semantics = [], scalar_prefetch = 0 : i64, scratch_operands = 0 : i64, tpu.core_type = #tpu.core_type<tc>} {
    %c0 = arith.constant 0 : index
    %c0_0 = arith.constant 0 : index
    %0 = vector.load %arg0[%c0, %c0_0] : memref<128x32xf32, #tpu.memory_space<vmem>>, vector<128x32xf32>
    %c0_1 = arith.constant 0 : index
    %c0_2 = arith.constant 0 : index
    %1 = vector.load %arg1[%c0_1, %c0_2] : memref<32x16xf32, #tpu.memory_space<vmem>>, vector<32x16xf32>
    %cst = arith.constant dense<0.000000e+00> : vector<128x16xf32>
    %2 = tpu.matmul %0, %1, %cst {dimension_numbers = #tpu.dot_dimension_numbers<[1], [0], [0], [1], [0, 0, 1, 1], [], []>} : vector<128x32xf32>, vector<32x16xf32>, vector<128x16xf32> -> vector<128x16xf32>
    %c0_3 = arith.constant 0 : index
    %c0_4 = arith.constant 0 : index
    %3 = vector.load %arg2[%c0_3, %c0_4] : memref<1x16xf32, #tpu.memory_space<vmem>>, vector<1x16xf32>
    %4 = vector.broadcast %3 : vector<1x16xf32> to vector<128x16xf32>
    %5 = arith.addf %2, %4 : vector<128x16xf32>
    %cst_5 = arith.constant 0.000000e+00 : f32
    %6 = vector.broadcast %cst_5 : f32 to vector<128x16xf32>
    %7 = arith.maximumf %5, %6 : vector<128x16xf32>
    %c0_6 = arith.constant 0 : index
    %c0_7 = arith.constant 0 : index
    %8 = vector.load %arg6[%c0_6, %c0_7] : memref<128x16xf32, #tpu.memory_space<vmem>>, vector<128x16xf32>
    tpu.vector_store %arg6[%c0_6, %c0_7], %7 {strides = array<i32>} : memref<128x16xf32, #tpu.memory_space<vmem>>, vector<128x16xf32>,
    %c0_8 = arith.constant 0 : index
    %c0_9 = arith.constant 0 : index
    %c0_10 = arith.constant 0 : index
    %9 = vector.load %arg4[%c0_8, %c0_9, %c0_10] : memref<9x16x32xf32, #tpu.memory_space<vmem>>, vector<1x16x32xf32>
    %10 = vector.shape_cast %9 : vector<1x16x32xf32> to vector<16x32xf32>
    %cst_11 = arith.constant dense<0.000000e+00> : vector<128x32xf32>
    %11 = tpu.matmul %7, %10, %cst_11 {dimension_numbers = #tpu.dot_dimension_numbers<[1], [0], [0], [1], [0, 0, 1, 1], [], []>} : vector<128x16xf32>, vector<16x32xf32>, vector<128x32xf32> -> vector<128x32xf32>
    %c0_12 = arith.constant 0 : index
    %c0_13 = arith.constant 0 : index
    %c0_14 = arith.constant 0 : index
    %12 = vector.load %arg3[%c0_12, %c0_13, %c0_14] : memref<9x32x128xf32, #tpu.memory_space<vmem>>, vector<1x32x128xf32>
    %13 = vector.shape_cast %12 : vector<1x32x128xf32> to vector<32x128xf32>
    %cst_15 = arith.constant dense<0.000000e+00> : vector<32x32xf32>
    %14 = tpu.matmul %13, %11, %cst_15 {dimension_numbers = #tpu.dot_dimension_numbers<[1], [0], [0], [1], [0, 0, 1, 1], [], []>} : vector<32x128xf32>, vector<128x32xf32>, vector<32x32xf32> -> vector<32x32xf32>
    %c1 = arith.constant 1 : index
    %c0_16 = arith.constant 0 : index
    %c0_17 = arith.constant 0 : index
    %15 = vector.load %arg4[%c1, %c0_16, %c0_17] : memref<9x16x32xf32, #tpu.memory_space<vmem>>, vector<1x16x32xf32>
    %16 = vector.shape_cast %15 : vector<1x16x32xf32> to vector<16x32xf32>
    %cst_18 = arith.constant dense<0.000000e+00> : vector<128x32xf32>
    %17 = tpu.matmul %7, %16, %cst_18 {dimension_numbers = #tpu.dot_dimension_numbers<[1], [0], [0], [1], [0, 0, 1, 1], [], []>} : vector<128x16xf32>, vector<16x32xf32>, vector<128x32xf32> -> vector<128x32xf32>
    %c1_19 = arith.constant 1 : index
    %c0_20 = arith.constant 0 : index
    %c0_21 = arith.constant 0 : index
    %18 = vector.load %arg3[%c1_19, %c0_20, %c0_21] : memref<9x32x128xf32, #tpu.memory_space<vmem>>, vector<1x32x128xf32>
    %19 = vector.shape_cast %18 : vector<1x32x128xf32> to vector<32x128xf32>
    %cst_22 = arith.constant dense<0.000000e+00> : vector<32x32xf32>
    %20 = tpu.matmul %19, %17, %cst_22 {dimension_numbers = #tpu.dot_dimension_numbers<[1], [0], [0], [1], [0, 0, 1, 1], [], []>} : vector<32x128xf32>, vector<128x32xf32>, vector<32x32xf32> -> vector<32x32xf32>
    %21 = arith.addf %14, %20 : vector<32x32xf32>
    %c2 = arith.constant 2 : index
    %c0_23 = arith.constant 0 : index
    %c0_24 = arith.constant 0 : index
    %22 = vector.load %arg4[%c2, %c0_23, %c0_24] : memref<9x16x32xf32, #tpu.memory_space<vmem>>, vector<1x16x32xf32>
    %23 = vector.shape_cast %22 : vector<1x16x32xf32> to vector<16x32xf32>
    %cst_25 = arith.constant dense<0.000000e+00> : vector<128x32xf32>
    %24 = tpu.matmul %7, %23, %cst_25 {dimension_numbers = #tpu.dot_dimension_numbers<[1], [0], [0], [1], [0, 0, 1, 1], [], []>} : vector<128x16xf32>, vector<16x32xf32>, vector<128x32xf32> -> vector<128x32xf32>
    %c2_26 = arith.constant 2 : index
    %c0_27 = arith.constant 0 : index
    %c0_28 = arith.constant 0 : index
    %25 = vector.load %arg3[%c2_26, %c0_27, %c0_28] : memref<9x32x128xf32, #tpu.memory_space<vmem>>, vector<1x32x128xf32>
    %26 = vector.shape_cast %25 : vector<1x32x128xf32> to vector<32x128xf32>
    %cst_29 = arith.constant dense<0.000000e+00> : vector<32x32xf32>
    %27 = tpu.matmul %26, %24, %cst_29 {dimension_numbers = #tpu.dot_dimension_numbers<[1], [0], [0], [1], [0, 0, 1, 1], [], []>} : vector<32x128xf32>, vector<128x32xf32>, vector<32x32xf32> -> vector<32x32xf32>
    %28 = arith.addf %21, %27 : vector<32x32xf32>
    %c3 = arith.constant 3 : index
    %c0_30 = arith.constant 0 : index
    %c0_31 = arith.constant 0 : index
    %29 = vector.load %arg4[%c3, %c0_30, %c0_31] : memref<9x16x32xf32, #tpu.memory_space<vmem>>, vector<1x16x32xf32>
    %30 = vector.shape_cast %29 : vector<1x16x32xf32> to vector<16x32xf32>
    %cst_32 = arith.constant dense<0.000000e+00> : vector<128x32xf32>
    %31 = tpu.matmul %7, %30, %cst_32 {dimension_numbers = #tpu.dot_dimension_numbers<[1], [0], [0], [1], [0, 0, 1, 1], [], []>} : vector<128x16xf32>, vector<16x32xf32>, vector<128x32xf32> -> vector<128x32xf32>
    %c3_33 = arith.constant 3 : index
    %c0_34 = arith.constant 0 : index
    %c0_35 = arith.constant 0 : index
    %32 = vector.load %arg3[%c3_33, %c0_34, %c0_35] : memref<9x32x128xf32, #tpu.memory_space<vmem>>, vector<1x32x128xf32>
    %33 = vector.shape_cast %32 : vector<1x32x128xf32> to vector<32x128xf32>
    %cst_36 = arith.constant dense<0.000000e+00> : vector<32x32xf32>
    %34 = tpu.matmul %33, %31, %cst_36 {dimension_numbers = #tpu.dot_dimension_numbers<[1], [0], [0], [1], [0, 0, 1, 1], [], []>} : vector<32x128xf32>, vector<128x32xf32>, vector<32x32xf32> -> vector<32x32xf32>
    %35 = arith.addf %28, %34 : vector<32x32xf32>
    %c4 = arith.constant 4 : index
    %c0_37 = arith.constant 0 : index
    %c0_38 = arith.constant 0 : index
    %36 = vector.load %arg4[%c4, %c0_37, %c0_38] : memref<9x16x32xf32, #tpu.memory_space<vmem>>, vector<1x16x32xf32>
    %37 = vector.shape_cast %36 : vector<1x16x32xf32> to vector<16x32xf32>
    %cst_39 = arith.constant dense<0.000000e+00> : vector<128x32xf32>
    %38 = tpu.matmul %7, %37, %cst_39 {dimension_numbers = #tpu.dot_dimension_numbers<[1], [0], [0], [1], [0, 0, 1, 1], [], []>} : vector<128x16xf32>, vector<16x32xf32>, vector<128x32xf32> -> vector<128x32xf32>
    %c4_40 = arith.constant 4 : index
    %c0_41 = arith.constant 0 : index
    %c0_42 = arith.constant 0 : index
    %39 = vector.load %arg3[%c4_40, %c0_41, %c0_42] : memref<9x32x128xf32, #tpu.memory_space<vmem>>, vector<1x32x128xf32>
    %40 = vector.shape_cast %39 : vector<1x32x128xf32> to vector<32x128xf32>
    %cst_43 = arith.constant dense<0.000000e+00> : vector<32x32xf32>
    %41 = tpu.matmul %40, %38, %cst_43 {dimension_numbers = #tpu.dot_dimension_numbers<[1], [0], [0], [1], [0, 0, 1, 1], [], []>} : vector<32x128xf32>, vector<128x32xf32>, vector<32x32xf32> -> vector<32x32xf32>
    %42 = arith.addf %35, %41 : vector<32x32xf32>
    %c5 = arith.constant 5 : index
    %c0_44 = arith.constant 0 : index
    %c0_45 = arith.constant 0 : index
    %43 = vector.load %arg4[%c5, %c0_44, %c0_45] : memref<9x16x32xf32, #tpu.memory_space<vmem>>, vector<1x16x32xf32>
    %44 = vector.shape_cast %43 : vector<1x16x32xf32> to vector<16x32xf32>
    %cst_46 = arith.constant dense<0.000000e+00> : vector<128x32xf32>
    %45 = tpu.matmul %7, %44, %cst_46 {dimension_numbers = #tpu.dot_dimension_numbers<[1], [0], [0], [1], [0, 0, 1, 1], [], []>} : vector<128x16xf32>, vector<16x32xf32>, vector<128x32xf32> -> vector<128x32xf32>
    %c5_47 = arith.constant 5 : index
    %c0_48 = arith.constant 0 : index
    %c0_49 = arith.constant 0 : index
    %46 = vector.load %arg3[%c5_47, %c0_48, %c0_49] : memref<9x32x128xf32, #tpu.memory_space<vmem>>, vector<1x32x128xf32>
    %47 = vector.shape_cast %46 : vector<1x32x128xf32> to vector<32x128xf32>
    %cst_50 = arith.constant dense<0.000000e+00> : vector<32x32xf32>
    %48 = tpu.matmul %47, %45, %cst_50 {dimension_numbers = #tpu.dot_dimension_numbers<[1], [0], [0], [1], [0, 0, 1, 1], [], []>} : vector<32x128xf32>, vector<128x32xf32>, vector<32x32xf32> -> vector<32x32xf32>
    %49 = arith.addf %42, %48 : vector<32x32xf32>
    %c6 = arith.constant 6 : index
    %c0_51 = arith.constant 0 : index
    %c0_52 = arith.constant 0 : index
    %50 = vector.load %arg4[%c6, %c0_51, %c0_52] : memref<9x16x32xf32, #tpu.memory_space<vmem>>, vector<1x16x32xf32>
    %51 = vector.shape_cast %50 : vector<1x16x32xf32> to vector<16x32xf32>
    %cst_53 = arith.constant dense<0.000000e+00> : vector<128x32xf32>
    %52 = tpu.matmul %7, %51, %cst_53 {dimension_numbers = #tpu.dot_dimension_numbers<[1], [0], [0], [1], [0, 0, 1, 1], [], []>} : vector<128x16xf32>, vector<16x32xf32>, vector<128x32xf32> -> vector<128x32xf32>
    %c6_54 = arith.constant 6 : index
    %c0_55 = arith.constant 0 : index
    %c0_56 = arith.constant 0 : index
    %53 = vector.load %arg3[%c6_54, %c0_55, %c0_56] : memref<9x32x128xf32, #tpu.memory_space<vmem>>, vector<1x32x128xf32>
    %54 = vector.shape_cast %53 : vector<1x32x128xf32> to vector<32x128xf32>
    %cst_57 = arith.constant dense<0.000000e+00> : vector<32x32xf32>
    %55 = tpu.matmul %54, %52, %cst_57 {dimension_numbers = #tpu.dot_dimension_numbers<[1], [0], [0], [1], [0, 0, 1, 1], [], []>} : vector<32x128xf32>, vector<128x32xf32>, vector<32x32xf32> -> vector<32x32xf32>
    %56 = arith.addf %49, %55 : vector<32x32xf32>
    %c7 = arith.constant 7 : index
    %c0_58 = arith.constant 0 : index
    %c0_59 = arith.constant 0 : index
    %57 = vector.load %arg4[%c7, %c0_58, %c0_59] : memref<9x16x32xf32, #tpu.memory_space<vmem>>, vector<1x16x32xf32>
    %58 = vector.shape_cast %57 : vector<1x16x32xf32> to vector<16x32xf32>
    %cst_60 = arith.constant dense<0.000000e+00> : vector<128x32xf32>
    %59 = tpu.matmul %7, %58, %cst_60 {dimension_numbers = #tpu.dot_dimension_numbers<[1], [0], [0], [1], [0, 0, 1, 1], [], []>} : vector<128x16xf32>, vector<16x32xf32>, vector<128x32xf32> -> vector<128x32xf32>
    %c7_61 = arith.constant 7 : index
    %c0_62 = arith.constant 0 : index
    %c0_63 = arith.constant 0 : index
    %60 = vector.load %arg3[%c7_61, %c0_62, %c0_63] : memref<9x32x128xf32, #tpu.memory_space<vmem>>, vector<1x32x128xf32>
    %61 = vector.shape_cast %60 : vector<1x32x128xf32> to vector<32x128xf32>
    %cst_64 = arith.constant dense<0.000000e+00> : vector<32x32xf32>
    %62 = tpu.matmul %61, %59, %cst_64 {dimension_numbers = #tpu.dot_dimension_numbers<[1], [0], [0], [1], [0, 0, 1, 1], [], []>} : vector<32x128xf32>, vector<128x32xf32>, vector<32x32xf32> -> vector<32x32xf32>
    %63 = arith.addf %56, %62 : vector<32x32xf32>
    %c8 = arith.constant 8 : index
    %c0_65 = arith.constant 0 : index
    %c0_66 = arith.constant 0 : index
    %64 = vector.load %arg4[%c8, %c0_65, %c0_66] : memref<9x16x32xf32, #tpu.memory_space<vmem>>, vector<1x16x32xf32>
    %65 = vector.shape_cast %64 : vector<1x16x32xf32> to vector<16x32xf32>
    %cst_67 = arith.constant dense<0.000000e+00> : vector<128x32xf32>
    %66 = tpu.matmul %7, %65, %cst_67 {dimension_numbers = #tpu.dot_dimension_numbers<[1], [0], [0], [1], [0, 0, 1, 1], [], []>} : vector<128x16xf32>, vector<16x32xf32>, vector<128x32xf32> -> vector<128x32xf32>
    %c8_68 = arith.constant 8 : index
    %c0_69 = arith.constant 0 : index
    %c0_70 = arith.constant 0 : index
    %67 = vector.load %arg3[%c8_68, %c0_69, %c0_70] : memref<9x32x128xf32, #tpu.memory_space<vmem>>, vector<1x32x128xf32>
    %68 = vector.shape_cast %67 : vector<1x32x128xf32> to vector<32x128xf32>
    %cst_71 = arith.constant dense<0.000000e+00> : vector<32x32xf32>
    %69 = tpu.matmul %68, %66, %cst_71 {dimension_numbers = #tpu.dot_dimension_numbers<[1], [0], [0], [1], [0, 0, 1, 1], [], []>} : vector<32x128xf32>, vector<128x32xf32>, vector<32x32xf32> -> vector<32x32xf32>
    %70 = arith.addf %63, %69 : vector<32x32xf32>
    %c0_72 = arith.constant 0 : index
    %c0_73 = arith.constant 0 : index
    %71 = vector.load %arg5[%c0_72, %c0_73] : memref<1x32xf32, #tpu.memory_space<vmem>>, vector<1x32xf32>
    %72 = vector.broadcast %71 : vector<1x32xf32> to vector<32x32xf32>
    %73 = arith.addf %70, %72 : vector<32x32xf32>
    %cst_74 = arith.constant 0.000000e+00 : f32
    %74 = vector.broadcast %cst_74 : f32 to vector<32x32xf32>
    %75 = arith.maximumf %73, %74 : vector<32x32xf32>
    %c0_75 = arith.constant 0 : index
    %c0_76 = arith.constant 0 : index
    %76 = vector.load %arg7[%c0_75, %c0_76] : memref<32x32xf32, #tpu.memory_space<vmem>>, vector<32x32xf32>
    tpu.vector_store %arg7[%c0_75, %c0_76], %75 {strides = array<i32>} : memref<32x32xf32, #tpu.memory_space<vmem>>, vector<32x32xf32>,
    return
  }
}

module attributes {stable_mosaic.version = 11 : i64} {
  func.func @_gbottleneck_kernel(%arg0: memref<32x56xf32, #tpu.memory_space<vmem>>, %arg1: memref<32x32xf32, #tpu.memory_space<vmem>>, %arg2: memref<56x64xf32, #tpu.memory_space<vmem>>, %arg3: memref<1x32xf32, #tpu.memory_space<vmem>>, %arg4: memref<12x32x64xf32, #tpu.memory_space<vmem>>, %arg5: memref<12x1x32xf32, #tpu.memory_space<vmem>>, %arg6: memref<32x256xf32, #tpu.memory_space<vmem>>, %arg7: memref<1x128xf32, #tpu.memory_space<vmem>>, %arg8: memref<32x32xf32, #tpu.memory_space<vmem>>, %arg9: memref<32x128xf32, #tpu.memory_space<vmem>>) attributes {dimension_semantics = [], scalar_prefetch = 0 : i64, scratch_operands = 0 : i64, tpu.core_type = #tpu.core_type<tc>} {
    %c0 = arith.constant 0 : index
    %c0_0 = arith.constant 0 : index
    %0 = vector.load %arg1[%c0, %c0_0] : memref<32x32xf32, #tpu.memory_space<vmem>>, vector<32x32xf32>
    %c0_1 = arith.constant 0 : index
    %c0_2 = arith.constant 0 : index
    %1 = vector.load %arg0[%c0_1, %c0_2] : memref<32x56xf32, #tpu.memory_space<vmem>>, vector<32x56xf32>
    %c0_3 = arith.constant 0 : index
    %c0_4 = arith.constant 0 : index
    %2 = vector.load %arg2[%c0_3, %c0_4] : memref<56x64xf32, #tpu.memory_space<vmem>>, vector<56x64xf32>
    %c0_5 = arith.constant 0 : index
    %c0_6 = arith.constant 0 : index
    %3 = vector.load %arg3[%c0_5, %c0_6] : memref<1x32xf32, #tpu.memory_space<vmem>>, vector<1x32xf32>
    %cst = arith.constant dense<0.000000e+00> : vector<32x64xf32>
    %4 = tpu.matmul %1, %2, %cst {dimension_numbers = #tpu.dot_dimension_numbers<[1], [0], [0], [1], [0, 0, 1, 1], [], []>} : vector<32x56xf32>, vector<56x64xf32>, vector<32x64xf32> -> vector<32x64xf32>
    %5 = vector.extract_strided_slice %4 {offsets = [0, 0], sizes = [32, 32], strides = [1, 1]} : vector<32x64xf32> to vector<32x32xf32>
    %cst_7 = arith.constant dense<0.000000e+00> : vector<32x32xf32>
    %6 = tpu.matmul %0, %5, %cst_7 {dimension_numbers = #tpu.dot_dimension_numbers<[1], [0], [0], [1], [0, 0, 1, 1], [], []>} : vector<32x32xf32>, vector<32x32xf32>, vector<32x32xf32> -> vector<32x32xf32>
    %7 = vector.extract_strided_slice %4 {offsets = [0, 32], sizes = [32, 32], strides = [1, 1]} : vector<32x64xf32> to vector<32x32xf32>
    %8 = arith.addf %6, %7 : vector<32x32xf32>
    %9 = vector.broadcast %3 : vector<1x32xf32> to vector<32x32xf32>
    %10 = arith.addf %8, %9 : vector<32x32xf32>
    %cst_8 = arith.constant 0.000000e+00 : f32
    %11 = vector.broadcast %cst_8 : f32 to vector<32x32xf32>
    %12 = arith.maximumf %10, %11 : vector<32x32xf32>
    %c0_9 = arith.constant 0 : index
    %c0_10 = arith.constant 0 : index
    %c0_11 = arith.constant 0 : index
    %13 = vector.load %arg4[%c0_9, %c0_10, %c0_11] : memref<12x32x64xf32, #tpu.memory_space<vmem>>, vector<1x32x64xf32>
    %14 = vector.shape_cast %13 : vector<1x32x64xf32> to vector<32x64xf32>
    %c0_12 = arith.constant 0 : index
    %c0_13 = arith.constant 0 : index
    %c0_14 = arith.constant 0 : index
    %15 = vector.load %arg5[%c0_12, %c0_13, %c0_14] : memref<12x1x32xf32, #tpu.memory_space<vmem>>, vector<1x1x32xf32>
    %16 = vector.shape_cast %15 : vector<1x1x32xf32> to vector<1x32xf32>
    %cst_15 = arith.constant dense<0.000000e+00> : vector<32x64xf32>
    %17 = tpu.matmul %12, %14, %cst_15 {dimension_numbers = #tpu.dot_dimension_numbers<[1], [0], [0], [1], [0, 0, 1, 1], [], []>} : vector<32x32xf32>, vector<32x64xf32>, vector<32x64xf32> -> vector<32x64xf32>
    %18 = vector.extract_strided_slice %17 {offsets = [0, 0], sizes = [32, 32], strides = [1, 1]} : vector<32x64xf32> to vector<32x32xf32>
    %cst_16 = arith.constant dense<0.000000e+00> : vector<32x32xf32>
    %19 = tpu.matmul %0, %18, %cst_16 {dimension_numbers = #tpu.dot_dimension_numbers<[1], [0], [0], [1], [0, 0, 1, 1], [], []>} : vector<32x32xf32>, vector<32x32xf32>, vector<32x32xf32> -> vector<32x32xf32>
    %20 = vector.extract_strided_slice %17 {offsets = [0, 32], sizes = [32, 32], strides = [1, 1]} : vector<32x64xf32> to vector<32x32xf32>
    %21 = arith.addf %19, %20 : vector<32x32xf32>
    %22 = vector.broadcast %16 : vector<1x32xf32> to vector<32x32xf32>
    %23 = arith.addf %21, %22 : vector<32x32xf32>
    %cst_17 = arith.constant 0.000000e+00 : f32
    %24 = vector.broadcast %cst_17 : f32 to vector<32x32xf32>
    %25 = arith.maximumf %23, %24 : vector<32x32xf32>
    %c1 = arith.constant 1 : index
    %c0_18 = arith.constant 0 : index
    %c0_19 = arith.constant 0 : index
    %26 = vector.load %arg4[%c1, %c0_18, %c0_19] : memref<12x32x64xf32, #tpu.memory_space<vmem>>, vector<1x32x64xf32>
    %27 = vector.shape_cast %26 : vector<1x32x64xf32> to vector<32x64xf32>
    %c1_20 = arith.constant 1 : index
    %c0_21 = arith.constant 0 : index
    %c0_22 = arith.constant 0 : index
    %28 = vector.load %arg5[%c1_20, %c0_21, %c0_22] : memref<12x1x32xf32, #tpu.memory_space<vmem>>, vector<1x1x32xf32>
    %29 = vector.shape_cast %28 : vector<1x1x32xf32> to vector<1x32xf32>
    %cst_23 = arith.constant dense<0.000000e+00> : vector<32x64xf32>
    %30 = tpu.matmul %25, %27, %cst_23 {dimension_numbers = #tpu.dot_dimension_numbers<[1], [0], [0], [1], [0, 0, 1, 1], [], []>} : vector<32x32xf32>, vector<32x64xf32>, vector<32x64xf32> -> vector<32x64xf32>
    %31 = vector.extract_strided_slice %30 {offsets = [0, 0], sizes = [32, 32], strides = [1, 1]} : vector<32x64xf32> to vector<32x32xf32>
    %cst_24 = arith.constant dense<0.000000e+00> : vector<32x32xf32>
    %32 = tpu.matmul %0, %31, %cst_24 {dimension_numbers = #tpu.dot_dimension_numbers<[1], [0], [0], [1], [0, 0, 1, 1], [], []>} : vector<32x32xf32>, vector<32x32xf32>, vector<32x32xf32> -> vector<32x32xf32>
    %33 = vector.extract_strided_slice %30 {offsets = [0, 32], sizes = [32, 32], strides = [1, 1]} : vector<32x64xf32> to vector<32x32xf32>
    %34 = arith.addf %32, %33 : vector<32x32xf32>
    %35 = vector.broadcast %29 : vector<1x32xf32> to vector<32x32xf32>
    %36 = arith.addf %34, %35 : vector<32x32xf32>
    %cst_25 = arith.constant 0.000000e+00 : f32
    %37 = vector.broadcast %cst_25 : f32 to vector<32x32xf32>
    %38 = arith.maximumf %36, %37 : vector<32x32xf32>
    %39 = arith.addf %12, %38 : vector<32x32xf32>
    %cst_26 = arith.constant 5.000000e-01 : f32
    %40 = vector.broadcast %cst_26 : f32 to vector<32x32xf32>
    %41 = arith.mulf %39, %40 : vector<32x32xf32>
    %c2 = arith.constant 2 : index
    %c0_27 = arith.constant 0 : index
    %c0_28 = arith.constant 0 : index
    %42 = vector.load %arg4[%c2, %c0_27, %c0_28] : memref<12x32x64xf32, #tpu.memory_space<vmem>>, vector<1x32x64xf32>
    %43 = vector.shape_cast %42 : vector<1x32x64xf32> to vector<32x64xf32>
    %c2_29 = arith.constant 2 : index
    %c0_30 = arith.constant 0 : index
    %c0_31 = arith.constant 0 : index
    %44 = vector.load %arg5[%c2_29, %c0_30, %c0_31] : memref<12x1x32xf32, #tpu.memory_space<vmem>>, vector<1x1x32xf32>
    %45 = vector.shape_cast %44 : vector<1x1x32xf32> to vector<1x32xf32>
    %cst_32 = arith.constant dense<0.000000e+00> : vector<32x64xf32>
    %46 = tpu.matmul %41, %43, %cst_32 {dimension_numbers = #tpu.dot_dimension_numbers<[1], [0], [0], [1], [0, 0, 1, 1], [], []>} : vector<32x32xf32>, vector<32x64xf32>, vector<32x64xf32> -> vector<32x64xf32>
    %47 = vector.extract_strided_slice %46 {offsets = [0, 0], sizes = [32, 32], strides = [1, 1]} : vector<32x64xf32> to vector<32x32xf32>
    %cst_33 = arith.constant dense<0.000000e+00> : vector<32x32xf32>
    %48 = tpu.matmul %0, %47, %cst_33 {dimension_numbers = #tpu.dot_dimension_numbers<[1], [0], [0], [1], [0, 0, 1, 1], [], []>} : vector<32x32xf32>, vector<32x32xf32>, vector<32x32xf32> -> vector<32x32xf32>
    %49 = vector.extract_strided_slice %46 {offsets = [0, 32], sizes = [32, 32], strides = [1, 1]} : vector<32x64xf32> to vector<32x32xf32>
    %50 = arith.addf %48, %49 : vector<32x32xf32>
    %51 = vector.broadcast %45 : vector<1x32xf32> to vector<32x32xf32>
    %52 = arith.addf %50, %51 : vector<32x32xf32>
    %cst_34 = arith.constant 0.000000e+00 : f32
    %53 = vector.broadcast %cst_34 : f32 to vector<32x32xf32>
    %54 = arith.maximumf %52, %53 : vector<32x32xf32>
    %c3 = arith.constant 3 : index
    %c0_35 = arith.constant 0 : index
    %c0_36 = arith.constant 0 : index
    %55 = vector.load %arg4[%c3, %c0_35, %c0_36] : memref<12x32x64xf32, #tpu.memory_space<vmem>>, vector<1x32x64xf32>
    %56 = vector.shape_cast %55 : vector<1x32x64xf32> to vector<32x64xf32>
    %c3_37 = arith.constant 3 : index
    %c0_38 = arith.constant 0 : index
    %c0_39 = arith.constant 0 : index
    %57 = vector.load %arg5[%c3_37, %c0_38, %c0_39] : memref<12x1x32xf32, #tpu.memory_space<vmem>>, vector<1x1x32xf32>
    %58 = vector.shape_cast %57 : vector<1x1x32xf32> to vector<1x32xf32>
    %cst_40 = arith.constant dense<0.000000e+00> : vector<32x64xf32>
    %59 = tpu.matmul %54, %56, %cst_40 {dimension_numbers = #tpu.dot_dimension_numbers<[1], [0], [0], [1], [0, 0, 1, 1], [], []>} : vector<32x32xf32>, vector<32x64xf32>, vector<32x64xf32> -> vector<32x64xf32>
    %60 = vector.extract_strided_slice %59 {offsets = [0, 0], sizes = [32, 32], strides = [1, 1]} : vector<32x64xf32> to vector<32x32xf32>
    %cst_41 = arith.constant dense<0.000000e+00> : vector<32x32xf32>
    %61 = tpu.matmul %0, %60, %cst_41 {dimension_numbers = #tpu.dot_dimension_numbers<[1], [0], [0], [1], [0, 0, 1, 1], [], []>} : vector<32x32xf32>, vector<32x32xf32>, vector<32x32xf32> -> vector<32x32xf32>
    %62 = vector.extract_strided_slice %59 {offsets = [0, 32], sizes = [32, 32], strides = [1, 1]} : vector<32x64xf32> to vector<32x32xf32>
    %63 = arith.addf %61, %62 : vector<32x32xf32>
    %64 = vector.broadcast %58 : vector<1x32xf32> to vector<32x32xf32>
    %65 = arith.addf %63, %64 : vector<32x32xf32>
    %cst_42 = arith.constant 0.000000e+00 : f32
    %66 = vector.broadcast %cst_42 : f32 to vector<32x32xf32>
    %67 = arith.maximumf %65, %66 : vector<32x32xf32>
    %68 = arith.addf %41, %67 : vector<32x32xf32>
    %cst_43 = arith.constant 5.000000e-01 : f32
    %69 = vector.broadcast %cst_43 : f32 to vector<32x32xf32>
    %70 = arith.mulf %68, %69 : vector<32x32xf32>
    %c4 = arith.constant 4 : index
    %c0_44 = arith.constant 0 : index
    %c0_45 = arith.constant 0 : index
    %71 = vector.load %arg4[%c4, %c0_44, %c0_45] : memref<12x32x64xf32, #tpu.memory_space<vmem>>, vector<1x32x64xf32>
    %72 = vector.shape_cast %71 : vector<1x32x64xf32> to vector<32x64xf32>
    %c4_46 = arith.constant 4 : index
    %c0_47 = arith.constant 0 : index
    %c0_48 = arith.constant 0 : index
    %73 = vector.load %arg5[%c4_46, %c0_47, %c0_48] : memref<12x1x32xf32, #tpu.memory_space<vmem>>, vector<1x1x32xf32>
    %74 = vector.shape_cast %73 : vector<1x1x32xf32> to vector<1x32xf32>
    %cst_49 = arith.constant dense<0.000000e+00> : vector<32x64xf32>
    %75 = tpu.matmul %70, %72, %cst_49 {dimension_numbers = #tpu.dot_dimension_numbers<[1], [0], [0], [1], [0, 0, 1, 1], [], []>} : vector<32x32xf32>, vector<32x64xf32>, vector<32x64xf32> -> vector<32x64xf32>
    %76 = vector.extract_strided_slice %75 {offsets = [0, 0], sizes = [32, 32], strides = [1, 1]} : vector<32x64xf32> to vector<32x32xf32>
    %cst_50 = arith.constant dense<0.000000e+00> : vector<32x32xf32>
    %77 = tpu.matmul %0, %76, %cst_50 {dimension_numbers = #tpu.dot_dimension_numbers<[1], [0], [0], [1], [0, 0, 1, 1], [], []>} : vector<32x32xf32>, vector<32x32xf32>, vector<32x32xf32> -> vector<32x32xf32>
    %78 = vector.extract_strided_slice %75 {offsets = [0, 32], sizes = [32, 32], strides = [1, 1]} : vector<32x64xf32> to vector<32x32xf32>
    %79 = arith.addf %77, %78 : vector<32x32xf32>
    %80 = vector.broadcast %74 : vector<1x32xf32> to vector<32x32xf32>
    %81 = arith.addf %79, %80 : vector<32x32xf32>
    %cst_51 = arith.constant 0.000000e+00 : f32
    %82 = vector.broadcast %cst_51 : f32 to vector<32x32xf32>
    %83 = arith.maximumf %81, %82 : vector<32x32xf32>
    %c5 = arith.constant 5 : index
    %c0_52 = arith.constant 0 : index
    %c0_53 = arith.constant 0 : index
    %84 = vector.load %arg4[%c5, %c0_52, %c0_53] : memref<12x32x64xf32, #tpu.memory_space<vmem>>, vector<1x32x64xf32>
    %85 = vector.shape_cast %84 : vector<1x32x64xf32> to vector<32x64xf32>
    %c5_54 = arith.constant 5 : index
    %c0_55 = arith.constant 0 : index
    %c0_56 = arith.constant 0 : index
    %86 = vector.load %arg5[%c5_54, %c0_55, %c0_56] : memref<12x1x32xf32, #tpu.memory_space<vmem>>, vector<1x1x32xf32>
    %87 = vector.shape_cast %86 : vector<1x1x32xf32> to vector<1x32xf32>
    %cst_57 = arith.constant dense<0.000000e+00> : vector<32x64xf32>
    %88 = tpu.matmul %83, %85, %cst_57 {dimension_numbers = #tpu.dot_dimension_numbers<[1], [0], [0], [1], [0, 0, 1, 1], [], []>} : vector<32x32xf32>, vector<32x64xf32>, vector<32x64xf32> -> vector<32x64xf32>
    %89 = vector.extract_strided_slice %88 {offsets = [0, 0], sizes = [32, 32], strides = [1, 1]} : vector<32x64xf32> to vector<32x32xf32>
    %cst_58 = arith.constant dense<0.000000e+00> : vector<32x32xf32>
    %90 = tpu.matmul %0, %89, %cst_58 {dimension_numbers = #tpu.dot_dimension_numbers<[1], [0], [0], [1], [0, 0, 1, 1], [], []>} : vector<32x32xf32>, vector<32x32xf32>, vector<32x32xf32> -> vector<32x32xf32>
    %91 = vector.extract_strided_slice %88 {offsets = [0, 32], sizes = [32, 32], strides = [1, 1]} : vector<32x64xf32> to vector<32x32xf32>
    %92 = arith.addf %90, %91 : vector<32x32xf32>
    %93 = vector.broadcast %87 : vector<1x32xf32> to vector<32x32xf32>
    %94 = arith.addf %92, %93 : vector<32x32xf32>
    %cst_59 = arith.constant 0.000000e+00 : f32
    %95 = vector.broadcast %cst_59 : f32 to vector<32x32xf32>
    %96 = arith.maximumf %94, %95 : vector<32x32xf32>
    %97 = arith.addf %70, %96 : vector<32x32xf32>
    %cst_60 = arith.constant 5.000000e-01 : f32
    %98 = vector.broadcast %cst_60 : f32 to vector<32x32xf32>
    %99 = arith.mulf %97, %98 : vector<32x32xf32>
    %c6 = arith.constant 6 : index
    %c0_61 = arith.constant 0 : index
    %c0_62 = arith.constant 0 : index
    %100 = vector.load %arg4[%c6, %c0_61, %c0_62] : memref<12x32x64xf32, #tpu.memory_space<vmem>>, vector<1x32x64xf32>
    %101 = vector.shape_cast %100 : vector<1x32x64xf32> to vector<32x64xf32>
    %c6_63 = arith.constant 6 : index
    %c0_64 = arith.constant 0 : index
    %c0_65 = arith.constant 0 : index
    %102 = vector.load %arg5[%c6_63, %c0_64, %c0_65] : memref<12x1x32xf32, #tpu.memory_space<vmem>>, vector<1x1x32xf32>
    %103 = vector.shape_cast %102 : vector<1x1x32xf32> to vector<1x32xf32>
    %cst_66 = arith.constant dense<0.000000e+00> : vector<32x64xf32>
    %104 = tpu.matmul %99, %101, %cst_66 {dimension_numbers = #tpu.dot_dimension_numbers<[1], [0], [0], [1], [0, 0, 1, 1], [], []>} : vector<32x32xf32>, vector<32x64xf32>, vector<32x64xf32> -> vector<32x64xf32>
    %105 = vector.extract_strided_slice %104 {offsets = [0, 0], sizes = [32, 32], strides = [1, 1]} : vector<32x64xf32> to vector<32x32xf32>
    %cst_67 = arith.constant dense<0.000000e+00> : vector<32x32xf32>
    %106 = tpu.matmul %0, %105, %cst_67 {dimension_numbers = #tpu.dot_dimension_numbers<[1], [0], [0], [1], [0, 0, 1, 1], [], []>} : vector<32x32xf32>, vector<32x32xf32>, vector<32x32xf32> -> vector<32x32xf32>
    %107 = vector.extract_strided_slice %104 {offsets = [0, 32], sizes = [32, 32], strides = [1, 1]} : vector<32x64xf32> to vector<32x32xf32>
    %108 = arith.addf %106, %107 : vector<32x32xf32>
    %109 = vector.broadcast %103 : vector<1x32xf32> to vector<32x32xf32>
    %110 = arith.addf %108, %109 : vector<32x32xf32>
    %cst_68 = arith.constant 0.000000e+00 : f32
    %111 = vector.broadcast %cst_68 : f32 to vector<32x32xf32>
    %112 = arith.maximumf %110, %111 : vector<32x32xf32>
    %c7 = arith.constant 7 : index
    %c0_69 = arith.constant 0 : index
    %c0_70 = arith.constant 0 : index
    %113 = vector.load %arg4[%c7, %c0_69, %c0_70] : memref<12x32x64xf32, #tpu.memory_space<vmem>>, vector<1x32x64xf32>
    %114 = vector.shape_cast %113 : vector<1x32x64xf32> to vector<32x64xf32>
    %c7_71 = arith.constant 7 : index
    %c0_72 = arith.constant 0 : index
    %c0_73 = arith.constant 0 : index
    %115 = vector.load %arg5[%c7_71, %c0_72, %c0_73] : memref<12x1x32xf32, #tpu.memory_space<vmem>>, vector<1x1x32xf32>
    %116 = vector.shape_cast %115 : vector<1x1x32xf32> to vector<1x32xf32>
    %cst_74 = arith.constant dense<0.000000e+00> : vector<32x64xf32>
    %117 = tpu.matmul %112, %114, %cst_74 {dimension_numbers = #tpu.dot_dimension_numbers<[1], [0], [0], [1], [0, 0, 1, 1], [], []>} : vector<32x32xf32>, vector<32x64xf32>, vector<32x64xf32> -> vector<32x64xf32>
    %118 = vector.extract_strided_slice %117 {offsets = [0, 0], sizes = [32, 32], strides = [1, 1]} : vector<32x64xf32> to vector<32x32xf32>
    %cst_75 = arith.constant dense<0.000000e+00> : vector<32x32xf32>
    %119 = tpu.matmul %0, %118, %cst_75 {dimension_numbers = #tpu.dot_dimension_numbers<[1], [0], [0], [1], [0, 0, 1, 1], [], []>} : vector<32x32xf32>, vector<32x32xf32>, vector<32x32xf32> -> vector<32x32xf32>
    %120 = vector.extract_strided_slice %117 {offsets = [0, 32], sizes = [32, 32], strides = [1, 1]} : vector<32x64xf32> to vector<32x32xf32>
    %121 = arith.addf %119, %120 : vector<32x32xf32>
    %122 = vector.broadcast %116 : vector<1x32xf32> to vector<32x32xf32>
    %123 = arith.addf %121, %122 : vector<32x32xf32>
    %cst_76 = arith.constant 0.000000e+00 : f32
    %124 = vector.broadcast %cst_76 : f32 to vector<32x32xf32>
    %125 = arith.maximumf %123, %124 : vector<32x32xf32>
    %126 = arith.addf %99, %125 : vector<32x32xf32>
    %cst_77 = arith.constant 5.000000e-01 : f32
    %127 = vector.broadcast %cst_77 : f32 to vector<32x32xf32>
    %128 = arith.mulf %126, %127 : vector<32x32xf32>
    %c8 = arith.constant 8 : index
    %c0_78 = arith.constant 0 : index
    %c0_79 = arith.constant 0 : index
    %129 = vector.load %arg4[%c8, %c0_78, %c0_79] : memref<12x32x64xf32, #tpu.memory_space<vmem>>, vector<1x32x64xf32>
    %130 = vector.shape_cast %129 : vector<1x32x64xf32> to vector<32x64xf32>
    %c8_80 = arith.constant 8 : index
    %c0_81 = arith.constant 0 : index
    %c0_82 = arith.constant 0 : index
    %131 = vector.load %arg5[%c8_80, %c0_81, %c0_82] : memref<12x1x32xf32, #tpu.memory_space<vmem>>, vector<1x1x32xf32>
    %132 = vector.shape_cast %131 : vector<1x1x32xf32> to vector<1x32xf32>
    %cst_83 = arith.constant dense<0.000000e+00> : vector<32x64xf32>
    %133 = tpu.matmul %128, %130, %cst_83 {dimension_numbers = #tpu.dot_dimension_numbers<[1], [0], [0], [1], [0, 0, 1, 1], [], []>} : vector<32x32xf32>, vector<32x64xf32>, vector<32x64xf32> -> vector<32x64xf32>
    %134 = vector.extract_strided_slice %133 {offsets = [0, 0], sizes = [32, 32], strides = [1, 1]} : vector<32x64xf32> to vector<32x32xf32>
    %cst_84 = arith.constant dense<0.000000e+00> : vector<32x32xf32>
    %135 = tpu.matmul %0, %134, %cst_84 {dimension_numbers = #tpu.dot_dimension_numbers<[1], [0], [0], [1], [0, 0, 1, 1], [], []>} : vector<32x32xf32>, vector<32x32xf32>, vector<32x32xf32> -> vector<32x32xf32>
    %136 = vector.extract_strided_slice %133 {offsets = [0, 32], sizes = [32, 32], strides = [1, 1]} : vector<32x64xf32> to vector<32x32xf32>
    %137 = arith.addf %135, %136 : vector<32x32xf32>
    %138 = vector.broadcast %132 : vector<1x32xf32> to vector<32x32xf32>
    %139 = arith.addf %137, %138 : vector<32x32xf32>
    %cst_85 = arith.constant 0.000000e+00 : f32
    %140 = vector.broadcast %cst_85 : f32 to vector<32x32xf32>
    %141 = arith.maximumf %139, %140 : vector<32x32xf32>
    %c9 = arith.constant 9 : index
    %c0_86 = arith.constant 0 : index
    %c0_87 = arith.constant 0 : index
    %142 = vector.load %arg4[%c9, %c0_86, %c0_87] : memref<12x32x64xf32, #tpu.memory_space<vmem>>, vector<1x32x64xf32>
    %143 = vector.shape_cast %142 : vector<1x32x64xf32> to vector<32x64xf32>
    %c9_88 = arith.constant 9 : index
    %c0_89 = arith.constant 0 : index
    %c0_90 = arith.constant 0 : index
    %144 = vector.load %arg5[%c9_88, %c0_89, %c0_90] : memref<12x1x32xf32, #tpu.memory_space<vmem>>, vector<1x1x32xf32>
    %145 = vector.shape_cast %144 : vector<1x1x32xf32> to vector<1x32xf32>
    %cst_91 = arith.constant dense<0.000000e+00> : vector<32x64xf32>
    %146 = tpu.matmul %141, %143, %cst_91 {dimension_numbers = #tpu.dot_dimension_numbers<[1], [0], [0], [1], [0, 0, 1, 1], [], []>} : vector<32x32xf32>, vector<32x64xf32>, vector<32x64xf32> -> vector<32x64xf32>
    %147 = vector.extract_strided_slice %146 {offsets = [0, 0], sizes = [32, 32], strides = [1, 1]} : vector<32x64xf32> to vector<32x32xf32>
    %cst_92 = arith.constant dense<0.000000e+00> : vector<32x32xf32>
    %148 = tpu.matmul %0, %147, %cst_92 {dimension_numbers = #tpu.dot_dimension_numbers<[1], [0], [0], [1], [0, 0, 1, 1], [], []>} : vector<32x32xf32>, vector<32x32xf32>, vector<32x32xf32> -> vector<32x32xf32>
    %149 = vector.extract_strided_slice %146 {offsets = [0, 32], sizes = [32, 32], strides = [1, 1]} : vector<32x64xf32> to vector<32x32xf32>
    %150 = arith.addf %148, %149 : vector<32x32xf32>
    %151 = vector.broadcast %145 : vector<1x32xf32> to vector<32x32xf32>
    %152 = arith.addf %150, %151 : vector<32x32xf32>
    %cst_93 = arith.constant 0.000000e+00 : f32
    %153 = vector.broadcast %cst_93 : f32 to vector<32x32xf32>
    %154 = arith.maximumf %152, %153 : vector<32x32xf32>
    %155 = arith.addf %128, %154 : vector<32x32xf32>
    %cst_94 = arith.constant 5.000000e-01 : f32
    %156 = vector.broadcast %cst_94 : f32 to vector<32x32xf32>
    %157 = arith.mulf %155, %156 : vector<32x32xf32>
    %c10 = arith.constant 10 : index
    %c0_95 = arith.constant 0 : index
    %c0_96 = arith.constant 0 : index
    %158 = vector.load %arg4[%c10, %c0_95, %c0_96] : memref<12x32x64xf32, #tpu.memory_space<vmem>>, vector<1x32x64xf32>
    %159 = vector.shape_cast %158 : vector<1x32x64xf32> to vector<32x64xf32>
    %c10_97 = arith.constant 10 : index
    %c0_98 = arith.constant 0 : index
    %c0_99 = arith.constant 0 : index
    %160 = vector.load %arg5[%c10_97, %c0_98, %c0_99] : memref<12x1x32xf32, #tpu.memory_space<vmem>>, vector<1x1x32xf32>
    %161 = vector.shape_cast %160 : vector<1x1x32xf32> to vector<1x32xf32>
    %cst_100 = arith.constant dense<0.000000e+00> : vector<32x64xf32>
    %162 = tpu.matmul %157, %159, %cst_100 {dimension_numbers = #tpu.dot_dimension_numbers<[1], [0], [0], [1], [0, 0, 1, 1], [], []>} : vector<32x32xf32>, vector<32x64xf32>, vector<32x64xf32> -> vector<32x64xf32>
    %163 = vector.extract_strided_slice %162 {offsets = [0, 0], sizes = [32, 32], strides = [1, 1]} : vector<32x64xf32> to vector<32x32xf32>
    %cst_101 = arith.constant dense<0.000000e+00> : vector<32x32xf32>
    %164 = tpu.matmul %0, %163, %cst_101 {dimension_numbers = #tpu.dot_dimension_numbers<[1], [0], [0], [1], [0, 0, 1, 1], [], []>} : vector<32x32xf32>, vector<32x32xf32>, vector<32x32xf32> -> vector<32x32xf32>
    %165 = vector.extract_strided_slice %162 {offsets = [0, 32], sizes = [32, 32], strides = [1, 1]} : vector<32x64xf32> to vector<32x32xf32>
    %166 = arith.addf %164, %165 : vector<32x32xf32>
    %167 = vector.broadcast %161 : vector<1x32xf32> to vector<32x32xf32>
    %168 = arith.addf %166, %167 : vector<32x32xf32>
    %cst_102 = arith.constant 0.000000e+00 : f32
    %169 = vector.broadcast %cst_102 : f32 to vector<32x32xf32>
    %170 = arith.maximumf %168, %169 : vector<32x32xf32>
    %c11 = arith.constant 11 : index
    %c0_103 = arith.constant 0 : index
    %c0_104 = arith.constant 0 : index
    %171 = vector.load %arg4[%c11, %c0_103, %c0_104] : memref<12x32x64xf32, #tpu.memory_space<vmem>>, vector<1x32x64xf32>
    %172 = vector.shape_cast %171 : vector<1x32x64xf32> to vector<32x64xf32>
    %c11_105 = arith.constant 11 : index
    %c0_106 = arith.constant 0 : index
    %c0_107 = arith.constant 0 : index
    %173 = vector.load %arg5[%c11_105, %c0_106, %c0_107] : memref<12x1x32xf32, #tpu.memory_space<vmem>>, vector<1x1x32xf32>
    %174 = vector.shape_cast %173 : vector<1x1x32xf32> to vector<1x32xf32>
    %cst_108 = arith.constant dense<0.000000e+00> : vector<32x64xf32>
    %175 = tpu.matmul %170, %172, %cst_108 {dimension_numbers = #tpu.dot_dimension_numbers<[1], [0], [0], [1], [0, 0, 1, 1], [], []>} : vector<32x32xf32>, vector<32x64xf32>, vector<32x64xf32> -> vector<32x64xf32>
    %176 = vector.extract_strided_slice %175 {offsets = [0, 0], sizes = [32, 32], strides = [1, 1]} : vector<32x64xf32> to vector<32x32xf32>
    %cst_109 = arith.constant dense<0.000000e+00> : vector<32x32xf32>
    %177 = tpu.matmul %0, %176, %cst_109 {dimension_numbers = #tpu.dot_dimension_numbers<[1], [0], [0], [1], [0, 0, 1, 1], [], []>} : vector<32x32xf32>, vector<32x32xf32>, vector<32x32xf32> -> vector<32x32xf32>
    %178 = vector.extract_strided_slice %175 {offsets = [0, 32], sizes = [32, 32], strides = [1, 1]} : vector<32x64xf32> to vector<32x32xf32>
    %179 = arith.addf %177, %178 : vector<32x32xf32>
    %180 = vector.broadcast %174 : vector<1x32xf32> to vector<32x32xf32>
    %181 = arith.addf %179, %180 : vector<32x32xf32>
    %cst_110 = arith.constant 0.000000e+00 : f32
    %182 = vector.broadcast %cst_110 : f32 to vector<32x32xf32>
    %183 = arith.maximumf %181, %182 : vector<32x32xf32>
    %184 = arith.addf %157, %183 : vector<32x32xf32>
    %cst_111 = arith.constant 5.000000e-01 : f32
    %185 = vector.broadcast %cst_111 : f32 to vector<32x32xf32>
    %186 = arith.mulf %184, %185 : vector<32x32xf32>
    %c0_112 = arith.constant 0 : index
    %c0_113 = arith.constant 0 : index
    %187 = vector.load %arg8[%c0_112, %c0_113] : memref<32x32xf32, #tpu.memory_space<vmem>>, vector<32x32xf32>
    tpu.vector_store %arg8[%c0_112, %c0_113], %186 {strides = array<i32>} : memref<32x32xf32, #tpu.memory_space<vmem>>, vector<32x32xf32>,
    %c0_114 = arith.constant 0 : index
    %c0_115 = arith.constant 0 : index
    %188 = vector.load %arg6[%c0_114, %c0_115] : memref<32x256xf32, #tpu.memory_space<vmem>>, vector<32x256xf32>
    %c0_116 = arith.constant 0 : index
    %c0_117 = arith.constant 0 : index
    %189 = vector.load %arg7[%c0_116, %c0_117] : memref<1x128xf32, #tpu.memory_space<vmem>>, vector<1x128xf32>
    %cst_118 = arith.constant dense<0.000000e+00> : vector<32x256xf32>
    %190 = tpu.matmul %186, %188, %cst_118 {dimension_numbers = #tpu.dot_dimension_numbers<[1], [0], [0], [1], [0, 0, 1, 1], [], []>} : vector<32x32xf32>, vector<32x256xf32>, vector<32x256xf32> -> vector<32x256xf32>
    %191 = vector.extract_strided_slice %190 {offsets = [0, 0], sizes = [32, 128], strides = [1, 1]} : vector<32x256xf32> to vector<32x128xf32>
    %cst_119 = arith.constant dense<0.000000e+00> : vector<32x128xf32>
    %192 = tpu.matmul %0, %191, %cst_119 {dimension_numbers = #tpu.dot_dimension_numbers<[1], [0], [0], [1], [0, 0, 1, 1], [], []>} : vector<32x32xf32>, vector<32x128xf32>, vector<32x128xf32> -> vector<32x128xf32>
    %193 = vector.extract_strided_slice %190 {offsets = [0, 128], sizes = [32, 128], strides = [1, 1]} : vector<32x256xf32> to vector<32x128xf32>
    %194 = arith.addf %192, %193 : vector<32x128xf32>
    %195 = vector.broadcast %189 : vector<1x128xf32> to vector<32x128xf32>
    %196 = arith.addf %194, %195 : vector<32x128xf32>
    %c0_120 = arith.constant 0 : index
    %c0_121 = arith.constant 0 : index
    %197 = vector.load %arg9[%c0_120, %c0_121] : memref<32x128xf32, #tpu.memory_space<vmem>>, vector<32x128xf32>
    tpu.vector_store %arg9[%c0_120, %c0_121], %196 {strides = array<i32>} : memref<32x128xf32, #tpu.memory_space<vmem>>, vector<32x128xf32>,
    return
  }
}

module attributes {stable_mosaic.version = 11 : i64} {
  func.func @_gbottleneck_kernel(%arg0: memref<64x88xf32, #tpu.memory_space<vmem>>, %arg1: memref<64x64xf32, #tpu.memory_space<vmem>>, %arg2: memref<88x64xf32, #tpu.memory_space<vmem>>, %arg3: memref<1x32xf32, #tpu.memory_space<vmem>>, %arg4: memref<12x32x64xf32, #tpu.memory_space<vmem>>, %arg5: memref<12x1x32xf32, #tpu.memory_space<vmem>>, %arg6: memref<32x256xf32, #tpu.memory_space<vmem>>, %arg7: memref<1x128xf32, #tpu.memory_space<vmem>>, %arg8: memref<64x32xf32, #tpu.memory_space<vmem>>, %arg9: memref<64x128xf32, #tpu.memory_space<vmem>>) attributes {dimension_semantics = [], scalar_prefetch = 0 : i64, scratch_operands = 0 : i64, tpu.core_type = #tpu.core_type<tc>} {
    %c0 = arith.constant 0 : index
    %c0_0 = arith.constant 0 : index
    %0 = vector.load %arg1[%c0, %c0_0] : memref<64x64xf32, #tpu.memory_space<vmem>>, vector<64x64xf32>
    %c0_1 = arith.constant 0 : index
    %c0_2 = arith.constant 0 : index
    %1 = vector.load %arg0[%c0_1, %c0_2] : memref<64x88xf32, #tpu.memory_space<vmem>>, vector<64x88xf32>
    %c0_3 = arith.constant 0 : index
    %c0_4 = arith.constant 0 : index
    %2 = vector.load %arg2[%c0_3, %c0_4] : memref<88x64xf32, #tpu.memory_space<vmem>>, vector<88x64xf32>
    %c0_5 = arith.constant 0 : index
    %c0_6 = arith.constant 0 : index
    %3 = vector.load %arg3[%c0_5, %c0_6] : memref<1x32xf32, #tpu.memory_space<vmem>>, vector<1x32xf32>
    %cst = arith.constant dense<0.000000e+00> : vector<64x64xf32>
    %4 = tpu.matmul %1, %2, %cst {dimension_numbers = #tpu.dot_dimension_numbers<[1], [0], [0], [1], [0, 0, 1, 1], [], []>} : vector<64x88xf32>, vector<88x64xf32>, vector<64x64xf32> -> vector<64x64xf32>
    %5 = vector.extract_strided_slice %4 {offsets = [0, 0], sizes = [64, 32], strides = [1, 1]} : vector<64x64xf32> to vector<64x32xf32>
    %cst_7 = arith.constant dense<0.000000e+00> : vector<64x32xf32>
    %6 = tpu.matmul %0, %5, %cst_7 {dimension_numbers = #tpu.dot_dimension_numbers<[1], [0], [0], [1], [0, 0, 1, 1], [], []>} : vector<64x64xf32>, vector<64x32xf32>, vector<64x32xf32> -> vector<64x32xf32>
    %7 = vector.extract_strided_slice %4 {offsets = [0, 32], sizes = [64, 32], strides = [1, 1]} : vector<64x64xf32> to vector<64x32xf32>
    %8 = arith.addf %6, %7 : vector<64x32xf32>
    %9 = vector.broadcast %3 : vector<1x32xf32> to vector<64x32xf32>
    %10 = arith.addf %8, %9 : vector<64x32xf32>
    %cst_8 = arith.constant 0.000000e+00 : f32
    %11 = vector.broadcast %cst_8 : f32 to vector<64x32xf32>
    %12 = arith.maximumf %10, %11 : vector<64x32xf32>
    %c0_9 = arith.constant 0 : index
    %c0_10 = arith.constant 0 : index
    %c0_11 = arith.constant 0 : index
    %13 = vector.load %arg4[%c0_9, %c0_10, %c0_11] : memref<12x32x64xf32, #tpu.memory_space<vmem>>, vector<1x32x64xf32>
    %14 = vector.shape_cast %13 : vector<1x32x64xf32> to vector<32x64xf32>
    %c0_12 = arith.constant 0 : index
    %c0_13 = arith.constant 0 : index
    %c0_14 = arith.constant 0 : index
    %15 = vector.load %arg5[%c0_12, %c0_13, %c0_14] : memref<12x1x32xf32, #tpu.memory_space<vmem>>, vector<1x1x32xf32>
    %16 = vector.shape_cast %15 : vector<1x1x32xf32> to vector<1x32xf32>
    %cst_15 = arith.constant dense<0.000000e+00> : vector<64x64xf32>
    %17 = tpu.matmul %12, %14, %cst_15 {dimension_numbers = #tpu.dot_dimension_numbers<[1], [0], [0], [1], [0, 0, 1, 1], [], []>} : vector<64x32xf32>, vector<32x64xf32>, vector<64x64xf32> -> vector<64x64xf32>
    %18 = vector.extract_strided_slice %17 {offsets = [0, 0], sizes = [64, 32], strides = [1, 1]} : vector<64x64xf32> to vector<64x32xf32>
    %cst_16 = arith.constant dense<0.000000e+00> : vector<64x32xf32>
    %19 = tpu.matmul %0, %18, %cst_16 {dimension_numbers = #tpu.dot_dimension_numbers<[1], [0], [0], [1], [0, 0, 1, 1], [], []>} : vector<64x64xf32>, vector<64x32xf32>, vector<64x32xf32> -> vector<64x32xf32>
    %20 = vector.extract_strided_slice %17 {offsets = [0, 32], sizes = [64, 32], strides = [1, 1]} : vector<64x64xf32> to vector<64x32xf32>
    %21 = arith.addf %19, %20 : vector<64x32xf32>
    %22 = vector.broadcast %16 : vector<1x32xf32> to vector<64x32xf32>
    %23 = arith.addf %21, %22 : vector<64x32xf32>
    %cst_17 = arith.constant 0.000000e+00 : f32
    %24 = vector.broadcast %cst_17 : f32 to vector<64x32xf32>
    %25 = arith.maximumf %23, %24 : vector<64x32xf32>
    %c1 = arith.constant 1 : index
    %c0_18 = arith.constant 0 : index
    %c0_19 = arith.constant 0 : index
    %26 = vector.load %arg4[%c1, %c0_18, %c0_19] : memref<12x32x64xf32, #tpu.memory_space<vmem>>, vector<1x32x64xf32>
    %27 = vector.shape_cast %26 : vector<1x32x64xf32> to vector<32x64xf32>
    %c1_20 = arith.constant 1 : index
    %c0_21 = arith.constant 0 : index
    %c0_22 = arith.constant 0 : index
    %28 = vector.load %arg5[%c1_20, %c0_21, %c0_22] : memref<12x1x32xf32, #tpu.memory_space<vmem>>, vector<1x1x32xf32>
    %29 = vector.shape_cast %28 : vector<1x1x32xf32> to vector<1x32xf32>
    %cst_23 = arith.constant dense<0.000000e+00> : vector<64x64xf32>
    %30 = tpu.matmul %25, %27, %cst_23 {dimension_numbers = #tpu.dot_dimension_numbers<[1], [0], [0], [1], [0, 0, 1, 1], [], []>} : vector<64x32xf32>, vector<32x64xf32>, vector<64x64xf32> -> vector<64x64xf32>
    %31 = vector.extract_strided_slice %30 {offsets = [0, 0], sizes = [64, 32], strides = [1, 1]} : vector<64x64xf32> to vector<64x32xf32>
    %cst_24 = arith.constant dense<0.000000e+00> : vector<64x32xf32>
    %32 = tpu.matmul %0, %31, %cst_24 {dimension_numbers = #tpu.dot_dimension_numbers<[1], [0], [0], [1], [0, 0, 1, 1], [], []>} : vector<64x64xf32>, vector<64x32xf32>, vector<64x32xf32> -> vector<64x32xf32>
    %33 = vector.extract_strided_slice %30 {offsets = [0, 32], sizes = [64, 32], strides = [1, 1]} : vector<64x64xf32> to vector<64x32xf32>
    %34 = arith.addf %32, %33 : vector<64x32xf32>
    %35 = vector.broadcast %29 : vector<1x32xf32> to vector<64x32xf32>
    %36 = arith.addf %34, %35 : vector<64x32xf32>
    %cst_25 = arith.constant 0.000000e+00 : f32
    %37 = vector.broadcast %cst_25 : f32 to vector<64x32xf32>
    %38 = arith.maximumf %36, %37 : vector<64x32xf32>
    %39 = arith.addf %12, %38 : vector<64x32xf32>
    %cst_26 = arith.constant 5.000000e-01 : f32
    %40 = vector.broadcast %cst_26 : f32 to vector<64x32xf32>
    %41 = arith.mulf %39, %40 : vector<64x32xf32>
    %c2 = arith.constant 2 : index
    %c0_27 = arith.constant 0 : index
    %c0_28 = arith.constant 0 : index
    %42 = vector.load %arg4[%c2, %c0_27, %c0_28] : memref<12x32x64xf32, #tpu.memory_space<vmem>>, vector<1x32x64xf32>
    %43 = vector.shape_cast %42 : vector<1x32x64xf32> to vector<32x64xf32>
    %c2_29 = arith.constant 2 : index
    %c0_30 = arith.constant 0 : index
    %c0_31 = arith.constant 0 : index
    %44 = vector.load %arg5[%c2_29, %c0_30, %c0_31] : memref<12x1x32xf32, #tpu.memory_space<vmem>>, vector<1x1x32xf32>
    %45 = vector.shape_cast %44 : vector<1x1x32xf32> to vector<1x32xf32>
    %cst_32 = arith.constant dense<0.000000e+00> : vector<64x64xf32>
    %46 = tpu.matmul %41, %43, %cst_32 {dimension_numbers = #tpu.dot_dimension_numbers<[1], [0], [0], [1], [0, 0, 1, 1], [], []>} : vector<64x32xf32>, vector<32x64xf32>, vector<64x64xf32> -> vector<64x64xf32>
    %47 = vector.extract_strided_slice %46 {offsets = [0, 0], sizes = [64, 32], strides = [1, 1]} : vector<64x64xf32> to vector<64x32xf32>
    %cst_33 = arith.constant dense<0.000000e+00> : vector<64x32xf32>
    %48 = tpu.matmul %0, %47, %cst_33 {dimension_numbers = #tpu.dot_dimension_numbers<[1], [0], [0], [1], [0, 0, 1, 1], [], []>} : vector<64x64xf32>, vector<64x32xf32>, vector<64x32xf32> -> vector<64x32xf32>
    %49 = vector.extract_strided_slice %46 {offsets = [0, 32], sizes = [64, 32], strides = [1, 1]} : vector<64x64xf32> to vector<64x32xf32>
    %50 = arith.addf %48, %49 : vector<64x32xf32>
    %51 = vector.broadcast %45 : vector<1x32xf32> to vector<64x32xf32>
    %52 = arith.addf %50, %51 : vector<64x32xf32>
    %cst_34 = arith.constant 0.000000e+00 : f32
    %53 = vector.broadcast %cst_34 : f32 to vector<64x32xf32>
    %54 = arith.maximumf %52, %53 : vector<64x32xf32>
    %c3 = arith.constant 3 : index
    %c0_35 = arith.constant 0 : index
    %c0_36 = arith.constant 0 : index
    %55 = vector.load %arg4[%c3, %c0_35, %c0_36] : memref<12x32x64xf32, #tpu.memory_space<vmem>>, vector<1x32x64xf32>
    %56 = vector.shape_cast %55 : vector<1x32x64xf32> to vector<32x64xf32>
    %c3_37 = arith.constant 3 : index
    %c0_38 = arith.constant 0 : index
    %c0_39 = arith.constant 0 : index
    %57 = vector.load %arg5[%c3_37, %c0_38, %c0_39] : memref<12x1x32xf32, #tpu.memory_space<vmem>>, vector<1x1x32xf32>
    %58 = vector.shape_cast %57 : vector<1x1x32xf32> to vector<1x32xf32>
    %cst_40 = arith.constant dense<0.000000e+00> : vector<64x64xf32>
    %59 = tpu.matmul %54, %56, %cst_40 {dimension_numbers = #tpu.dot_dimension_numbers<[1], [0], [0], [1], [0, 0, 1, 1], [], []>} : vector<64x32xf32>, vector<32x64xf32>, vector<64x64xf32> -> vector<64x64xf32>
    %60 = vector.extract_strided_slice %59 {offsets = [0, 0], sizes = [64, 32], strides = [1, 1]} : vector<64x64xf32> to vector<64x32xf32>
    %cst_41 = arith.constant dense<0.000000e+00> : vector<64x32xf32>
    %61 = tpu.matmul %0, %60, %cst_41 {dimension_numbers = #tpu.dot_dimension_numbers<[1], [0], [0], [1], [0, 0, 1, 1], [], []>} : vector<64x64xf32>, vector<64x32xf32>, vector<64x32xf32> -> vector<64x32xf32>
    %62 = vector.extract_strided_slice %59 {offsets = [0, 32], sizes = [64, 32], strides = [1, 1]} : vector<64x64xf32> to vector<64x32xf32>
    %63 = arith.addf %61, %62 : vector<64x32xf32>
    %64 = vector.broadcast %58 : vector<1x32xf32> to vector<64x32xf32>
    %65 = arith.addf %63, %64 : vector<64x32xf32>
    %cst_42 = arith.constant 0.000000e+00 : f32
    %66 = vector.broadcast %cst_42 : f32 to vector<64x32xf32>
    %67 = arith.maximumf %65, %66 : vector<64x32xf32>
    %68 = arith.addf %41, %67 : vector<64x32xf32>
    %cst_43 = arith.constant 5.000000e-01 : f32
    %69 = vector.broadcast %cst_43 : f32 to vector<64x32xf32>
    %70 = arith.mulf %68, %69 : vector<64x32xf32>
    %c4 = arith.constant 4 : index
    %c0_44 = arith.constant 0 : index
    %c0_45 = arith.constant 0 : index
    %71 = vector.load %arg4[%c4, %c0_44, %c0_45] : memref<12x32x64xf32, #tpu.memory_space<vmem>>, vector<1x32x64xf32>
    %72 = vector.shape_cast %71 : vector<1x32x64xf32> to vector<32x64xf32>
    %c4_46 = arith.constant 4 : index
    %c0_47 = arith.constant 0 : index
    %c0_48 = arith.constant 0 : index
    %73 = vector.load %arg5[%c4_46, %c0_47, %c0_48] : memref<12x1x32xf32, #tpu.memory_space<vmem>>, vector<1x1x32xf32>
    %74 = vector.shape_cast %73 : vector<1x1x32xf32> to vector<1x32xf32>
    %cst_49 = arith.constant dense<0.000000e+00> : vector<64x64xf32>
    %75 = tpu.matmul %70, %72, %cst_49 {dimension_numbers = #tpu.dot_dimension_numbers<[1], [0], [0], [1], [0, 0, 1, 1], [], []>} : vector<64x32xf32>, vector<32x64xf32>, vector<64x64xf32> -> vector<64x64xf32>
    %76 = vector.extract_strided_slice %75 {offsets = [0, 0], sizes = [64, 32], strides = [1, 1]} : vector<64x64xf32> to vector<64x32xf32>
    %cst_50 = arith.constant dense<0.000000e+00> : vector<64x32xf32>
    %77 = tpu.matmul %0, %76, %cst_50 {dimension_numbers = #tpu.dot_dimension_numbers<[1], [0], [0], [1], [0, 0, 1, 1], [], []>} : vector<64x64xf32>, vector<64x32xf32>, vector<64x32xf32> -> vector<64x32xf32>
    %78 = vector.extract_strided_slice %75 {offsets = [0, 32], sizes = [64, 32], strides = [1, 1]} : vector<64x64xf32> to vector<64x32xf32>
    %79 = arith.addf %77, %78 : vector<64x32xf32>
    %80 = vector.broadcast %74 : vector<1x32xf32> to vector<64x32xf32>
    %81 = arith.addf %79, %80 : vector<64x32xf32>
    %cst_51 = arith.constant 0.000000e+00 : f32
    %82 = vector.broadcast %cst_51 : f32 to vector<64x32xf32>
    %83 = arith.maximumf %81, %82 : vector<64x32xf32>
    %c5 = arith.constant 5 : index
    %c0_52 = arith.constant 0 : index
    %c0_53 = arith.constant 0 : index
    %84 = vector.load %arg4[%c5, %c0_52, %c0_53] : memref<12x32x64xf32, #tpu.memory_space<vmem>>, vector<1x32x64xf32>
    %85 = vector.shape_cast %84 : vector<1x32x64xf32> to vector<32x64xf32>
    %c5_54 = arith.constant 5 : index
    %c0_55 = arith.constant 0 : index
    %c0_56 = arith.constant 0 : index
    %86 = vector.load %arg5[%c5_54, %c0_55, %c0_56] : memref<12x1x32xf32, #tpu.memory_space<vmem>>, vector<1x1x32xf32>
    %87 = vector.shape_cast %86 : vector<1x1x32xf32> to vector<1x32xf32>
    %cst_57 = arith.constant dense<0.000000e+00> : vector<64x64xf32>
    %88 = tpu.matmul %83, %85, %cst_57 {dimension_numbers = #tpu.dot_dimension_numbers<[1], [0], [0], [1], [0, 0, 1, 1], [], []>} : vector<64x32xf32>, vector<32x64xf32>, vector<64x64xf32> -> vector<64x64xf32>
    %89 = vector.extract_strided_slice %88 {offsets = [0, 0], sizes = [64, 32], strides = [1, 1]} : vector<64x64xf32> to vector<64x32xf32>
    %cst_58 = arith.constant dense<0.000000e+00> : vector<64x32xf32>
    %90 = tpu.matmul %0, %89, %cst_58 {dimension_numbers = #tpu.dot_dimension_numbers<[1], [0], [0], [1], [0, 0, 1, 1], [], []>} : vector<64x64xf32>, vector<64x32xf32>, vector<64x32xf32> -> vector<64x32xf32>
    %91 = vector.extract_strided_slice %88 {offsets = [0, 32], sizes = [64, 32], strides = [1, 1]} : vector<64x64xf32> to vector<64x32xf32>
    %92 = arith.addf %90, %91 : vector<64x32xf32>
    %93 = vector.broadcast %87 : vector<1x32xf32> to vector<64x32xf32>
    %94 = arith.addf %92, %93 : vector<64x32xf32>
    %cst_59 = arith.constant 0.000000e+00 : f32
    %95 = vector.broadcast %cst_59 : f32 to vector<64x32xf32>
    %96 = arith.maximumf %94, %95 : vector<64x32xf32>
    %97 = arith.addf %70, %96 : vector<64x32xf32>
    %cst_60 = arith.constant 5.000000e-01 : f32
    %98 = vector.broadcast %cst_60 : f32 to vector<64x32xf32>
    %99 = arith.mulf %97, %98 : vector<64x32xf32>
    %c6 = arith.constant 6 : index
    %c0_61 = arith.constant 0 : index
    %c0_62 = arith.constant 0 : index
    %100 = vector.load %arg4[%c6, %c0_61, %c0_62] : memref<12x32x64xf32, #tpu.memory_space<vmem>>, vector<1x32x64xf32>
    %101 = vector.shape_cast %100 : vector<1x32x64xf32> to vector<32x64xf32>
    %c6_63 = arith.constant 6 : index
    %c0_64 = arith.constant 0 : index
    %c0_65 = arith.constant 0 : index
    %102 = vector.load %arg5[%c6_63, %c0_64, %c0_65] : memref<12x1x32xf32, #tpu.memory_space<vmem>>, vector<1x1x32xf32>
    %103 = vector.shape_cast %102 : vector<1x1x32xf32> to vector<1x32xf32>
    %cst_66 = arith.constant dense<0.000000e+00> : vector<64x64xf32>
    %104 = tpu.matmul %99, %101, %cst_66 {dimension_numbers = #tpu.dot_dimension_numbers<[1], [0], [0], [1], [0, 0, 1, 1], [], []>} : vector<64x32xf32>, vector<32x64xf32>, vector<64x64xf32> -> vector<64x64xf32>
    %105 = vector.extract_strided_slice %104 {offsets = [0, 0], sizes = [64, 32], strides = [1, 1]} : vector<64x64xf32> to vector<64x32xf32>
    %cst_67 = arith.constant dense<0.000000e+00> : vector<64x32xf32>
    %106 = tpu.matmul %0, %105, %cst_67 {dimension_numbers = #tpu.dot_dimension_numbers<[1], [0], [0], [1], [0, 0, 1, 1], [], []>} : vector<64x64xf32>, vector<64x32xf32>, vector<64x32xf32> -> vector<64x32xf32>
    %107 = vector.extract_strided_slice %104 {offsets = [0, 32], sizes = [64, 32], strides = [1, 1]} : vector<64x64xf32> to vector<64x32xf32>
    %108 = arith.addf %106, %107 : vector<64x32xf32>
    %109 = vector.broadcast %103 : vector<1x32xf32> to vector<64x32xf32>
    %110 = arith.addf %108, %109 : vector<64x32xf32>
    %cst_68 = arith.constant 0.000000e+00 : f32
    %111 = vector.broadcast %cst_68 : f32 to vector<64x32xf32>
    %112 = arith.maximumf %110, %111 : vector<64x32xf32>
    %c7 = arith.constant 7 : index
    %c0_69 = arith.constant 0 : index
    %c0_70 = arith.constant 0 : index
    %113 = vector.load %arg4[%c7, %c0_69, %c0_70] : memref<12x32x64xf32, #tpu.memory_space<vmem>>, vector<1x32x64xf32>
    %114 = vector.shape_cast %113 : vector<1x32x64xf32> to vector<32x64xf32>
    %c7_71 = arith.constant 7 : index
    %c0_72 = arith.constant 0 : index
    %c0_73 = arith.constant 0 : index
    %115 = vector.load %arg5[%c7_71, %c0_72, %c0_73] : memref<12x1x32xf32, #tpu.memory_space<vmem>>, vector<1x1x32xf32>
    %116 = vector.shape_cast %115 : vector<1x1x32xf32> to vector<1x32xf32>
    %cst_74 = arith.constant dense<0.000000e+00> : vector<64x64xf32>
    %117 = tpu.matmul %112, %114, %cst_74 {dimension_numbers = #tpu.dot_dimension_numbers<[1], [0], [0], [1], [0, 0, 1, 1], [], []>} : vector<64x32xf32>, vector<32x64xf32>, vector<64x64xf32> -> vector<64x64xf32>
    %118 = vector.extract_strided_slice %117 {offsets = [0, 0], sizes = [64, 32], strides = [1, 1]} : vector<64x64xf32> to vector<64x32xf32>
    %cst_75 = arith.constant dense<0.000000e+00> : vector<64x32xf32>
    %119 = tpu.matmul %0, %118, %cst_75 {dimension_numbers = #tpu.dot_dimension_numbers<[1], [0], [0], [1], [0, 0, 1, 1], [], []>} : vector<64x64xf32>, vector<64x32xf32>, vector<64x32xf32> -> vector<64x32xf32>
    %120 = vector.extract_strided_slice %117 {offsets = [0, 32], sizes = [64, 32], strides = [1, 1]} : vector<64x64xf32> to vector<64x32xf32>
    %121 = arith.addf %119, %120 : vector<64x32xf32>
    %122 = vector.broadcast %116 : vector<1x32xf32> to vector<64x32xf32>
    %123 = arith.addf %121, %122 : vector<64x32xf32>
    %cst_76 = arith.constant 0.000000e+00 : f32
    %124 = vector.broadcast %cst_76 : f32 to vector<64x32xf32>
    %125 = arith.maximumf %123, %124 : vector<64x32xf32>
    %126 = arith.addf %99, %125 : vector<64x32xf32>
    %cst_77 = arith.constant 5.000000e-01 : f32
    %127 = vector.broadcast %cst_77 : f32 to vector<64x32xf32>
    %128 = arith.mulf %126, %127 : vector<64x32xf32>
    %c8 = arith.constant 8 : index
    %c0_78 = arith.constant 0 : index
    %c0_79 = arith.constant 0 : index
    %129 = vector.load %arg4[%c8, %c0_78, %c0_79] : memref<12x32x64xf32, #tpu.memory_space<vmem>>, vector<1x32x64xf32>
    %130 = vector.shape_cast %129 : vector<1x32x64xf32> to vector<32x64xf32>
    %c8_80 = arith.constant 8 : index
    %c0_81 = arith.constant 0 : index
    %c0_82 = arith.constant 0 : index
    %131 = vector.load %arg5[%c8_80, %c0_81, %c0_82] : memref<12x1x32xf32, #tpu.memory_space<vmem>>, vector<1x1x32xf32>
    %132 = vector.shape_cast %131 : vector<1x1x32xf32> to vector<1x32xf32>
    %cst_83 = arith.constant dense<0.000000e+00> : vector<64x64xf32>
    %133 = tpu.matmul %128, %130, %cst_83 {dimension_numbers = #tpu.dot_dimension_numbers<[1], [0], [0], [1], [0, 0, 1, 1], [], []>} : vector<64x32xf32>, vector<32x64xf32>, vector<64x64xf32> -> vector<64x64xf32>
    %134 = vector.extract_strided_slice %133 {offsets = [0, 0], sizes = [64, 32], strides = [1, 1]} : vector<64x64xf32> to vector<64x32xf32>
    %cst_84 = arith.constant dense<0.000000e+00> : vector<64x32xf32>
    %135 = tpu.matmul %0, %134, %cst_84 {dimension_numbers = #tpu.dot_dimension_numbers<[1], [0], [0], [1], [0, 0, 1, 1], [], []>} : vector<64x64xf32>, vector<64x32xf32>, vector<64x32xf32> -> vector<64x32xf32>
    %136 = vector.extract_strided_slice %133 {offsets = [0, 32], sizes = [64, 32], strides = [1, 1]} : vector<64x64xf32> to vector<64x32xf32>
    %137 = arith.addf %135, %136 : vector<64x32xf32>
    %138 = vector.broadcast %132 : vector<1x32xf32> to vector<64x32xf32>
    %139 = arith.addf %137, %138 : vector<64x32xf32>
    %cst_85 = arith.constant 0.000000e+00 : f32
    %140 = vector.broadcast %cst_85 : f32 to vector<64x32xf32>
    %141 = arith.maximumf %139, %140 : vector<64x32xf32>
    %c9 = arith.constant 9 : index
    %c0_86 = arith.constant 0 : index
    %c0_87 = arith.constant 0 : index
    %142 = vector.load %arg4[%c9, %c0_86, %c0_87] : memref<12x32x64xf32, #tpu.memory_space<vmem>>, vector<1x32x64xf32>
    %143 = vector.shape_cast %142 : vector<1x32x64xf32> to vector<32x64xf32>
    %c9_88 = arith.constant 9 : index
    %c0_89 = arith.constant 0 : index
    %c0_90 = arith.constant 0 : index
    %144 = vector.load %arg5[%c9_88, %c0_89, %c0_90] : memref<12x1x32xf32, #tpu.memory_space<vmem>>, vector<1x1x32xf32>
    %145 = vector.shape_cast %144 : vector<1x1x32xf32> to vector<1x32xf32>
    %cst_91 = arith.constant dense<0.000000e+00> : vector<64x64xf32>
    %146 = tpu.matmul %141, %143, %cst_91 {dimension_numbers = #tpu.dot_dimension_numbers<[1], [0], [0], [1], [0, 0, 1, 1], [], []>} : vector<64x32xf32>, vector<32x64xf32>, vector<64x64xf32> -> vector<64x64xf32>
    %147 = vector.extract_strided_slice %146 {offsets = [0, 0], sizes = [64, 32], strides = [1, 1]} : vector<64x64xf32> to vector<64x32xf32>
    %cst_92 = arith.constant dense<0.000000e+00> : vector<64x32xf32>
    %148 = tpu.matmul %0, %147, %cst_92 {dimension_numbers = #tpu.dot_dimension_numbers<[1], [0], [0], [1], [0, 0, 1, 1], [], []>} : vector<64x64xf32>, vector<64x32xf32>, vector<64x32xf32> -> vector<64x32xf32>
    %149 = vector.extract_strided_slice %146 {offsets = [0, 32], sizes = [64, 32], strides = [1, 1]} : vector<64x64xf32> to vector<64x32xf32>
    %150 = arith.addf %148, %149 : vector<64x32xf32>
    %151 = vector.broadcast %145 : vector<1x32xf32> to vector<64x32xf32>
    %152 = arith.addf %150, %151 : vector<64x32xf32>
    %cst_93 = arith.constant 0.000000e+00 : f32
    %153 = vector.broadcast %cst_93 : f32 to vector<64x32xf32>
    %154 = arith.maximumf %152, %153 : vector<64x32xf32>
    %155 = arith.addf %128, %154 : vector<64x32xf32>
    %cst_94 = arith.constant 5.000000e-01 : f32
    %156 = vector.broadcast %cst_94 : f32 to vector<64x32xf32>
    %157 = arith.mulf %155, %156 : vector<64x32xf32>
    %c10 = arith.constant 10 : index
    %c0_95 = arith.constant 0 : index
    %c0_96 = arith.constant 0 : index
    %158 = vector.load %arg4[%c10, %c0_95, %c0_96] : memref<12x32x64xf32, #tpu.memory_space<vmem>>, vector<1x32x64xf32>
    %159 = vector.shape_cast %158 : vector<1x32x64xf32> to vector<32x64xf32>
    %c10_97 = arith.constant 10 : index
    %c0_98 = arith.constant 0 : index
    %c0_99 = arith.constant 0 : index
    %160 = vector.load %arg5[%c10_97, %c0_98, %c0_99] : memref<12x1x32xf32, #tpu.memory_space<vmem>>, vector<1x1x32xf32>
    %161 = vector.shape_cast %160 : vector<1x1x32xf32> to vector<1x32xf32>
    %cst_100 = arith.constant dense<0.000000e+00> : vector<64x64xf32>
    %162 = tpu.matmul %157, %159, %cst_100 {dimension_numbers = #tpu.dot_dimension_numbers<[1], [0], [0], [1], [0, 0, 1, 1], [], []>} : vector<64x32xf32>, vector<32x64xf32>, vector<64x64xf32> -> vector<64x64xf32>
    %163 = vector.extract_strided_slice %162 {offsets = [0, 0], sizes = [64, 32], strides = [1, 1]} : vector<64x64xf32> to vector<64x32xf32>
    %cst_101 = arith.constant dense<0.000000e+00> : vector<64x32xf32>
    %164 = tpu.matmul %0, %163, %cst_101 {dimension_numbers = #tpu.dot_dimension_numbers<[1], [0], [0], [1], [0, 0, 1, 1], [], []>} : vector<64x64xf32>, vector<64x32xf32>, vector<64x32xf32> -> vector<64x32xf32>
    %165 = vector.extract_strided_slice %162 {offsets = [0, 32], sizes = [64, 32], strides = [1, 1]} : vector<64x64xf32> to vector<64x32xf32>
    %166 = arith.addf %164, %165 : vector<64x32xf32>
    %167 = vector.broadcast %161 : vector<1x32xf32> to vector<64x32xf32>
    %168 = arith.addf %166, %167 : vector<64x32xf32>
    %cst_102 = arith.constant 0.000000e+00 : f32
    %169 = vector.broadcast %cst_102 : f32 to vector<64x32xf32>
    %170 = arith.maximumf %168, %169 : vector<64x32xf32>
    %c11 = arith.constant 11 : index
    %c0_103 = arith.constant 0 : index
    %c0_104 = arith.constant 0 : index
    %171 = vector.load %arg4[%c11, %c0_103, %c0_104] : memref<12x32x64xf32, #tpu.memory_space<vmem>>, vector<1x32x64xf32>
    %172 = vector.shape_cast %171 : vector<1x32x64xf32> to vector<32x64xf32>
    %c11_105 = arith.constant 11 : index
    %c0_106 = arith.constant 0 : index
    %c0_107 = arith.constant 0 : index
    %173 = vector.load %arg5[%c11_105, %c0_106, %c0_107] : memref<12x1x32xf32, #tpu.memory_space<vmem>>, vector<1x1x32xf32>
    %174 = vector.shape_cast %173 : vector<1x1x32xf32> to vector<1x32xf32>
    %cst_108 = arith.constant dense<0.000000e+00> : vector<64x64xf32>
    %175 = tpu.matmul %170, %172, %cst_108 {dimension_numbers = #tpu.dot_dimension_numbers<[1], [0], [0], [1], [0, 0, 1, 1], [], []>} : vector<64x32xf32>, vector<32x64xf32>, vector<64x64xf32> -> vector<64x64xf32>
    %176 = vector.extract_strided_slice %175 {offsets = [0, 0], sizes = [64, 32], strides = [1, 1]} : vector<64x64xf32> to vector<64x32xf32>
    %cst_109 = arith.constant dense<0.000000e+00> : vector<64x32xf32>
    %177 = tpu.matmul %0, %176, %cst_109 {dimension_numbers = #tpu.dot_dimension_numbers<[1], [0], [0], [1], [0, 0, 1, 1], [], []>} : vector<64x64xf32>, vector<64x32xf32>, vector<64x32xf32> -> vector<64x32xf32>
    %178 = vector.extract_strided_slice %175 {offsets = [0, 32], sizes = [64, 32], strides = [1, 1]} : vector<64x64xf32> to vector<64x32xf32>
    %179 = arith.addf %177, %178 : vector<64x32xf32>
    %180 = vector.broadcast %174 : vector<1x32xf32> to vector<64x32xf32>
    %181 = arith.addf %179, %180 : vector<64x32xf32>
    %cst_110 = arith.constant 0.000000e+00 : f32
    %182 = vector.broadcast %cst_110 : f32 to vector<64x32xf32>
    %183 = arith.maximumf %181, %182 : vector<64x32xf32>
    %184 = arith.addf %157, %183 : vector<64x32xf32>
    %cst_111 = arith.constant 5.000000e-01 : f32
    %185 = vector.broadcast %cst_111 : f32 to vector<64x32xf32>
    %186 = arith.mulf %184, %185 : vector<64x32xf32>
    %c0_112 = arith.constant 0 : index
    %c0_113 = arith.constant 0 : index
    %187 = vector.load %arg8[%c0_112, %c0_113] : memref<64x32xf32, #tpu.memory_space<vmem>>, vector<64x32xf32>
    tpu.vector_store %arg8[%c0_112, %c0_113], %186 {strides = array<i32>} : memref<64x32xf32, #tpu.memory_space<vmem>>, vector<64x32xf32>,
    %c0_114 = arith.constant 0 : index
    %c0_115 = arith.constant 0 : index
    %188 = vector.load %arg6[%c0_114, %c0_115] : memref<32x256xf32, #tpu.memory_space<vmem>>, vector<32x256xf32>
    %c0_116 = arith.constant 0 : index
    %c0_117 = arith.constant 0 : index
    %189 = vector.load %arg7[%c0_116, %c0_117] : memref<1x128xf32, #tpu.memory_space<vmem>>, vector<1x128xf32>
    %cst_118 = arith.constant dense<0.000000e+00> : vector<64x256xf32>
    %190 = tpu.matmul %186, %188, %cst_118 {dimension_numbers = #tpu.dot_dimension_numbers<[1], [0], [0], [1], [0, 0, 1, 1], [], []>} : vector<64x32xf32>, vector<32x256xf32>, vector<64x256xf32> -> vector<64x256xf32>
    %191 = vector.extract_strided_slice %190 {offsets = [0, 0], sizes = [64, 128], strides = [1, 1]} : vector<64x256xf32> to vector<64x128xf32>
    %cst_119 = arith.constant dense<0.000000e+00> : vector<64x128xf32>
    %192 = tpu.matmul %0, %191, %cst_119 {dimension_numbers = #tpu.dot_dimension_numbers<[1], [0], [0], [1], [0, 0, 1, 1], [], []>} : vector<64x64xf32>, vector<64x128xf32>, vector<64x128xf32> -> vector<64x128xf32>
    %193 = vector.extract_strided_slice %190 {offsets = [0, 128], sizes = [64, 128], strides = [1, 1]} : vector<64x256xf32> to vector<64x128xf32>
    %194 = arith.addf %192, %193 : vector<64x128xf32>
    %195 = vector.broadcast %189 : vector<1x128xf32> to vector<64x128xf32>
    %196 = arith.addf %194, %195 : vector<64x128xf32>
    %c0_120 = arith.constant 0 : index
    %c0_121 = arith.constant 0 : index
    %197 = vector.load %arg9[%c0_120, %c0_121] : memref<64x128xf32, #tpu.memory_space<vmem>>, vector<64x128xf32>
    tpu.vector_store %arg9[%c0_120, %c0_121], %196 {strides = array<i32>} : memref<64x128xf32, #tpu.memory_space<vmem>>, vector<64x128xf32>,
    return
  }
}

module attributes {stable_mosaic.version = 11 : i64} {
  func.func @_gbottleneck_kernel(%arg0: memref<96x88xf32, #tpu.memory_space<vmem>>, %arg1: memref<96x96xf32, #tpu.memory_space<vmem>>, %arg2: memref<88x64xf32, #tpu.memory_space<vmem>>, %arg3: memref<1x32xf32, #tpu.memory_space<vmem>>, %arg4: memref<12x32x64xf32, #tpu.memory_space<vmem>>, %arg5: memref<12x1x32xf32, #tpu.memory_space<vmem>>, %arg6: memref<32x256xf32, #tpu.memory_space<vmem>>, %arg7: memref<1x128xf32, #tpu.memory_space<vmem>>, %arg8: memref<96x32xf32, #tpu.memory_space<vmem>>, %arg9: memref<96x128xf32, #tpu.memory_space<vmem>>) attributes {dimension_semantics = [], scalar_prefetch = 0 : i64, scratch_operands = 0 : i64, tpu.core_type = #tpu.core_type<tc>} {
    %c0 = arith.constant 0 : index
    %c0_0 = arith.constant 0 : index
    %0 = vector.load %arg1[%c0, %c0_0] : memref<96x96xf32, #tpu.memory_space<vmem>>, vector<96x96xf32>
    %c0_1 = arith.constant 0 : index
    %c0_2 = arith.constant 0 : index
    %1 = vector.load %arg0[%c0_1, %c0_2] : memref<96x88xf32, #tpu.memory_space<vmem>>, vector<96x88xf32>
    %c0_3 = arith.constant 0 : index
    %c0_4 = arith.constant 0 : index
    %2 = vector.load %arg2[%c0_3, %c0_4] : memref<88x64xf32, #tpu.memory_space<vmem>>, vector<88x64xf32>
    %c0_5 = arith.constant 0 : index
    %c0_6 = arith.constant 0 : index
    %3 = vector.load %arg3[%c0_5, %c0_6] : memref<1x32xf32, #tpu.memory_space<vmem>>, vector<1x32xf32>
    %cst = arith.constant dense<0.000000e+00> : vector<96x64xf32>
    %4 = tpu.matmul %1, %2, %cst {dimension_numbers = #tpu.dot_dimension_numbers<[1], [0], [0], [1], [0, 0, 1, 1], [], []>} : vector<96x88xf32>, vector<88x64xf32>, vector<96x64xf32> -> vector<96x64xf32>
    %5 = vector.extract_strided_slice %4 {offsets = [0, 0], sizes = [96, 32], strides = [1, 1]} : vector<96x64xf32> to vector<96x32xf32>
    %cst_7 = arith.constant dense<0.000000e+00> : vector<96x32xf32>
    %6 = tpu.matmul %0, %5, %cst_7 {dimension_numbers = #tpu.dot_dimension_numbers<[1], [0], [0], [1], [0, 0, 1, 1], [], []>} : vector<96x96xf32>, vector<96x32xf32>, vector<96x32xf32> -> vector<96x32xf32>
    %7 = vector.extract_strided_slice %4 {offsets = [0, 32], sizes = [96, 32], strides = [1, 1]} : vector<96x64xf32> to vector<96x32xf32>
    %8 = arith.addf %6, %7 : vector<96x32xf32>
    %9 = vector.broadcast %3 : vector<1x32xf32> to vector<96x32xf32>
    %10 = arith.addf %8, %9 : vector<96x32xf32>
    %cst_8 = arith.constant 0.000000e+00 : f32
    %11 = vector.broadcast %cst_8 : f32 to vector<96x32xf32>
    %12 = arith.maximumf %10, %11 : vector<96x32xf32>
    %c0_9 = arith.constant 0 : index
    %c0_10 = arith.constant 0 : index
    %c0_11 = arith.constant 0 : index
    %13 = vector.load %arg4[%c0_9, %c0_10, %c0_11] : memref<12x32x64xf32, #tpu.memory_space<vmem>>, vector<1x32x64xf32>
    %14 = vector.shape_cast %13 : vector<1x32x64xf32> to vector<32x64xf32>
    %c0_12 = arith.constant 0 : index
    %c0_13 = arith.constant 0 : index
    %c0_14 = arith.constant 0 : index
    %15 = vector.load %arg5[%c0_12, %c0_13, %c0_14] : memref<12x1x32xf32, #tpu.memory_space<vmem>>, vector<1x1x32xf32>
    %16 = vector.shape_cast %15 : vector<1x1x32xf32> to vector<1x32xf32>
    %cst_15 = arith.constant dense<0.000000e+00> : vector<96x64xf32>
    %17 = tpu.matmul %12, %14, %cst_15 {dimension_numbers = #tpu.dot_dimension_numbers<[1], [0], [0], [1], [0, 0, 1, 1], [], []>} : vector<96x32xf32>, vector<32x64xf32>, vector<96x64xf32> -> vector<96x64xf32>
    %18 = vector.extract_strided_slice %17 {offsets = [0, 0], sizes = [96, 32], strides = [1, 1]} : vector<96x64xf32> to vector<96x32xf32>
    %cst_16 = arith.constant dense<0.000000e+00> : vector<96x32xf32>
    %19 = tpu.matmul %0, %18, %cst_16 {dimension_numbers = #tpu.dot_dimension_numbers<[1], [0], [0], [1], [0, 0, 1, 1], [], []>} : vector<96x96xf32>, vector<96x32xf32>, vector<96x32xf32> -> vector<96x32xf32>
    %20 = vector.extract_strided_slice %17 {offsets = [0, 32], sizes = [96, 32], strides = [1, 1]} : vector<96x64xf32> to vector<96x32xf32>
    %21 = arith.addf %19, %20 : vector<96x32xf32>
    %22 = vector.broadcast %16 : vector<1x32xf32> to vector<96x32xf32>
    %23 = arith.addf %21, %22 : vector<96x32xf32>
    %cst_17 = arith.constant 0.000000e+00 : f32
    %24 = vector.broadcast %cst_17 : f32 to vector<96x32xf32>
    %25 = arith.maximumf %23, %24 : vector<96x32xf32>
    %c1 = arith.constant 1 : index
    %c0_18 = arith.constant 0 : index
    %c0_19 = arith.constant 0 : index
    %26 = vector.load %arg4[%c1, %c0_18, %c0_19] : memref<12x32x64xf32, #tpu.memory_space<vmem>>, vector<1x32x64xf32>
    %27 = vector.shape_cast %26 : vector<1x32x64xf32> to vector<32x64xf32>
    %c1_20 = arith.constant 1 : index
    %c0_21 = arith.constant 0 : index
    %c0_22 = arith.constant 0 : index
    %28 = vector.load %arg5[%c1_20, %c0_21, %c0_22] : memref<12x1x32xf32, #tpu.memory_space<vmem>>, vector<1x1x32xf32>
    %29 = vector.shape_cast %28 : vector<1x1x32xf32> to vector<1x32xf32>
    %cst_23 = arith.constant dense<0.000000e+00> : vector<96x64xf32>
    %30 = tpu.matmul %25, %27, %cst_23 {dimension_numbers = #tpu.dot_dimension_numbers<[1], [0], [0], [1], [0, 0, 1, 1], [], []>} : vector<96x32xf32>, vector<32x64xf32>, vector<96x64xf32> -> vector<96x64xf32>
    %31 = vector.extract_strided_slice %30 {offsets = [0, 0], sizes = [96, 32], strides = [1, 1]} : vector<96x64xf32> to vector<96x32xf32>
    %cst_24 = arith.constant dense<0.000000e+00> : vector<96x32xf32>
    %32 = tpu.matmul %0, %31, %cst_24 {dimension_numbers = #tpu.dot_dimension_numbers<[1], [0], [0], [1], [0, 0, 1, 1], [], []>} : vector<96x96xf32>, vector<96x32xf32>, vector<96x32xf32> -> vector<96x32xf32>
    %33 = vector.extract_strided_slice %30 {offsets = [0, 32], sizes = [96, 32], strides = [1, 1]} : vector<96x64xf32> to vector<96x32xf32>
    %34 = arith.addf %32, %33 : vector<96x32xf32>
    %35 = vector.broadcast %29 : vector<1x32xf32> to vector<96x32xf32>
    %36 = arith.addf %34, %35 : vector<96x32xf32>
    %cst_25 = arith.constant 0.000000e+00 : f32
    %37 = vector.broadcast %cst_25 : f32 to vector<96x32xf32>
    %38 = arith.maximumf %36, %37 : vector<96x32xf32>
    %39 = arith.addf %12, %38 : vector<96x32xf32>
    %cst_26 = arith.constant 5.000000e-01 : f32
    %40 = vector.broadcast %cst_26 : f32 to vector<96x32xf32>
    %41 = arith.mulf %39, %40 : vector<96x32xf32>
    %c2 = arith.constant 2 : index
    %c0_27 = arith.constant 0 : index
    %c0_28 = arith.constant 0 : index
    %42 = vector.load %arg4[%c2, %c0_27, %c0_28] : memref<12x32x64xf32, #tpu.memory_space<vmem>>, vector<1x32x64xf32>
    %43 = vector.shape_cast %42 : vector<1x32x64xf32> to vector<32x64xf32>
    %c2_29 = arith.constant 2 : index
    %c0_30 = arith.constant 0 : index
    %c0_31 = arith.constant 0 : index
    %44 = vector.load %arg5[%c2_29, %c0_30, %c0_31] : memref<12x1x32xf32, #tpu.memory_space<vmem>>, vector<1x1x32xf32>
    %45 = vector.shape_cast %44 : vector<1x1x32xf32> to vector<1x32xf32>
    %cst_32 = arith.constant dense<0.000000e+00> : vector<96x64xf32>
    %46 = tpu.matmul %41, %43, %cst_32 {dimension_numbers = #tpu.dot_dimension_numbers<[1], [0], [0], [1], [0, 0, 1, 1], [], []>} : vector<96x32xf32>, vector<32x64xf32>, vector<96x64xf32> -> vector<96x64xf32>
    %47 = vector.extract_strided_slice %46 {offsets = [0, 0], sizes = [96, 32], strides = [1, 1]} : vector<96x64xf32> to vector<96x32xf32>
    %cst_33 = arith.constant dense<0.000000e+00> : vector<96x32xf32>
    %48 = tpu.matmul %0, %47, %cst_33 {dimension_numbers = #tpu.dot_dimension_numbers<[1], [0], [0], [1], [0, 0, 1, 1], [], []>} : vector<96x96xf32>, vector<96x32xf32>, vector<96x32xf32> -> vector<96x32xf32>
    %49 = vector.extract_strided_slice %46 {offsets = [0, 32], sizes = [96, 32], strides = [1, 1]} : vector<96x64xf32> to vector<96x32xf32>
    %50 = arith.addf %48, %49 : vector<96x32xf32>
    %51 = vector.broadcast %45 : vector<1x32xf32> to vector<96x32xf32>
    %52 = arith.addf %50, %51 : vector<96x32xf32>
    %cst_34 = arith.constant 0.000000e+00 : f32
    %53 = vector.broadcast %cst_34 : f32 to vector<96x32xf32>
    %54 = arith.maximumf %52, %53 : vector<96x32xf32>
    %c3 = arith.constant 3 : index
    %c0_35 = arith.constant 0 : index
    %c0_36 = arith.constant 0 : index
    %55 = vector.load %arg4[%c3, %c0_35, %c0_36] : memref<12x32x64xf32, #tpu.memory_space<vmem>>, vector<1x32x64xf32>
    %56 = vector.shape_cast %55 : vector<1x32x64xf32> to vector<32x64xf32>
    %c3_37 = arith.constant 3 : index
    %c0_38 = arith.constant 0 : index
    %c0_39 = arith.constant 0 : index
    %57 = vector.load %arg5[%c3_37, %c0_38, %c0_39] : memref<12x1x32xf32, #tpu.memory_space<vmem>>, vector<1x1x32xf32>
    %58 = vector.shape_cast %57 : vector<1x1x32xf32> to vector<1x32xf32>
    %cst_40 = arith.constant dense<0.000000e+00> : vector<96x64xf32>
    %59 = tpu.matmul %54, %56, %cst_40 {dimension_numbers = #tpu.dot_dimension_numbers<[1], [0], [0], [1], [0, 0, 1, 1], [], []>} : vector<96x32xf32>, vector<32x64xf32>, vector<96x64xf32> -> vector<96x64xf32>
    %60 = vector.extract_strided_slice %59 {offsets = [0, 0], sizes = [96, 32], strides = [1, 1]} : vector<96x64xf32> to vector<96x32xf32>
    %cst_41 = arith.constant dense<0.000000e+00> : vector<96x32xf32>
    %61 = tpu.matmul %0, %60, %cst_41 {dimension_numbers = #tpu.dot_dimension_numbers<[1], [0], [0], [1], [0, 0, 1, 1], [], []>} : vector<96x96xf32>, vector<96x32xf32>, vector<96x32xf32> -> vector<96x32xf32>
    %62 = vector.extract_strided_slice %59 {offsets = [0, 32], sizes = [96, 32], strides = [1, 1]} : vector<96x64xf32> to vector<96x32xf32>
    %63 = arith.addf %61, %62 : vector<96x32xf32>
    %64 = vector.broadcast %58 : vector<1x32xf32> to vector<96x32xf32>
    %65 = arith.addf %63, %64 : vector<96x32xf32>
    %cst_42 = arith.constant 0.000000e+00 : f32
    %66 = vector.broadcast %cst_42 : f32 to vector<96x32xf32>
    %67 = arith.maximumf %65, %66 : vector<96x32xf32>
    %68 = arith.addf %41, %67 : vector<96x32xf32>
    %cst_43 = arith.constant 5.000000e-01 : f32
    %69 = vector.broadcast %cst_43 : f32 to vector<96x32xf32>
    %70 = arith.mulf %68, %69 : vector<96x32xf32>
    %c4 = arith.constant 4 : index
    %c0_44 = arith.constant 0 : index
    %c0_45 = arith.constant 0 : index
    %71 = vector.load %arg4[%c4, %c0_44, %c0_45] : memref<12x32x64xf32, #tpu.memory_space<vmem>>, vector<1x32x64xf32>
    %72 = vector.shape_cast %71 : vector<1x32x64xf32> to vector<32x64xf32>
    %c4_46 = arith.constant 4 : index
    %c0_47 = arith.constant 0 : index
    %c0_48 = arith.constant 0 : index
    %73 = vector.load %arg5[%c4_46, %c0_47, %c0_48] : memref<12x1x32xf32, #tpu.memory_space<vmem>>, vector<1x1x32xf32>
    %74 = vector.shape_cast %73 : vector<1x1x32xf32> to vector<1x32xf32>
    %cst_49 = arith.constant dense<0.000000e+00> : vector<96x64xf32>
    %75 = tpu.matmul %70, %72, %cst_49 {dimension_numbers = #tpu.dot_dimension_numbers<[1], [0], [0], [1], [0, 0, 1, 1], [], []>} : vector<96x32xf32>, vector<32x64xf32>, vector<96x64xf32> -> vector<96x64xf32>
    %76 = vector.extract_strided_slice %75 {offsets = [0, 0], sizes = [96, 32], strides = [1, 1]} : vector<96x64xf32> to vector<96x32xf32>
    %cst_50 = arith.constant dense<0.000000e+00> : vector<96x32xf32>
    %77 = tpu.matmul %0, %76, %cst_50 {dimension_numbers = #tpu.dot_dimension_numbers<[1], [0], [0], [1], [0, 0, 1, 1], [], []>} : vector<96x96xf32>, vector<96x32xf32>, vector<96x32xf32> -> vector<96x32xf32>
    %78 = vector.extract_strided_slice %75 {offsets = [0, 32], sizes = [96, 32], strides = [1, 1]} : vector<96x64xf32> to vector<96x32xf32>
    %79 = arith.addf %77, %78 : vector<96x32xf32>
    %80 = vector.broadcast %74 : vector<1x32xf32> to vector<96x32xf32>
    %81 = arith.addf %79, %80 : vector<96x32xf32>
    %cst_51 = arith.constant 0.000000e+00 : f32
    %82 = vector.broadcast %cst_51 : f32 to vector<96x32xf32>
    %83 = arith.maximumf %81, %82 : vector<96x32xf32>
    %c5 = arith.constant 5 : index
    %c0_52 = arith.constant 0 : index
    %c0_53 = arith.constant 0 : index
    %84 = vector.load %arg4[%c5, %c0_52, %c0_53] : memref<12x32x64xf32, #tpu.memory_space<vmem>>, vector<1x32x64xf32>
    %85 = vector.shape_cast %84 : vector<1x32x64xf32> to vector<32x64xf32>
    %c5_54 = arith.constant 5 : index
    %c0_55 = arith.constant 0 : index
    %c0_56 = arith.constant 0 : index
    %86 = vector.load %arg5[%c5_54, %c0_55, %c0_56] : memref<12x1x32xf32, #tpu.memory_space<vmem>>, vector<1x1x32xf32>
    %87 = vector.shape_cast %86 : vector<1x1x32xf32> to vector<1x32xf32>
    %cst_57 = arith.constant dense<0.000000e+00> : vector<96x64xf32>
    %88 = tpu.matmul %83, %85, %cst_57 {dimension_numbers = #tpu.dot_dimension_numbers<[1], [0], [0], [1], [0, 0, 1, 1], [], []>} : vector<96x32xf32>, vector<32x64xf32>, vector<96x64xf32> -> vector<96x64xf32>
    %89 = vector.extract_strided_slice %88 {offsets = [0, 0], sizes = [96, 32], strides = [1, 1]} : vector<96x64xf32> to vector<96x32xf32>
    %cst_58 = arith.constant dense<0.000000e+00> : vector<96x32xf32>
    %90 = tpu.matmul %0, %89, %cst_58 {dimension_numbers = #tpu.dot_dimension_numbers<[1], [0], [0], [1], [0, 0, 1, 1], [], []>} : vector<96x96xf32>, vector<96x32xf32>, vector<96x32xf32> -> vector<96x32xf32>
    %91 = vector.extract_strided_slice %88 {offsets = [0, 32], sizes = [96, 32], strides = [1, 1]} : vector<96x64xf32> to vector<96x32xf32>
    %92 = arith.addf %90, %91 : vector<96x32xf32>
    %93 = vector.broadcast %87 : vector<1x32xf32> to vector<96x32xf32>
    %94 = arith.addf %92, %93 : vector<96x32xf32>
    %cst_59 = arith.constant 0.000000e+00 : f32
    %95 = vector.broadcast %cst_59 : f32 to vector<96x32xf32>
    %96 = arith.maximumf %94, %95 : vector<96x32xf32>
    %97 = arith.addf %70, %96 : vector<96x32xf32>
    %cst_60 = arith.constant 5.000000e-01 : f32
    %98 = vector.broadcast %cst_60 : f32 to vector<96x32xf32>
    %99 = arith.mulf %97, %98 : vector<96x32xf32>
    %c6 = arith.constant 6 : index
    %c0_61 = arith.constant 0 : index
    %c0_62 = arith.constant 0 : index
    %100 = vector.load %arg4[%c6, %c0_61, %c0_62] : memref<12x32x64xf32, #tpu.memory_space<vmem>>, vector<1x32x64xf32>
    %101 = vector.shape_cast %100 : vector<1x32x64xf32> to vector<32x64xf32>
    %c6_63 = arith.constant 6 : index
    %c0_64 = arith.constant 0 : index
    %c0_65 = arith.constant 0 : index
    %102 = vector.load %arg5[%c6_63, %c0_64, %c0_65] : memref<12x1x32xf32, #tpu.memory_space<vmem>>, vector<1x1x32xf32>
    %103 = vector.shape_cast %102 : vector<1x1x32xf32> to vector<1x32xf32>
    %cst_66 = arith.constant dense<0.000000e+00> : vector<96x64xf32>
    %104 = tpu.matmul %99, %101, %cst_66 {dimension_numbers = #tpu.dot_dimension_numbers<[1], [0], [0], [1], [0, 0, 1, 1], [], []>} : vector<96x32xf32>, vector<32x64xf32>, vector<96x64xf32> -> vector<96x64xf32>
    %105 = vector.extract_strided_slice %104 {offsets = [0, 0], sizes = [96, 32], strides = [1, 1]} : vector<96x64xf32> to vector<96x32xf32>
    %cst_67 = arith.constant dense<0.000000e+00> : vector<96x32xf32>
    %106 = tpu.matmul %0, %105, %cst_67 {dimension_numbers = #tpu.dot_dimension_numbers<[1], [0], [0], [1], [0, 0, 1, 1], [], []>} : vector<96x96xf32>, vector<96x32xf32>, vector<96x32xf32> -> vector<96x32xf32>
    %107 = vector.extract_strided_slice %104 {offsets = [0, 32], sizes = [96, 32], strides = [1, 1]} : vector<96x64xf32> to vector<96x32xf32>
    %108 = arith.addf %106, %107 : vector<96x32xf32>
    %109 = vector.broadcast %103 : vector<1x32xf32> to vector<96x32xf32>
    %110 = arith.addf %108, %109 : vector<96x32xf32>
    %cst_68 = arith.constant 0.000000e+00 : f32
    %111 = vector.broadcast %cst_68 : f32 to vector<96x32xf32>
    %112 = arith.maximumf %110, %111 : vector<96x32xf32>
    %c7 = arith.constant 7 : index
    %c0_69 = arith.constant 0 : index
    %c0_70 = arith.constant 0 : index
    %113 = vector.load %arg4[%c7, %c0_69, %c0_70] : memref<12x32x64xf32, #tpu.memory_space<vmem>>, vector<1x32x64xf32>
    %114 = vector.shape_cast %113 : vector<1x32x64xf32> to vector<32x64xf32>
    %c7_71 = arith.constant 7 : index
    %c0_72 = arith.constant 0 : index
    %c0_73 = arith.constant 0 : index
    %115 = vector.load %arg5[%c7_71, %c0_72, %c0_73] : memref<12x1x32xf32, #tpu.memory_space<vmem>>, vector<1x1x32xf32>
    %116 = vector.shape_cast %115 : vector<1x1x32xf32> to vector<1x32xf32>
    %cst_74 = arith.constant dense<0.000000e+00> : vector<96x64xf32>
    %117 = tpu.matmul %112, %114, %cst_74 {dimension_numbers = #tpu.dot_dimension_numbers<[1], [0], [0], [1], [0, 0, 1, 1], [], []>} : vector<96x32xf32>, vector<32x64xf32>, vector<96x64xf32> -> vector<96x64xf32>
    %118 = vector.extract_strided_slice %117 {offsets = [0, 0], sizes = [96, 32], strides = [1, 1]} : vector<96x64xf32> to vector<96x32xf32>
    %cst_75 = arith.constant dense<0.000000e+00> : vector<96x32xf32>
    %119 = tpu.matmul %0, %118, %cst_75 {dimension_numbers = #tpu.dot_dimension_numbers<[1], [0], [0], [1], [0, 0, 1, 1], [], []>} : vector<96x96xf32>, vector<96x32xf32>, vector<96x32xf32> -> vector<96x32xf32>
    %120 = vector.extract_strided_slice %117 {offsets = [0, 32], sizes = [96, 32], strides = [1, 1]} : vector<96x64xf32> to vector<96x32xf32>
    %121 = arith.addf %119, %120 : vector<96x32xf32>
    %122 = vector.broadcast %116 : vector<1x32xf32> to vector<96x32xf32>
    %123 = arith.addf %121, %122 : vector<96x32xf32>
    %cst_76 = arith.constant 0.000000e+00 : f32
    %124 = vector.broadcast %cst_76 : f32 to vector<96x32xf32>
    %125 = arith.maximumf %123, %124 : vector<96x32xf32>
    %126 = arith.addf %99, %125 : vector<96x32xf32>
    %cst_77 = arith.constant 5.000000e-01 : f32
    %127 = vector.broadcast %cst_77 : f32 to vector<96x32xf32>
    %128 = arith.mulf %126, %127 : vector<96x32xf32>
    %c8 = arith.constant 8 : index
    %c0_78 = arith.constant 0 : index
    %c0_79 = arith.constant 0 : index
    %129 = vector.load %arg4[%c8, %c0_78, %c0_79] : memref<12x32x64xf32, #tpu.memory_space<vmem>>, vector<1x32x64xf32>
    %130 = vector.shape_cast %129 : vector<1x32x64xf32> to vector<32x64xf32>
    %c8_80 = arith.constant 8 : index
    %c0_81 = arith.constant 0 : index
    %c0_82 = arith.constant 0 : index
    %131 = vector.load %arg5[%c8_80, %c0_81, %c0_82] : memref<12x1x32xf32, #tpu.memory_space<vmem>>, vector<1x1x32xf32>
    %132 = vector.shape_cast %131 : vector<1x1x32xf32> to vector<1x32xf32>
    %cst_83 = arith.constant dense<0.000000e+00> : vector<96x64xf32>
    %133 = tpu.matmul %128, %130, %cst_83 {dimension_numbers = #tpu.dot_dimension_numbers<[1], [0], [0], [1], [0, 0, 1, 1], [], []>} : vector<96x32xf32>, vector<32x64xf32>, vector<96x64xf32> -> vector<96x64xf32>
    %134 = vector.extract_strided_slice %133 {offsets = [0, 0], sizes = [96, 32], strides = [1, 1]} : vector<96x64xf32> to vector<96x32xf32>
    %cst_84 = arith.constant dense<0.000000e+00> : vector<96x32xf32>
    %135 = tpu.matmul %0, %134, %cst_84 {dimension_numbers = #tpu.dot_dimension_numbers<[1], [0], [0], [1], [0, 0, 1, 1], [], []>} : vector<96x96xf32>, vector<96x32xf32>, vector<96x32xf32> -> vector<96x32xf32>
    %136 = vector.extract_strided_slice %133 {offsets = [0, 32], sizes = [96, 32], strides = [1, 1]} : vector<96x64xf32> to vector<96x32xf32>
    %137 = arith.addf %135, %136 : vector<96x32xf32>
    %138 = vector.broadcast %132 : vector<1x32xf32> to vector<96x32xf32>
    %139 = arith.addf %137, %138 : vector<96x32xf32>
    %cst_85 = arith.constant 0.000000e+00 : f32
    %140 = vector.broadcast %cst_85 : f32 to vector<96x32xf32>
    %141 = arith.maximumf %139, %140 : vector<96x32xf32>
    %c9 = arith.constant 9 : index
    %c0_86 = arith.constant 0 : index
    %c0_87 = arith.constant 0 : index
    %142 = vector.load %arg4[%c9, %c0_86, %c0_87] : memref<12x32x64xf32, #tpu.memory_space<vmem>>, vector<1x32x64xf32>
    %143 = vector.shape_cast %142 : vector<1x32x64xf32> to vector<32x64xf32>
    %c9_88 = arith.constant 9 : index
    %c0_89 = arith.constant 0 : index
    %c0_90 = arith.constant 0 : index
    %144 = vector.load %arg5[%c9_88, %c0_89, %c0_90] : memref<12x1x32xf32, #tpu.memory_space<vmem>>, vector<1x1x32xf32>
    %145 = vector.shape_cast %144 : vector<1x1x32xf32> to vector<1x32xf32>
    %cst_91 = arith.constant dense<0.000000e+00> : vector<96x64xf32>
    %146 = tpu.matmul %141, %143, %cst_91 {dimension_numbers = #tpu.dot_dimension_numbers<[1], [0], [0], [1], [0, 0, 1, 1], [], []>} : vector<96x32xf32>, vector<32x64xf32>, vector<96x64xf32> -> vector<96x64xf32>
    %147 = vector.extract_strided_slice %146 {offsets = [0, 0], sizes = [96, 32], strides = [1, 1]} : vector<96x64xf32> to vector<96x32xf32>
    %cst_92 = arith.constant dense<0.000000e+00> : vector<96x32xf32>
    %148 = tpu.matmul %0, %147, %cst_92 {dimension_numbers = #tpu.dot_dimension_numbers<[1], [0], [0], [1], [0, 0, 1, 1], [], []>} : vector<96x96xf32>, vector<96x32xf32>, vector<96x32xf32> -> vector<96x32xf32>
    %149 = vector.extract_strided_slice %146 {offsets = [0, 32], sizes = [96, 32], strides = [1, 1]} : vector<96x64xf32> to vector<96x32xf32>
    %150 = arith.addf %148, %149 : vector<96x32xf32>
    %151 = vector.broadcast %145 : vector<1x32xf32> to vector<96x32xf32>
    %152 = arith.addf %150, %151 : vector<96x32xf32>
    %cst_93 = arith.constant 0.000000e+00 : f32
    %153 = vector.broadcast %cst_93 : f32 to vector<96x32xf32>
    %154 = arith.maximumf %152, %153 : vector<96x32xf32>
    %155 = arith.addf %128, %154 : vector<96x32xf32>
    %cst_94 = arith.constant 5.000000e-01 : f32
    %156 = vector.broadcast %cst_94 : f32 to vector<96x32xf32>
    %157 = arith.mulf %155, %156 : vector<96x32xf32>
    %c10 = arith.constant 10 : index
    %c0_95 = arith.constant 0 : index
    %c0_96 = arith.constant 0 : index
    %158 = vector.load %arg4[%c10, %c0_95, %c0_96] : memref<12x32x64xf32, #tpu.memory_space<vmem>>, vector<1x32x64xf32>
    %159 = vector.shape_cast %158 : vector<1x32x64xf32> to vector<32x64xf32>
    %c10_97 = arith.constant 10 : index
    %c0_98 = arith.constant 0 : index
    %c0_99 = arith.constant 0 : index
    %160 = vector.load %arg5[%c10_97, %c0_98, %c0_99] : memref<12x1x32xf32, #tpu.memory_space<vmem>>, vector<1x1x32xf32>
    %161 = vector.shape_cast %160 : vector<1x1x32xf32> to vector<1x32xf32>
    %cst_100 = arith.constant dense<0.000000e+00> : vector<96x64xf32>
    %162 = tpu.matmul %157, %159, %cst_100 {dimension_numbers = #tpu.dot_dimension_numbers<[1], [0], [0], [1], [0, 0, 1, 1], [], []>} : vector<96x32xf32>, vector<32x64xf32>, vector<96x64xf32> -> vector<96x64xf32>
    %163 = vector.extract_strided_slice %162 {offsets = [0, 0], sizes = [96, 32], strides = [1, 1]} : vector<96x64xf32> to vector<96x32xf32>
    %cst_101 = arith.constant dense<0.000000e+00> : vector<96x32xf32>
    %164 = tpu.matmul %0, %163, %cst_101 {dimension_numbers = #tpu.dot_dimension_numbers<[1], [0], [0], [1], [0, 0, 1, 1], [], []>} : vector<96x96xf32>, vector<96x32xf32>, vector<96x32xf32> -> vector<96x32xf32>
    %165 = vector.extract_strided_slice %162 {offsets = [0, 32], sizes = [96, 32], strides = [1, 1]} : vector<96x64xf32> to vector<96x32xf32>
    %166 = arith.addf %164, %165 : vector<96x32xf32>
    %167 = vector.broadcast %161 : vector<1x32xf32> to vector<96x32xf32>
    %168 = arith.addf %166, %167 : vector<96x32xf32>
    %cst_102 = arith.constant 0.000000e+00 : f32
    %169 = vector.broadcast %cst_102 : f32 to vector<96x32xf32>
    %170 = arith.maximumf %168, %169 : vector<96x32xf32>
    %c11 = arith.constant 11 : index
    %c0_103 = arith.constant 0 : index
    %c0_104 = arith.constant 0 : index
    %171 = vector.load %arg4[%c11, %c0_103, %c0_104] : memref<12x32x64xf32, #tpu.memory_space<vmem>>, vector<1x32x64xf32>
    %172 = vector.shape_cast %171 : vector<1x32x64xf32> to vector<32x64xf32>
    %c11_105 = arith.constant 11 : index
    %c0_106 = arith.constant 0 : index
    %c0_107 = arith.constant 0 : index
    %173 = vector.load %arg5[%c11_105, %c0_106, %c0_107] : memref<12x1x32xf32, #tpu.memory_space<vmem>>, vector<1x1x32xf32>
    %174 = vector.shape_cast %173 : vector<1x1x32xf32> to vector<1x32xf32>
    %cst_108 = arith.constant dense<0.000000e+00> : vector<96x64xf32>
    %175 = tpu.matmul %170, %172, %cst_108 {dimension_numbers = #tpu.dot_dimension_numbers<[1], [0], [0], [1], [0, 0, 1, 1], [], []>} : vector<96x32xf32>, vector<32x64xf32>, vector<96x64xf32> -> vector<96x64xf32>
    %176 = vector.extract_strided_slice %175 {offsets = [0, 0], sizes = [96, 32], strides = [1, 1]} : vector<96x64xf32> to vector<96x32xf32>
    %cst_109 = arith.constant dense<0.000000e+00> : vector<96x32xf32>
    %177 = tpu.matmul %0, %176, %cst_109 {dimension_numbers = #tpu.dot_dimension_numbers<[1], [0], [0], [1], [0, 0, 1, 1], [], []>} : vector<96x96xf32>, vector<96x32xf32>, vector<96x32xf32> -> vector<96x32xf32>
    %178 = vector.extract_strided_slice %175 {offsets = [0, 32], sizes = [96, 32], strides = [1, 1]} : vector<96x64xf32> to vector<96x32xf32>
    %179 = arith.addf %177, %178 : vector<96x32xf32>
    %180 = vector.broadcast %174 : vector<1x32xf32> to vector<96x32xf32>
    %181 = arith.addf %179, %180 : vector<96x32xf32>
    %cst_110 = arith.constant 0.000000e+00 : f32
    %182 = vector.broadcast %cst_110 : f32 to vector<96x32xf32>
    %183 = arith.maximumf %181, %182 : vector<96x32xf32>
    %184 = arith.addf %157, %183 : vector<96x32xf32>
    %cst_111 = arith.constant 5.000000e-01 : f32
    %185 = vector.broadcast %cst_111 : f32 to vector<96x32xf32>
    %186 = arith.mulf %184, %185 : vector<96x32xf32>
    %c0_112 = arith.constant 0 : index
    %c0_113 = arith.constant 0 : index
    %187 = vector.load %arg8[%c0_112, %c0_113] : memref<96x32xf32, #tpu.memory_space<vmem>>, vector<96x32xf32>
    tpu.vector_store %arg8[%c0_112, %c0_113], %186 {strides = array<i32>} : memref<96x32xf32, #tpu.memory_space<vmem>>, vector<96x32xf32>,
    %c0_114 = arith.constant 0 : index
    %c0_115 = arith.constant 0 : index
    %188 = vector.load %arg6[%c0_114, %c0_115] : memref<32x256xf32, #tpu.memory_space<vmem>>, vector<32x256xf32>
    %c0_116 = arith.constant 0 : index
    %c0_117 = arith.constant 0 : index
    %189 = vector.load %arg7[%c0_116, %c0_117] : memref<1x128xf32, #tpu.memory_space<vmem>>, vector<1x128xf32>
    %cst_118 = arith.constant dense<0.000000e+00> : vector<96x256xf32>
    %190 = tpu.matmul %186, %188, %cst_118 {dimension_numbers = #tpu.dot_dimension_numbers<[1], [0], [0], [1], [0, 0, 1, 1], [], []>} : vector<96x32xf32>, vector<32x256xf32>, vector<96x256xf32> -> vector<96x256xf32>
    %191 = vector.extract_strided_slice %190 {offsets = [0, 0], sizes = [96, 128], strides = [1, 1]} : vector<96x256xf32> to vector<96x128xf32>
    %cst_119 = arith.constant dense<0.000000e+00> : vector<96x128xf32>
    %192 = tpu.matmul %0, %191, %cst_119 {dimension_numbers = #tpu.dot_dimension_numbers<[1], [0], [0], [1], [0, 0, 1, 1], [], []>} : vector<96x96xf32>, vector<96x128xf32>, vector<96x128xf32> -> vector<96x128xf32>
    %193 = vector.extract_strided_slice %190 {offsets = [0, 128], sizes = [96, 128], strides = [1, 1]} : vector<96x256xf32> to vector<96x128xf32>
    %194 = arith.addf %192, %193 : vector<96x128xf32>
    %195 = vector.broadcast %189 : vector<1x128xf32> to vector<96x128xf32>
    %196 = arith.addf %194, %195 : vector<96x128xf32>
    %c0_120 = arith.constant 0 : index
    %c0_121 = arith.constant 0 : index
    %197 = vector.load %arg9[%c0_120, %c0_121] : memref<96x128xf32, #tpu.memory_space<vmem>>, vector<96x128xf32>
    tpu.vector_store %arg9[%c0_120, %c0_121], %196 {strides = array<i32>} : memref<96x128xf32, #tpu.memory_space<vmem>>, vector<96x128xf32>,
    return
  }
}

</mosaic_0001>

<llo_original>
// kernel: pixel2mesh_forward.4
$region0: #{pixel2mesh_forward.4}
  #allocation0 [shape = 'u32[]', space=smem, size = 0x4, offset = 0x4, fixed_abs, tag = 'smem constant byte address 0x4 - core index']
  #allocation1 [shape = 'u32[72,128]{1,0:T(1,128)}', space=vmem, size = 0x9000, scoped, tag = 'internal scratch']
  %s0 = inlined_call_operand.vmem [shape: f32[128,32], index: 0, kind: input, shape index: {}]
  %s1 = inlined_call_operand.vmem [shape: f32[32,16], index: 1, kind: input, shape index: {}]
  %s2 = inlined_call_operand.vmem [shape: f32[1,16], index: 2, kind: input, shape index: {}]
  %s3 = inlined_call_operand.vmem [shape: f32[9,32,128], index: 3, kind: input, shape index: {}]
  %s4 = inlined_call_operand.vmem [shape: f32[9,16,32], index: 4, kind: input, shape index: {}]
  %s5 = inlined_call_operand.vmem [shape: f32[1,32], index: 5, kind: input, shape index: {}]
  %s6 = inlined_call_operand.vmem [shape: f32[128,16], index: 6, kind: output, shape index: {0}]
  %s7 = inlined_call_operand.vmem [shape: f32[32,32], index: 7, kind: output, shape index: {1}]
  %8 = xla_tuple %s6, %s7
  %s9 = sld [smem:[#allocation0]]
  $region42: #{pixel2mesh_forward.4} parent=0
    _
  %s11 = ssub.s32 1, %s9
  %s12 = scalar_select 0, %s11, %s9
  // Predicated region
  $region2: #{pixel2mesh_forward.4} parent=0 // pred_check
    _
  $region3: #{pixel2mesh_forward.4} parent=0 // pred_check_branch
    %14 = sbr.rel (0) target = $region5
  $region4: #{pixel2mesh_forward.4} parent=0 // pred_region
    _
  $region5: #{pixel2mesh_forward.4} parent=0 // pred_fallthru
    _
  // Predicated region
  $region6: #{pixel2mesh_forward.4} parent=0 // pred_check
    _
  $region7: #{pixel2mesh_forward.4} parent=0 // pred_check_branch
    %16 = sbr.rel (0) target = $region9
  $region8: #{pixel2mesh_forward.4} parent=0 // pred_region
    _
  $region9: #{pixel2mesh_forward.4} parent=0 // pred_fallthru
    _
  // Predicated region
  $region10: #{pixel2mesh_forward.4} parent=0 // pred_check
    _
  $region11: #{pixel2mesh_forward.4} parent=0 // pred_check_branch
    %18 = sbr.rel (0) target = $region13
  $region12: #{pixel2mesh_forward.4} parent=0 // pred_region
    _
  $region13: #{pixel2mesh_forward.4} parent=0 // pred_fallthru
    _
  // Predicated region
  $region14: #{pixel2mesh_forward.4} parent=0 // pred_check
    _
  $region15: #{pixel2mesh_forward.4} parent=0 // pred_check_branch
    %20 = sbr.rel (0) target = $region17
  $region16: #{pixel2mesh_forward.4} parent=0 // pred_region
    _
  $region17: #{pixel2mesh_forward.4} parent=0 // pred_fallthru
    _
  // Predicated region
  $region18: #{pixel2mesh_forward.4} parent=0 // pred_check
    _
  $region19: #{pixel2mesh_forward.4} parent=0 // pred_check_branch
    %22 = sbr.rel (0) target = $region21
  $region20: #{pixel2mesh_forward.4} parent=0 // pred_region
    _
  $region21: #{pixel2mesh_forward.4} parent=0 // pred_fallthru
    _
  // Predicated region
  $region22: #{pixel2mesh_forward.4} parent=0 // pred_check
    _
  $region23: #{pixel2mesh_forward.4} parent=0 // pred_check_branch
    %24 = sbr.rel (0) target = $region25
  $region24: #{pixel2mesh_forward.4} parent=0 // pred_region
    _
  $region25: #{pixel2mesh_forward.4} parent=0 // pred_fallthru
    _
  %v25 = vld [vmem:[%s0] sm:$0xff]
  %v26 = vld [vmem:[%s0 + $0x8] sm:$0xff]
  %v27 = vld [vmem:[%s0 + $0x10] sm:$0xff]
  %v28 = vld [vmem:[%s0 + $0x18] sm:$0xff]
  %v29 = vld [vmem:[%s0 + $0x20] sm:$0xff]
  %v30 = vld [vmem:[%s0 + $0x28] sm:$0xff]
  %v31 = vld [vmem:[%s0 + $0x30] sm:$0xff]
  %v32 = vld [vmem:[%s0 + $0x38] sm:$0xff]
  %v33 = vld [vmem:[%s0 + $0x40] sm:$0xff]
  %v34 = vld [vmem:[%s0 + $0x48] sm:$0xff]
  %v35 = vld [vmem:[%s0 + $0x50] sm:$0xff]
  %v36 = vld [vmem:[%s0 + $0x58] sm:$0xff]
  %v37 = vld [vmem:[%s0 + $0x60] sm:$0xff]
  %v38 = vld [vmem:[%s0 + $0x68] sm:$0xff]
  %v39 = vld [vmem:[%s0 + $0x70] sm:$0xff]
  %v40 = vld [vmem:[%s0 + $0x78] sm:$0xff]
  %v41 = vld [vmem:[%s1] sm:$0xff]
  %v42 = vld [vmem:[%s1 + $0x8] sm:$0xff]
  %v43 = vld [vmem:[%s1 + $0x10] sm:$0xff]
  %v44 = vld [vmem:[%s1 + $0x18] sm:$0xff]
  %v45 = vld [vmem:[%s2] sm:$0x1]
  %v47 = vperm.slane %v45, 0
  %vm49 = vcmask 261120
  %v51 = vsel %vm49, %v25, 0
  %v54 = vsel %vm49, %v26, 0
  %v57 = vsel %vm49, %v27, 0
  %v60 = vsel %vm49, %v28, 0
  %v63 = vsel %vm49, %v29, 0
  %v66 = vsel %vm49, %v30, 0
  %v69 = vsel %vm49, %v31, 0
  %v72 = vsel %vm49, %v32, 0
  %v75 = vsel %vm49, %v33, 0
  %v78 = vsel %vm49, %v34, 0
  %v81 = vsel %vm49, %v35, 0
  %v84 = vsel %vm49, %v36, 0
  %v87 = vsel %vm49, %v37, 0
  %v90 = vsel %vm49, %v38, 0
  %v93 = vsel %vm49, %v39, 0
  %v96 = vsel %vm49, %v40, 0
  %98 = vmatpush.msra.mxu0 0.0
  %99 = vmatpush.msra.mxu0 0.0
  %100 = vmatpush.msra.mxu0 0.0
  %101 = vmatpush.msra.mxu0 0.0
  %102 = vmatpush.msra.mxu0 0.0
  %103 = vmatpush.msra.mxu0 0.0
  %104 = vmatpush.msra.mxu0 0.0
  %105 = vmatpush.msra.mxu0 0.0
  %106 = vmatpush.msra.mxu0 0.0
  %107 = vmatpush.msra.mxu0 0.0
  %108 = vmatpush.msra.mxu0 0.0
  %109 = vmatpush.msra.mxu0 0.0
  %110 = vmatpush.msra.mxu0 %v44
  %111 = vmatpush.msra.mxu0 %v43
  %112 = vmatpush.msra.mxu0 %v42
  %113 = vmatpush.msra.mxu0 %v41
  %114 = vmatmul.f32.gmra.mxu0 %v51
  %v115 = vpop.f32.mrf.mxu0
  %v116 = vadd.f32 %v47, %v115
  %117 = vmatmul.f32.gmra.mxu0 %v54
  %v118 = vpop.f32.mrf.mxu0
  %v119 = vadd.f32 %v47, %v118
  %120 = vmatmul.f32.gmra.mxu0 %v57
  %v121 = vpop.f32.mrf.mxu0
  %v122 = vadd.f32 %v47, %v121
  %123 = vmatmul.f32.gmra.mxu0 %v60
  %v124 = vpop.f32.mrf.mxu0
  %v125 = vadd.f32 %v47, %v124
  %126 = vmatmul.f32.gmra.mxu0 %v63
  %v127 = vpop.f32.mrf.mxu0
  %v128 = vadd.f32 %v47, %v127
  %129 = vmatmul.f32.gmra.mxu0 %v66
  %v130 = vpop.f32.mrf.mxu0
  %v131 = vadd.f32 %v47, %v130
  %132 = vmatmul.f32.gmra.mxu0 %v69
  %v133 = vpop.f32.mrf.mxu0
  %v134 = vadd.f32 %v47, %v133
  %135 = vmatmul.f32.gmra.mxu0 %v72
  %v136 = vpop.f32.mrf.mxu0
  %v137 = vadd.f32 %v47, %v136
  %138 = vmatmul.f32.gmra.mxu0 %v75
  %v139 = vpop.f32.mrf.mxu0
  %v140 = vadd.f32 %v47, %v139
  %141 = vmatmul.f32.gmra.mxu0 %v78
  %v142 = vpop.f32.mrf.mxu0
  %v143 = vadd.f32 %v47, %v142
  %144 = vmatmul.f32.gmra.mxu0 %v81
  %v145 = vpop.f32.mrf.mxu0
  %v146 = vadd.f32 %v47, %v145
  %147 = vmatmul.f32.gmra.mxu0 %v84
  %v148 = vpop.f32.mrf.mxu0
  %v149 = vadd.f32 %v47, %v148
  %150 = vmatmul.f32.gmra.mxu0 %v87
  %v151 = vpop.f32.mrf.mxu0
  %v152 = vadd.f32 %v47, %v151
  %153 = vmatmul.f32.gmra.mxu0 %v90
  %v154 = vpop.f32.mrf.mxu0
  %v155 = vadd.f32 %v47, %v154
  %156 = vmatmul.f32.gmra.mxu0 %v93
  %v157 = vpop.f32.mrf.mxu0
  %v158 = vadd.f32 %v47, %v157
  %159 = vmatmul.f32.gmra.mxu0 %v96
  %v160 = vpop.f32.mrf.mxu0
  %v161 = vadd.f32 %v47, %v160
  %162 = vdwg.mxu0
  %v163 = vmax.f32 %v116, 0.0
  %v164 = vmax.f32 %v119, 0.0
  %v165 = vmax.f32 %v122, 0.0
  %v166 = vmax.f32 %v125, 0.0
  %v167 = vmax.f32 %v128, 0.0
  %v168 = vmax.f32 %v131, 0.0
  %v169 = vmax.f32 %v134, 0.0
  %v170 = vmax.f32 %v137, 0.0
  %v171 = vmax.f32 %v140, 0.0
  %v172 = vmax.f32 %v143, 0.0
  %v173 = vmax.f32 %v146, 0.0
  %v174 = vmax.f32 %v149, 0.0
  %v175 = vmax.f32 %v152, 0.0
  %v176 = vmax.f32 %v155, 0.0
  %v177 = vmax.f32 %v158, 0.0
  %v178 = vmax.f32 %v161, 0.0
  %vm179 = vcmask 130048
  %180 = vst.msk [vmem:[%s6] sm:$0xff] %vm179, %v163
  %181 = vst.msk [vmem:[%s6 + $0x8] sm:$0xff] %vm179, %v164
  %182 = vst.msk [vmem:[%s6 + $0x10] sm:$0xff] %vm179, %v165
  %183 = vst.msk [vmem:[%s6 + $0x18] sm:$0xff] %vm179, %v166
  %184 = vst.msk [vmem:[%s6 + $0x20] sm:$0xff] %vm179, %v167
  %185 = vst.msk [vmem:[%s6 + $0x28] sm:$0xff] %vm179, %v168
  %186 = vst.msk [vmem:[%s6 + $0x30] sm:$0xff] %vm179, %v169
  %187 = vst.msk [vmem:[%s6 + $0x38] sm:$0xff] %vm179, %v170
  %188 = vst.msk [vmem:[%s6 + $0x40] sm:$0xff] %vm179, %v171
  %189 = vst.msk [vmem:[%s6 + $0x48] sm:$0xff] %vm179, %v172
  %190 = vst.msk [vmem:[%s6 + $0x50] sm:$0xff] %vm179, %v173
  %191 = vst.msk [vmem:[%s6 + $0x58] sm:$0xff] %vm179, %v174
  %192 = vst.msk [vmem:[%s6 + $0x60] sm:$0xff] %vm179, %v175
  %193 = vst.msk [vmem:[%s6 + $0x68] sm:$0xff] %vm179, %v176
  %194 = vst.msk [vmem:[%s6 + $0x70] sm:$0xff] %vm179, %v177
  %195 = vst.msk [vmem:[%s6 + $0x78] sm:$0xff] %vm179, %v178
  %v196 = vld [vmem:[%s4] sm:$0xff]
  %v197 = vld [vmem:[%s4 + $0x8] sm:$0xff]
  %v199 = vsel %vm179, %v163, 0
  %v202 = vsel %vm179, %v164, 0
  %v205 = vsel %vm179, %v165, 0
  %v208 = vsel %vm179, %v166, 0
  %v211 = vsel %vm179, %v167, 0
  %v214 = vsel %vm179, %v168, 0
  %v217 = vsel %vm179, %v169, 0
  %v220 = vsel %vm179, %v170, 0
  %v223 = vsel %vm179, %v171, 0
  %v226 = vsel %vm179, %v172, 0
  %v229 = vsel %vm179, %v173, 0
  %v232 = vsel %vm179, %v174, 0
  %v235 = vsel %vm179, %v175, 0
  %v238 = vsel %vm179, %v176, 0
  %v241 = vsel %vm179, %v177, 0
  %v244 = vsel %vm179, %v178, 0
  %246 = vmatpush.msra.mxu0 0.0
  %247 = vmatpush.msra.mxu0 0.0
  %248 = vmatpush.msra.mxu0 0.0
  %249 = vmatpush.msra.mxu0 0.0
  %250 = vmatpush.msra.mxu0 0.0
  %251 = vmatpush.msra.mxu0 0.0
  %252 = vmatpush.msra.mxu0 0.0
  %253 = vmatpush.msra.mxu0 0.0
  %254 = vmatpush.msra.mxu0 0.0
  %255 = vmatpush.msra.mxu0 0.0
  %256 = vmatpush.msra.mxu0 0.0
  %257 = vmatpush.msra.mxu0 0.0
  %258 = vmatpush.msra.mxu0 0.0
  %259 = vmatpush.msra.mxu0 0.0
  %260 = vmatpush.msra.mxu0 %v197
  %261 = vmatpush.msra.mxu0 %v196
  %262 = vmatmul.f32.gmra.mxu0 %v199
  %v263 = vpop.f32.mrf.mxu0
  %v264 = vadd.f32 0.0, %v263
  %265 = vmatmul.f32.gmra.mxu0 %v202
  %v266 = vpop.f32.mrf.mxu0
  %v267 = vadd.f32 0.0, %v266
  %268 = vmatmul.f32.gmra.mxu0 %v205
  %v269 = vpop.f32.mrf.mxu0
  %v270 = vadd.f32 0.0, %v269
  %271 = vmatmul.f32.gmra.mxu0 %v208
  %v272 = vpop.f32.mrf.mxu0
  %v273 = vadd.f32 0.0, %v272
  %274 = vmatmul.f32.gmra.mxu0 %v211
  %v275 = vpop.f32.mrf.mxu0
  %v276 = vadd.f32 0.0, %v275
  %277 = vmatmul.f32.gmra.mxu0 %v214
  %v278 = vpop.f32.mrf.mxu0
  %v279 = vadd.f32 0.0, %v278
  %280 = vmatmul.f32.gmra.mxu0 %v217
  %v281 = vpop.f32.mrf.mxu0
  %v282 = vadd.f32 0.0, %v281
  %283 = vmatmul.f32.gmra.mxu0 %v220
  %v284 = vpop.f32.mrf.mxu0
  %v285 = vadd.f32 0.0, %v284
  %286 = vmatmul.f32.gmra.mxu0 %v223
  %v287 = vpop.f32.mrf.mxu0
  %v288 = vadd.f32 0.0, %v287
  %289 = vmatmul.f32.gmra.mxu0 %v226
  %v290 = vpop.f32.mrf.mxu0
  %v291 = vadd.f32 0.0, %v290
  %292 = vmatmul.f32.gmra.mxu0 %v229
  %v293 = vpop.f32.mrf.mxu0
  %v294 = vadd.f32 0.0, %v293
  %295 = vmatmul.f32.gmra.mxu0 %v232
  %v296 = vpop.f32.mrf.mxu0
  %v297 = vadd.f32 0.0, %v296
  %298 = vmatmul.f32.gmra.mxu0 %v235
  %v299 = vpop.f32.mrf.mxu0
  %v300 = vadd.f32 0.0, %v299
  %301 = vmatmul.f32.gmra.mxu0 %v238
  %v302 = vpop.f32.mrf.mxu0
  %v303 = vadd.f32 0.0, %v302
  %304 = vmatmul.f32.gmra.mxu0 %v241
  %v305 = vpop.f32.mrf.mxu0
  %v306 = vadd.f32 0.0, %v305
  %307 = vmatmul.f32.gmra.mxu0 %v244
  %v308 = vpop.f32.mrf.mxu0
  %v309 = vadd.f32 0.0, %v308
  %310 = vdwg.mxu0
  %v311 = vld [vmem:[%s3] sm:$0xff]
  %v312 = vld [vmem:[%s3 + $0x8] sm:$0xff]
  %v313 = vld [vmem:[%s3 + $0x10] sm:$0xff]
  %v314 = vld [vmem:[%s3 + $0x18] sm:$0xff]
  %s315 = scalar_lea.vmem %s4, 16
  %v316 = vld [vmem:[%s315] sm:$0xff]
  %v317 = vld [vmem:[%s315 + $0x8] sm:$0xff]
  %318 = vmatpush.msra.mxu0 0.0
  %319 = vmatpush.msra.mxu0 0.0
  %320 = vmatpush.msra.mxu0 0.0
  %321 = vmatpush.msra.mxu0 0.0
  %322 = vmatpush.msra.mxu0 0.0
  %323 = vmatpush.msra.mxu0 0.0
  %324 = vmatpush.msra.mxu0 0.0
  %325 = vmatpush.msra.mxu0 0.0
  %326 = vmatpush.msra.mxu0 0.0
  %327 = vmatpush.msra.mxu0 0.0
  %328 = vmatpush.msra.mxu0 0.0
  %329 = vmatpush.msra.mxu0 0.0
  %330 = vmatpush.msra.mxu0 0.0
  %331 = vmatpush.msra.mxu0 0.0
  %332 = vmatpush.msra.mxu0 %v317
  %333 = vmatpush.msra.mxu0 %v316
  %334 = vmatmul.f32.gmra.mxu0 %v199
  %v335 = vpop.f32.mrf.mxu0
  %v336 = vadd.f32 0.0, %v335
  %337 = vmatmul.f32.gmra.mxu0 %v202
  %v338 = vpop.f32.mrf.mxu0
  %v339 = vadd.f32 0.0, %v338
  %340 = vmatmul.f32.gmra.mxu0 %v205
  %v341 = vpop.f32.mrf.mxu0
  %v342 = vadd.f32 0.0, %v341
  %343 = vmatmul.f32.gmra.mxu0 %v208
  %v344 = vpop.f32.mrf.mxu0
  %v345 = vadd.f32 0.0, %v344
  %346 = vmatmul.f32.gmra.mxu0 %v211
  %v347 = vpop.f32.mrf.mxu0
  %v348 = vadd.f32 0.0, %v347
  %349 = vmatmul.f32.gmra.mxu0 %v214
  %v350 = vpop.f32.mrf.mxu0
  %v351 = vadd.f32 0.0, %v350
  %352 = vmatmul.f32.gmra.mxu0 %v217
  %v353 = vpop.f32.mrf.mxu0
  %v354 = vadd.f32 0.0, %v353
  %355 = vmatmul.f32.gmra.mxu0 %v220
  %v356 = vpop.f32.mrf.mxu0
  %v357 = vadd.f32 0.0, %v356
  %358 = vmatmul.f32.gmra.mxu0 %v223
  %v359 = vpop.f32.mrf.mxu0
  %v360 = vadd.f32 0.0, %v359
  %361 = vmatmul.f32.gmra.mxu0 %v226
  %v362 = vpop.f32.mrf.mxu0
  %v363 = vadd.f32 0.0, %v362
  %364 = vmatmul.f32.gmra.mxu0 %v229
  %v365 = vpop.f32.mrf.mxu0
  %v366 = vadd.f32 0.0, %v365
  %367 = vmatmul.f32.gmra.mxu0 %v232
  %v368 = vpop.f32.mrf.mxu0
  %v369 = vadd.f32 0.0, %v368
  %370 = vmatmul.f32.gmra.mxu0 %v235
  %v371 = vpop.f32.mrf.mxu0
  %v372 = vadd.f32 0.0, %v371
  %373 = vmatmul.f32.gmra.mxu0 %v238
  %v374 = vpop.f32.mrf.mxu0
  %v375 = vadd.f32 0.0, %v374
  %376 = vmatmul.f32.gmra.mxu0 %v241
  %v377 = vpop.f32.mrf.mxu0
  %v378 = vadd.f32 0.0, %v377
  %379 = vmatmul.f32.gmra.mxu0 %v244
  %v380 = vpop.f32.mrf.mxu0
  %v381 = vadd.f32 0.0, %v380
  %382 = vdwg.mxu0
  %s383 = scalar_lea.vmem %s3, 32
  %v384 = vld [vmem:[%s383] sm:$0xff]
  %v385 = vld [vmem:[%s383 + $0x8] sm:$0xff]
  %v386 = vld [vmem:[%s383 + $0x10] sm:$0xff]
  %v387 = vld [vmem:[%s383 + $0x18] sm:$0xff]
  %388 = vmatpush.msra.mxu0 %v381
  %389 = vmatpush.msra.mxu0 %v378
  %390 = vmatpush.msra.mxu0 %v375
  %391 = vmatpush.msra.mxu0 %v372
  %392 = vmatpush.msra.mxu0 %v369
  %393 = vmatpush.msra.mxu0 %v366
  %394 = vmatpush.msra.mxu0 %v363
  %395 = vmatpush.msra.mxu0 %v360
  %396 = vmatpush.msra.mxu0 %v357
  %397 = vmatpush.msra.mxu0 %v354
  %398 = vmatpush.msra.mxu0 %v351
  %399 = vmatpush.msra.mxu0 %v348
  %400 = vmatpush.msra.mxu0 %v345
  %401 = vmatpush.msra.mxu0 %v342
  %402 = vmatpush.msra.mxu0 %v339
  %403 = vmatpush.msra.mxu0 %v336
  %404 = vmatmul.f32.gmra.mxu0 %v384
  %v405 = vpop.f32.mrf.mxu0
  %v406 = vadd.f32 0.0, %v405
  %407 = vmatmul.f32.gmra.mxu0 %v385
  %v408 = vpop.f32.mrf.mxu0
  %v409 = vadd.f32 0.0, %v408
  %410 = vmatmul.f32.gmra.mxu0 %v386
  %v411 = vpop.f32.mrf.mxu0
  %v412 = vadd.f32 0.0, %v411
  %413 = vmatmul.f32.gmra.mxu0 %v387
  %v414 = vpop.f32.mrf.mxu0
  %v415 = vadd.f32 0.0, %v414
  %416 = vdwg.mxu0
  %417 = vmatpush.msra.mxu0 %v309
  %418 = vmatpush.msra.mxu0 %v306
  %419 = vmatpush.msra.mxu0 %v303
  %420 = vmatpush.msra.mxu0 %v300
  %421 = vmatpush.msra.mxu0 %v297
  %422 = vmatpush.msra.mxu0 %v294
  %423 = vmatpush.msra.mxu0 %v291
  %424 = vmatpush.msra.mxu0 %v288
  %425 = vmatpush.msra.mxu0 %v285
  %426 = vmatpush.msra.mxu0 %v282
  %427 = vmatpush.msra.mxu0 %v279
  %428 = vmatpush.msra.mxu0 %v276
  %429 = vmatpush.msra.mxu0 %v273
  %430 = vmatpush.msra.mxu0 %v270
  %431 = vmatpush.msra.mxu0 %v267
  %432 = vmatpush.msra.mxu0 %v264
  %433 = vmatmul.f32.gmra.mxu0 %v311
  %v434 = vpop.f32.mrf.mxu0
  %v435 = vadd.f32 %v406, %v434
  %436 = vmatmul.f32.gmra.mxu0 %v312
  %v437 = vpop.f32.mrf.mxu0
  %v438 = vadd.f32 %v409, %v437
  %439 = vmatmul.f32.gmra.mxu0 %v313
  %v440 = vpop.f32.mrf.mxu0
  %v441 = vadd.f32 %v412, %v440
  %442 = vmatmul.f32.gmra.mxu0 %v314
  %v443 = vpop.f32.mrf.mxu0
  %v444 = vadd.f32 %v415, %v443
  %445 = vdwg.mxu0
  %s446 = scalar_lea.vmem %s4, 32
  %v447 = vld [vmem:[%s446] sm:$0xff]
  %v448 = vld [vmem:[%s446 + $0x8] sm:$0xff]
  %449 = vmatpush.msra.mxu0 0.0
  %450 = vmatpush.msra.mxu0 0.0
  %451 = vmatpush.msra.mxu0 0.0
  %452 = vmatpush.msra.mxu0 0.0
  %453 = vmatpush.msra.mxu0 0.0
  %454 = vmatpush.msra.mxu0 0.0
  %455 = vmatpush.msra.mxu0 0.0
  %456 = vmatpush.msra.mxu0 0.0
  %457 = vmatpush.msra.mxu0 0.0
  %458 = vmatpush.msra.mxu0 0.0
  %459 = vmatpush.msra.mxu0 0.0
  %460 = vmatpush.msra.mxu0 0.0
  %461 = vmatpush.msra.mxu0 0.0
  %462 = vmatpush.msra.mxu0 0.0
  %463 = vmatpush.msra.mxu0 %v448
  %464 = vmatpush.msra.mxu0 %v447
  %465 = vmatmul.f32.gmra.mxu0 %v199
  %v466 = vpop.f32.mrf.mxu0
  %v467 = vadd.f32 0.0, %v466
  %468 = vmatmul.f32.gmra.mxu0 %v202
  %v469 = vpop.f32.mrf.mxu0
  %v470 = vadd.f32 0.0, %v469
  %471 = vmatmul.f32.gmra.mxu0 %v205
  %v472 = vpop.f32.mrf.mxu0
  %v473 = vadd.f32 0.0, %v472
  %474 = vmatmul.f32.gmra.mxu0 %v208
  %v475 = vpop.f32.mrf.mxu0
  %v476 = vadd.f32 0.0, %v475
  %477 = vmatmul.f32.gmra.mxu0 %v211
  %v478 = vpop.f32.mrf.mxu0
  %v479 = vadd.f32 0.0, %v478
  %480 = vmatmul.f32.gmra.mxu0 %v214
  %v481 = vpop.f32.mrf.mxu0
  %v482 = vadd.f32 0.0, %v481
  %483 = vmatmul.f32.gmra.mxu0 %v217
  %v484 = vpop.f32.mrf.mxu0
  %v485 = vadd.f32 0.0, %v484
  %486 = vmatmul.f32.gmra.mxu0 %v220
  %v487 = vpop.f32.mrf.mxu0
  %v488 = vadd.f32 0.0, %v487
  %489 = vmatmul.f32.gmra.mxu0 %v223
  %v490 = vpop.f32.mrf.mxu0
  %v491 = vadd.f32 0.0, %v490
  %492 = vmatmul.f32.gmra.mxu0 %v226
  %v493 = vpop.f32.mrf.mxu0
  %v494 = vadd.f32 0.0, %v493
  %495 = vmatmul.f32.gmra.mxu0 %v229
  %v496 = vpop.f32.mrf.mxu0
  %v497 = vadd.f32 0.0, %v496
  %498 = vmatmul.f32.gmra.mxu0 %v232
  %v499 = vpop.f32.mrf.mxu0
  %v500 = vadd.f32 0.0, %v499
  %501 = vmatmul.f32.gmra.mxu0 %v235
  %v502 = vpop.f32.mrf.mxu0
  %v503 = vadd.f32 0.0, %v502
  %504 = vmatmul.f32.gmra.mxu0 %v238
  %v505 = vpop.f32.mrf.mxu0
  %v506 = vadd.f32 0.0, %v505
  %507 = vmatmul.f32.gmra.mxu0 %v241
  %v508 = vpop.f32.mrf.mxu0
  %v509 = vadd.f32 0.0, %v508
  %510 = vmatmul.f32.gmra.mxu0 %v244
  %v511 = vpop.f32.mrf.mxu0
  %v512 = vadd.f32 0.0, %v511
  %513 = vdwg.mxu0
  %s514 = scalar_lea.vmem %s3, 64
  %v515 = vld [vmem:[%s514] sm:$0xff]
  %v516 = vld [vmem:[%s514 + $0x8] sm:$0xff]
  %v517 = vld [vmem:[%s514 + $0x10] sm:$0xff]
  %v518 = vld [vmem:[%s514 + $0x18] sm:$0xff]
  %519 = vmatpush.msra.mxu0 %v512
  %520 = vmatpush.msra.mxu0 %v509
  %521 = vmatpush.msra.mxu0 %v506
  %522 = vmatpush.msra.mxu0 %v503
  %523 = vmatpush.msra.mxu0 %v500
  %524 = vmatpush.msra.mxu0 %v497
  %525 = vmatpush.msra.mxu0 %v494
  %526 = vmatpush.msra.mxu0 %v491
  %527 = vmatpush.msra.mxu0 %v488
  %528 = vmatpush.msra.mxu0 %v485
  %529 = vmatpush.msra.mxu0 %v482
  %530 = vmatpush.msra.mxu0 %v479
  %531 = vmatpush.msra.mxu0 %v476
  %532 = vmatpush.msra.mxu0 %v473
  %533 = vmatpush.msra.mxu0 %v470
  %534 = vmatpush.msra.mxu0 %v467
  %535 = vmatmul.f32.gmra.mxu0 %v515
  %v536 = vpop.f32.mrf.mxu0
  %v537 = vadd.f32 0.0, %v536
  %538 = vmatmul.f32.gmra.mxu0 %v516
  %v539 = vpop.f32.mrf.mxu0
  %v540 = vadd.f32 0.0, %v539
  %541 = vmatmul.f32.gmra.mxu0 %v517
  %v542 = vpop.f32.mrf.mxu0
  %v543 = vadd.f32 0.0, %v542
  %544 = vmatmul.f32.gmra.mxu0 %v518
  %v545 = vpop.f32.mrf.mxu0
  %v546 = vadd.f32 0.0, %v545
  %547 = vdwg.mxu0
  %v548 = vadd.f32 %v435, %v537
  %v549 = vadd.f32 %v438, %v540
  %v550 = vadd.f32 %v441, %v543
  %v551 = vadd.f32 %v444, %v546
  %s552 = scalar_lea.vmem %s4, 48
  %v553 = vld [vmem:[%s552] sm:$0xff]
  %v554 = vld [vmem:[%s552 + $0x8] sm:$0xff]
  %555 = vmatpush.msra.mxu0 0.0
  %556 = vmatpush.msra.mxu0 0.0
  %557 = vmatpush.msra.mxu0 0.0
  %558 = vmatpush.msra.mxu0 0.0
  %559 = vmatpush.msra.mxu0 0.0
  %560 = vmatpush.msra.mxu0 0.0
  %561 = vmatpush.msra.mxu0 0.0
  %562 = vmatpush.msra.mxu0 0.0
  %563 = vmatpush.msra.mxu0 0.0
  %564 = vmatpush.msra.mxu0 0.0
  %565 = vmatpush.msra.mxu0 0.0
  %566 = vmatpush.msra.mxu0 0.0
  %567 = vmatpush.msra.mxu0 0.0
  %568 = vmatpush.msra.mxu0 0.0
  %569 = vmatpush.msra.mxu0 %v554
  %570 = vmatpush.msra.mxu0 %v553
  %571 = vmatmul.f32.gmra.mxu0 %v199
  %v572 = vpop.f32.mrf.mxu0
  %v573 = vadd.f32 0.0, %v572
  %574 = vmatmul.f32.gmra.mxu0 %v202
  %v575 = vpop.f32.mrf.mxu0
  %v576 = vadd.f32 0.0, %v575
  %577 = vmatmul.f32.gmra.mxu0 %v205
  %v578 = vpop.f32.mrf.mxu0
  %v579 = vadd.f32 0.0, %v578
  %580 = vmatmul.f32.gmra.mxu0 %v208
  %v581 = vpop.f32.mrf.mxu0
  %v582 = vadd.f32 0.0, %v581
  %583 = vmatmul.f32.gmra.mxu0 %v211
  %v584 = vpop.f32.mrf.mxu0
  %v585 = vadd.f32 0.0, %v584
  %586 = vmatmul.f32.gmra.mxu0 %v214
  %v587 = vpop.f32.mrf.mxu0
  %v588 = vadd.f32 0.0, %v587
  %589 = vmatmul.f32.gmra.mxu0 %v217
  %v590 = vpop.f32.mrf.mxu0
  %v591 = vadd.f32 0.0, %v590
  %592 = vmatmul.f32.gmra.mxu0 %v220
  %v593 = vpop.f32.mrf.mxu0
  %v594 = vadd.f32 0.0, %v593
  %595 = vmatmul.f32.gmra.mxu0 %v223
  %v596 = vpop.f32.mrf.mxu0
  %v597 = vadd.f32 0.0, %v596
  %598 = vmatmul.f32.gmra.mxu0 %v226
  %v599 = vpop.f32.mrf.mxu0
  %v600 = vadd.f32 0.0, %v599
  %601 = vmatmul.f32.gmra.mxu0 %v229
  %v602 = vpop.f32.mrf.mxu0
  %v603 = vadd.f32 0.0, %v602
  %604 = vmatmul.f32.gmra.mxu0 %v232
  %v605 = vpop.f32.mrf.mxu0
  %v606 = vadd.f32 0.0, %v605
  %607 = vmatmul.f32.gmra.mxu0 %v235
  %v608 = vpop.f32.mrf.mxu0
  %v609 = vadd.f32 0.0, %v608
  %610 = vmatmul.f32.gmra.mxu0 %v238
  %v611 = vpop.f32.mrf.mxu0
  %v612 = vadd.f32 0.0, %v611
  %613 = vmatmul.f32.gmra.mxu0 %v241
  %v614 = vpop.f32.mrf.mxu0
  %v615 = vadd.f32 0.0, %v614
  %616 = vmatmul.f32.gmra.mxu0 %v244
  %v617 = vpop.f32.mrf.mxu0
  %v618 = vadd.f32 0.0, %v617
  %619 = vdwg.mxu0
  %s620 = scalar_lea.vmem %s3, 96
  %v621 = vld [vmem:[%s620] sm:$0xff]
  %v622 = vld [vmem:[%s620 + $0x8] sm:$0xff]
  %v623 = vld [vmem:[%s620 + $0x10] sm:$0xff]
  %v624 = vld [vmem:[%s620 + $0x18] sm:$0xff]
  %625 = vmatpush.msra.mxu0 %v618
  %626 = vmatpush.msra.mxu0 %v615
  %627 = vmatpush.msra.mxu0 %v612
  %628 = vmatpush.msra.mxu0 %v609
  %629 = vmatpush.msra.mxu0 %v606
  %630 = vmatpush.msra.mxu0 %v603
  %631 = vmatpush.msra.mxu0 %v600
  %632 = vmatpush.msra.mxu0 %v597
  %633 = vmatpush.msra.mxu0 %v594
  %634 = vmatpush.msra.mxu0 %v591
  %635 = vmatpush.msra.mxu0 %v588
  %636 = vmatpush.msra.mxu0 %v585
  %637 = vmatpush.msra.mxu0 %v582
  %638 = vmatpush.msra.mxu0 %v579
  %639 = vmatpush.msra.mxu0 %v576
  %640 = vmatpush.msra.mxu0 %v573
  %641 = vmatmul.f32.gmra.mxu0 %v621
  %v642 = vpop.f32.mrf.mxu0
  %v643 = vadd.f32 0.0, %v642
  %644 = vmatmul.f32.gmra.mxu0 %v622
  %v645 = vpop.f32.mrf.mxu0
  %v646 = vadd.f32 0.0, %v645
  %647 = vmatmul.f32.gmra.mxu0 %v623
  %v648 = vpop.f32.mrf.mxu0
  %v649 = vadd.f32 0.0, %v648
  %650 = vmatmul.f32.gmra.mxu0 %v624
  %v651 = vpop.f32.mrf.mxu0
  %v652 = vadd.f32 0.0, %v651
  %653 = vdwg.mxu0
  %v654 = vadd.f32 %v548, %v643
  %v655 = vadd.f32 %v549, %v646
  %v656 = vadd.f32 %v550, %v649
  %v657 = vadd.f32 %v551, %v652
  %s658 = scalar_lea.vmem %s4, 64
  %v659 = vld [vmem:[%s658] sm:$0xff]
  %v660 = vld [vmem:[%s658 + $0x8] sm:$0xff]
  %661 = vmatpush.msra.mxu0 0.0
  %662 = vmatpush.msra.mxu0 0.0
  %663 = vmatpush.msra.mxu0 0.0
  %664 = vmatpush.msra.mxu0 0.0
  %665 = vmatpush.msra.mxu0 0.0
  %666 = vmatpush.msra.mxu0 0.0
  %667 = vmatpush.msra.mxu0 0.0
  %668 = vmatpush.msra.mxu0 0.0
  %669 = vmatpush.msra.mxu0 0.0
  %670 = vmatpush.msra.mxu0 0.0
  %671 = vmatpush.msra.mxu0 0.0
  %672 = vmatpush.msra.mxu0 0.0
  %673 = vmatpush.msra.mxu0 0.0
  %674 = vmatpush.msra.mxu0 0.0
  %675 = vmatpush.msra.mxu0 %v660
  %676 = vmatpush.msra.mxu0 %v659
  %677 = vmatmul.f32.gmra.mxu0 %v199
  %v678 = vpop.f32.mrf.mxu0
  %v679 = vadd.f32 0.0, %v678
  %680 = vmatmul.f32.gmra.mxu0 %v202
  %v681 = vpop.f32.mrf.mxu0
  %v682 = vadd.f32 0.0, %v681
  %683 = vmatmul.f32.gmra.mxu0 %v205
  %v684 = vpop.f32.mrf.mxu0
  %v685 = vadd.f32 0.0, %v684
  %686 = vmatmul.f32.gmra.mxu0 %v208
  %v687 = vpop.f32.mrf.mxu0
  %v688 = vadd.f32 0.0, %v687
  %689 = vmatmul.f32.gmra.mxu0 %v211
  %v690 = vpop.f32.mrf.mxu0
  %v691 = vadd.f32 0.0, %v690
  %692 = vmatmul.f32.gmra.mxu0 %v214
  %v693 = vpop.f32.mrf.mxu0
  %v694 = vadd.f32 0.0, %v693
  %695 = vmatmul.f32.gmra.mxu0 %v217
  %v696 = vpop.f32.mrf.mxu0
  %v697 = vadd.f32 0.0, %v696
  %698 = vmatmul.f32.gmra.mxu0 %v220
  %v699 = vpop.f32.mrf.mxu0
  %v700 = vadd.f32 0.0, %v699
  %701 = vmatmul.f32.gmra.mxu0 %v223
  %v702 = vpop.f32.mrf.mxu0
  %v703 = vadd.f32 0.0, %v702
  %704 = vmatmul.f32.gmra.mxu0 %v226
  %v705 = vpop.f32.mrf.mxu0
  %v706 = vadd.f32 0.0, %v705
  %707 = vmatmul.f32.gmra.mxu0 %v229
  %v708 = vpop.f32.mrf.mxu0
  %v709 = vadd.f32 0.0, %v708
  %710 = vmatmul.f32.gmra.mxu0 %v232
  %v711 = vpop.f32.mrf.mxu0
  %v712 = vadd.f32 0.0, %v711
  %713 = vmatmul.f32.gmra.mxu0 %v235
  %v714 = vpop.f32.mrf.mxu0
  %v715 = vadd.f32 0.0, %v714
  %716 = vmatmul.f32.gmra.mxu0 %v238
  %v717 = vpop.f32.mrf.mxu0
  %v718 = vadd.f32 0.0, %v717
  %719 = vmatmul.f32.gmra.mxu0 %v241
  %v720 = vpop.f32.mrf.mxu0
  %v721 = vadd.f32 0.0, %v720
  %722 = vmatmul.f32.gmra.mxu0 %v244
  %v723 = vpop.f32.mrf.mxu0
  %v724 = vadd.f32 0.0, %v723
  %725 = vdwg.mxu0
  %s726 = scalar_lea.vmem %s3, 128
  %v727 = vld [vmem:[%s726] sm:$0xff]
  %v728 = vld [vmem:[%s726 + $0x8] sm:$0xff]
  %v729 = vld [vmem:[%s726 + $0x10] sm:$0xff]
  %v730 = vld [vmem:[%s726 + $0x18] sm:$0xff]
  %731 = vmatpush.msra.mxu0 %v724
  %732 = vmatpush.msra.mxu0 %v721
  %733 = vmatpush.msra.mxu0 %v718
  %734 = vmatpush.msra.mxu0 %v715
  %735 = vmatpush.msra.mxu0 %v712
  %736 = vmatpush.msra.mxu0 %v709
  %737 = vmatpush.msra.mxu0 %v706
  %738 = vmatpush.msra.mxu0 %v703
  %739 = vmatpush.msra.mxu0 %v700
  %740 = vmatpush.msra.mxu0 %v697
  %741 = vmatpush.msra.mxu0 %v694
  %742 = vmatpush.msra.mxu0 %v691
  %743 = vmatpush.msra.mxu0 %v688
  %744 = vmatpush.msra.mxu0 %v685
  %745 = vmatpush.msra.mxu0 %v682
  %746 = vmatpush.msra.mxu0 %v679
  %747 = vmatmul.f32.gmra.mxu0 %v727
  %v748 = vpop.f32.mrf.mxu0
  %v749 = vadd.f32 0.0, %v748
  %750 = vmatmul.f32.gmra.mxu0 %v728
  %v751 = vpop.f32.mrf.mxu0
  %v752 = vadd.f32 0.0, %v751
  %753 = vmatmul.f32.gmra.mxu0 %v729
  %v754 = vpop.f32.mrf.mxu0
  %v755 = vadd.f32 0.0, %v754
  %756 = vmatmul.f32.gmra.mxu0 %v730
  %v757 = vpop.f32.mrf.mxu0
  %v758 = vadd.f32 0.0, %v757
  %759 = vdwg.mxu0
  %v760 = vadd.f32 %v654, %v749
  %v761 = vadd.f32 %v655, %v752
  %v762 = vadd.f32 %v656, %v755
  %v763 = vadd.f32 %v657, %v758
  %s764 = scalar_lea.vmem %s4, 80
  %v765 = vld [vmem:[%s764] sm:$0xff]
  %v766 = vld [vmem:[%s764 + $0x8] sm:$0xff]
  %767 = vmatpush.msra.mxu0 0.0
  %768 = vmatpush.msra.mxu0 0.0
  %769 = vmatpush.msra.mxu0 0.0
  %770 = vmatpush.msra.mxu0 0.0
  %771 = vmatpush.msra.mxu0 0.0
  %772 = vmatpush.msra.mxu0 0.0
  %773 = vmatpush.msra.mxu0 0.0
  %774 = vmatpush.msra.mxu0 0.0
  %775 = vmatpush.msra.mxu0 0.0
  %776 = vmatpush.msra.mxu0 0.0
  %777 = vmatpush.msra.mxu0 0.0
  %778 = vmatpush.msra.mxu0 0.0
  %779 = vmatpush.msra.mxu0 0.0
  %780 = vmatpush.msra.mxu0 0.0
  %781 = vmatpush.msra.mxu0 %v766
  %782 = vmatpush.msra.mxu0 %v765
  %783 = vmatmul.f32.gmra.mxu0 %v199
  %v784 = vpop.f32.mrf.mxu0
  %v785 = vadd.f32 0.0, %v784
  %786 = vmatmul.f32.gmra.mxu0 %v202
  %v787 = vpop.f32.mrf.mxu0
  %v788 = vadd.f32 0.0, %v787
  %789 = vmatmul.f32.gmra.mxu0 %v205
  %v790 = vpop.f32.mrf.mxu0
  %v791 = vadd.f32 0.0, %v790
  %792 = vmatmul.f32.gmra.mxu0 %v208
  %v793 = vpop.f32.mrf.mxu0
  %v794 = vadd.f32 0.0, %v793
  %795 = vmatmul.f32.gmra.mxu0 %v211
  %v796 = vpop.f32.mrf.mxu0
  %v797 = vadd.f32 0.0, %v796
  %798 = vmatmul.f32.gmra.mxu0 %v214
  %v799 = vpop.f32.mrf.mxu0
  %v800 = vadd.f32 0.0, %v799
  %801 = vmatmul.f32.gmra.mxu0 %v217
  %v802 = vpop.f32.mrf.mxu0
  %v803 = vadd.f32 0.0, %v802
  %804 = vmatmul.f32.gmra.mxu0 %v220
  %v805 = vpop.f32.mrf.mxu0
  %v806 = vadd.f32 0.0, %v805
  %807 = vmatmul.f32.gmra.mxu0 %v223
  %v808 = vpop.f32.mrf.mxu0
  %v809 = vadd.f32 0.0, %v808
  %810 = vmatmul.f32.gmra.mxu0 %v226
  %v811 = vpop.f32.mrf.mxu0
  %v812 = vadd.f32 0.0, %v811
  %813 = vmatmul.f32.gmra.mxu0 %v229
  %v814 = vpop.f32.mrf.mxu0
  %v815 = vadd.f32 0.0, %v814
  %816 = vmatmul.f32.gmra.mxu0 %v232
  %v817 = vpop.f32.mrf.mxu0
  %v818 = vadd.f32 0.0, %v817
  %819 = vmatmul.f32.gmra.mxu0 %v235
  %v820 = vpop.f32.mrf.mxu0
  %v821 = vadd.f32 0.0, %v820
  %822 = vmatmul.f32.gmra.mxu0 %v238
  %v823 = vpop.f32.mrf.mxu0
  %v824 = vadd.f32 0.0, %v823
  %825 = vmatmul.f32.gmra.mxu0 %v241
  %v826 = vpop.f32.mrf.mxu0
  %v827 = vadd.f32 0.0, %v826
  %828 = vmatmul.f32.gmra.mxu0 %v244
  %v829 = vpop.f32.mrf.mxu0
  %v830 = vadd.f32 0.0, %v829
  %831 = vdwg.mxu0
  %s832 = scalar_lea.vmem %s3, 160
  %v833 = vld [vmem:[%s832] sm:$0xff]
  %v834 = vld [vmem:[%s832 + $0x8] sm:$0xff]
  %v835 = vld [vmem:[%s832 + $0x10] sm:$0xff]
  %v836 = vld [vmem:[%s832 + $0x18] sm:$0xff]
  %837 = vmatpush.msra.mxu0 %v830
  %838 = vmatpush.msra.mxu0 %v827
  %839 = vmatpush.msra.mxu0 %v824
  %840 = vmatpush.msra.mxu0 %v821
  %841 = vmatpush.msra.mxu0 %v818
  %842 = vmatpush.msra.mxu0 %v815
  %843 = vmatpush.msra.mxu0 %v812
  %844 = vmatpush.msra.mxu0 %v809
  %845 = vmatpush.msra.mxu0 %v806
  %846 = vmatpush.msra.mxu0 %v803
  %847 = vmatpush.msra.mxu0 %v800
  %848 = vmatpush.msra.mxu0 %v797
  %849 = vmatpush.msra.mxu0 %v794
  %850 = vmatpush.msra.mxu0 %v791
  %851 = vmatpush.msra.mxu0 %v788
  %852 = vmatpush.msra.mxu0 %v785
  %853 = vmatmul.f32.gmra.mxu0 %v833
  %v854 = vpop.f32.mrf.mxu0
  %v855 = vadd.f32 0.0, %v854
  %856 = vmatmul.f32.gmra.mxu0 %v834
  %v857 = vpop.f32.mrf.mxu0
  %v858 = vadd.f32 0.0, %v857
  %859 = vmatmul.f32.gmra.mxu0 %v835
  %v860 = vpop.f32.mrf.mxu0
  %v861 = vadd.f32 0.0, %v860
  %862 = vmatmul.f32.gmra.mxu0 %v836
  %v863 = vpop.f32.mrf.mxu0
  %v864 = vadd.f32 0.0, %v863
  %865 = vdwg.mxu0
  %v866 = vadd.f32 %v760, %v855
  %v867 = vadd.f32 %v761, %v858
  %v868 = vadd.f32 %v762, %v861
  %v869 = vadd.f32 %v763, %v864
  %s870 = scalar_lea.vmem %s4, 96
  %v871 = vld [vmem:[%s870] sm:$0xff]
  %v872 = vld [vmem:[%s870 + $0x8] sm:$0xff]
  %873 = vmatpush.msra.mxu0 0.0
  %874 = vmatpush.msra.mxu0 0.0
  %875 = vmatpush.msra.mxu0 0.0
  %876 = vmatpush.msra.mxu0 0.0
  %877 = vmatpush.msra.mxu0 0.0
  %878 = vmatpush.msra.mxu0 0.0
  %879 = vmatpush.msra.mxu0 0.0
  %880 = vmatpush.msra.mxu0 0.0
  %881 = vmatpush.msra.mxu0 0.0
  %882 = vmatpush.msra.mxu0 0.0
  %883 = vmatpush.msra.mxu0 0.0
  %884 = vmatpush.msra.mxu0 0.0
  %885 = vmatpush.msra.mxu0 0.0
  %886 = vmatpush.msra.mxu0 0.0
  %887 = vmatpush.msra.mxu0 %v872
  %888 = vmatpush.msra.mxu0 %v871
  %889 = vmatmul.f32.gmra.mxu0 %v199
  %v890 = vpop.f32.mrf.mxu0
  %v891 = vadd.f32 0.0, %v890
  %892 = vmatmul.f32.gmra.mxu0 %v202
  %v893 = vpop.f32.mrf.mxu0
  %v894 = vadd.f32 0.0, %v893
  %895 = vmatmul.f32.gmra.mxu0 %v205
  %v896 = vpop.f32.mrf.mxu0
  %v897 = vadd.f32 0.0, %v896
  %898 = vmatmul.f32.gmra.mxu0 %v208
  %v899 = vpop.f32.mrf.mxu0
  %v900 = vadd.f32 0.0, %v899
  %901 = vmatmul.f32.gmra.mxu0 %v211
  %v902 = vpop.f32.mrf.mxu0
  %v903 = vadd.f32 0.0, %v902
  %904 = vmatmul.f32.gmra.mxu0 %v214
  %v905 = vpop.f32.mrf.mxu0
  %v906 = vadd.f32 0.0, %v905
  %907 = vmatmul.f32.gmra.mxu0 %v217
  %v908 = vpop.f32.mrf.mxu0
  %v909 = vadd.f32 0.0, %v908
  %910 = vmatmul.f32.gmra.mxu0 %v220
  %v911 = vpop.f32.mrf.mxu0
  %v912 = vadd.f32 0.0, %v911
  %913 = vmatmul.f32.gmra.mxu0 %v223
  %v914 = vpop.f32.mrf.mxu0
  %v915 = vadd.f32 0.0, %v914
  %916 = vmatmul.f32.gmra.mxu0 %v226
  %v917 = vpop.f32.mrf.mxu0
  %v918 = vadd.f32 0.0, %v917
  %919 = vmatmul.f32.gmra.mxu0 %v229
  %v920 = vpop.f32.mrf.mxu0
  %v921 = vadd.f32 0.0, %v920
  %922 = vmatmul.f32.gmra.mxu0 %v232
  %v923 = vpop.f32.mrf.mxu0
  %v924 = vadd.f32 0.0, %v923
  %925 = vmatmul.f32.gmra.mxu0 %v235
  %v926 = vpop.f32.mrf.mxu0
  %v927 = vadd.f32 0.0, %v926
  %928 = vmatmul.f32.gmra.mxu0 %v238
  %v929 = vpop.f32.mrf.mxu0
  %v930 = vadd.f32 0.0, %v929
  %931 = vmatmul.f32.gmra.mxu0 %v241
  %v932 = vpop.f32.mrf.mxu0
  %v933 = vadd.f32 0.0, %v932
  %934 = vmatmul.f32.gmra.mxu0 %v244
  %v935 = vpop.f32.mrf.mxu0
  %v936 = vadd.f32 0.0, %v935
  %937 = vdwg.mxu0
  %s938 = scalar_lea.vmem %s3, 192
  %v939 = vld [vmem:[%s938] sm:$0xff]
  %v940 = vld [vmem:[%s938 + $0x8] sm:$0xff]
  %v941 = vld [vmem:[%s938 + $0x10] sm:$0xff]
  %v942 = vld [vmem:[%s938 + $0x18] sm:$0xff]
  %943 = vmatpush.msra.mxu0 %v936
  %944 = vmatpush.msra.mxu0 %v933
  %945 = vmatpush.msra.mxu0 %v930
  %946 = vmatpush.msra.mxu0 %v927
  %947 = vmatpush.msra.mxu0 %v924
  %948 = vmatpush.msra.mxu0 %v921
  %949 = vmatpush.msra.mxu0 %v918
  %950 = vmatpush.msra.mxu0 %v915
  %951 = vmatpush.msra.mxu0 %v912
  %952 = vmatpush.msra.mxu0 %v909
  %953 = vmatpush.msra.mxu0 %v906
  %954 = vmatpush.msra.mxu0 %v903
  %955 = vmatpush.msra.mxu0 %v900
  %956 = vmatpush.msra.mxu0 %v897
  %957 = vmatpush.msra.mxu0 %v894
  %958 = vmatpush.msra.mxu0 %v891
  %959 = vmatmul.f32.gmra.mxu0 %v939
  %v960 = vpop.f32.mrf.mxu0
  %v961 = vadd.f32 0.0, %v960
  %962 = vmatmul.f32.gmra.mxu0 %v940
  %v963 = vpop.f32.mrf.mxu0
  %v964 = vadd.f32 0.0, %v963
  %965 = vmatmul.f32.gmra.mxu0 %v941
  %v966 = vpop.f32.mrf.mxu0
  %v967 = vadd.f32 0.0, %v966
  %968 = vmatmul.f32.gmra.mxu0 %v942
  %v969 = vpop.f32.mrf.mxu0
  %v970 = vadd.f32 0.0, %v969
  %971 = vdwg.mxu0
  %v972 = vadd.f32 %v866, %v961
  %v973 = vadd.f32 %v867, %v964
  %v974 = vadd.f32 %v868, %v967
  %v975 = vadd.f32 %v869, %v970
  %s976 = scalar_lea.vmem %s4, 112
  %v977 = vld [vmem:[%s976] sm:$0xff]
  %v978 = vld [vmem:[%s976 + $0x8] sm:$0xff]
  %979 = vmatpush.msra.mxu0 0.0
  %980 = vmatpush.msra.mxu0 0.0
  %981 = vmatpush.msra.mxu0 0.0
  %982 = vmatpush.msra.mxu0 0.0
  %983 = vmatpush.msra.mxu0 0.0
  %984 = vmatpush.msra.mxu0 0.0
  %985 = vmatpush.msra.mxu0 0.0
  %986 = vmatpush.msra.mxu0 0.0
  %987 = vmatpush.msra.mxu0 0.0
  %988 = vmatpush.msra.mxu0 0.0
  %989 = vmatpush.msra.mxu0 0.0
  %990 = vmatpush.msra.mxu0 0.0
  %991 = vmatpush.msra.mxu0 0.0
  %992 = vmatpush.msra.mxu0 0.0
  %993 = vmatpush.msra.mxu0 %v978
  %994 = vmatpush.msra.mxu0 %v977
  %995 = vmatmul.f32.gmra.mxu0 %v199
  %v996 = vpop.f32.mrf.mxu0
  %v997 = vadd.f32 0.0, %v996
  %998 = vmatmul.f32.gmra.mxu0 %v202
  %v999 = vpop.f32.mrf.mxu0
  %v1000 = vadd.f32 0.0, %v999
  %1001 = vmatmul.f32.gmra.mxu0 %v205
  %v1002 = vpop.f32.mrf.mxu0
  %v1003 = vadd.f32 0.0, %v1002
  %1004 = vmatmul.f32.gmra.mxu0 %v208
  %v1005 = vpop.f32.mrf.mxu0
  %v1006 = vadd.f32 0.0, %v1005
  %1007 = vmatmul.f32.gmra.mxu0 %v211
  %v1008 = vpop.f32.mrf.mxu0
  %v1009 = vadd.f32 0.0, %v1008
  %1010 = vmatmul.f32.gmra.mxu0 %v214
  %v1011 = vpop.f32.mrf.mxu0
  %v1012 = vadd.f32 0.0, %v1011
  %1013 = vmatmul.f32.gmra.mxu0 %v217
  %v1014 = vpop.f32.mrf.mxu0
  %v1015 = vadd.f32 0.0, %v1014
  %1016 = vmatmul.f32.gmra.mxu0 %v220
  %v1017 = vpop.f32.mrf.mxu0
  %v1018 = vadd.f32 0.0, %v1017
  %1019 = vmatmul.f32.gmra.mxu0 %v223
  %v1020 = vpop.f32.mrf.mxu0
  %v1021 = vadd.f32 0.0, %v1020
  %1022 = vmatmul.f32.gmra.mxu0 %v226
  %v1023 = vpop.f32.mrf.mxu0
  %v1024 = vadd.f32 0.0, %v1023
  %1025 = vmatmul.f32.gmra.mxu0 %v229
  %v1026 = vpop.f32.mrf.mxu0
  %v1027 = vadd.f32 0.0, %v1026
  %1028 = vmatmul.f32.gmra.mxu0 %v232
  %v1029 = vpop.f32.mrf.mxu0
  %v1030 = vadd.f32 0.0, %v1029
  %1031 = vmatmul.f32.gmra.mxu0 %v235
  %v1032 = vpop.f32.mrf.mxu0
  %v1033 = vadd.f32 0.0, %v1032
  %1034 = vmatmul.f32.gmra.mxu0 %v238
  %v1035 = vpop.f32.mrf.mxu0
  %v1036 = vadd.f32 0.0, %v1035
  %1037 = vmatmul.f32.gmra.mxu0 %v241
  %v1038 = vpop.f32.mrf.mxu0
  %v1039 = vadd.f32 0.0, %v1038
  %1040 = vmatmul.f32.gmra.mxu0 %v244
  %v1041 = vpop.f32.mrf.mxu0
  %v1042 = vadd.f32 0.0, %v1041
  %1043 = vdwg.mxu0
  %s1044 = scalar_lea.vmem %s3, 224
  %v1045 = vld [vmem:[%s1044] sm:$0xff]
  %v1046 = vld [vmem:[%s1044 + $0x8] sm:$0xff]
  %v1047 = vld [vmem:[%s1044 + $0x10] sm:$0xff]
  %v1048 = vld [vmem:[%s1044 + $0x18] sm:$0xff]
  %1049 = vmatpush.msra.mxu0 %v1042
  %1050 = vmatpush.msra.mxu0 %v1039
  %1051 = vmatpush.msra.mxu0 %v1036
  %1052 = vmatpush.msra.mxu0 %v1033
  %1053 = vmatpush.msra.mxu0 %v1030
  %1054 = vmatpush.msra.mxu0 %v1027
  %1055 = vmatpush.msra.mxu0 %v1024
  %1056 = vmatpush.msra.mxu0 %v1021
  %1057 = vmatpush.msra.mxu0 %v1018
  %1058 = vmatpush.msra.mxu0 %v1015
  %1059 = vmatpush.msra.mxu0 %v1012
  %1060 = vmatpush.msra.mxu0 %v1009
  %1061 = vmatpush.msra.mxu0 %v1006
  %1062 = vmatpush.msra.mxu0 %v1003
  %1063 = vmatpush.msra.mxu0 %v1000
  %1064 = vmatpush.msra.mxu0 %v997
  %1065 = vmatmul.f32.gmra.mxu0 %v1045
  %v1066 = vpop.f32.mrf.mxu0
  %v1067 = vadd.f32 0.0, %v1066
  %1068 = vmatmul.f32.gmra.mxu0 %v1046
  %v1069 = vpop.f32.mrf.mxu0
  %v1070 = vadd.f32 0.0, %v1069
  %1071 = vmatmul.f32.gmra.mxu0 %v1047
  %v1072 = vpop.f32.mrf.mxu0
  %v1073 = vadd.f32 0.0, %v1072
  %1074 = vmatmul.f32.gmra.mxu0 %v1048
  %v1075 = vpop.f32.mrf.mxu0
  %v1076 = vadd.f32 0.0, %v1075
  %1077 = vdwg.mxu0
  %v1078 = vadd.f32 %v972, %v1067
  %v1079 = vadd.f32 %v973, %v1070
  %v1080 = vadd.f32 %v974, %v1073
  %v1081 = vadd.f32 %v975, %v1076
  %s1082 = scalar_lea.vmem %s4, 128
  %v1083 = vld [vmem:[%s1082] sm:$0xff]
  %v1084 = vld [vmem:[%s1082 + $0x8] sm:$0xff]
  %1085 = vmatpush.msra.mxu0 0.0
  %1086 = vmatpush.msra.mxu0 0.0
  %1087 = vmatpush.msra.mxu0 0.0
  %1088 = vmatpush.msra.mxu0 0.0
  %1089 = vmatpush.msra.mxu0 0.0
  %1090 = vmatpush.msra.mxu0 0.0
  %1091 = vmatpush.msra.mxu0 0.0
  %1092 = vmatpush.msra.mxu0 0.0
  %1093 = vmatpush.msra.mxu0 0.0
  %1094 = vmatpush.msra.mxu0 0.0
  %1095 = vmatpush.msra.mxu0 0.0
  %1096 = vmatpush.msra.mxu0 0.0
  %1097 = vmatpush.msra.mxu0 0.0
  %1098 = vmatpush.msra.mxu0 0.0
  %1099 = vmatpush.msra.mxu0 %v1084
  %1100 = vmatpush.msra.mxu0 %v1083
  %1101 = vmatmul.f32.gmra.mxu0 %v199
  %v1102 = vpop.f32.mrf.mxu0
  %v1103 = vadd.f32 0.0, %v1102
  %1104 = vmatmul.f32.gmra.mxu0 %v202
  %v1105 = vpop.f32.mrf.mxu0
  %v1106 = vadd.f32 0.0, %v1105
  %1107 = vmatmul.f32.gmra.mxu0 %v205
  %v1108 = vpop.f32.mrf.mxu0
  %v1109 = vadd.f32 0.0, %v1108
  %1110 = vmatmul.f32.gmra.mxu0 %v208
  %v1111 = vpop.f32.mrf.mxu0
  %v1112 = vadd.f32 0.0, %v1111
  %1113 = vmatmul.f32.gmra.mxu0 %v211
  %v1114 = vpop.f32.mrf.mxu0
  %v1115 = vadd.f32 0.0, %v1114
  %1116 = vmatmul.f32.gmra.mxu0 %v214
  %v1117 = vpop.f32.mrf.mxu0
  %v1118 = vadd.f32 0.0, %v1117
  %1119 = vmatmul.f32.gmra.mxu0 %v217
  %v1120 = vpop.f32.mrf.mxu0
  %v1121 = vadd.f32 0.0, %v1120
  %1122 = vmatmul.f32.gmra.mxu0 %v220
  %v1123 = vpop.f32.mrf.mxu0
  %v1124 = vadd.f32 0.0, %v1123
  %1125 = vmatmul.f32.gmra.mxu0 %v223
  %v1126 = vpop.f32.mrf.mxu0
  %v1127 = vadd.f32 0.0, %v1126
  %1128 = vmatmul.f32.gmra.mxu0 %v226
  %v1129 = vpop.f32.mrf.mxu0
  %v1130 = vadd.f32 0.0, %v1129
  %1131 = vmatmul.f32.gmra.mxu0 %v229
  %v1132 = vpop.f32.mrf.mxu0
  %v1133 = vadd.f32 0.0, %v1132
  %1134 = vmatmul.f32.gmra.mxu0 %v232
  %v1135 = vpop.f32.mrf.mxu0
  %v1136 = vadd.f32 0.0, %v1135
  %1137 = vmatmul.f32.gmra.mxu0 %v235
  %v1138 = vpop.f32.mrf.mxu0
  %v1139 = vadd.f32 0.0, %v1138
  %1140 = vmatmul.f32.gmra.mxu0 %v238
  %v1141 = vpop.f32.mrf.mxu0
  %v1142 = vadd.f32 0.0, %v1141
  %1143 = vmatmul.f32.gmra.mxu0 %v241
  %v1144 = vpop.f32.mrf.mxu0
  %v1145 = vadd.f32 0.0, %v1144
  %1146 = vmatmul.f32.gmra.mxu0 %v244
  %v1147 = vpop.f32.mrf.mxu0
  %v1148 = vadd.f32 0.0, %v1147
  %1149 = vdwg.mxu0
  %s1150 = scalar_lea.vmem %s3, 256
  %v1151 = vld [vmem:[%s1150] sm:$0xff]
  %v1152 = vld [vmem:[%s1150 + $0x8] sm:$0xff]
  %v1153 = vld [vmem:[%s1150 + $0x10] sm:$0xff]
  %v1154 = vld [vmem:[%s1150 + $0x18] sm:$0xff]
  %1155 = vmatpush.msra.mxu0 %v1148
  %1156 = vmatpush.msra.mxu0 %v1145
  %1157 = vmatpush.msra.mxu0 %v1142
  %1158 = vmatpush.msra.mxu0 %v1139
  %1159 = vmatpush.msra.mxu0 %v1136
  %1160 = vmatpush.msra.mxu0 %v1133
  %1161 = vmatpush.msra.mxu0 %v1130
  %1162 = vmatpush.msra.mxu0 %v1127
  %1163 = vmatpush.msra.mxu0 %v1124
  %1164 = vmatpush.msra.mxu0 %v1121
  %1165 = vmatpush.msra.mxu0 %v1118
  %1166 = vmatpush.msra.mxu0 %v1115
  %1167 = vmatpush.msra.mxu0 %v1112
  %1168 = vmatpush.msra.mxu0 %v1109
  %1169 = vmatpush.msra.mxu0 %v1106
  %1170 = vmatpush.msra.mxu0 %v1103
  %1171 = vmatmul.f32.gmra.mxu0 %v1151
  %v1172 = vpop.f32.mrf.mxu0
  %v1173 = vadd.f32 0.0, %v1172
  %1174 = vmatmul.f32.gmra.mxu0 %v1152
  %v1175 = vpop.f32.mrf.mxu0
  %v1176 = vadd.f32 0.0, %v1175
  %1177 = vmatmul.f32.gmra.mxu0 %v1153
  %v1178 = vpop.f32.mrf.mxu0
  %v1179 = vadd.f32 0.0, %v1178
  %1180 = vmatmul.f32.gmra.mxu0 %v1154
  %v1181 = vpop.f32.mrf.mxu0
  %v1182 = vadd.f32 0.0, %v1181
  %1183 = vdwg.mxu0
  %v1184 = vadd.f32 %v1078, %v1173
  %v1185 = vadd.f32 %v1079, %v1176
  %v1186 = vadd.f32 %v1080, %v1179
  %v1187 = vadd.f32 %v1081, %v1182
  %v1188 = vld [vmem:[%s5] sm:$0x1]
  %v1190 = vperm.slane %v1188, 0
  %v1192 = vadd.f32 %v1184, %v1190
  %v1193 = vadd.f32 %v1185, %v1190
  %v1194 = vadd.f32 %v1186, %v1190
  %v1195 = vadd.f32 %v1187, %v1190
  %v1196 = vmax.f32 %v1192, 0.0
  %v1197 = vmax.f32 %v1193, 0.0
  %v1198 = vmax.f32 %v1194, 0.0
  %v1199 = vmax.f32 %v1195, 0.0
  %1200 = vst.msk [vmem:[%s7] sm:$0xff] %vm49, %v1196
  %1201 = vst.msk [vmem:[%s7 + $0x8] sm:$0xff] %vm49, %v1197
  %1202 = vst.msk [vmem:[%s7 + $0x10] sm:$0xff] %vm49, %v1198
  %1203 = vst.msk [vmem:[%s7 + $0x18] sm:$0xff] %vm49, %v1199
  // Predicated region
  $region26: #{pixel2mesh_forward.4} parent=0 // pred_check
    _
  $region27: #{pixel2mesh_forward.4} parent=0 // pred_check_branch
    %1205 = sbr.rel (0) target = $region29
  $region28: #{pixel2mesh_forward.4} parent=0 // pred_region
    _
  $region29: #{pixel2mesh_forward.4} parent=0 // pred_fallthru
    _
  // Predicated region
  $region30: #{pixel2mesh_forward.4} parent=0 // pred_check
    _
  $region31: #{pixel2mesh_forward.4} parent=0 // pred_check_branch
    %1207 = sbr.rel (0) target = $region33
  $region32: #{pixel2mesh_forward.4} parent=0 // pred_region
    _
  $region33: #{pixel2mesh_forward.4} parent=0 // pred_fallthru
    _
  // Predicated region
  $region34: #{pixel2mesh_forward.4} parent=0 // pred_check
    _
  $region35: #{pixel2mesh_forward.4} parent=0 // pred_check_branch
    %1209 = sbr.rel (0) target = $region37
  $region36: #{pixel2mesh_forward.4} parent=0 // pred_region
    _
  $region37: #{pixel2mesh_forward.4} parent=0 // pred_fallthru
    _
  // Predicated region
  $region38: #{pixel2mesh_forward.4} parent=0 // pred_check
    _
  $region39: #{pixel2mesh_forward.4} parent=0 // pred_check_branch
    %1211 = sbr.rel (0) target = $region41
  $region40: #{pixel2mesh_forward.4} parent=0 // pred_region
    _
  $region41: #{pixel2mesh_forward.4} parent=0 // pred_fallthru
    _

// kernel: pixel2mesh_forward.5
$region0: #{pixel2mesh_forward.5}
  #allocation0 [shape = 'u32[]', space=smem, size = 0x4, offset = 0x4, fixed_abs, tag = 'smem constant byte address 0x4 - core index']
  #allocation1 [shape = 'u32[72,128]{1,0:T(1,128)}', space=vmem, size = 0x9000, scoped, tag = 'internal scratch']
  %s0 = inlined_call_operand.vmem [shape: f32[32,56], index: 0, kind: input, shape index: {}]
  %s1 = inlined_call_operand.vmem [shape: f32[32,32], index: 1, kind: input, shape index: {}]
  %s2 = inlined_call_operand.vmem [shape: f32[56,64], index: 2, kind: input, shape index: {}]
  %s3 = inlined_call_operand.vmem [shape: f32[1,32], index: 3, kind: input, shape index: {}]
  %s4 = inlined_call_operand.vmem [shape: f32[12,32,64], index: 4, kind: input, shape index: {}]
  %s5 = inlined_call_operand.vmem [shape: f32[12,1,32], index: 5, kind: input, shape index: {}]
  %s6 = inlined_call_operand.vmem [shape: f32[32,256], index: 6, kind: input, shape index: {}]
  %s7 = inlined_call_operand.vmem [shape: f32[1,128], index: 7, kind: input, shape index: {}]
  %s8 = inlined_call_operand.vmem [shape: f32[32,32], index: 8, kind: output, shape index: {0}]
  %s9 = inlined_call_operand.vmem [shape: f32[32,128], index: 9, kind: output, shape index: {1}]
  %10 = xla_tuple %s8, %s9
  %s11 = sld [smem:[#allocation0]]
  $region50: #{pixel2mesh_forward.5} parent=0
    _
  %s13 = ssub.s32 1, %s11
  %s14 = scalar_select 0, %s13, %s11
  // Predicated region
  $region2: #{pixel2mesh_forward.5} parent=0 // pred_check
    _
  $region3: #{pixel2mesh_forward.5} parent=0 // pred_check_branch
    %16 = sbr.rel (0) target = $region5
  $region4: #{pixel2mesh_forward.5} parent=0 // pred_region
    _
  $region5: #{pixel2mesh_forward.5} parent=0 // pred_fallthru
    _
  // Predicated region
  $region6: #{pixel2mesh_forward.5} parent=0 // pred_check
    _
  $region7: #{pixel2mesh_forward.5} parent=0 // pred_check_branch
    %18 = sbr.rel (0) target = $region9
  $region8: #{pixel2mesh_forward.5} parent=0 // pred_region
    _
  $region9: #{pixel2mesh_forward.5} parent=0 // pred_fallthru
    _
  // Predicated region
  $region10: #{pixel2mesh_forward.5} parent=0 // pred_check
    _
  $region11: #{pixel2mesh_forward.5} parent=0 // pred_check_branch
    %20 = sbr.rel (0) target = $region13
  $region12: #{pixel2mesh_forward.5} parent=0 // pred_region
    _
  $region13: #{pixel2mesh_forward.5} parent=0 // pred_fallthru
    _
  // Predicated region
  $region14: #{pixel2mesh_forward.5} parent=0 // pred_check
    _
  $region15: #{pixel2mesh_forward.5} parent=0 // pred_check_branch
    %22 = sbr.rel (0) target = $region17
  $region16: #{pixel2mesh_forward.5} parent=0 // pred_region
    _
  $region17: #{pixel2mesh_forward.5} parent=0 // pred_fallthru
    _
  // Predicated region
  $region18: #{pixel2mesh_forward.5} parent=0 // pred_check
    _
  $region19: #{pixel2mesh_forward.5} parent=0 // pred_check_branch
    %24 = sbr.rel (0) target = $region21
  $region20: #{pixel2mesh_forward.5} parent=0 // pred_region
    _
  $region21: #{pixel2mesh_forward.5} parent=0 // pred_fallthru
    _
  // Predicated region
  $region22: #{pixel2mesh_forward.5} parent=0 // pred_check
    _
  $region23: #{pixel2mesh_forward.5} parent=0 // pred_check_branch
    %26 = sbr.rel (0) target = $region25
  $region24: #{pixel2mesh_forward.5} parent=0 // pred_region
    _
  $region25: #{pixel2mesh_forward.5} parent=0 // pred_fallthru
    _
  // Predicated region
  $region26: #{pixel2mesh_forward.5} parent=0 // pred_check
    _
  $region27: #{pixel2mesh_forward.5} parent=0 // pred_check_branch
    %28 = sbr.rel (0) target = $region29
  $region28: #{pixel2mesh_forward.5} parent=0 // pred_region
    _
  $region29: #{pixel2mesh_forward.5} parent=0 // pred_fallthru
    _
  // Predicated region
  $region30: #{pixel2mesh_forward.5} parent=0 // pred_check
    _
  $region31: #{pixel2mesh_forward.5} parent=0 // pred_check_branch
    %30 = sbr.rel (0) target = $region33
  $region32: #{pixel2mesh_forward.5} parent=0 // pred_region
    _
  $region33: #{pixel2mesh_forward.5} parent=0 // pred_fallthru
    _
  %v31 = vld [vmem:[%s1] sm:$0xff]
  %v32 = vld [vmem:[%s1 + $0x8] sm:$0xff]
  %v33 = vld [vmem:[%s1 + $0x10] sm:$0xff]
  %v34 = vld [vmem:[%s1 + $0x18] sm:$0xff]
  %v35 = vld [vmem:[%s0] sm:$0xff]
  %v36 = vld [vmem:[%s0 + $0x8] sm:$0xff]
  %v37 = vld [vmem:[%s0 + $0x10] sm:$0xff]
  %v38 = vld [vmem:[%s0 + $0x18] sm:$0xff]
  %v39 = vld [vmem:[%s2] sm:$0xff]
  %v40 = vld [vmem:[%s2 + $0x8] sm:$0xff]
  %v41 = vld [vmem:[%s2 + $0x10] sm:$0xff]
  %v42 = vld [vmem:[%s2 + $0x18] sm:$0xff]
  %v43 = vld [vmem:[%s2 + $0x20] sm:$0xff]
  %v44 = vld [vmem:[%s2 + $0x28] sm:$0xff]
  %v45 = vld [vmem:[%s2 + $0x30] sm:$0xff]
  %v46 = vld [vmem:[%s3] sm:$0x1]
  %vm47 = vcmask 457728
  %v49 = vsel %vm47, %v35, 0
  %v52 = vsel %vm47, %v36, 0
  %v55 = vsel %vm47, %v37, 0
  %v58 = vsel %vm47, %v38, 0
  %60 = vmatpush.msra.mxu0 0.0
  %61 = vmatpush.msra.mxu0 0.0
  %62 = vmatpush.msra.mxu0 0.0
  %63 = vmatpush.msra.mxu0 0.0
  %64 = vmatpush.msra.mxu0 0.0
  %65 = vmatpush.msra.mxu0 0.0
  %66 = vmatpush.msra.mxu0 0.0
  %67 = vmatpush.msra.mxu0 0.0
  %68 = vmatpush.msra.mxu0 0.0
  %69 = vmatpush.msra.mxu0 %v45
  %70 = vmatpush.msra.mxu0 %v44
  %71 = vmatpush.msra.mxu0 %v43
  %72 = vmatpush.msra.mxu0 %v42
  %73 = vmatpush.msra.mxu0 %v41
  %74 = vmatpush.msra.mxu0 %v40
  %75 = vmatpush.msra.mxu0 %v39
  %76 = vmatmul.f32.gmra.mxu0 %v49
  %v77 = vpop.f32.mrf.mxu0
  %v78 = vadd.f32 0.0, %v77
  %79 = vmatmul.f32.gmra.mxu0 %v52
  %v80 = vpop.f32.mrf.mxu0
  %v81 = vadd.f32 0.0, %v80
  %82 = vmatmul.f32.gmra.mxu0 %v55
  %v83 = vpop.f32.mrf.mxu0
  %v84 = vadd.f32 0.0, %v83
  %85 = vmatmul.f32.gmra.mxu0 %v58
  %v86 = vpop.f32.mrf.mxu0
  %v87 = vadd.f32 0.0, %v86
  %88 = vdwg.mxu0
  %93 = vrot.lane.b32.xlu0 %v78, 96
  %v94 = vpop.permute.xlu0 %93
  %95 = vrot.lane.b32.xlu0 %v81, 96
  %v96 = vpop.permute.xlu0 %95
  %97 = vrot.lane.b32.xlu0 %v84, 96
  %v98 = vpop.permute.xlu0 %97
  %99 = vrot.lane.b32.xlu0 %v87, 96
  %v100 = vpop.permute.xlu0 %99
  %vm105 = vcmask 261120
  %v107 = vsel %vm105, %v31, 0
  %v110 = vsel %vm105, %v32, 0
  %v113 = vsel %vm105, %v33, 0
  %v116 = vsel %vm105, %v34, 0
  %118 = vmatpush.msra.mxu0 0.0
  %119 = vmatpush.msra.mxu0 0.0
  %120 = vmatpush.msra.mxu0 0.0
  %121 = vmatpush.msra.mxu0 0.0
  %122 = vmatpush.msra.mxu0 0.0
  %123 = vmatpush.msra.mxu0 0.0
  %124 = vmatpush.msra.mxu0 0.0
  %125 = vmatpush.msra.mxu0 0.0
  %126 = vmatpush.msra.mxu0 0.0
  %127 = vmatpush.msra.mxu0 0.0
  %128 = vmatpush.msra.mxu0 0.0
  %129 = vmatpush.msra.mxu0 0.0
  %130 = vmatpush.msra.mxu0 %v87
  %131 = vmatpush.msra.mxu0 %v84
  %132 = vmatpush.msra.mxu0 %v81
  %133 = vmatpush.msra.mxu0 %v78
  %134 = vmatmul.f32.gmra.mxu0 %v107
  %v135 = vpop.f32.mrf.mxu0
  %v136 = vadd.f32 %v94, %v135
  %137 = vmatmul.f32.gmra.mxu0 %v110
  %v138 = vpop.f32.mrf.mxu0
  %v139 = vadd.f32 %v96, %v138
  %140 = vmatmul.f32.gmra.mxu0 %v113
  %v141 = vpop.f32.mrf.mxu0
  %v142 = vadd.f32 %v98, %v141
  %143 = vmatmul.f32.gmra.mxu0 %v116
  %v144 = vpop.f32.mrf.mxu0
  %v145 = vadd.f32 %v100, %v144
  %146 = vdwg.mxu0
  %v148 = vperm.slane %v46, 0
  %v150 = vadd.f32 %v136, %v148
  %v151 = vadd.f32 %v139, %v148
  %v152 = vadd.f32 %v142, %v148
  %v153 = vadd.f32 %v145, %v148
  %v154 = vmax.f32 %v150, 0.0
  %v155 = vmax.f32 %v151, 0.0
  %v156 = vmax.f32 %v152, 0.0
  %v157 = vmax.f32 %v153, 0.0
  %v158 = vld [vmem:[%s4] sm:$0xff]
  %v159 = vld [vmem:[%s4 + $0x8] sm:$0xff]
  %v160 = vld [vmem:[%s4 + $0x10] sm:$0xff]
  %v161 = vld [vmem:[%s4 + $0x18] sm:$0xff]
  %v162 = vld [vmem:[%s5] sm:$0x1]
  %v164 = vsel %vm105, %v154, 0
  %v167 = vsel %vm105, %v155, 0
  %v170 = vsel %vm105, %v156, 0
  %v173 = vsel %vm105, %v157, 0
  %175 = vmatpush.msra.mxu0 0.0
  %176 = vmatpush.msra.mxu0 0.0
  %177 = vmatpush.msra.mxu0 0.0
  %178 = vmatpush.msra.mxu0 0.0
  %179 = vmatpush.msra.mxu0 0.0
  %180 = vmatpush.msra.mxu0 0.0
  %181 = vmatpush.msra.mxu0 0.0
  %182 = vmatpush.msra.mxu0 0.0
  %183 = vmatpush.msra.mxu0 0.0
  %184 = vmatpush.msra.mxu0 0.0
  %185 = vmatpush.msra.mxu0 0.0
  %186 = vmatpush.msra.mxu0 0.0
  %187 = vmatpush.msra.mxu0 %v161
  %188 = vmatpush.msra.mxu0 %v160
  %189 = vmatpush.msra.mxu0 %v159
  %190 = vmatpush.msra.mxu0 %v158
  %191 = vmatmul.f32.gmra.mxu0 %v164
  %v192 = vpop.f32.mrf.mxu0
  %v193 = vadd.f32 0.0, %v192
  %194 = vmatmul.f32.gmra.mxu0 %v167
  %v195 = vpop.f32.mrf.mxu0
  %v196 = vadd.f32 0.0, %v195
  %197 = vmatmul.f32.gmra.mxu0 %v170
  %v198 = vpop.f32.mrf.mxu0
  %v199 = vadd.f32 0.0, %v198
  %200 = vmatmul.f32.gmra.mxu0 %v173
  %v201 = vpop.f32.mrf.mxu0
  %v202 = vadd.f32 0.0, %v201
  %203 = vdwg.mxu0
  %208 = vrot.lane.b32.xlu0 %v193, 96
  %v209 = vpop.permute.xlu0 %208
  %210 = vrot.lane.b32.xlu0 %v196, 96
  %v211 = vpop.permute.xlu0 %210
  %212 = vrot.lane.b32.xlu0 %v199, 96
  %v213 = vpop.permute.xlu0 %212
  %214 = vrot.lane.b32.xlu0 %v202, 96
  %v215 = vpop.permute.xlu0 %214
  %220 = vmatpush.msra.mxu0 0.0
  %221 = vmatpush.msra.mxu0 0.0
  %222 = vmatpush.msra.mxu0 0.0
  %223 = vmatpush.msra.mxu0 0.0
  %224 = vmatpush.msra.mxu0 0.0
  %225 = vmatpush.msra.mxu0 0.0
  %226 = vmatpush.msra.mxu0 0.0
  %227 = vmatpush.msra.mxu0 0.0
  %228 = vmatpush.msra.mxu0 0.0
  %229 = vmatpush.msra.mxu0 0.0
  %230 = vmatpush.msra.mxu0 0.0
  %231 = vmatpush.msra.mxu0 0.0
  %232 = vmatpush.msra.mxu0 %v202
  %233 = vmatpush.msra.mxu0 %v199
  %234 = vmatpush.msra.mxu0 %v196
  %235 = vmatpush.msra.mxu0 %v193
  %236 = vmatmul.f32.gmra.mxu0 %v107
  %v237 = vpop.f32.mrf.mxu0
  %v238 = vadd.f32 %v209, %v237
  %239 = vmatmul.f32.gmra.mxu0 %v110
  %v240 = vpop.f32.mrf.mxu0
  %v241 = vadd.f32 %v211, %v240
  %242 = vmatmul.f32.gmra.mxu0 %v113
  %v243 = vpop.f32.mrf.mxu0
  %v244 = vadd.f32 %v213, %v243
  %245 = vmatmul.f32.gmra.mxu0 %v116
  %v246 = vpop.f32.mrf.mxu0
  %v247 = vadd.f32 %v215, %v246
  %248 = vdwg.mxu0
  %v250 = vperm.slane %v162, 0
  %v252 = vadd.f32 %v238, %v250
  %v253 = vadd.f32 %v241, %v250
  %v254 = vadd.f32 %v244, %v250
  %v255 = vadd.f32 %v247, %v250
  %v256 = vmax.f32 %v252, 0.0
  %v257 = vmax.f32 %v253, 0.0
  %v258 = vmax.f32 %v254, 0.0
  %v259 = vmax.f32 %v255, 0.0
  %s260 = scalar_lea.vmem %s4, 32
  %v261 = vld [vmem:[%s260] sm:$0xff]
  %v262 = vld [vmem:[%s260 + $0x8] sm:$0xff]
  %v263 = vld [vmem:[%s260 + $0x10] sm:$0xff]
  %v264 = vld [vmem:[%s260 + $0x18] sm:$0xff]
  %s265 = scalar_lea.vmem %s5, 1
  %v266 = vld [vmem:[%s265] sm:$0x1]
  %v268 = vsel %vm105, %v256, 0
  %v271 = vsel %vm105, %v257, 0
  %v274 = vsel %vm105, %v258, 0
  %v277 = vsel %vm105, %v259, 0
  %279 = vmatpush.msra.mxu0 0.0
  %280 = vmatpush.msra.mxu0 0.0
  %281 = vmatpush.msra.mxu0 0.0
  %282 = vmatpush.msra.mxu0 0.0
  %283 = vmatpush.msra.mxu0 0.0
  %284 = vmatpush.msra.mxu0 0.0
  %285 = vmatpush.msra.mxu0 0.0
  %286 = vmatpush.msra.mxu0 0.0
  %287 = vmatpush.msra.mxu0 0.0
  %288 = vmatpush.msra.mxu0 0.0
  %289 = vmatpush.msra.mxu0 0.0
  %290 = vmatpush.msra.mxu0 0.0
  %291 = vmatpush.msra.mxu0 %v264
  %292 = vmatpush.msra.mxu0 %v263
  %293 = vmatpush.msra.mxu0 %v262
  %294 = vmatpush.msra.mxu0 %v261
  %295 = vmatmul.f32.gmra.mxu0 %v268
  %v296 = vpop.f32.mrf.mxu0
  %v297 = vadd.f32 0.0, %v296
  %298 = vmatmul.f32.gmra.mxu0 %v271
  %v299 = vpop.f32.mrf.mxu0
  %v300 = vadd.f32 0.0, %v299
  %301 = vmatmul.f32.gmra.mxu0 %v274
  %v302 = vpop.f32.mrf.mxu0
  %v303 = vadd.f32 0.0, %v302
  %304 = vmatmul.f32.gmra.mxu0 %v277
  %v305 = vpop.f32.mrf.mxu0
  %v306 = vadd.f32 0.0, %v305
  %307 = vdwg.mxu0
  %312 = vrot.lane.b32.xlu0 %v297, 96
  %v313 = vpop.permute.xlu0 %312
  %314 = vrot.lane.b32.xlu0 %v300, 96
  %v315 = vpop.permute.xlu0 %314
  %316 = vrot.lane.b32.xlu0 %v303, 96
  %v317 = vpop.permute.xlu0 %316
  %318 = vrot.lane.b32.xlu0 %v306, 96
  %v319 = vpop.permute.xlu0 %318
  %324 = vmatpush.msra.mxu0 0.0
  %325 = vmatpush.msra.mxu0 0.0
  %326 = vmatpush.msra.mxu0 0.0
  %327 = vmatpush.msra.mxu0 0.0
  %328 = vmatpush.msra.mxu0 0.0
  %329 = vmatpush.msra.mxu0 0.0
  %330 = vmatpush.msra.mxu0 0.0
  %331 = vmatpush.msra.mxu0 0.0
  %332 = vmatpush.msra.mxu0 0.0
  %333 = vmatpush.msra.mxu0 0.0
  %334 = vmatpush.msra.mxu0 0.0
  %335 = vmatpush.msra.mxu0 0.0
  %336 = vmatpush.msra.mxu0 %v306
  %337 = vmatpush.msra.mxu0 %v303
  %338 = vmatpush.msra.mxu0 %v300
  %339 = vmatpush.msra.mxu0 %v297
  %340 = vmatmul.f32.gmra.mxu0 %v107
  %v341 = vpop.f32.mrf.mxu0
  %v342 = vadd.f32 %v313, %v341
  %343 = vmatmul.f32.gmra.mxu0 %v110
  %v344 = vpop.f32.mrf.mxu0
  %v345 = vadd.f32 %v315, %v344
  %346 = vmatmul.f32.gmra.mxu0 %v113
  %v347 = vpop.f32.mrf.mxu0
  %v348 = vadd.f32 %v317, %v347
  %349 = vmatmul.f32.gmra.mxu0 %v116
  %v350 = vpop.f32.mrf.mxu0
  %v351 = vadd.f32 %v319, %v350
  %352 = vdwg.mxu0
  %v354 = vperm.slane %v266, 0
  %v356 = vadd.f32 %v342, %v354
  %v357 = vadd.f32 %v345, %v354
  %v358 = vadd.f32 %v348, %v354
  %v359 = vadd.f32 %v351, %v354
  %v360 = vmax.f32 %v356, 0.0
  %v361 = vmax.f32 %v357, 0.0
  %v362 = vmax.f32 %v358, 0.0
  %v363 = vmax.f32 %v359, 0.0
  %v364 = vadd.f32 %v154, %v360
  %v365 = vadd.f32 %v155, %v361
  %v366 = vadd.f32 %v156, %v362
  %v367 = vadd.f32 %v157, %v363
  %v368 = vmul.f32 %v364, 0.5
  %v369 = vmul.f32 %v365, 0.5
  %v370 = vmul.f32 %v366, 0.5
  %v371 = vmul.f32 %v367, 0.5
  %s372 = scalar_lea.vmem %s4, 64
  %v373 = vld [vmem:[%s372] sm:$0xff]
  %v374 = vld [vmem:[%s372 + $0x8] sm:$0xff]
  %v375 = vld [vmem:[%s372 + $0x10] sm:$0xff]
  %v376 = vld [vmem:[%s372 + $0x18] sm:$0xff]
  %s377 = scalar_lea.vmem %s5, 2
  %v378 = vld [vmem:[%s377] sm:$0x1]
  %v380 = vsel %vm105, %v368, 0
  %v383 = vsel %vm105, %v369, 0
  %v386 = vsel %vm105, %v370, 0
  %v389 = vsel %vm105, %v371, 0
  %391 = vmatpush.msra.mxu0 0.0
  %392 = vmatpush.msra.mxu0 0.0
  %393 = vmatpush.msra.mxu0 0.0
  %394 = vmatpush.msra.mxu0 0.0
  %395 = vmatpush.msra.mxu0 0.0
  %396 = vmatpush.msra.mxu0 0.0
  %397 = vmatpush.msra.mxu0 0.0
  %398 = vmatpush.msra.mxu0 0.0
  %399 = vmatpush.msra.mxu0 0.0
  %400 = vmatpush.msra.mxu0 0.0
  %401 = vmatpush.msra.mxu0 0.0
  %402 = vmatpush.msra.mxu0 0.0
  %403 = vmatpush.msra.mxu0 %v376
  %404 = vmatpush.msra.mxu0 %v375
  %405 = vmatpush.msra.mxu0 %v374
  %406 = vmatpush.msra.mxu0 %v373
  %407 = vmatmul.f32.gmra.mxu0 %v380
  %v408 = vpop.f32.mrf.mxu0
  %v409 = vadd.f32 0.0, %v408
  %410 = vmatmul.f32.gmra.mxu0 %v383
  %v411 = vpop.f32.mrf.mxu0
  %v412 = vadd.f32 0.0, %v411
  %413 = vmatmul.f32.gmra.mxu0 %v386
  %v414 = vpop.f32.mrf.mxu0
  %v415 = vadd.f32 0.0, %v414
  %416 = vmatmul.f32.gmra.mxu0 %v389
  %v417 = vpop.f32.mrf.mxu0
  %v418 = vadd.f32 0.0, %v417
  %419 = vdwg.mxu0
  %424 = vrot.lane.b32.xlu0 %v409, 96
  %v425 = vpop.permute.xlu0 %424
  %426 = vrot.lane.b32.xlu0 %v412, 96
  %v427 = vpop.permute.xlu0 %426
  %428 = vrot.lane.b32.xlu0 %v415, 96
  %v429 = vpop.permute.xlu0 %428
  %430 = vrot.lane.b32.xlu0 %v418, 96
  %v431 = vpop.permute.xlu0 %430
  %436 = vmatpush.msra.mxu0 0.0
  %437 = vmatpush.msra.mxu0 0.0
  %438 = vmatpush.msra.mxu0 0.0
  %439 = vmatpush.msra.mxu0 0.0
  %440 = vmatpush.msra.mxu0 0.0
  %441 = vmatpush.msra.mxu0 0.0
  %442 = vmatpush.msra.mxu0 0.0
  %443 = vmatpush.msra.mxu0 0.0
  %444 = vmatpush.msra.mxu0 0.0
  %445 = vmatpush.msra.mxu0 0.0
  %446 = vmatpush.msra.mxu0 0.0
  %447 = vmatpush.msra.mxu0 0.0
  %448 = vmatpush.msra.mxu0 %v418
  %449 = vmatpush.msra.mxu0 %v415
  %450 = vmatpush.msra.mxu0 %v412
  %451 = vmatpush.msra.mxu0 %v409
  %452 = vmatmul.f32.gmra.mxu0 %v107
  %v453 = vpop.f32.mrf.mxu0
  %v454 = vadd.f32 %v425, %v453
  %455 = vmatmul.f32.gmra.mxu0 %v110
  %v456 = vpop.f32.mrf.mxu0
  %v457 = vadd.f32 %v427, %v456
  %458 = vmatmul.f32.gmra.mxu0 %v113
  %v459 = vpop.f32.mrf.mxu0
  %v460 = vadd.f32 %v429, %v459
  %461 = vmatmul.f32.gmra.mxu0 %v116
  %v462 = vpop.f32.mrf.mxu0
  %v463 = vadd.f32 %v431, %v462
  %464 = vdwg.mxu0
  %v466 = vperm.slane %v378, 0
  %v468 = vadd.f32 %v454, %v466
  %v469 = vadd.f32 %v457, %v466
  %v470 = vadd.f32 %v460, %v466
  %v471 = vadd.f32 %v463, %v466
  %v472 = vmax.f32 %v468, 0.0
  %v473 = vmax.f32 %v469, 0.0
  %v474 = vmax.f32 %v470, 0.0
  %v475 = vmax.f32 %v471, 0.0
  %s476 = scalar_lea.vmem %s4, 96
  %v477 = vld [vmem:[%s476] sm:$0xff]
  %v478 = vld [vmem:[%s476 + $0x8] sm:$0xff]
  %v479 = vld [vmem:[%s476 + $0x10] sm:$0xff]
  %v480 = vld [vmem:[%s476 + $0x18] sm:$0xff]
  %s481 = scalar_lea.vmem %s5, 3
  %v482 = vld [vmem:[%s481] sm:$0x1]
  %v484 = vsel %vm105, %v472, 0
  %v487 = vsel %vm105, %v473, 0
  %v490 = vsel %vm105, %v474, 0
  %v493 = vsel %vm105, %v475, 0
  %495 = vmatpush.msra.mxu0 0.0
  %496 = vmatpush.msra.mxu0 0.0
  %497 = vmatpush.msra.mxu0 0.0
  %498 = vmatpush.msra.mxu0 0.0
  %499 = vmatpush.msra.mxu0 0.0
  %500 = vmatpush.msra.mxu0 0.0
  %501 = vmatpush.msra.mxu0 0.0
  %502 = vmatpush.msra.mxu0 0.0
  %503 = vmatpush.msra.mxu0 0.0
  %504 = vmatpush.msra.mxu0 0.0
  %505 = vmatpush.msra.mxu0 0.0
  %506 = vmatpush.msra.mxu0 0.0
  %507 = vmatpush.msra.mxu0 %v480
  %508 = vmatpush.msra.mxu0 %v479
  %509 = vmatpush.msra.mxu0 %v478
  %510 = vmatpush.msra.mxu0 %v477
  %511 = vmatmul.f32.gmra.mxu0 %v484
  %v512 = vpop.f32.mrf.mxu0
  %v513 = vadd.f32 0.0, %v512
  %514 = vmatmul.f32.gmra.mxu0 %v487
  %v515 = vpop.f32.mrf.mxu0
  %v516 = vadd.f32 0.0, %v515
  %517 = vmatmul.f32.gmra.mxu0 %v490
  %v518 = vpop.f32.mrf.mxu0
  %v519 = vadd.f32 0.0, %v518
  %520 = vmatmul.f32.gmra.mxu0 %v493
  %v521 = vpop.f32.mrf.mxu0
  %v522 = vadd.f32 0.0, %v521
  %523 = vdwg.mxu0
  %528 = vrot.lane.b32.xlu0 %v513, 96
  %v529 = vpop.permute.xlu0 %528
  %530 = vrot.lane.b32.xlu0 %v516, 96
  %v531 = vpop.permute.xlu0 %530
  %532 = vrot.lane.b32.xlu0 %v519, 96
  %v533 = vpop.permute.xlu0 %532
  %534 = vrot.lane.b32.xlu0 %v522, 96
  %v535 = vpop.permute.xlu0 %534
  %540 = vmatpush.msra.mxu0 0.0
  %541 = vmatpush.msra.mxu0 0.0
  %542 = vmatpush.msra.mxu0 0.0
  %543 = vmatpush.msra.mxu0 0.0
  %544 = vmatpush.msra.mxu0 0.0
  %545 = vmatpush.msra.mxu0 0.0
  %546 = vmatpush.msra.mxu0 0.0
  %547 = vmatpush.msra.mxu0 0.0
  %548 = vmatpush.msra.mxu0 0.0
  %549 = vmatpush.msra.mxu0 0.0
  %550 = vmatpush.msra.mxu0 0.0
  %551 = vmatpush.msra.mxu0 0.0
  %552 = vmatpush.msra.mxu0 %v522
  %553 = vmatpush.msra.mxu0 %v519
  %554 = vmatpush.msra.mxu0 %v516
  %555 = vmatpush.msra.mxu0 %v513
  %556 = vmatmul.f32.gmra.mxu0 %v107
  %v557 = vpop.f32.mrf.mxu0
  %v558 = vadd.f32 %v529, %v557
  %559 = vmatmul.f32.gmra.mxu0 %v110
  %v560 = vpop.f32.mrf.mxu0
  %v561 = vadd.f32 %v531, %v560
  %562 = vmatmul.f32.gmra.mxu0 %v113
  %v563 = vpop.f32.mrf.mxu0
  %v564 = vadd.f32 %v533, %v563
  %565 = vmatmul.f32.gmra.mxu0 %v116
  %v566 = vpop.f32.mrf.mxu0
  %v567 = vadd.f32 %v535, %v566
  %568 = vdwg.mxu0
  %v570 = vperm.slane %v482, 0
  %v572 = vadd.f32 %v558, %v570
  %v573 = vadd.f32 %v561, %v570
  %v574 = vadd.f32 %v564, %v570
  %v575 = vadd.f32 %v567, %v570
  %v576 = vmax.f32 %v572, 0.0
  %v577 = vmax.f32 %v573, 0.0
  %v578 = vmax.f32 %v574, 0.0
  %v579 = vmax.f32 %v575, 0.0
  %v580 = vadd.f32 %v368, %v576
  %v581 = vadd.f32 %v369, %v577
  %v582 = vadd.f32 %v370, %v578
  %v583 = vadd.f32 %v371, %v579
  %v584 = vmul.f32 %v580, 0.5
  %v585 = vmul.f32 %v581, 0.5
  %v586 = vmul.f32 %v582, 0.5
  %v587 = vmul.f32 %v583, 0.5
  %s588 = scalar_lea.vmem %s4, 128
  %v589 = vld [vmem:[%s588] sm:$0xff]
  %v590 = vld [vmem:[%s588 + $0x8] sm:$0xff]
  %v591 = vld [vmem:[%s588 + $0x10] sm:$0xff]
  %v592 = vld [vmem:[%s588 + $0x18] sm:$0xff]
  %s593 = scalar_lea.vmem %s5, 4
  %v594 = vld [vmem:[%s593] sm:$0x1]
  %v596 = vsel %vm105, %v584, 0
  %v599 = vsel %vm105, %v585, 0
  %v602 = vsel %vm105, %v586, 0
  %v605 = vsel %vm105, %v587, 0
  %607 = vmatpush.msra.mxu0 0.0
  %608 = vmatpush.msra.mxu0 0.0
  %609 = vmatpush.msra.mxu0 0.0
  %610 = vmatpush.msra.mxu0 0.0
  %611 = vmatpush.msra.mxu0 0.0
  %612 = vmatpush.msra.mxu0 0.0
  %613 = vmatpush.msra.mxu0 0.0
  %614 = vmatpush.msra.mxu0 0.0
  %615 = vmatpush.msra.mxu0 0.0
  %616 = vmatpush.msra.mxu0 0.0
  %617 = vmatpush.msra.mxu0 0.0
  %618 = vmatpush.msra.mxu0 0.0
  %619 = vmatpush.msra.mxu0 %v592
  %620 = vmatpush.msra.mxu0 %v591
  %621 = vmatpush.msra.mxu0 %v590
  %622 = vmatpush.msra.mxu0 %v589
  %623 = vmatmul.f32.gmra.mxu0 %v596
  %v624 = vpop.f32.mrf.mxu0
  %v625 = vadd.f32 0.0, %v624
  %626 = vmatmul.f32.gmra.mxu0 %v599
  %v627 = vpop.f32.mrf.mxu0
  %v628 = vadd.f32 0.0, %v627
  %629 = vmatmul.f32.gmra.mxu0 %v602
  %v630 = vpop.f32.mrf.mxu0
  %v631 = vadd.f32 0.0, %v630
  %632 = vmatmul.f32.gmra.mxu0 %v605
  %v633 = vpop.f32.mrf.mxu0
  %v634 = vadd.f32 0.0, %v633
  %635 = vdwg.mxu0
  %640 = vrot.lane.b32.xlu0 %v625, 96
  %v641 = vpop.permute.xlu0 %640
  %642 = vrot.lane.b32.xlu0 %v628, 96
  %v643 = vpop.permute.xlu0 %642
  %644 = vrot.lane.b32.xlu0 %v631, 96
  %v645 = vpop.permute.xlu0 %644
  %646 = vrot.lane.b32.xlu0 %v634, 96
  %v647 = vpop.permute.xlu0 %646
  %652 = vmatpush.msra.mxu0 0.0
  %653 = vmatpush.msra.mxu0 0.0
  %654 = vmatpush.msra.mxu0 0.0
  %655 = vmatpush.msra.mxu0 0.0
  %656 = vmatpush.msra.mxu0 0.0
  %657 = vmatpush.msra.mxu0 0.0
  %658 = vmatpush.msra.mxu0 0.0
  %659 = vmatpush.msra.mxu0 0.0
  %660 = vmatpush.msra.mxu0 0.0
  %661 = vmatpush.msra.mxu0 0.0
  %662 = vmatpush.msra.mxu0 0.0
  %663 = vmatpush.msra.mxu0 0.0
  %664 = vmatpush.msra.mxu0 %v634
  %665 = vmatpush.msra.mxu0 %v631
  %666 = vmatpush.msra.mxu0 %v628
  %667 = vmatpush.msra.mxu0 %v625
  %668 = vmatmul.f32.gmra.mxu0 %v107
  %v669 = vpop.f32.mrf.mxu0
  %v670 = vadd.f32 %v641, %v669
  %671 = vmatmul.f32.gmra.mxu0 %v110
  %v672 = vpop.f32.mrf.mxu0
  %v673 = vadd.f32 %v643, %v672
  %674 = vmatmul.f32.gmra.mxu0 %v113
  %v675 = vpop.f32.mrf.mxu0
  %v676 = vadd.f32 %v645, %v675
  %677 = vmatmul.f32.gmra.mxu0 %v116
  %v678 = vpop.f32.mrf.mxu0
  %v679 = vadd.f32 %v647, %v678
  %680 = vdwg.mxu0
  %v682 = vperm.slane %v594, 0
  %v684 = vadd.f32 %v670, %v682
  %v685 = vadd.f32 %v673, %v682
  %v686 = vadd.f32 %v676, %v682
  %v687 = vadd.f32 %v679, %v682
  %v688 = vmax.f32 %v684, 0.0
  %v689 = vmax.f32 %v685, 0.0
  %v690 = vmax.f32 %v686, 0.0
  %v691 = vmax.f32 %v687, 0.0
  %s692 = scalar_lea.vmem %s4, 160
  %v693 = vld [vmem:[%s692] sm:$0xff]
  %v694 = vld [vmem:[%s692 + $0x8] sm:$0xff]
  %v695 = vld [vmem:[%s692 + $0x10] sm:$0xff]
  %v696 = vld [vmem:[%s692 + $0x18] sm:$0xff]
  %s697 = scalar_lea.vmem %s5, 5
  %v698 = vld [vmem:[%s697] sm:$0x1]
  %v700 = vsel %vm105, %v688, 0
  %v703 = vsel %vm105, %v689, 0
  %v706 = vsel %vm105, %v690, 0
  %v709 = vsel %vm105, %v691, 0
  %711 = vmatpush.msra.mxu0 0.0
  %712 = vmatpush.msra.mxu0 0.0
  %713 = vmatpush.msra.mxu0 0.0
  %714 = vmatpush.msra.mxu0 0.0
  %715 = vmatpush.msra.mxu0 0.0
  %716 = vmatpush.msra.mxu0 0.0
  %717 = vmatpush.msra.mxu0 0.0
  %718 = vmatpush.msra.mxu0 0.0
  %719 = vmatpush.msra.mxu0 0.0
  %720 = vmatpush.msra.mxu0 0.0
  %721 = vmatpush.msra.mxu0 0.0
  %722 = vmatpush.msra.mxu0 0.0
  %723 = vmatpush.msra.mxu0 %v696
  %724 = vmatpush.msra.mxu0 %v695
  %725 = vmatpush.msra.mxu0 %v694
  %726 = vmatpush.msra.mxu0 %v693
  %727 = vmatmul.f32.gmra.mxu0 %v700
  %v728 = vpop.f32.mrf.mxu0
  %v729 = vadd.f32 0.0, %v728
  %730 = vmatmul.f32.gmra.mxu0 %v703
  %v731 = vpop.f32.mrf.mxu0
  %v732 = vadd.f32 0.0, %v731
  %733 = vmatmul.f32.gmra.mxu0 %v706
  %v734 = vpop.f32.mrf.mxu0
  %v735 = vadd.f32 0.0, %v734
  %736 = vmatmul.f32.gmra.mxu0 %v709
  %v737 = vpop.f32.mrf.mxu0
  %v738 = vadd.f32 0.0, %v737
  %739 = vdwg.mxu0
  %744 = vrot.lane.b32.xlu0 %v729, 96
  %v745 = vpop.permute.xlu0 %744
  %746 = vrot.lane.b32.xlu0 %v732, 96
  %v747 = vpop.permute.xlu0 %746
  %748 = vrot.lane.b32.xlu0 %v735, 96
  %v749 = vpop.permute.xlu0 %748
  %750 = vrot.lane.b32.xlu0 %v738, 96
  %v751 = vpop.permute.xlu0 %750
  %756 = vmatpush.msra.mxu0 0.0
  %757 = vmatpush.msra.mxu0 0.0
  %758 = vmatpush.msra.mxu0 0.0
  %759 = vmatpush.msra.mxu0 0.0
  %760 = vmatpush.msra.mxu0 0.0
  %761 = vmatpush.msra.mxu0 0.0
  %762 = vmatpush.msra.mxu0 0.0
  %763 = vmatpush.msra.mxu0 0.0
  %764 = vmatpush.msra.mxu0 0.0
  %765 = vmatpush.msra.mxu0 0.0
  %766 = vmatpush.msra.mxu0 0.0
  %767 = vmatpush.msra.mxu0 0.0
  %768 = vmatpush.msra.mxu0 %v738
  %769 = vmatpush.msra.mxu0 %v735
  %770 = vmatpush.msra.mxu0 %v732
  %771 = vmatpush.msra.mxu0 %v729
  %772 = vmatmul.f32.gmra.mxu0 %v107
  %v773 = vpop.f32.mrf.mxu0
  %v774 = vadd.f32 %v745, %v773
  %775 = vmatmul.f32.gmra.mxu0 %v110
  %v776 = vpop.f32.mrf.mxu0
  %v777 = vadd.f32 %v747, %v776
  %778 = vmatmul.f32.gmra.mxu0 %v113
  %v779 = vpop.f32.mrf.mxu0
  %v780 = vadd.f32 %v749, %v779
  %781 = vmatmul.f32.gmra.mxu0 %v116
  %v782 = vpop.f32.mrf.mxu0
  %v783 = vadd.f32 %v751, %v782
  %784 = vdwg.mxu0
  %v786 = vperm.slane %v698, 0
  %v788 = vadd.f32 %v774, %v786
  %v789 = vadd.f32 %v777, %v786
  %v790 = vadd.f32 %v780, %v786
  %v791 = vadd.f32 %v783, %v786
  %v792 = vmax.f32 %v788, 0.0
  %v793 = vmax.f32 %v789, 0.0
  %v794 = vmax.f32 %v790, 0.0
  %v795 = vmax.f32 %v791, 0.0
  %v796 = vadd.f32 %v584, %v792
  %v797 = vadd.f32 %v585, %v793
  %v798 = vadd.f32 %v586, %v794
  %v799 = vadd.f32 %v587, %v795
  %v800 = vmul.f32 %v796, 0.5
  %v801 = vmul.f32 %v797, 0.5
  %v802 = vmul.f32 %v798, 0.5
  %v803 = vmul.f32 %v799, 0.5
  %s804 = scalar_lea.vmem %s4, 192
  %v805 = vld [vmem:[%s804] sm:$0xff]
  %v806 = vld [vmem:[%s804 + $0x8] sm:$0xff]
  %v807 = vld [vmem:[%s804 + $0x10] sm:$0xff]
  %v808 = vld [vmem:[%s804 + $0x18] sm:$0xff]
  %s809 = scalar_lea.vmem %s5, 6
  %v810 = vld [vmem:[%s809] sm:$0x1]
  %v812 = vsel %vm105, %v800, 0
  %v815 = vsel %vm105, %v801, 0
  %v818 = vsel %vm105, %v802, 0
  %v821 = vsel %vm105, %v803, 0
  %823 = vmatpush.msra.mxu0 0.0
  %824 = vmatpush.msra.mxu0 0.0
  %825 = vmatpush.msra.mxu0 0.0
  %826 = vmatpush.msra.mxu0 0.0
  %827 = vmatpush.msra.mxu0 0.0
  %828 = vmatpush.msra.mxu0 0.0
  %829 = vmatpush.msra.mxu0 0.0
  %830 = vmatpush.msra.mxu0 0.0
  %831 = vmatpush.msra.mxu0 0.0
  %832 = vmatpush.msra.mxu0 0.0
  %833 = vmatpush.msra.mxu0 0.0
  %834 = vmatpush.msra.mxu0 0.0
  %835 = vmatpush.msra.mxu0 %v808
  %836 = vmatpush.msra.mxu0 %v807
  %837 = vmatpush.msra.mxu0 %v806
  %838 = vmatpush.msra.mxu0 %v805
  %839 = vmatmul.f32.gmra.mxu0 %v812
  %v840 = vpop.f32.mrf.mxu0
  %v841 = vadd.f32 0.0, %v840
  %842 = vmatmul.f32.gmra.mxu0 %v815
  %v843 = vpop.f32.mrf.mxu0
  %v844 = vadd.f32 0.0, %v843
  %845 = vmatmul.f32.gmra.mxu0 %v818
  %v846 = vpop.f32.mrf.mxu0
  %v847 = vadd.f32 0.0, %v846
  %848 = vmatmul.f32.gmra.mxu0 %v821
  %v849 = vpop.f32.mrf.mxu0
  %v850 = vadd.f32 0.0, %v849
  %851 = vdwg.mxu0
  %856 = vrot.lane.b32.xlu0 %v841, 96
  %v857 = vpop.permute.xlu0 %856
  %858 = vrot.lane.b32.xlu0 %v844, 96
  %v859 = vpop.permute.xlu0 %858
  %860 = vrot.lane.b32.xlu0 %v847, 96
  %v861 = vpop.permute.xlu0 %860
  %862 = vrot.lane.b32.xlu0 %v850, 96
  %v863 = vpop.permute.xlu0 %862
  %868 = vmatpush.msra.mxu0 0.0
  %869 = vmatpush.msra.mxu0 0.0
  %870 = vmatpush.msra.mxu0 0.0
  %871 = vmatpush.msra.mxu0 0.0
  %872 = vmatpush.msra.mxu0 0.0
  %873 = vmatpush.msra.mxu0 0.0
  %874 = vmatpush.msra.mxu0 0.0
  %875 = vmatpush.msra.mxu0 0.0
  %876 = vmatpush.msra.mxu0 0.0
  %877 = vmatpush.msra.mxu0 0.0
  %878 = vmatpush.msra.mxu0 0.0
  %879 = vmatpush.msra.mxu0 0.0
  %880 = vmatpush.msra.mxu0 %v850
  %881 = vmatpush.msra.mxu0 %v847
  %882 = vmatpush.msra.mxu0 %v844
  %883 = vmatpush.msra.mxu0 %v841
  %884 = vmatmul.f32.gmra.mxu0 %v107
  %v885 = vpop.f32.mrf.mxu0
  %v886 = vadd.f32 %v857, %v885
  %887 = vmatmul.f32.gmra.mxu0 %v110
  %v888 = vpop.f32.mrf.mxu0
  %v889 = vadd.f32 %v859, %v888
  %890 = vmatmul.f32.gmra.mxu0 %v113
  %v891 = vpop.f32.mrf.mxu0
  %v892 = vadd.f32 %v861, %v891
  %893 = vmatmul.f32.gmra.mxu0 %v116
  %v894 = vpop.f32.mrf.mxu0
  %v895 = vadd.f32 %v863, %v894
  %896 = vdwg.mxu0
  %v898 = vperm.slane %v810, 0
  %v900 = vadd.f32 %v886, %v898
  %v901 = vadd.f32 %v889, %v898
  %v902 = vadd.f32 %v892, %v898
  %v903 = vadd.f32 %v895, %v898
  %v904 = vmax.f32 %v900, 0.0
  %v905 = vmax.f32 %v901, 0.0
  %v906 = vmax.f32 %v902, 0.0
  %v907 = vmax.f32 %v903, 0.0
  %s908 = scalar_lea.vmem %s4, 224
  %v909 = vld [vmem:[%s908] sm:$0xff]
  %v910 = vld [vmem:[%s908 + $0x8] sm:$0xff]
  %v911 = vld [vmem:[%s908 + $0x10] sm:$0xff]
  %v912 = vld [vmem:[%s908 + $0x18] sm:$0xff]
  %s913 = scalar_lea.vmem %s5, 7
  %v914 = vld [vmem:[%s913] sm:$0x1]
  %v916 = vsel %vm105, %v904, 0
  %v919 = vsel %vm105, %v905, 0
  %v922 = vsel %vm105, %v906, 0
  %v925 = vsel %vm105, %v907, 0
  %927 = vmatpush.msra.mxu0 0.0
  %928 = vmatpush.msra.mxu0 0.0
  %929 = vmatpush.msra.mxu0 0.0
  %930 = vmatpush.msra.mxu0 0.0
  %931 = vmatpush.msra.mxu0 0.0
  %932 = vmatpush.msra.mxu0 0.0
  %933 = vmatpush.msra.mxu0 0.0
  %934 = vmatpush.msra.mxu0 0.0
  %935 = vmatpush.msra.mxu0 0.0
  %936 = vmatpush.msra.mxu0 0.0
  %937 = vmatpush.msra.mxu0 0.0
  %938 = vmatpush.msra.mxu0 0.0
  %939 = vmatpush.msra.mxu0 %v912
  %940 = vmatpush.msra.mxu0 %v911
  %941 = vmatpush.msra.mxu0 %v910
  %942 = vmatpush.msra.mxu0 %v909
  %943 = vmatmul.f32.gmra.mxu0 %v916
  %v944 = vpop.f32.mrf.mxu0
  %v945 = vadd.f32 0.0, %v944
  %946 = vmatmul.f32.gmra.mxu0 %v919
  %v947 = vpop.f32.mrf.mxu0
  %v948 = vadd.f32 0.0, %v947
  %949 = vmatmul.f32.gmra.mxu0 %v922
  %v950 = vpop.f32.mrf.mxu0
  %v951 = vadd.f32 0.0, %v950
  %952 = vmatmul.f32.gmra.mxu0 %v925
  %v953 = vpop.f32.mrf.mxu0
  %v954 = vadd.f32 0.0, %v953
  %955 = vdwg.mxu0
  %960 = vrot.lane.b32.xlu0 %v945, 96
  %v961 = vpop.permute.xlu0 %960
  %962 = vrot.lane.b32.xlu0 %v948, 96
  %v963 = vpop.permute.xlu0 %962
  %964 = vrot.lane.b32.xlu0 %v951, 96
  %v965 = vpop.permute.xlu0 %964
  %966 = vrot.lane.b32.xlu0 %v954, 96
  %v967 = vpop.permute.xlu0 %966
  %972 = vmatpush.msra.mxu0 0.0
  %973 = vmatpush.msra.mxu0 0.0
  %974 = vmatpush.msra.mxu0 0.0
  %975 = vmatpush.msra.mxu0 0.0
  %976 = vmatpush.msra.mxu0 0.0
  %977 = vmatpush.msra.mxu0 0.0
  %978 = vmatpush.msra.mxu0 0.0
  %979 = vmatpush.msra.mxu0 0.0
  %980 = vmatpush.msra.mxu0 0.0
  %981 = vmatpush.msra.mxu0 0.0
  %982 = vmatpush.msra.mxu0 0.0
  %983 = vmatpush.msra.mxu0 0.0
  %984 = vmatpush.msra.mxu0 %v954
  %985 = vmatpush.msra.mxu0 %v951
  %986 = vmatpush.msra.mxu0 %v948
  %987 = vmatpush.msra.mxu0 %v945
  %988 = vmatmul.f32.gmra.mxu0 %v107
  %v989 = vpop.f32.mrf.mxu0
  %v990 = vadd.f32 %v961, %v989
  %991 = vmatmul.f32.gmra.mxu0 %v110
  %v992 = vpop.f32.mrf.mxu0
  %v993 = vadd.f32 %v963, %v992
  %994 = vmatmul.f32.gmra.mxu0 %v113
  %v995 = vpop.f32.mrf.mxu0
  %v996 = vadd.f32 %v965, %v995
  %997 = vmatmul.f32.gmra.mxu0 %v116
  %v998 = vpop.f32.mrf.mxu0
  %v999 = vadd.f32 %v967, %v998
  %1000 = vdwg.mxu0
  %v1002 = vperm.slane %v914, 0
  %v1004 = vadd.f32 %v990, %v1002
  %v1005 = vadd.f32 %v993, %v1002
  %v1006 = vadd.f32 %v996, %v1002
  %v1007 = vadd.f32 %v999, %v1002
  %v1008 = vmax.f32 %v1004, 0.0
  %v1009 = vmax.f32 %v1005, 0.0
  %v1010 = vmax.f32 %v1006, 0.0
  %v1011 = vmax.f32 %v1007, 0.0
  %v1012 = vadd.f32 %v800, %v1008
  %v1013 = vadd.f32 %v801, %v1009
  %v1014 = vadd.f32 %v802, %v1010
  %v1015 = vadd.f32 %v803, %v1011
  %v1016 = vmul.f32 %v1012, 0.5
  %v1017 = vmul.f32 %v1013, 0.5
  %v1018 = vmul.f32 %v1014, 0.5
  %v1019 = vmul.f32 %v1015, 0.5
  %s1020 = scalar_lea.vmem %s4, 256
  %v1021 = vld [vmem:[%s1020] sm:$0xff]
  %v1022 = vld [vmem:[%s1020 + $0x8] sm:$0xff]
  %v1023 = vld [vmem:[%s1020 + $0x10] sm:$0xff]
  %v1024 = vld [vmem:[%s1020 + $0x18] sm:$0xff]
  %s1025 = scalar_lea.vmem %s5, 8
  %v1026 = vld [vmem:[%s1025] sm:$0x1]
  %v1028 = vsel %vm105, %v1016, 0
  %v1031 = vsel %vm105, %v1017, 0
  %v1034 = vsel %vm105, %v1018, 0
  %v1037 = vsel %vm105, %v1019, 0
  %1039 = vmatpush.msra.mxu0 0.0
  %1040 = vmatpush.msra.mxu0 0.0
  %1041 = vmatpush.msra.mxu0 0.0
  %1042 = vmatpush.msra.mxu0 0.0
  %1043 = vmatpush.msra.mxu0 0.0
  %1044 = vmatpush.msra.mxu0 0.0
  %1045 = vmatpush.msra.mxu0 0.0
  %1046 = vmatpush.msra.mxu0 0.0
  %1047 = vmatpush.msra.mxu0 0.0
  %1048 = vmatpush.msra.mxu0 0.0
  %1049 = vmatpush.msra.mxu0 0.0
  %1050 = vmatpush.msra.mxu0 0.0
  %1051 = vmatpush.msra.mxu0 %v1024
  %1052 = vmatpush.msra.mxu0 %v1023
  %1053 = vmatpush.msra.mxu0 %v1022
  %1054 = vmatpush.msra.mxu0 %v1021
  %1055 = vmatmul.f32.gmra.mxu0 %v1028
  %v1056 = vpop.f32.mrf.mxu0
  %v1057 = vadd.f32 0.0, %v1056
  %1058 = vmatmul.f32.gmra.mxu0 %v1031
  %v1059 = vpop.f32.mrf.mxu0
  %v1060 = vadd.f32 0.0, %v1059
  %1061 = vmatmul.f32.gmra.mxu0 %v1034
  %v1062 = vpop.f32.mrf.mxu0
  %v1063 = vadd.f32 0.0, %v1062
  %1064 = vmatmul.f32.gmra.mxu0 %v1037
  %v1065 = vpop.f32.mrf.mxu0
  %v1066 = vadd.f32 0.0, %v1065
  %1067 = vdwg.mxu0
  %1072 = vrot.lane.b32.xlu0 %v1057, 96
  %v1073 = vpop.permute.xlu0 %1072
  %1074 = vrot.lane.b32.xlu0 %v1060, 96
  %v1075 = vpop.permute.xlu0 %1074
  %1076 = vrot.lane.b32.xlu0 %v1063, 96
  %v1077 = vpop.permute.xlu0 %1076
  %1078 = vrot.lane.b32.xlu0 %v1066, 96
  %v1079 = vpop.permute.xlu0 %1078
  %1084 = vmatpush.msra.mxu0 0.0
  %1085 = vmatpush.msra.mxu0 0.0
  %1086 = vmatpush.msra.mxu0 0.0
  %1087 = vmatpush.msra.mxu0 0.0
  %1088 = vmatpush.msra.mxu0 0.0
  %1089 = vmatpush.msra.mxu0 0.0
  %1090 = vmatpush.msra.mxu0 0.0
  %1091 = vmatpush.msra.mxu0 0.0
  %1092 = vmatpush.msra.mxu0 0.0
  %1093 = vmatpush.msra.mxu0 0.0
  %1094 = vmatpush.msra.mxu0 0.0
  %1095 = vmatpush.msra.mxu0 0.0
  %1096 = vmatpush.msra.mxu0 %v1066
  %1097 = vmatpush.msra.mxu0 %v1063
  %1098 = vmatpush.msra.mxu0 %v1060
  %1099 = vmatpush.msra.mxu0 %v1057
  %1100 = vmatmul.f32.gmra.mxu0 %v107
  %v1101 = vpop.f32.mrf.mxu0
  %v1102 = vadd.f32 %v1073, %v1101
  %1103 = vmatmul.f32.gmra.mxu0 %v110
  %v1104 = vpop.f32.mrf.mxu0
  %v1105 = vadd.f32 %v1075, %v1104
  %1106 = vmatmul.f32.gmra.mxu0 %v113
  %v1107 = vpop.f32.mrf.mxu0
  %v1108 = vadd.f32 %v1077, %v1107
  %1109 = vmatmul.f32.gmra.mxu0 %v116
  %v1110 = vpop.f32.mrf.mxu0
  %v1111 = vadd.f32 %v1079, %v1110
  %1112 = vdwg.mxu0
  %v1114 = vperm.slane %v1026, 0
  %v1116 = vadd.f32 %v1102, %v1114
  %v1117 = vadd.f32 %v1105, %v1114
  %v1118 = vadd.f32 %v1108, %v1114
  %v1119 = vadd.f32 %v1111, %v1114
  %v1120 = vmax.f32 %v1116, 0.0
  %v1121 = vmax.f32 %v1117, 0.0
  %v1122 = vmax.f32 %v1118, 0.0
  %v1123 = vmax.f32 %v1119, 0.0
  %s1124 = scalar_lea.vmem %s4, 288
  %v1125 = vld [vmem:[%s1124] sm:$0xff]
  %v1126 = vld [vmem:[%s1124 + $0x8] sm:$0xff]
  %v1127 = vld [vmem:[%s1124 + $0x10] sm:$0xff]
  %v1128 = vld [vmem:[%s1124 + $0x18] sm:$0xff]
  %s1129 = scalar_lea.vmem %s5, 9
  %v1130 = vld [vmem:[%s1129] sm:$0x1]
  %v1132 = vsel %vm105, %v1120, 0
  %v1135 = vsel %vm105, %v1121, 0
  %v1138 = vsel %vm105, %v1122, 0
  %v1141 = vsel %vm105, %v1123, 0
  %1143 = vmatpush.msra.mxu0 0.0
  %1144 = vmatpush.msra.mxu0 0.0
  %1145 = vmatpush.msra.mxu0 0.0
  %1146 = vmatpush.msra.mxu0 0.0
  %1147 = vmatpush.msra.mxu0 0.0
  %1148 = vmatpush.msra.mxu0 0.0
  %1149 = vmatpush.msra.mxu0 0.0
  %1150 = vmatpush.msra.mxu0 0.0
  %1151 = vmatpush.msra.mxu0 0.0
  %1152 = vmatpush.msra.mxu0 0.0
  %1153 = vmatpush.msra.mxu0 0.0
  %1154 = vmatpush.msra.mxu0 0.0
  %1155 = vmatpush.msra.mxu0 %v1128
  %1156 = vmatpush.msra.mxu0 %v1127
  %1157 = vmatpush.msra.mxu0 %v1126
  %1158 = vmatpush.msra.mxu0 %v1125
  %1159 = vmatmul.f32.gmra.mxu0 %v1132
  %v1160 = vpop.f32.mrf.mxu0
  %v1161 = vadd.f32 0.0, %v1160
  %1162 = vmatmul.f32.gmra.mxu0 %v1135
  %v1163 = vpop.f32.mrf.mxu0
  %v1164 = vadd.f32 0.0, %v1163
  %1165 = vmatmul.f32.gmra.mxu0 %v1138
  %v1166 = vpop.f32.mrf.mxu0
  %v1167 = vadd.f32 0.0, %v1166
  %1168 = vmatmul.f32.gmra.mxu0 %v1141
  %v1169 = vpop.f32.mrf.mxu0
  %v1170 = vadd.f32 0.0, %v1169
  %1171 = vdwg.mxu0
  %1176 = vrot.lane.b32.xlu0 %v1161, 96
  %v1177 = vpop.permute.xlu0 %1176
  %1178 = vrot.lane.b32.xlu0 %v1164, 96
  %v1179 = vpop.permute.xlu0 %1178
  %1180 = vrot.lane.b32.xlu0 %v1167, 96
  %v1181 = vpop.permute.xlu0 %1180
  %1182 = vrot.lane.b32.xlu0 %v1170, 96
  %v1183 = vpop.permute.xlu0 %1182
  %1188 = vmatpush.msra.mxu0 0.0
  %1189 = vmatpush.msra.mxu0 0.0
  %1190 = vmatpush.msra.mxu0 0.0
  %1191 = vmatpush.msra.mxu0 0.0
  %1192 = vmatpush.msra.mxu0 0.0
  %1193 = vmatpush.msra.mxu0 0.0
  %1194 = vmatpush.msra.mxu0 0.0
  %1195 = vmatpush.msra.mxu0 0.0
  %1196 = vmatpush.msra.mxu0 0.0
  %1197 = vmatpush.msra.mxu0 0.0
  %1198 = vmatpush.msra.mxu0 0.0
  %1199 = vmatpush.msra.mxu0 0.0
  %1200 = vmatpush.msra.mxu0 %v1170
  %1201 = vmatpush.msra.mxu0 %v1167
  %1202 = vmatpush.msra.mxu0 %v1164
  %1203 = vmatpush.msra.mxu0 %v1161
  %1204 = vmatmul.f32.gmra.mxu0 %v107
  %v1205 = vpop.f32.mrf.mxu0
  %v1206 = vadd.f32 %v1177, %v1205
  %1207 = vmatmul.f32.gmra.mxu0 %v110
  %v1208 = vpop.f32.mrf.mxu0
  %v1209 = vadd.f32 %v1179, %v1208
  %1210 = vmatmul.f32.gmra.mxu0 %v113
  %v1211 = vpop.f32.mrf.mxu0
  %v1212 = vadd.f32 %v1181, %v1211
  %1213 = vmatmul.f32.gmra.mxu0 %v116
  %v1214 = vpop.f32.mrf.mxu0
  %v1215 = vadd.f32 %v1183, %v1214
  %1216 = vdwg.mxu0
  %v1218 = vperm.slane %v1130, 0
  %v1220 = vadd.f32 %v1206, %v1218
  %v1221 = vadd.f32 %v1209, %v1218
  %v1222 = vadd.f32 %v1212, %v1218
  %v1223 = vadd.f32 %v1215, %v1218
  %v1224 = vmax.f32 %v1220, 0.0
  %v1225 = vmax.f32 %v1221, 0.0
  %v1226 = vmax.f32 %v1222, 0.0
  %v1227 = vmax.f32 %v1223, 0.0
  %v1228 = vadd.f32 %v1016, %v1224
  %v1229 = vadd.f32 %v1017, %v1225
  %v1230 = vadd.f32 %v1018, %v1226
  %v1231 = vadd.f32 %v1019, %v1227
  %v1232 = vmul.f32 %v1228, 0.5
  %v1233 = vmul.f32 %v1229, 0.5
  %v1234 = vmul.f32 %v1230, 0.5
  %v1235 = vmul.f32 %v1231, 0.5
  %s1236 = scalar_lea.vmem %s4, 320
  %v1237 = vld [vmem:[%s1236] sm:$0xff]
  %v1238 = vld [vmem:[%s1236 + $0x8] sm:$0xff]
  %v1239 = vld [vmem:[%s1236 + $0x10] sm:$0xff]
  %v1240 = vld [vmem:[%s1236 + $0x18] sm:$0xff]
  %s1241 = scalar_lea.vmem %s5, 10
  %v1242 = vld [vmem:[%s1241] sm:$0x1]
  %v1244 = vsel %vm105, %v1232, 0
  %v1247 = vsel %vm105, %v1233, 0
  %v1250 = vsel %vm105, %v1234, 0
  %v1253 = vsel %vm105, %v1235, 0
  %1255 = vmatpush.msra.mxu0 0.0
  %1256 = vmatpush.msra.mxu0 0.0
  %1257 = vmatpush.msra.mxu0 0.0
  %1258 = vmatpush.msra.mxu0 0.0
  %1259 = vmatpush.msra.mxu0 0.0
  %1260 = vmatpush.msra.mxu0 0.0
  %1261 = vmatpush.msra.mxu0 0.0
  %1262 = vmatpush.msra.mxu0 0.0
  %1263 = vmatpush.msra.mxu0 0.0
  %1264 = vmatpush.msra.mxu0 0.0
  %1265 = vmatpush.msra.mxu0 0.0
  %1266 = vmatpush.msra.mxu0 0.0
  %1267 = vmatpush.msra.mxu0 %v1240
  %1268 = vmatpush.msra.mxu0 %v1239
  %1269 = vmatpush.msra.mxu0 %v1238
  %1270 = vmatpush.msra.mxu0 %v1237
  %1271 = vmatmul.f32.gmra.mxu0 %v1244
  %v1272 = vpop.f32.mrf.mxu0
  %v1273 = vadd.f32 0.0, %v1272
  %1274 = vmatmul.f32.gmra.mxu0 %v1247
  %v1275 = vpop.f32.mrf.mxu0
  %v1276 = vadd.f32 0.0, %v1275
  %1277 = vmatmul.f32.gmra.mxu0 %v1250
  %v1278 = vpop.f32.mrf.mxu0
  %v1279 = vadd.f32 0.0, %v1278
  %1280 = vmatmul.f32.gmra.mxu0 %v1253
  %v1281 = vpop.f32.mrf.mxu0
  %v1282 = vadd.f32 0.0, %v1281
  %1283 = vdwg.mxu0
  %1288 = vrot.lane.b32.xlu0 %v1273, 96
  %v1289 = vpop.permute.xlu0 %1288
  %1290 = vrot.lane.b32.xlu0 %v1276, 96
  %v1291 = vpop.permute.xlu0 %1290
  %1292 = vrot.lane.b32.xlu0 %v1279, 96
  %v1293 = vpop.permute.xlu0 %1292
  %1294 = vrot.lane.b32.xlu0 %v1282, 96
  %v1295 = vpop.permute.xlu0 %1294
  %1300 = vmatpush.msra.mxu0 0.0
  %1301 = vmatpush.msra.mxu0 0.0
  %1302 = vmatpush.msra.mxu0 0.0
  %1303 = vmatpush.msra.mxu0 0.0
  %1304 = vmatpush.msra.mxu0 0.0
  %1305 = vmatpush.msra.mxu0 0.0
  %1306 = vmatpush.msra.mxu0 0.0
  %1307 = vmatpush.msra.mxu0 0.0
  %1308 = vmatpush.msra.mxu0 0.0
  %1309 = vmatpush.msra.mxu0 0.0
  %1310 = vmatpush.msra.mxu0 0.0
  %1311 = vmatpush.msra.mxu0 0.0
  %1312 = vmatpush.msra.mxu0 %v1282
  %1313 = vmatpush.msra.mxu0 %v1279
  %1314 = vmatpush.msra.mxu0 %v1276
  %1315 = vmatpush.msra.mxu0 %v1273
  %1316 = vmatmul.f32.gmra.mxu0 %v107
  %v1317 = vpop.f32.mrf.mxu0
  %v1318 = vadd.f32 %v1289, %v1317
  %1319 = vmatmul.f32.gmra.mxu0 %v110
  %v1320 = vpop.f32.mrf.mxu0
  %v1321 = vadd.f32 %v1291, %v1320
  %1322 = vmatmul.f32.gmra.mxu0 %v113
  %v1323 = vpop.f32.mrf.mxu0
  %v1324 = vadd.f32 %v1293, %v1323
  %1325 = vmatmul.f32.gmra.mxu0 %v116
  %v1326 = vpop.f32.mrf.mxu0
  %v1327 = vadd.f32 %v1295, %v1326
  %1328 = vdwg.mxu0
  %v1330 = vperm.slane %v1242, 0
  %v1332 = vadd.f32 %v1318, %v1330
  %v1333 = vadd.f32 %v1321, %v1330
  %v1334 = vadd.f32 %v1324, %v1330
  %v1335 = vadd.f32 %v1327, %v1330
  %v1336 = vmax.f32 %v1332, 0.0
  %v1337 = vmax.f32 %v1333, 0.0
  %v1338 = vmax.f32 %v1334, 0.0
  %v1339 = vmax.f32 %v1335, 0.0
  %s1340 = scalar_lea.vmem %s4, 352
  %v1341 = vld [vmem:[%s1340] sm:$0xff]
  %v1342 = vld [vmem:[%s1340 + $0x8] sm:$0xff]
  %v1343 = vld [vmem:[%s1340 + $0x10] sm:$0xff]
  %v1344 = vld [vmem:[%s1340 + $0x18] sm:$0xff]
  %s1345 = scalar_lea.vmem %s5, 11
  %v1346 = vld [vmem:[%s1345] sm:$0x1]
  %v1348 = vsel %vm105, %v1336, 0
  %v1351 = vsel %vm105, %v1337, 0
  %v1354 = vsel %vm105, %v1338, 0
  %v1357 = vsel %vm105, %v1339, 0
  %1359 = vmatpush.msra.mxu0 0.0
  %1360 = vmatpush.msra.mxu0 0.0
  %1361 = vmatpush.msra.mxu0 0.0
  %1362 = vmatpush.msra.mxu0 0.0
  %1363 = vmatpush.msra.mxu0 0.0
  %1364 = vmatpush.msra.mxu0 0.0
  %1365 = vmatpush.msra.mxu0 0.0
  %1366 = vmatpush.msra.mxu0 0.0
  %1367 = vmatpush.msra.mxu0 0.0
  %1368 = vmatpush.msra.mxu0 0.0
  %1369 = vmatpush.msra.mxu0 0.0
  %1370 = vmatpush.msra.mxu0 0.0
  %1371 = vmatpush.msra.mxu0 %v1344
  %1372 = vmatpush.msra.mxu0 %v1343
  %1373 = vmatpush.msra.mxu0 %v1342
  %1374 = vmatpush.msra.mxu0 %v1341
  %1375 = vmatmul.f32.gmra.mxu0 %v1348
  %v1376 = vpop.f32.mrf.mxu0
  %v1377 = vadd.f32 0.0, %v1376
  %1378 = vmatmul.f32.gmra.mxu0 %v1351
  %v1379 = vpop.f32.mrf.mxu0
  %v1380 = vadd.f32 0.0, %v1379
  %1381 = vmatmul.f32.gmra.mxu0 %v1354
  %v1382 = vpop.f32.mrf.mxu0
  %v1383 = vadd.f32 0.0, %v1382
  %1384 = vmatmul.f32.gmra.mxu0 %v1357
  %v1385 = vpop.f32.mrf.mxu0
  %v1386 = vadd.f32 0.0, %v1385
  %1387 = vdwg.mxu0
  %1392 = vrot.lane.b32.xlu0 %v1377, 96
  %v1393 = vpop.permute.xlu0 %1392
  %1394 = vrot.lane.b32.xlu0 %v1380, 96
  %v1395 = vpop.permute.xlu0 %1394
  %1396 = vrot.lane.b32.xlu0 %v1383, 96
  %v1397 = vpop.permute.xlu0 %1396
  %1398 = vrot.lane.b32.xlu0 %v1386, 96
  %v1399 = vpop.permute.xlu0 %1398
  %1404 = vmatpush.msra.mxu0 0.0
  %1405 = vmatpush.msra.mxu0 0.0
  %1406 = vmatpush.msra.mxu0 0.0
  %1407 = vmatpush.msra.mxu0 0.0
  %1408 = vmatpush.msra.mxu0 0.0
  %1409 = vmatpush.msra.mxu0 0.0
  %1410 = vmatpush.msra.mxu0 0.0
  %1411 = vmatpush.msra.mxu0 0.0
  %1412 = vmatpush.msra.mxu0 0.0
  %1413 = vmatpush.msra.mxu0 0.0
  %1414 = vmatpush.msra.mxu0 0.0
  %1415 = vmatpush.msra.mxu0 0.0
  %1416 = vmatpush.msra.mxu0 %v1386
  %1417 = vmatpush.msra.mxu0 %v1383
  %1418 = vmatpush.msra.mxu0 %v1380
  %1419 = vmatpush.msra.mxu0 %v1377
  %1420 = vmatmul.f32.gmra.mxu0 %v107
  %v1421 = vpop.f32.mrf.mxu0
  %v1422 = vadd.f32 %v1393, %v1421
  %1423 = vmatmul.f32.gmra.mxu0 %v110
  %v1424 = vpop.f32.mrf.mxu0
  %v1425 = vadd.f32 %v1395, %v1424
  %1426 = vmatmul.f32.gmra.mxu0 %v113
  %v1427 = vpop.f32.mrf.mxu0
  %v1428 = vadd.f32 %v1397, %v1427
  %1429 = vmatmul.f32.gmra.mxu0 %v116
  %v1430 = vpop.f32.mrf.mxu0
  %v1431 = vadd.f32 %v1399, %v1430
  %1432 = vdwg.mxu0
  %v1434 = vperm.slane %v1346, 0
  %v1436 = vadd.f32 %v1422, %v1434
  %v1437 = vadd.f32 %v1425, %v1434
  %v1438 = vadd.f32 %v1428, %v1434
  %v1439 = vadd.f32 %v1431, %v1434
  %v1440 = vmax.f32 %v1436, 0.0
  %v1441 = vmax.f32 %v1437, 0.0
  %v1442 = vmax.f32 %v1438, 0.0
  %v1443 = vmax.f32 %v1439, 0.0
  %v1444 = vadd.f32 %v1232, %v1440
  %v1445 = vadd.f32 %v1233, %v1441
  %v1446 = vadd.f32 %v1234, %v1442
  %v1447 = vadd.f32 %v1235, %v1443
  %v1448 = vmul.f32 %v1444, 0.5
  %v1449 = vmul.f32 %v1445, 0.5
  %v1450 = vmul.f32 %v1446, 0.5
  %v1451 = vmul.f32 %v1447, 0.5
  %1452 = vst.msk [vmem:[%s8] sm:$0xff] %vm105, %v1448
  %1453 = vst.msk [vmem:[%s8 + $0x8] sm:$0xff] %vm105, %v1449
  %1454 = vst.msk [vmem:[%s8 + $0x10] sm:$0xff] %vm105, %v1450
  %1455 = vst.msk [vmem:[%s8 + $0x18] sm:$0xff] %vm105, %v1451
  %v1456 = vld [vmem:[%s6] sm:$0xff]
  %v1457 = vld [vmem:[%s6 + $0x8] sm:$0xff]
  %v1458 = vld [vmem:[%s6 + $0x10] sm:$0xff]
  %v1459 = vld [vmem:[%s6 + $0x18] sm:$0xff]
  %v1460 = vld [vmem:[%s6 + $0x20] sm:$0xff]
  %v1461 = vld [vmem:[%s6 + $0x28] sm:$0xff]
  %v1462 = vld [vmem:[%s6 + $0x30] sm:$0xff]
  %v1463 = vld [vmem:[%s6 + $0x38] sm:$0xff]
  %v1464 = vld [vmem:[%s7] sm:$0x1]
  %v1466 = vsel %vm105, %v1448, 0
  %v1469 = vsel %vm105, %v1449, 0
  %v1472 = vsel %vm105, %v1450, 0
  %v1475 = vsel %vm105, %v1451, 0
  %1477 = vmatpush.msra.mxu0 0.0
  %1478 = vmatpush.msra.mxu0 0.0
  %1479 = vmatpush.msra.mxu0 0.0
  %1480 = vmatpush.msra.mxu0 0.0
  %1481 = vmatpush.msra.mxu0 0.0
  %1482 = vmatpush.msra.mxu0 0.0
  %1483 = vmatpush.msra.mxu0 0.0
  %1484 = vmatpush.msra.mxu0 0.0
  %1485 = vmatpush.msra.mxu0 0.0
  %1486 = vmatpush.msra.mxu0 0.0
  %1487 = vmatpush.msra.mxu0 0.0
  %1488 = vmatpush.msra.mxu0 0.0
  %1489 = vmatpush.msra.mxu0 %v1462
  %1490 = vmatpush.msra.mxu0 %v1460
  %1491 = vmatpush.msra.mxu0 %v1458
  %1492 = vmatpush.msra.mxu0 %v1456
  %1493 = vmatmul.f32.gmra.mxu0 %v1466
  %v1494 = vpop.f32.mrf.mxu0
  %v1495 = vadd.f32 0.0, %v1494
  %1496 = vmatmul.f32.gmra.mxu0 %v1469
  %v1497 = vpop.f32.mrf.mxu0
  %v1498 = vadd.f32 0.0, %v1497
  %1499 = vmatmul.f32.gmra.mxu0 %v1472
  %v1500 = vpop.f32.mrf.mxu0
  %v1501 = vadd.f32 0.0, %v1500
  %1502 = vmatmul.f32.gmra.mxu0 %v1475
  %v1503 = vpop.f32.mrf.mxu0
  %v1504 = vadd.f32 0.0, %v1503
  %1505 = vdwg.mxu0
  %1506 = vmatpush.msra.mxu0 0.0
  %1507 = vmatpush.msra.mxu0 0.0
  %1508 = vmatpush.msra.mxu0 0.0
  %1509 = vmatpush.msra.mxu0 0.0
  %1510 = vmatpush.msra.mxu0 0.0
  %1511 = vmatpush.msra.mxu0 0.0
  %1512 = vmatpush.msra.mxu0 0.0
  %1513 = vmatpush.msra.mxu0 0.0
  %1514 = vmatpush.msra.mxu0 0.0
  %1515 = vmatpush.msra.mxu0 0.0
  %1516 = vmatpush.msra.mxu0 0.0
  %1517 = vmatpush.msra.mxu0 0.0
  %1518 = vmatpush.msra.mxu0 %v1463
  %1519 = vmatpush.msra.mxu0 %v1461
  %1520 = vmatpush.msra.mxu0 %v1459
  %1521 = vmatpush.msra.mxu0 %v1457
  %1522 = vmatmul.f32.gmra.mxu0 %v1466
  %v1523 = vpop.f32.mrf.mxu0
  %v1524 = vadd.f32 0.0, %v1523
  %1525 = vmatmul.f32.gmra.mxu0 %v1469
  %v1526 = vpop.f32.mrf.mxu0
  %v1527 = vadd.f32 0.0, %v1526
  %1528 = vmatmul.f32.gmra.mxu0 %v1472
  %v1529 = vpop.f32.mrf.mxu0
  %v1530 = vadd.f32 0.0, %v1529
  %1531 = vmatmul.f32.gmra.mxu0 %v1475
  %v1532 = vpop.f32.mrf.mxu0
  %v1533 = vadd.f32 0.0, %v1532
  %1534 = vdwg.mxu0
  %1535 = vmatpush.msra.mxu0 0.0
  %1536 = vmatpush.msra.mxu0 0.0
  %1537 = vmatpush.msra.mxu0 0.0
  %1538 = vmatpush.msra.mxu0 0.0
  %1539 = vmatpush.msra.mxu0 0.0
  %1540 = vmatpush.msra.mxu0 0.0
  %1541 = vmatpush.msra.mxu0 0.0
  %1542 = vmatpush.msra.mxu0 0.0
  %1543 = vmatpush.msra.mxu0 0.0
  %1544 = vmatpush.msra.mxu0 0.0
  %1545 = vmatpush.msra.mxu0 0.0
  %1546 = vmatpush.msra.mxu0 0.0
  %1547 = vmatpush.msra.mxu0 %v1504
  %1548 = vmatpush.msra.mxu0 %v1501
  %1549 = vmatpush.msra.mxu0 %v1498
  %1550 = vmatpush.msra.mxu0 %v1495
  %1551 = vmatmul.f32.gmra.mxu0 %v107
  %v1552 = vpop.f32.mrf.mxu0
  %v1553 = vadd.f32 %v1524, %v1552
  %1554 = vmatmul.f32.gmra.mxu0 %v110
  %v1555 = vpop.f32.mrf.mxu0
  %v1556 = vadd.f32 %v1527, %v1555
  %1557 = vmatmul.f32.gmra.mxu0 %v113
  %v1558 = vpop.f32.mrf.mxu0
  %v1559 = vadd.f32 %v1530, %v1558
  %1560 = vmatmul.f32.gmra.mxu0 %v116
  %v1561 = vpop.f32.mrf.mxu0
  %v1562 = vadd.f32 %v1533, %v1561
  %1563 = vdwg.mxu0
  %v1565 = vperm.slane %v1464, 0
  %v1567 = vadd.f32 %v1553, %v1565
  %v1568 = vadd.f32 %v1556, %v1565
  %v1569 = vadd.f32 %v1559, %v1565
  %v1570 = vadd.f32 %v1562, %v1565
  %1571 = vst [vmem:[%s9] sm:$0xff] %v1567
  %1572 = vst [vmem:[%s9 + $0x8] sm:$0xff] %v1568
  %1573 = vst [vmem:[%s9 + $0x10] sm:$0xff] %v1569
  %1574 = vst [vmem:[%s9 + $0x18] sm:$0xff] %v1570
  // Predicated region
  $region34: #{pixel2mesh_forward.5} parent=0 // pred_check
    _
  $region35: #{pixel2mesh_forward.5} parent=0 // pred_check_branch
    %1576 = sbr.rel (0) target = $region37
  $region36: #{pixel2mesh_forward.5} parent=0 // pred_region
    _
  $region37: #{pixel2mesh_forward.5} parent=0 // pred_fallthru
    _
  // Predicated region
  $region38: #{pixel2mesh_forward.5} parent=0 // pred_check
    _
  $region39: #{pixel2mesh_forward.5} parent=0 // pred_check_branch
    %1578 = sbr.rel (0) target = $region41
  $region40: #{pixel2mesh_forward.5} parent=0 // pred_region
    _
  $region41: #{pixel2mesh_forward.5} parent=0 // pred_fallthru
    _
  // Predicated region
  $region42: #{pixel2mesh_forward.5} parent=0 // pred_check
    _
  $region43: #{pixel2mesh_forward.5} parent=0 // pred_check_branch
    %1580 = sbr.rel (0) target = $region45
  $region44: #{pixel2mesh_forward.5} parent=0 // pred_region
    _
  $region45: #{pixel2mesh_forward.5} parent=0 // pred_fallthru
    _
  // Predicated region
  $region46: #{pixel2mesh_forward.5} parent=0 // pred_check
    _
  $region47: #{pixel2mesh_forward.5} parent=0 // pred_check_branch
    %1582 = sbr.rel (0) target = $region49
  $region48: #{pixel2mesh_forward.5} parent=0 // pred_region
    _
  $region49: #{pixel2mesh_forward.5} parent=0 // pred_fallthru
    _

// kernel: pixel2mesh_forward.6
$region0: #{pixel2mesh_forward.6}
  #allocation0 [shape = 'u32[]', space=smem, size = 0x4, offset = 0x4, fixed_abs, tag = 'smem constant byte address 0x4 - core index']
  #allocation1 [shape = 'u32[72,128]{1,0:T(1,128)}', space=vmem, size = 0x9000, scoped, tag = 'internal scratch']
  %s0 = inlined_call_operand.vmem [shape: f32[64,88], index: 0, kind: input, shape index: {}]
  %s1 = inlined_call_operand.vmem [shape: f32[64,64], index: 1, kind: input, shape index: {}]
  %s2 = inlined_call_operand.vmem [shape: f32[88,64], index: 2, kind: input, shape index: {}]
  %s3 = inlined_call_operand.vmem [shape: f32[1,32], index: 3, kind: input, shape index: {}]
  %s4 = inlined_call_operand.vmem [shape: f32[12,32,64], index: 4, kind: input, shape index: {}]
  %s5 = inlined_call_operand.vmem [shape: f32[12,1,32], index: 5, kind: input, shape index: {}]
  %s6 = inlined_call_operand.vmem [shape: f32[32,256], index: 6, kind: input, shape index: {}]
  %s7 = inlined_call_operand.vmem [shape: f32[1,128], index: 7, kind: input, shape index: {}]
  %s8 = inlined_call_operand.vmem [shape: f32[64,32], index: 8, kind: output, shape index: {0}]
  %s9 = inlined_call_operand.vmem [shape: f32[64,128], index: 9, kind: output, shape index: {1}]
  %10 = xla_tuple %s8, %s9
  %s11 = sld [smem:[#allocation0]]
  $region50: #{pixel2mesh_forward.6} parent=0
    _
  %s13 = ssub.s32 1, %s11
  %s14 = scalar_select 0, %s13, %s11
  // Predicated region
  $region2: #{pixel2mesh_forward.6} parent=0 // pred_check
    _
  $region3: #{pixel2mesh_forward.6} parent=0 // pred_check_branch
    %16 = sbr.rel (0) target = $region5
  $region4: #{pixel2mesh_forward.6} parent=0 // pred_region
    _
  $region5: #{pixel2mesh_forward.6} parent=0 // pred_fallthru
    _
  // Predicated region
  $region6: #{pixel2mesh_forward.6} parent=0 // pred_check
    _
  $region7: #{pixel2mesh_forward.6} parent=0 // pred_check_branch
    %18 = sbr.rel (0) target = $region9
  $region8: #{pixel2mesh_forward.6} parent=0 // pred_region
    _
  $region9: #{pixel2mesh_forward.6} parent=0 // pred_fallthru
    _
  // Predicated region
  $region10: #{pixel2mesh_forward.6} parent=0 // pred_check
    _
  $region11: #{pixel2mesh_forward.6} parent=0 // pred_check_branch
    %20 = sbr.rel (0) target = $region13
  $region12: #{pixel2mesh_forward.6} parent=0 // pred_region
    _
  $region13: #{pixel2mesh_forward.6} parent=0 // pred_fallthru
    _
  // Predicated region
  $region14: #{pixel2mesh_forward.6} parent=0 // pred_check
    _
  $region15: #{pixel2mesh_forward.6} parent=0 // pred_check_branch
    %22 = sbr.rel (0) target = $region17
  $region16: #{pixel2mesh_forward.6} parent=0 // pred_region
    _
  $region17: #{pixel2mesh_forward.6} parent=0 // pred_fallthru
    _
  // Predicated region
  $region18: #{pixel2mesh_forward.6} parent=0 // pred_check
    _
  $region19: #{pixel2mesh_forward.6} parent=0 // pred_check_branch
    %24 = sbr.rel (0) target = $region21
  $region20: #{pixel2mesh_forward.6} parent=0 // pred_region
    _
  $region21: #{pixel2mesh_forward.6} parent=0 // pred_fallthru
    _
  // Predicated region
  $region22: #{pixel2mesh_forward.6} parent=0 // pred_check
    _
  $region23: #{pixel2mesh_forward.6} parent=0 // pred_check_branch
    %26 = sbr.rel (0) target = $region25
  $region24: #{pixel2mesh_forward.6} parent=0 // pred_region
    _
  $region25: #{pixel2mesh_forward.6} parent=0 // pred_fallthru
    _
  // Predicated region
  $region26: #{pixel2mesh_forward.6} parent=0 // pred_check
    _
  $region27: #{pixel2mesh_forward.6} parent=0 // pred_check_branch
    %28 = sbr.rel (0) target = $region29
  $region28: #{pixel2mesh_forward.6} parent=0 // pred_region
    _
  $region29: #{pixel2mesh_forward.6} parent=0 // pred_fallthru
    _
  // Predicated region
  $region30: #{pixel2mesh_forward.6} parent=0 // pred_check
    _
  $region31: #{pixel2mesh_forward.6} parent=0 // pred_check_branch
    %30 = sbr.rel (0) target = $region33
  $region32: #{pixel2mesh_forward.6} parent=0 // pred_region
    _
  $region33: #{pixel2mesh_forward.6} parent=0 // pred_fallthru
    _
  %v31 = vld [vmem:[%s1] sm:$0xff]
  %v32 = vld [vmem:[%s1 + $0x8] sm:$0xff]
  %v33 = vld [vmem:[%s1 + $0x10] sm:$0xff]
  %v34 = vld [vmem:[%s1 + $0x18] sm:$0xff]
  %v35 = vld [vmem:[%s1 + $0x20] sm:$0xff]
  %v36 = vld [vmem:[%s1 + $0x28] sm:$0xff]
  %v37 = vld [vmem:[%s1 + $0x30] sm:$0xff]
  %v38 = vld [vmem:[%s1 + $0x38] sm:$0xff]
  %v39 = vld [vmem:[%s0] sm:$0xff]
  %v40 = vld [vmem:[%s0 + $0x8] sm:$0xff]
  %v41 = vld [vmem:[%s0 + $0x10] sm:$0xff]
  %v42 = vld [vmem:[%s0 + $0x18] sm:$0xff]
  %v43 = vld [vmem:[%s0 + $0x20] sm:$0xff]
  %v44 = vld [vmem:[%s0 + $0x28] sm:$0xff]
  %v45 = vld [vmem:[%s0 + $0x30] sm:$0xff]
  %v46 = vld [vmem:[%s0 + $0x38] sm:$0xff]
  %v47 = vld [vmem:[%s2] sm:$0xff]
  %v48 = vld [vmem:[%s2 + $0x8] sm:$0xff]
  %v49 = vld [vmem:[%s2 + $0x10] sm:$0xff]
  %v50 = vld [vmem:[%s2 + $0x18] sm:$0xff]
  %v51 = vld [vmem:[%s2 + $0x20] sm:$0xff]
  %v52 = vld [vmem:[%s2 + $0x28] sm:$0xff]
  %v53 = vld [vmem:[%s2 + $0x30] sm:$0xff]
  %v54 = vld [vmem:[%s2 + $0x38] sm:$0xff]
  %v55 = vld [vmem:[%s2 + $0x40] sm:$0xff]
  %v56 = vld [vmem:[%s2 + $0x48] sm:$0xff]
  %v57 = vld [vmem:[%s2 + $0x50] sm:$0xff]
  %v58 = vld [vmem:[%s3] sm:$0x1]
  %vm59 = vcmask 719872
  %v61 = vsel %vm59, %v39, 0
  %v64 = vsel %vm59, %v40, 0
  %v67 = vsel %vm59, %v41, 0
  %v70 = vsel %vm59, %v42, 0
  %v73 = vsel %vm59, %v43, 0
  %v76 = vsel %vm59, %v44, 0
  %v79 = vsel %vm59, %v45, 0
  %v82 = vsel %vm59, %v46, 0
  %84 = vmatpush.msra.mxu0 0.0
  %85 = vmatpush.msra.mxu0 0.0
  %86 = vmatpush.msra.mxu0 0.0
  %87 = vmatpush.msra.mxu0 0.0
  %88 = vmatpush.msra.mxu0 0.0
  %89 = vmatpush.msra.mxu0 %v57
  %90 = vmatpush.msra.mxu0 %v56
  %91 = vmatpush.msra.mxu0 %v55
  %92 = vmatpush.msra.mxu0 %v54
  %93 = vmatpush.msra.mxu0 %v53
  %94 = vmatpush.msra.mxu0 %v52
  %95 = vmatpush.msra.mxu0 %v51
  %96 = vmatpush.msra.mxu0 %v50
  %97 = vmatpush.msra.mxu0 %v49
  %98 = vmatpush.msra.mxu0 %v48
  %99 = vmatpush.msra.mxu0 %v47
  %100 = vmatmul.f32.gmra.mxu0 %v61
  %v101 = vpop.f32.mrf.mxu0
  %v102 = vadd.f32 0.0, %v101
  %103 = vmatmul.f32.gmra.mxu0 %v64
  %v104 = vpop.f32.mrf.mxu0
  %v105 = vadd.f32 0.0, %v104
  %106 = vmatmul.f32.gmra.mxu0 %v67
  %v107 = vpop.f32.mrf.mxu0
  %v108 = vadd.f32 0.0, %v107
  %109 = vmatmul.f32.gmra.mxu0 %v70
  %v110 = vpop.f32.mrf.mxu0
  %v111 = vadd.f32 0.0, %v110
  %112 = vmatmul.f32.gmra.mxu0 %v73
  %v113 = vpop.f32.mrf.mxu0
  %v114 = vadd.f32 0.0, %v113
  %115 = vmatmul.f32.gmra.mxu0 %v76
  %v116 = vpop.f32.mrf.mxu0
  %v117 = vadd.f32 0.0, %v116
  %118 = vmatmul.f32.gmra.mxu0 %v79
  %v119 = vpop.f32.mrf.mxu0
  %v120 = vadd.f32 0.0, %v119
  %121 = vmatmul.f32.gmra.mxu0 %v82
  %v122 = vpop.f32.mrf.mxu0
  %v123 = vadd.f32 0.0, %v122
  %124 = vdwg.mxu0
  %133 = vrot.lane.b32.xlu0 %v102, 96
  %v134 = vpop.permute.xlu0 %133
  %135 = vrot.lane.b32.xlu0 %v105, 96
  %v136 = vpop.permute.xlu0 %135
  %137 = vrot.lane.b32.xlu0 %v108, 96
  %v138 = vpop.permute.xlu0 %137
  %139 = vrot.lane.b32.xlu0 %v111, 96
  %v140 = vpop.permute.xlu0 %139
  %141 = vrot.lane.b32.xlu0 %v114, 96
  %v142 = vpop.permute.xlu0 %141
  %143 = vrot.lane.b32.xlu0 %v117, 96
  %v144 = vpop.permute.xlu0 %143
  %145 = vrot.lane.b32.xlu0 %v120, 96
  %v146 = vpop.permute.xlu0 %145
  %147 = vrot.lane.b32.xlu0 %v123, 96
  %v148 = vpop.permute.xlu0 %147
  %vm157 = vcmask 523264
  %v159 = vsel %vm157, %v31, 0
  %v162 = vsel %vm157, %v32, 0
  %v165 = vsel %vm157, %v33, 0
  %v168 = vsel %vm157, %v34, 0
  %v171 = vsel %vm157, %v35, 0
  %v174 = vsel %vm157, %v36, 0
  %v177 = vsel %vm157, %v37, 0
  %v180 = vsel %vm157, %v38, 0
  %182 = vmatpush.msra.mxu0 0.0
  %183 = vmatpush.msra.mxu0 0.0
  %184 = vmatpush.msra.mxu0 0.0
  %185 = vmatpush.msra.mxu0 0.0
  %186 = vmatpush.msra.mxu0 0.0
  %187 = vmatpush.msra.mxu0 0.0
  %188 = vmatpush.msra.mxu0 0.0
  %189 = vmatpush.msra.mxu0 0.0
  %190 = vmatpush.msra.mxu0 %v123
  %191 = vmatpush.msra.mxu0 %v120
  %192 = vmatpush.msra.mxu0 %v117
  %193 = vmatpush.msra.mxu0 %v114
  %194 = vmatpush.msra.mxu0 %v111
  %195 = vmatpush.msra.mxu0 %v108
  %196 = vmatpush.msra.mxu0 %v105
  %197 = vmatpush.msra.mxu0 %v102
  %198 = vmatmul.f32.gmra.mxu0 %v159
  %v199 = vpop.f32.mrf.mxu0
  %v200 = vadd.f32 %v134, %v199
  %201 = vmatmul.f32.gmra.mxu0 %v162
  %v202 = vpop.f32.mrf.mxu0
  %v203 = vadd.f32 %v136, %v202
  %204 = vmatmul.f32.gmra.mxu0 %v165
  %v205 = vpop.f32.mrf.mxu0
  %v206 = vadd.f32 %v138, %v205
  %207 = vmatmul.f32.gmra.mxu0 %v168
  %v208 = vpop.f32.mrf.mxu0
  %v209 = vadd.f32 %v140, %v208
  %210 = vmatmul.f32.gmra.mxu0 %v171
  %v211 = vpop.f32.mrf.mxu0
  %v212 = vadd.f32 %v142, %v211
  %213 = vmatmul.f32.gmra.mxu0 %v174
  %v214 = vpop.f32.mrf.mxu0
  %v215 = vadd.f32 %v144, %v214
  %216 = vmatmul.f32.gmra.mxu0 %v177
  %v217 = vpop.f32.mrf.mxu0
  %v218 = vadd.f32 %v146, %v217
  %219 = vmatmul.f32.gmra.mxu0 %v180
  %v220 = vpop.f32.mrf.mxu0
  %v221 = vadd.f32 %v148, %v220
  %222 = vdwg.mxu0
  %v224 = vperm.slane %v58, 0
  %v226 = vadd.f32 %v200, %v224
  %v227 = vadd.f32 %v203, %v224
  %v228 = vadd.f32 %v206, %v224
  %v229 = vadd.f32 %v209, %v224
  %v230 = vadd.f32 %v212, %v224
  %v231 = vadd.f32 %v215, %v224
  %v232 = vadd.f32 %v218, %v224
  %v233 = vadd.f32 %v221, %v224
  %v234 = vmax.f32 %v226, 0.0
  %v235 = vmax.f32 %v227, 0.0
  %v236 = vmax.f32 %v228, 0.0
  %v237 = vmax.f32 %v229, 0.0
  %v238 = vmax.f32 %v230, 0.0
  %v239 = vmax.f32 %v231, 0.0
  %v240 = vmax.f32 %v232, 0.0
  %v241 = vmax.f32 %v233, 0.0
  %v242 = vld [vmem:[%s4] sm:$0xff]
  %v243 = vld [vmem:[%s4 + $0x8] sm:$0xff]
  %v244 = vld [vmem:[%s4 + $0x10] sm:$0xff]
  %v245 = vld [vmem:[%s4 + $0x18] sm:$0xff]
  %v246 = vld [vmem:[%s5] sm:$0x1]
  %vm247 = vcmask 261120
  %v249 = vsel %vm247, %v234, 0
  %v252 = vsel %vm247, %v235, 0
  %v255 = vsel %vm247, %v236, 0
  %v258 = vsel %vm247, %v237, 0
  %v261 = vsel %vm247, %v238, 0
  %v264 = vsel %vm247, %v239, 0
  %v267 = vsel %vm247, %v240, 0
  %v270 = vsel %vm247, %v241, 0
  %272 = vmatpush.msra.mxu0 0.0
  %273 = vmatpush.msra.mxu0 0.0
  %274 = vmatpush.msra.mxu0 0.0
  %275 = vmatpush.msra.mxu0 0.0
  %276 = vmatpush.msra.mxu0 0.0
  %277 = vmatpush.msra.mxu0 0.0
  %278 = vmatpush.msra.mxu0 0.0
  %279 = vmatpush.msra.mxu0 0.0
  %280 = vmatpush.msra.mxu0 0.0
  %281 = vmatpush.msra.mxu0 0.0
  %282 = vmatpush.msra.mxu0 0.0
  %283 = vmatpush.msra.mxu0 0.0
  %284 = vmatpush.msra.mxu0 %v245
  %285 = vmatpush.msra.mxu0 %v244
  %286 = vmatpush.msra.mxu0 %v243
  %287 = vmatpush.msra.mxu0 %v242
  %288 = vmatmul.f32.gmra.mxu0 %v249
  %v289 = vpop.f32.mrf.mxu0
  %v290 = vadd.f32 0.0, %v289
  %291 = vmatmul.f32.gmra.mxu0 %v252
  %v292 = vpop.f32.mrf.mxu0
  %v293 = vadd.f32 0.0, %v292
  %294 = vmatmul.f32.gmra.mxu0 %v255
  %v295 = vpop.f32.mrf.mxu0
  %v296 = vadd.f32 0.0, %v295
  %297 = vmatmul.f32.gmra.mxu0 %v258
  %v298 = vpop.f32.mrf.mxu0
  %v299 = vadd.f32 0.0, %v298
  %300 = vmatmul.f32.gmra.mxu0 %v261
  %v301 = vpop.f32.mrf.mxu0
  %v302 = vadd.f32 0.0, %v301
  %303 = vmatmul.f32.gmra.mxu0 %v264
  %v304 = vpop.f32.mrf.mxu0
  %v305 = vadd.f32 0.0, %v304
  %306 = vmatmul.f32.gmra.mxu0 %v267
  %v307 = vpop.f32.mrf.mxu0
  %v308 = vadd.f32 0.0, %v307
  %309 = vmatmul.f32.gmra.mxu0 %v270
  %v310 = vpop.f32.mrf.mxu0
  %v311 = vadd.f32 0.0, %v310
  %312 = vdwg.mxu0
  %321 = vrot.lane.b32.xlu0 %v290, 96
  %v322 = vpop.permute.xlu0 %321
  %323 = vrot.lane.b32.xlu0 %v293, 96
  %v324 = vpop.permute.xlu0 %323
  %325 = vrot.lane.b32.xlu0 %v296, 96
  %v326 = vpop.permute.xlu0 %325
  %327 = vrot.lane.b32.xlu0 %v299, 96
  %v328 = vpop.permute.xlu0 %327
  %329 = vrot.lane.b32.xlu0 %v302, 96
  %v330 = vpop.permute.xlu0 %329
  %331 = vrot.lane.b32.xlu0 %v305, 96
  %v332 = vpop.permute.xlu0 %331
  %333 = vrot.lane.b32.xlu0 %v308, 96
  %v334 = vpop.permute.xlu0 %333
  %335 = vrot.lane.b32.xlu0 %v311, 96
  %v336 = vpop.permute.xlu0 %335
  %345 = vmatpush.msra.mxu0 0.0
  %346 = vmatpush.msra.mxu0 0.0
  %347 = vmatpush.msra.mxu0 0.0
  %348 = vmatpush.msra.mxu0 0.0
  %349 = vmatpush.msra.mxu0 0.0
  %350 = vmatpush.msra.mxu0 0.0
  %351 = vmatpush.msra.mxu0 0.0
  %352 = vmatpush.msra.mxu0 0.0
  %353 = vmatpush.msra.mxu0 %v311
  %354 = vmatpush.msra.mxu0 %v308
  %355 = vmatpush.msra.mxu0 %v305
  %356 = vmatpush.msra.mxu0 %v302
  %357 = vmatpush.msra.mxu0 %v299
  %358 = vmatpush.msra.mxu0 %v296
  %359 = vmatpush.msra.mxu0 %v293
  %360 = vmatpush.msra.mxu0 %v290
  %361 = vmatmul.f32.gmra.mxu0 %v159
  %v362 = vpop.f32.mrf.mxu0
  %v363 = vadd.f32 %v322, %v362
  %364 = vmatmul.f32.gmra.mxu0 %v162
  %v365 = vpop.f32.mrf.mxu0
  %v366 = vadd.f32 %v324, %v365
  %367 = vmatmul.f32.gmra.mxu0 %v165
  %v368 = vpop.f32.mrf.mxu0
  %v369 = vadd.f32 %v326, %v368
  %370 = vmatmul.f32.gmra.mxu0 %v168
  %v371 = vpop.f32.mrf.mxu0
  %v372 = vadd.f32 %v328, %v371
  %373 = vmatmul.f32.gmra.mxu0 %v171
  %v374 = vpop.f32.mrf.mxu0
  %v375 = vadd.f32 %v330, %v374
  %376 = vmatmul.f32.gmra.mxu0 %v174
  %v377 = vpop.f32.mrf.mxu0
  %v378 = vadd.f32 %v332, %v377
  %379 = vmatmul.f32.gmra.mxu0 %v177
  %v380 = vpop.f32.mrf.mxu0
  %v381 = vadd.f32 %v334, %v380
  %382 = vmatmul.f32.gmra.mxu0 %v180
  %v383 = vpop.f32.mrf.mxu0
  %v384 = vadd.f32 %v336, %v383
  %385 = vdwg.mxu0
  %v387 = vperm.slane %v246, 0
  %v389 = vadd.f32 %v363, %v387
  %v390 = vadd.f32 %v366, %v387
  %v391 = vadd.f32 %v369, %v387
  %v392 = vadd.f32 %v372, %v387
  %v393 = vadd.f32 %v375, %v387
  %v394 = vadd.f32 %v378, %v387
  %v395 = vadd.f32 %v381, %v387
  %v396 = vadd.f32 %v384, %v387
  %v397 = vmax.f32 %v389, 0.0
  %v398 = vmax.f32 %v390, 0.0
  %v399 = vmax.f32 %v391, 0.0
  %v400 = vmax.f32 %v392, 0.0
  %v401 = vmax.f32 %v393, 0.0
  %v402 = vmax.f32 %v394, 0.0
  %v403 = vmax.f32 %v395, 0.0
  %v404 = vmax.f32 %v396, 0.0
  %s405 = scalar_lea.vmem %s4, 32
  %v406 = vld [vmem:[%s405] sm:$0xff]
  %v407 = vld [vmem:[%s405 + $0x8] sm:$0xff]
  %v408 = vld [vmem:[%s405 + $0x10] sm:$0xff]
  %v409 = vld [vmem:[%s405 + $0x18] sm:$0xff]
  %s410 = scalar_lea.vmem %s5, 1
  %v411 = vld [vmem:[%s410] sm:$0x1]
  %v413 = vsel %vm247, %v397, 0
  %v416 = vsel %vm247, %v398, 0
  %v419 = vsel %vm247, %v399, 0
  %v422 = vsel %vm247, %v400, 0
  %v425 = vsel %vm247, %v401, 0
  %v428 = vsel %vm247, %v402, 0
  %v431 = vsel %vm247, %v403, 0
  %v434 = vsel %vm247, %v404, 0
  %436 = vmatpush.msra.mxu0 0.0
  %437 = vmatpush.msra.mxu0 0.0
  %438 = vmatpush.msra.mxu0 0.0
  %439 = vmatpush.msra.mxu0 0.0
  %440 = vmatpush.msra.mxu0 0.0
  %441 = vmatpush.msra.mxu0 0.0
  %442 = vmatpush.msra.mxu0 0.0
  %443 = vmatpush.msra.mxu0 0.0
  %444 = vmatpush.msra.mxu0 0.0
  %445 = vmatpush.msra.mxu0 0.0
  %446 = vmatpush.msra.mxu0 0.0
  %447 = vmatpush.msra.mxu0 0.0
  %448 = vmatpush.msra.mxu0 %v409
  %449 = vmatpush.msra.mxu0 %v408
  %450 = vmatpush.msra.mxu0 %v407
  %451 = vmatpush.msra.mxu0 %v406
  %452 = vmatmul.f32.gmra.mxu0 %v413
  %v453 = vpop.f32.mrf.mxu0
  %v454 = vadd.f32 0.0, %v453
  %455 = vmatmul.f32.gmra.mxu0 %v416
  %v456 = vpop.f32.mrf.mxu0
  %v457 = vadd.f32 0.0, %v456
  %458 = vmatmul.f32.gmra.mxu0 %v419
  %v459 = vpop.f32.mrf.mxu0
  %v460 = vadd.f32 0.0, %v459
  %461 = vmatmul.f32.gmra.mxu0 %v422
  %v462 = vpop.f32.mrf.mxu0
  %v463 = vadd.f32 0.0, %v462
  %464 = vmatmul.f32.gmra.mxu0 %v425
  %v465 = vpop.f32.mrf.mxu0
  %v466 = vadd.f32 0.0, %v465
  %467 = vmatmul.f32.gmra.mxu0 %v428
  %v468 = vpop.f32.mrf.mxu0
  %v469 = vadd.f32 0.0, %v468
  %470 = vmatmul.f32.gmra.mxu0 %v431
  %v471 = vpop.f32.mrf.mxu0
  %v472 = vadd.f32 0.0, %v471
  %473 = vmatmul.f32.gmra.mxu0 %v434
  %v474 = vpop.f32.mrf.mxu0
  %v475 = vadd.f32 0.0, %v474
  %476 = vdwg.mxu0
  %485 = vrot.lane.b32.xlu0 %v454, 96
  %v486 = vpop.permute.xlu0 %485
  %487 = vrot.lane.b32.xlu0 %v457, 96
  %v488 = vpop.permute.xlu0 %487
  %489 = vrot.lane.b32.xlu0 %v460, 96
  %v490 = vpop.permute.xlu0 %489
  %491 = vrot.lane.b32.xlu0 %v463, 96
  %v492 = vpop.permute.xlu0 %491
  %493 = vrot.lane.b32.xlu0 %v466, 96
  %v494 = vpop.permute.xlu0 %493
  %495 = vrot.lane.b32.xlu0 %v469, 96
  %v496 = vpop.permute.xlu0 %495
  %497 = vrot.lane.b32.xlu0 %v472, 96
  %v498 = vpop.permute.xlu0 %497
  %499 = vrot.lane.b32.xlu0 %v475, 96
  %v500 = vpop.permute.xlu0 %499
  %509 = vmatpush.msra.mxu0 0.0
  %510 = vmatpush.msra.mxu0 0.0
  %511 = vmatpush.msra.mxu0 0.0
  %512 = vmatpush.msra.mxu0 0.0
  %513 = vmatpush.msra.mxu0 0.0
  %514 = vmatpush.msra.mxu0 0.0
  %515 = vmatpush.msra.mxu0 0.0
  %516 = vmatpush.msra.mxu0 0.0
  %517 = vmatpush.msra.mxu0 %v475
  %518 = vmatpush.msra.mxu0 %v472
  %519 = vmatpush.msra.mxu0 %v469
  %520 = vmatpush.msra.mxu0 %v466
  %521 = vmatpush.msra.mxu0 %v463
  %522 = vmatpush.msra.mxu0 %v460
  %523 = vmatpush.msra.mxu0 %v457
  %524 = vmatpush.msra.mxu0 %v454
  %525 = vmatmul.f32.gmra.mxu0 %v159
  %v526 = vpop.f32.mrf.mxu0
  %v527 = vadd.f32 %v486, %v526
  %528 = vmatmul.f32.gmra.mxu0 %v162
  %v529 = vpop.f32.mrf.mxu0
  %v530 = vadd.f32 %v488, %v529
  %531 = vmatmul.f32.gmra.mxu0 %v165
  %v532 = vpop.f32.mrf.mxu0
  %v533 = vadd.f32 %v490, %v532
  %534 = vmatmul.f32.gmra.mxu0 %v168
  %v535 = vpop.f32.mrf.mxu0
  %v536 = vadd.f32 %v492, %v535
  %537 = vmatmul.f32.gmra.mxu0 %v171
  %v538 = vpop.f32.mrf.mxu0
  %v539 = vadd.f32 %v494, %v538
  %540 = vmatmul.f32.gmra.mxu0 %v174
  %v541 = vpop.f32.mrf.mxu0
  %v542 = vadd.f32 %v496, %v541
  %543 = vmatmul.f32.gmra.mxu0 %v177
  %v544 = vpop.f32.mrf.mxu0
  %v545 = vadd.f32 %v498, %v544
  %546 = vmatmul.f32.gmra.mxu0 %v180
  %v547 = vpop.f32.mrf.mxu0
  %v548 = vadd.f32 %v500, %v547
  %549 = vdwg.mxu0
  %v551 = vperm.slane %v411, 0
  %v553 = vadd.f32 %v527, %v551
  %v554 = vadd.f32 %v530, %v551
  %v555 = vadd.f32 %v533, %v551
  %v556 = vadd.f32 %v536, %v551
  %v557 = vadd.f32 %v539, %v551
  %v558 = vadd.f32 %v542, %v551
  %v559 = vadd.f32 %v545, %v551
  %v560 = vadd.f32 %v548, %v551
  %v561 = vmax.f32 %v553, 0.0
  %v562 = vmax.f32 %v554, 0.0
  %v563 = vmax.f32 %v555, 0.0
  %v564 = vmax.f32 %v556, 0.0
  %v565 = vmax.f32 %v557, 0.0
  %v566 = vmax.f32 %v558, 0.0
  %v567 = vmax.f32 %v559, 0.0
  %v568 = vmax.f32 %v560, 0.0
  %v569 = vadd.f32 %v234, %v561
  %v570 = vadd.f32 %v235, %v562
  %v571 = vadd.f32 %v236, %v563
  %v572 = vadd.f32 %v237, %v564
  %v573 = vadd.f32 %v238, %v565
  %v574 = vadd.f32 %v239, %v566
  %v575 = vadd.f32 %v240, %v567
  %v576 = vadd.f32 %v241, %v568
  %v577 = vmul.f32 %v569, 0.5
  %v578 = vmul.f32 %v570, 0.5
  %v579 = vmul.f32 %v571, 0.5
  %v580 = vmul.f32 %v572, 0.5
  %v581 = vmul.f32 %v573, 0.5
  %v582 = vmul.f32 %v574, 0.5
  %v583 = vmul.f32 %v575, 0.5
  %v584 = vmul.f32 %v576, 0.5
  %s585 = scalar_lea.vmem %s4, 64
  %v586 = vld [vmem:[%s585] sm:$0xff]
  %v587 = vld [vmem:[%s585 + $0x8] sm:$0xff]
  %v588 = vld [vmem:[%s585 + $0x10] sm:$0xff]
  %v589 = vld [vmem:[%s585 + $0x18] sm:$0xff]
  %s590 = scalar_lea.vmem %s5, 2
  %v591 = vld [vmem:[%s590] sm:$0x1]
  %v593 = vsel %vm247, %v577, 0
  %v596 = vsel %vm247, %v578, 0
  %v599 = vsel %vm247, %v579, 0
  %v602 = vsel %vm247, %v580, 0
  %v605 = vsel %vm247, %v581, 0
  %v608 = vsel %vm247, %v582, 0
  %v611 = vsel %vm247, %v583, 0
  %v614 = vsel %vm247, %v584, 0
  %616 = vmatpush.msra.mxu0 0.0
  %617 = vmatpush.msra.mxu0 0.0
  %618 = vmatpush.msra.mxu0 0.0
  %619 = vmatpush.msra.mxu0 0.0
  %620 = vmatpush.msra.mxu0 0.0
  %621 = vmatpush.msra.mxu0 0.0
  %622 = vmatpush.msra.mxu0 0.0
  %623 = vmatpush.msra.mxu0 0.0
  %624 = vmatpush.msra.mxu0 0.0
  %625 = vmatpush.msra.mxu0 0.0
  %626 = vmatpush.msra.mxu0 0.0
  %627 = vmatpush.msra.mxu0 0.0
  %628 = vmatpush.msra.mxu0 %v589
  %629 = vmatpush.msra.mxu0 %v588
  %630 = vmatpush.msra.mxu0 %v587
  %631 = vmatpush.msra.mxu0 %v586
  %632 = vmatmul.f32.gmra.mxu0 %v593
  %v633 = vpop.f32.mrf.mxu0
  %v634 = vadd.f32 0.0, %v633
  %635 = vmatmul.f32.gmra.mxu0 %v596
  %v636 = vpop.f32.mrf.mxu0
  %v637 = vadd.f32 0.0, %v636
  %638 = vmatmul.f32.gmra.mxu0 %v599
  %v639 = vpop.f32.mrf.mxu0
  %v640 = vadd.f32 0.0, %v639
  %641 = vmatmul.f32.gmra.mxu0 %v602
  %v642 = vpop.f32.mrf.mxu0
  %v643 = vadd.f32 0.0, %v642
  %644 = vmatmul.f32.gmra.mxu0 %v605
  %v645 = vpop.f32.mrf.mxu0
  %v646 = vadd.f32 0.0, %v645
  %647 = vmatmul.f32.gmra.mxu0 %v608
  %v648 = vpop.f32.mrf.mxu0
  %v649 = vadd.f32 0.0, %v648
  %650 = vmatmul.f32.gmra.mxu0 %v611
  %v651 = vpop.f32.mrf.mxu0
  %v652 = vadd.f32 0.0, %v651
  %653 = vmatmul.f32.gmra.mxu0 %v614
  %v654 = vpop.f32.mrf.mxu0
  %v655 = vadd.f32 0.0, %v654
  %656 = vdwg.mxu0
  %665 = vrot.lane.b32.xlu0 %v634, 96
  %v666 = vpop.permute.xlu0 %665
  %667 = vrot.lane.b32.xlu0 %v637, 96
  %v668 = vpop.permute.xlu0 %667
  %669 = vrot.lane.b32.xlu0 %v640, 96
  %v670 = vpop.permute.xlu0 %669
  %671 = vrot.lane.b32.xlu0 %v643, 96
  %v672 = vpop.permute.xlu0 %671
  %673 = vrot.lane.b32.xlu0 %v646, 96
  %v674 = vpop.permute.xlu0 %673
  %675 = vrot.lane.b32.xlu0 %v649, 96
  %v676 = vpop.permute.xlu0 %675
  %677 = vrot.lane.b32.xlu0 %v652, 96
  %v678 = vpop.permute.xlu0 %677
  %679 = vrot.lane.b32.xlu0 %v655, 96
  %v680 = vpop.permute.xlu0 %679
  %689 = vmatpush.msra.mxu0 0.0
  %690 = vmatpush.msra.mxu0 0.0
  %691 = vmatpush.msra.mxu0 0.0
  %692 = vmatpush.msra.mxu0 0.0
  %693 = vmatpush.msra.mxu0 0.0
  %694 = vmatpush.msra.mxu0 0.0
  %695 = vmatpush.msra.mxu0 0.0
  %696 = vmatpush.msra.mxu0 0.0
  %697 = vmatpush.msra.mxu0 %v655
  %698 = vmatpush.msra.mxu0 %v652
  %699 = vmatpush.msra.mxu0 %v649
  %700 = vmatpush.msra.mxu0 %v646
  %701 = vmatpush.msra.mxu0 %v643
  %702 = vmatpush.msra.mxu0 %v640
  %703 = vmatpush.msra.mxu0 %v637
  %704 = vmatpush.msra.mxu0 %v634
  %705 = vmatmul.f32.gmra.mxu0 %v159
  %v706 = vpop.f32.mrf.mxu0
  %v707 = vadd.f32 %v666, %v706
  %708 = vmatmul.f32.gmra.mxu0 %v162
  %v709 = vpop.f32.mrf.mxu0
  %v710 = vadd.f32 %v668, %v709
  %711 = vmatmul.f32.gmra.mxu0 %v165
  %v712 = vpop.f32.mrf.mxu0
  %v713 = vadd.f32 %v670, %v712
  %714 = vmatmul.f32.gmra.mxu0 %v168
  %v715 = vpop.f32.mrf.mxu0
  %v716 = vadd.f32 %v672, %v715
  %717 = vmatmul.f32.gmra.mxu0 %v171
  %v718 = vpop.f32.mrf.mxu0
  %v719 = vadd.f32 %v674, %v718
  %720 = vmatmul.f32.gmra.mxu0 %v174
  %v721 = vpop.f32.mrf.mxu0
  %v722 = vadd.f32 %v676, %v721
  %723 = vmatmul.f32.gmra.mxu0 %v177
  %v724 = vpop.f32.mrf.mxu0
  %v725 = vadd.f32 %v678, %v724
  %726 = vmatmul.f32.gmra.mxu0 %v180
  %v727 = vpop.f32.mrf.mxu0
  %v728 = vadd.f32 %v680, %v727
  %729 = vdwg.mxu0
  %v731 = vperm.slane %v591, 0
  %v733 = vadd.f32 %v707, %v731
  %v734 = vadd.f32 %v710, %v731
  %v735 = vadd.f32 %v713, %v731
  %v736 = vadd.f32 %v716, %v731
  %v737 = vadd.f32 %v719, %v731
  %v738 = vadd.f32 %v722, %v731
  %v739 = vadd.f32 %v725, %v731
  %v740 = vadd.f32 %v728, %v731
  %v741 = vmax.f32 %v733, 0.0
  %v742 = vmax.f32 %v734, 0.0
  %v743 = vmax.f32 %v735, 0.0
  %v744 = vmax.f32 %v736, 0.0
  %v745 = vmax.f32 %v737, 0.0
  %v746 = vmax.f32 %v738, 0.0
  %v747 = vmax.f32 %v739, 0.0
  %v748 = vmax.f32 %v740, 0.0
  %s749 = scalar_lea.vmem %s4, 96
  %v750 = vld [vmem:[%s749] sm:$0xff]
  %v751 = vld [vmem:[%s749 + $0x8] sm:$0xff]
  %v752 = vld [vmem:[%s749 + $0x10] sm:$0xff]
  %v753 = vld [vmem:[%s749 + $0x18] sm:$0xff]
  %s754 = scalar_lea.vmem %s5, 3
  %v755 = vld [vmem:[%s754] sm:$0x1]
  %v757 = vsel %vm247, %v741, 0
  %v760 = vsel %vm247, %v742, 0
  %v763 = vsel %vm247, %v743, 0
  %v766 = vsel %vm247, %v744, 0
  %v769 = vsel %vm247, %v745, 0
  %v772 = vsel %vm247, %v746, 0
  %v775 = vsel %vm247, %v747, 0
  %v778 = vsel %vm247, %v748, 0
  %780 = vmatpush.msra.mxu0 0.0
  %781 = vmatpush.msra.mxu0 0.0
  %782 = vmatpush.msra.mxu0 0.0
  %783 = vmatpush.msra.mxu0 0.0
  %784 = vmatpush.msra.mxu0 0.0
  %785 = vmatpush.msra.mxu0 0.0
  %786 = vmatpush.msra.mxu0 0.0
  %787 = vmatpush.msra.mxu0 0.0
  %788 = vmatpush.msra.mxu0 0.0
  %789 = vmatpush.msra.mxu0 0.0
  %790 = vmatpush.msra.mxu0 0.0
  %791 = vmatpush.msra.mxu0 0.0
  %792 = vmatpush.msra.mxu0 %v753
  %793 = vmatpush.msra.mxu0 %v752
  %794 = vmatpush.msra.mxu0 %v751
  %795 = vmatpush.msra.mxu0 %v750
  %796 = vmatmul.f32.gmra.mxu0 %v757
  %v797 = vpop.f32.mrf.mxu0
  %v798 = vadd.f32 0.0, %v797
  %799 = vmatmul.f32.gmra.mxu0 %v760
  %v800 = vpop.f32.mrf.mxu0
  %v801 = vadd.f32 0.0, %v800
  %802 = vmatmul.f32.gmra.mxu0 %v763
  %v803 = vpop.f32.mrf.mxu0
  %v804 = vadd.f32 0.0, %v803
  %805 = vmatmul.f32.gmra.mxu0 %v766
  %v806 = vpop.f32.mrf.mxu0
  %v807 = vadd.f32 0.0, %v806
  %808 = vmatmul.f32.gmra.mxu0 %v769
  %v809 = vpop.f32.mrf.mxu0
  %v810 = vadd.f32 0.0, %v809
  %811 = vmatmul.f32.gmra.mxu0 %v772
  %v812 = vpop.f32.mrf.mxu0
  %v813 = vadd.f32 0.0, %v812
  %814 = vmatmul.f32.gmra.mxu0 %v775
  %v815 = vpop.f32.mrf.mxu0
  %v816 = vadd.f32 0.0, %v815
  %817 = vmatmul.f32.gmra.mxu0 %v778
  %v818 = vpop.f32.mrf.mxu0
  %v819 = vadd.f32 0.0, %v818
  %820 = vdwg.mxu0
  %829 = vrot.lane.b32.xlu0 %v798, 96
  %v830 = vpop.permute.xlu0 %829
  %831 = vrot.lane.b32.xlu0 %v801, 96
  %v832 = vpop.permute.xlu0 %831
  %833 = vrot.lane.b32.xlu0 %v804, 96
  %v834 = vpop.permute.xlu0 %833
  %835 = vrot.lane.b32.xlu0 %v807, 96
  %v836 = vpop.permute.xlu0 %835
  %837 = vrot.lane.b32.xlu0 %v810, 96
  %v838 = vpop.permute.xlu0 %837
  %839 = vrot.lane.b32.xlu0 %v813, 96
  %v840 = vpop.permute.xlu0 %839
  %841 = vrot.lane.b32.xlu0 %v816, 96
  %v842 = vpop.permute.xlu0 %841
  %843 = vrot.lane.b32.xlu0 %v819, 96
  %v844 = vpop.permute.xlu0 %843
  %853 = vmatpush.msra.mxu0 0.0
  %854 = vmatpush.msra.mxu0 0.0
  %855 = vmatpush.msra.mxu0 0.0
  %856 = vmatpush.msra.mxu0 0.0
  %857 = vmatpush.msra.mxu0 0.0
  %858 = vmatpush.msra.mxu0 0.0
  %859 = vmatpush.msra.mxu0 0.0
  %860 = vmatpush.msra.mxu0 0.0
  %861 = vmatpush.msra.mxu0 %v819
  %862 = vmatpush.msra.mxu0 %v816
  %863 = vmatpush.msra.mxu0 %v813
  %864 = vmatpush.msra.mxu0 %v810
  %865 = vmatpush.msra.mxu0 %v807
  %866 = vmatpush.msra.mxu0 %v804
  %867 = vmatpush.msra.mxu0 %v801
  %868 = vmatpush.msra.mxu0 %v798
  %869 = vmatmul.f32.gmra.mxu0 %v159
  %v870 = vpop.f32.mrf.mxu0
  %v871 = vadd.f32 %v830, %v870
  %872 = vmatmul.f32.gmra.mxu0 %v162
  %v873 = vpop.f32.mrf.mxu0
  %v874 = vadd.f32 %v832, %v873
  %875 = vmatmul.f32.gmra.mxu0 %v165
  %v876 = vpop.f32.mrf.mxu0
  %v877 = vadd.f32 %v834, %v876
  %878 = vmatmul.f32.gmra.mxu0 %v168
  %v879 = vpop.f32.mrf.mxu0
  %v880 = vadd.f32 %v836, %v879
  %881 = vmatmul.f32.gmra.mxu0 %v171
  %v882 = vpop.f32.mrf.mxu0
  %v883 = vadd.f32 %v838, %v882
  %884 = vmatmul.f32.gmra.mxu0 %v174
  %v885 = vpop.f32.mrf.mxu0
  %v886 = vadd.f32 %v840, %v885
  %887 = vmatmul.f32.gmra.mxu0 %v177
  %v888 = vpop.f32.mrf.mxu0
  %v889 = vadd.f32 %v842, %v888
  %890 = vmatmul.f32.gmra.mxu0 %v180
  %v891 = vpop.f32.mrf.mxu0
  %v892 = vadd.f32 %v844, %v891
  %893 = vdwg.mxu0
  %v895 = vperm.slane %v755, 0
  %v897 = vadd.f32 %v871, %v895
  %v898 = vadd.f32 %v874, %v895
  %v899 = vadd.f32 %v877, %v895
  %v900 = vadd.f32 %v880, %v895
  %v901 = vadd.f32 %v883, %v895
  %v902 = vadd.f32 %v886, %v895
  %v903 = vadd.f32 %v889, %v895
  %v904 = vadd.f32 %v892, %v895
  %v905 = vmax.f32 %v897, 0.0
  %v906 = vmax.f32 %v898, 0.0
  %v907 = vmax.f32 %v899, 0.0
  %v908 = vmax.f32 %v900, 0.0
  %v909 = vmax.f32 %v901, 0.0
  %v910 = vmax.f32 %v902, 0.0
  %v911 = vmax.f32 %v903, 0.0
  %v912 = vmax.f32 %v904, 0.0
  %v913 = vadd.f32 %v577, %v905
  %v914 = vadd.f32 %v578, %v906
  %v915 = vadd.f32 %v579, %v907
  %v916 = vadd.f32 %v580, %v908
  %v917 = vadd.f32 %v581, %v909
  %v918 = vadd.f32 %v582, %v910
  %v919 = vadd.f32 %v583, %v911
  %v920 = vadd.f32 %v584, %v912
  %v921 = vmul.f32 %v913, 0.5
  %v922 = vmul.f32 %v914, 0.5
  %v923 = vmul.f32 %v915, 0.5
  %v924 = vmul.f32 %v916, 0.5
  %v925 = vmul.f32 %v917, 0.5
  %v926 = vmul.f32 %v918, 0.5
  %v927 = vmul.f32 %v919, 0.5
  %v928 = vmul.f32 %v920, 0.5
  %s929 = scalar_lea.vmem %s4, 128
  %v930 = vld [vmem:[%s929] sm:$0xff]
  %v931 = vld [vmem:[%s929 + $0x8] sm:$0xff]
  %v932 = vld [vmem:[%s929 + $0x10] sm:$0xff]
  %v933 = vld [vmem:[%s929 + $0x18] sm:$0xff]
  %s934 = scalar_lea.vmem %s5, 4
  %v935 = vld [vmem:[%s934] sm:$0x1]
  %v937 = vsel %vm247, %v921, 0
  %v940 = vsel %vm247, %v922, 0
  %v943 = vsel %vm247, %v923, 0
  %v946 = vsel %vm247, %v924, 0
  %v949 = vsel %vm247, %v925, 0
  %v952 = vsel %vm247, %v926, 0
  %v955 = vsel %vm247, %v927, 0
  %v958 = vsel %vm247, %v928, 0
  %960 = vmatpush.msra.mxu0 0.0
  %961 = vmatpush.msra.mxu0 0.0
  %962 = vmatpush.msra.mxu0 0.0
  %963 = vmatpush.msra.mxu0 0.0
  %964 = vmatpush.msra.mxu0 0.0
  %965 = vmatpush.msra.mxu0 0.0
  %966 = vmatpush.msra.mxu0 0.0
  %967 = vmatpush.msra.mxu0 0.0
  %968 = vmatpush.msra.mxu0 0.0
  %969 = vmatpush.msra.mxu0 0.0
  %970 = vmatpush.msra.mxu0 0.0
  %971 = vmatpush.msra.mxu0 0.0
  %972 = vmatpush.msra.mxu0 %v933
  %973 = vmatpush.msra.mxu0 %v932
  %974 = vmatpush.msra.mxu0 %v931
  %975 = vmatpush.msra.mxu0 %v930
  %976 = vmatmul.f32.gmra.mxu0 %v937
  %v977 = vpop.f32.mrf.mxu0
  %v978 = vadd.f32 0.0, %v977
  %979 = vmatmul.f32.gmra.mxu0 %v940
  %v980 = vpop.f32.mrf.mxu0
  %v981 = vadd.f32 0.0, %v980
  %982 = vmatmul.f32.gmra.mxu0 %v943
  %v983 = vpop.f32.mrf.mxu0
  %v984 = vadd.f32 0.0, %v983
  %985 = vmatmul.f32.gmra.mxu0 %v946
  %v986 = vpop.f32.mrf.mxu0
  %v987 = vadd.f32 0.0, %v986
  %988 = vmatmul.f32.gmra.mxu0 %v949
  %v989 = vpop.f32.mrf.mxu0
  %v990 = vadd.f32 0.0, %v989
  %991 = vmatmul.f32.gmra.mxu0 %v952
  %v992 = vpop.f32.mrf.mxu0
  %v993 = vadd.f32 0.0, %v992
  %994 = vmatmul.f32.gmra.mxu0 %v955
  %v995 = vpop.f32.mrf.mxu0
  %v996 = vadd.f32 0.0, %v995
  %997 = vmatmul.f32.gmra.mxu0 %v958
  %v998 = vpop.f32.mrf.mxu0
  %v999 = vadd.f32 0.0, %v998
  %1000 = vdwg.mxu0
  %1009 = vrot.lane.b32.xlu0 %v978, 96
  %v1010 = vpop.permute.xlu0 %1009
  %1011 = vrot.lane.b32.xlu0 %v981, 96
  %v1012 = vpop.permute.xlu0 %1011
  %1013 = vrot.lane.b32.xlu0 %v984, 96
  %v1014 = vpop.permute.xlu0 %1013
  %1015 = vrot.lane.b32.xlu0 %v987, 96
  %v1016 = vpop.permute.xlu0 %1015
  %1017 = vrot.lane.b32.xlu0 %v990, 96
  %v1018 = vpop.permute.xlu0 %1017
  %1019 = vrot.lane.b32.xlu0 %v993, 96
  %v1020 = vpop.permute.xlu0 %1019
  %1021 = vrot.lane.b32.xlu0 %v996, 96
  %v1022 = vpop.permute.xlu0 %1021
  %1023 = vrot.lane.b32.xlu0 %v999, 96
  %v1024 = vpop.permute.xlu0 %1023
  %1033 = vmatpush.msra.mxu0 0.0
  %1034 = vmatpush.msra.mxu0 0.0
  %1035 = vmatpush.msra.mxu0 0.0
  %1036 = vmatpush.msra.mxu0 0.0
  %1037 = vmatpush.msra.mxu0 0.0
  %1038 = vmatpush.msra.mxu0 0.0
  %1039 = vmatpush.msra.mxu0 0.0
  %1040 = vmatpush.msra.mxu0 0.0
  %1041 = vmatpush.msra.mxu0 %v999
  %1042 = vmatpush.msra.mxu0 %v996
  %1043 = vmatpush.msra.mxu0 %v993
  %1044 = vmatpush.msra.mxu0 %v990
  %1045 = vmatpush.msra.mxu0 %v987
  %1046 = vmatpush.msra.mxu0 %v984
  %1047 = vmatpush.msra.mxu0 %v981
  %1048 = vmatpush.msra.mxu0 %v978
  %1049 = vmatmul.f32.gmra.mxu0 %v159
  %v1050 = vpop.f32.mrf.mxu0
  %v1051 = vadd.f32 %v1010, %v1050
  %1052 = vmatmul.f32.gmra.mxu0 %v162
  %v1053 = vpop.f32.mrf.mxu0
  %v1054 = vadd.f32 %v1012, %v1053
  %1055 = vmatmul.f32.gmra.mxu0 %v165
  %v1056 = vpop.f32.mrf.mxu0
  %v1057 = vadd.f32 %v1014, %v1056
  %1058 = vmatmul.f32.gmra.mxu0 %v168
  %v1059 = vpop.f32.mrf.mxu0
  %v1060 = vadd.f32 %v1016, %v1059
  %1061 = vmatmul.f32.gmra.mxu0 %v171
  %v1062 = vpop.f32.mrf.mxu0
  %v1063 = vadd.f32 %v1018, %v1062
  %1064 = vmatmul.f32.gmra.mxu0 %v174
  %v1065 = vpop.f32.mrf.mxu0
  %v1066 = vadd.f32 %v1020, %v1065
  %1067 = vmatmul.f32.gmra.mxu0 %v177
  %v1068 = vpop.f32.mrf.mxu0
  %v1069 = vadd.f32 %v1022, %v1068
  %1070 = vmatmul.f32.gmra.mxu0 %v180
  %v1071 = vpop.f32.mrf.mxu0
  %v1072 = vadd.f32 %v1024, %v1071
  %1073 = vdwg.mxu0
  %v1075 = vperm.slane %v935, 0
  %v1077 = vadd.f32 %v1051, %v1075
  %v1078 = vadd.f32 %v1054, %v1075
  %v1079 = vadd.f32 %v1057, %v1075
  %v1080 = vadd.f32 %v1060, %v1075
  %v1081 = vadd.f32 %v1063, %v1075
  %v1082 = vadd.f32 %v1066, %v1075
  %v1083 = vadd.f32 %v1069, %v1075
  %v1084 = vadd.f32 %v1072, %v1075
  %v1085 = vmax.f32 %v1077, 0.0
  %v1086 = vmax.f32 %v1078, 0.0
  %v1087 = vmax.f32 %v1079, 0.0
  %v1088 = vmax.f32 %v1080, 0.0
  %v1089 = vmax.f32 %v1081, 0.0
  %v1090 = vmax.f32 %v1082, 0.0
  %v1091 = vmax.f32 %v1083, 0.0
  %v1092 = vmax.f32 %v1084, 0.0
  %s1093 = scalar_lea.vmem %s4, 160
  %v1094 = vld [vmem:[%s1093] sm:$0xff]
  %v1095 = vld [vmem:[%s1093 + $0x8] sm:$0xff]
  %v1096 = vld [vmem:[%s1093 + $0x10] sm:$0xff]
  %v1097 = vld [vmem:[%s1093 + $0x18] sm:$0xff]
  %s1098 = scalar_lea.vmem %s5, 5
  %v1099 = vld [vmem:[%s1098] sm:$0x1]
  %v1101 = vsel %vm247, %v1085, 0
  %v1104 = vsel %vm247, %v1086, 0
  %v1107 = vsel %vm247, %v1087, 0
  %v1110 = vsel %vm247, %v1088, 0
  %v1113 = vsel %vm247, %v1089, 0
  %v1116 = vsel %vm247, %v1090, 0
  %v1119 = vsel %vm247, %v1091, 0
  %v1122 = vsel %vm247, %v1092, 0
  %1124 = vmatpush.msra.mxu0 0.0
  %1125 = vmatpush.msra.mxu0 0.0
  %1126 = vmatpush.msra.mxu0 0.0
  %1127 = vmatpush.msra.mxu0 0.0
  %1128 = vmatpush.msra.mxu0 0.0
  %1129 = vmatpush.msra.mxu0 0.0
  %1130 = vmatpush.msra.mxu0 0.0
  %1131 = vmatpush.msra.mxu0 0.0
  %1132 = vmatpush.msra.mxu0 0.0
  %1133 = vmatpush.msra.mxu0 0.0
  %1134 = vmatpush.msra.mxu0 0.0
  %1135 = vmatpush.msra.mxu0 0.0
  %1136 = vmatpush.msra.mxu0 %v1097
  %1137 = vmatpush.msra.mxu0 %v1096
  %1138 = vmatpush.msra.mxu0 %v1095
  %1139 = vmatpush.msra.mxu0 %v1094
  %1140 = vmatmul.f32.gmra.mxu0 %v1101
  %v1141 = vpop.f32.mrf.mxu0
  %v1142 = vadd.f32 0.0, %v1141
  %1143 = vmatmul.f32.gmra.mxu0 %v1104
  %v1144 = vpop.f32.mrf.mxu0
  %v1145 = vadd.f32 0.0, %v1144
  %1146 = vmatmul.f32.gmra.mxu0 %v1107
  %v1147 = vpop.f32.mrf.mxu0
  %v1148 = vadd.f32 0.0, %v1147
  %1149 = vmatmul.f32.gmra.mxu0 %v1110
  %v1150 = vpop.f32.mrf.mxu0
  %v1151 = vadd.f32 0.0, %v1150
  %1152 = vmatmul.f32.gmra.mxu0 %v1113
  %v1153 = vpop.f32.mrf.mxu0
  %v1154 = vadd.f32 0.0, %v1153
  %1155 = vmatmul.f32.gmra.mxu0 %v1116
  %v1156 = vpop.f32.mrf.mxu0
  %v1157 = vadd.f32 0.0, %v1156
  %1158 = vmatmul.f32.gmra.mxu0 %v1119
  %v1159 = vpop.f32.mrf.mxu0
  %v1160 = vadd.f32 0.0, %v1159
  %1161 = vmatmul.f32.gmra.mxu0 %v1122
  %v1162 = vpop.f32.mrf.mxu0
  %v1163 = vadd.f32 0.0, %v1162
  %1164 = vdwg.mxu0
  %1173 = vrot.lane.b32.xlu0 %v1142, 96
  %v1174 = vpop.permute.xlu0 %1173
  %1175 = vrot.lane.b32.xlu0 %v1145, 96
  %v1176 = vpop.permute.xlu0 %1175
  %1177 = vrot.lane.b32.xlu0 %v1148, 96
  %v1178 = vpop.permute.xlu0 %1177
  %1179 = vrot.lane.b32.xlu0 %v1151, 96
  %v1180 = vpop.permute.xlu0 %1179
  %1181 = vrot.lane.b32.xlu0 %v1154, 96
  %v1182 = vpop.permute.xlu0 %1181
  %1183 = vrot.lane.b32.xlu0 %v1157, 96
  %v1184 = vpop.permute.xlu0 %1183
  %1185 = vrot.lane.b32.xlu0 %v1160, 96
  %v1186 = vpop.permute.xlu0 %1185
  %1187 = vrot.lane.b32.xlu0 %v1163, 96
  %v1188 = vpop.permute.xlu0 %1187
  %1197 = vmatpush.msra.mxu0 0.0
  %1198 = vmatpush.msra.mxu0 0.0
  %1199 = vmatpush.msra.mxu0 0.0
  %1200 = vmatpush.msra.mxu0 0.0
  %1201 = vmatpush.msra.mxu0 0.0
  %1202 = vmatpush.msra.mxu0 0.0
  %1203 = vmatpush.msra.mxu0 0.0
  %1204 = vmatpush.msra.mxu0 0.0
  %1205 = vmatpush.msra.mxu0 %v1163
  %1206 = vmatpush.msra.mxu0 %v1160
  %1207 = vmatpush.msra.mxu0 %v1157
  %1208 = vmatpush.msra.mxu0 %v1154
  %1209 = vmatpush.msra.mxu0 %v1151
  %1210 = vmatpush.msra.mxu0 %v1148
  %1211 = vmatpush.msra.mxu0 %v1145
  %1212 = vmatpush.msra.mxu0 %v1142
  %1213 = vmatmul.f32.gmra.mxu0 %v159
  %v1214 = vpop.f32.mrf.mxu0
  %v1215 = vadd.f32 %v1174, %v1214
  %1216 = vmatmul.f32.gmra.mxu0 %v162
  %v1217 = vpop.f32.mrf.mxu0
  %v1218 = vadd.f32 %v1176, %v1217
  %1219 = vmatmul.f32.gmra.mxu0 %v165
  %v1220 = vpop.f32.mrf.mxu0
  %v1221 = vadd.f32 %v1178, %v1220
  %1222 = vmatmul.f32.gmra.mxu0 %v168
  %v1223 = vpop.f32.mrf.mxu0
  %v1224 = vadd.f32 %v1180, %v1223
  %1225 = vmatmul.f32.gmra.mxu0 %v171
  %v1226 = vpop.f32.mrf.mxu0
  %v1227 = vadd.f32 %v1182, %v1226
  %1228 = vmatmul.f32.gmra.mxu0 %v174
  %v1229 = vpop.f32.mrf.mxu0
  %v1230 = vadd.f32 %v1184, %v1229
  %1231 = vmatmul.f32.gmra.mxu0 %v177
  %v1232 = vpop.f32.mrf.mxu0
  %v1233 = vadd.f32 %v1186, %v1232
  %1234 = vmatmul.f32.gmra.mxu0 %v180
  %v1235 = vpop.f32.mrf.mxu0
  %v1236 = vadd.f32 %v1188, %v1235
  %1237 = vdwg.mxu0
  %v1239 = vperm.slane %v1099, 0
  %v1241 = vadd.f32 %v1215, %v1239
  %v1242 = vadd.f32 %v1218, %v1239
  %v1243 = vadd.f32 %v1221, %v1239
  %v1244 = vadd.f32 %v1224, %v1239
  %v1245 = vadd.f32 %v1227, %v1239
  %v1246 = vadd.f32 %v1230, %v1239
  %v1247 = vadd.f32 %v1233, %v1239
  %v1248 = vadd.f32 %v1236, %v1239
  %v1249 = vmax.f32 %v1241, 0.0
  %v1250 = vmax.f32 %v1242, 0.0
  %v1251 = vmax.f32 %v1243, 0.0
  %v1252 = vmax.f32 %v1244, 0.0
  %v1253 = vmax.f32 %v1245, 0.0
  %v1254 = vmax.f32 %v1246, 0.0
  %v1255 = vmax.f32 %v1247, 0.0
  %v1256 = vmax.f32 %v1248, 0.0
  %v1257 = vadd.f32 %v921, %v1249
  %v1258 = vadd.f32 %v922, %v1250
  %v1259 = vadd.f32 %v923, %v1251
  %v1260 = vadd.f32 %v924, %v1252
  %v1261 = vadd.f32 %v925, %v1253
  %v1262 = vadd.f32 %v926, %v1254
  %v1263 = vadd.f32 %v927, %v1255
  %v1264 = vadd.f32 %v928, %v1256
  %v1265 = vmul.f32 %v1257, 0.5
  %v1266 = vmul.f32 %v1258, 0.5
  %v1267 = vmul.f32 %v1259, 0.5
  %v1268 = vmul.f32 %v1260, 0.5
  %v1269 = vmul.f32 %v1261, 0.5
  %v1270 = vmul.f32 %v1262, 0.5
  %v1271 = vmul.f32 %v1263, 0.5
  %v1272 = vmul.f32 %v1264, 0.5
  %s1273 = scalar_lea.vmem %s4, 192
  %v1274 = vld [vmem:[%s1273] sm:$0xff]
  %v1275 = vld [vmem:[%s1273 + $0x8] sm:$0xff]
  %v1276 = vld [vmem:[%s1273 + $0x10] sm:$0xff]
  %v1277 = vld [vmem:[%s1273 + $0x18] sm:$0xff]
  %s1278 = scalar_lea.vmem %s5, 6
  %v1279 = vld [vmem:[%s1278] sm:$0x1]
  %v1281 = vsel %vm247, %v1265, 0
  %v1284 = vsel %vm247, %v1266, 0
  %v1287 = vsel %vm247, %v1267, 0
  %v1290 = vsel %vm247, %v1268, 0
  %v1293 = vsel %vm247, %v1269, 0
  %v1296 = vsel %vm247, %v1270, 0
  %v1299 = vsel %vm247, %v1271, 0
  %v1302 = vsel %vm247, %v1272, 0
  %1304 = vmatpush.msra.mxu0 0.0
  %1305 = vmatpush.msra.mxu0 0.0
  %1306 = vmatpush.msra.mxu0 0.0
  %1307 = vmatpush.msra.mxu0 0.0
  %1308 = vmatpush.msra.mxu0 0.0
  %1309 = vmatpush.msra.mxu0 0.0
  %1310 = vmatpush.msra.mxu0 0.0
  %1311 = vmatpush.msra.mxu0 0.0
  %1312 = vmatpush.msra.mxu0 0.0
  %1313 = vmatpush.msra.mxu0 0.0
  %1314 = vmatpush.msra.mxu0 0.0
  %1315 = vmatpush.msra.mxu0 0.0
  %1316 = vmatpush.msra.mxu0 %v1277
  %1317 = vmatpush.msra.mxu0 %v1276
  %1318 = vmatpush.msra.mxu0 %v1275
  %1319 = vmatpush.msra.mxu0 %v1274
  %1320 = vmatmul.f32.gmra.mxu0 %v1281
  %v1321 = vpop.f32.mrf.mxu0
  %v1322 = vadd.f32 0.0, %v1321
  %1323 = vmatmul.f32.gmra.mxu0 %v1284
  %v1324 = vpop.f32.mrf.mxu0
  %v1325 = vadd.f32 0.0, %v1324
  %1326 = vmatmul.f32.gmra.mxu0 %v1287
  %v1327 = vpop.f32.mrf.mxu0
  %v1328 = vadd.f32 0.0, %v1327
  %1329 = vmatmul.f32.gmra.mxu0 %v1290
  %v1330 = vpop.f32.mrf.mxu0
  %v1331 = vadd.f32 0.0, %v1330
  %1332 = vmatmul.f32.gmra.mxu0 %v1293
  %v1333 = vpop.f32.mrf.mxu0
  %v1334 = vadd.f32 0.0, %v1333
  %1335 = vmatmul.f32.gmra.mxu0 %v1296
  %v1336 = vpop.f32.mrf.mxu0
  %v1337 = vadd.f32 0.0, %v1336
  %1338 = vmatmul.f32.gmra.mxu0 %v1299
  %v1339 = vpop.f32.mrf.mxu0
  %v1340 = vadd.f32 0.0, %v1339
  %1341 = vmatmul.f32.gmra.mxu0 %v1302
  %v1342 = vpop.f32.mrf.mxu0
  %v1343 = vadd.f32 0.0, %v1342
  %1344 = vdwg.mxu0
  %1353 = vrot.lane.b32.xlu0 %v1322, 96
  %v1354 = vpop.permute.xlu0 %1353
  %1355 = vrot.lane.b32.xlu0 %v1325, 96
  %v1356 = vpop.permute.xlu0 %1355
  %1357 = vrot.lane.b32.xlu0 %v1328, 96
  %v1358 = vpop.permute.xlu0 %1357
  %1359 = vrot.lane.b32.xlu0 %v1331, 96
  %v1360 = vpop.permute.xlu0 %1359
  %1361 = vrot.lane.b32.xlu0 %v1334, 96
  %v1362 = vpop.permute.xlu0 %1361
  %1363 = vrot.lane.b32.xlu0 %v1337, 96
  %v1364 = vpop.permute.xlu0 %1363
  %1365 = vrot.lane.b32.xlu0 %v1340, 96
  %v1366 = vpop.permute.xlu0 %1365
  %1367 = vrot.lane.b32.xlu0 %v1343, 96
  %v1368 = vpop.permute.xlu0 %1367
  %1377 = vmatpush.msra.mxu0 0.0
  %1378 = vmatpush.msra.mxu0 0.0
  %1379 = vmatpush.msra.mxu0 0.0
  %1380 = vmatpush.msra.mxu0 0.0
  %1381 = vmatpush.msra.mxu0 0.0
  %1382 = vmatpush.msra.mxu0 0.0
  %1383 = vmatpush.msra.mxu0 0.0
  %1384 = vmatpush.msra.mxu0 0.0
  %1385 = vmatpush.msra.mxu0 %v1343
  %1386 = vmatpush.msra.mxu0 %v1340
  %1387 = vmatpush.msra.mxu0 %v1337
  %1388 = vmatpush.msra.mxu0 %v1334
  %1389 = vmatpush.msra.mxu0 %v1331
  %1390 = vmatpush.msra.mxu0 %v1328
  %1391 = vmatpush.msra.mxu0 %v1325
  %1392 = vmatpush.msra.mxu0 %v1322
  %1393 = vmatmul.f32.gmra.mxu0 %v159
  %v1394 = vpop.f32.mrf.mxu0
  %v1395 = vadd.f32 %v1354, %v1394
  %1396 = vmatmul.f32.gmra.mxu0 %v162
  %v1397 = vpop.f32.mrf.mxu0
  %v1398 = vadd.f32 %v1356, %v1397
  %1399 = vmatmul.f32.gmra.mxu0 %v165
  %v1400 = vpop.f32.mrf.mxu0
  %v1401 = vadd.f32 %v1358, %v1400
  %1402 = vmatmul.f32.gmra.mxu0 %v168
  %v1403 = vpop.f32.mrf.mxu0
  %v1404 = vadd.f32 %v1360, %v1403
  %1405 = vmatmul.f32.gmra.mxu0 %v171
  %v1406 = vpop.f32.mrf.mxu0
  %v1407 = vadd.f32 %v1362, %v1406
  %1408 = vmatmul.f32.gmra.mxu0 %v174
  %v1409 = vpop.f32.mrf.mxu0
  %v1410 = vadd.f32 %v1364, %v1409
  %1411 = vmatmul.f32.gmra.mxu0 %v177
  %v1412 = vpop.f32.mrf.mxu0
  %v1413 = vadd.f32 %v1366, %v1412
  %1414 = vmatmul.f32.gmra.mxu0 %v180
  %v1415 = vpop.f32.mrf.mxu0
  %v1416 = vadd.f32 %v1368, %v1415
  %1417 = vdwg.mxu0
  %v1419 = vperm.slane %v1279, 0
  %v1421 = vadd.f32 %v1395, %v1419
  %v1422 = vadd.f32 %v1398, %v1419
  %v1423 = vadd.f32 %v1401, %v1419
  %v1424 = vadd.f32 %v1404, %v1419
  %v1425 = vadd.f32 %v1407, %v1419
  %v1426 = vadd.f32 %v1410, %v1419
  %v1427 = vadd.f32 %v1413, %v1419
  %v1428 = vadd.f32 %v1416, %v1419
  %v1429 = vmax.f32 %v1421, 0.0
  %v1430 = vmax.f32 %v1422, 0.0
  %v1431 = vmax.f32 %v1423, 0.0
  %v1432 = vmax.f32 %v1424, 0.0
  %v1433 = vmax.f32 %v1425, 0.0
  %v1434 = vmax.f32 %v1426, 0.0
  %v1435 = vmax.f32 %v1427, 0.0
  %v1436 = vmax.f32 %v1428, 0.0
  %s1437 = scalar_lea.vmem %s4, 224
  %v1438 = vld [vmem:[%s1437] sm:$0xff]
  %v1439 = vld [vmem:[%s1437 + $0x8] sm:$0xff]
  %v1440 = vld [vmem:[%s1437 + $0x10] sm:$0xff]
  %v1441 = vld [vmem:[%s1437 + $0x18] sm:$0xff]
  %s1442 = scalar_lea.vmem %s5, 7
  %v1443 = vld [vmem:[%s1442] sm:$0x1]
  %v1445 = vsel %vm247, %v1429, 0
  %v1448 = vsel %vm247, %v1430, 0
  %v1451 = vsel %vm247, %v1431, 0
  %v1454 = vsel %vm247, %v1432, 0
  %v1457 = vsel %vm247, %v1433, 0
  %v1460 = vsel %vm247, %v1434, 0
  %v1463 = vsel %vm247, %v1435, 0
  %v1466 = vsel %vm247, %v1436, 0
  %1468 = vmatpush.msra.mxu0 0.0
  %1469 = vmatpush.msra.mxu0 0.0
  %1470 = vmatpush.msra.mxu0 0.0
  %1471 = vmatpush.msra.mxu0 0.0
  %1472 = vmatpush.msra.mxu0 0.0
  %1473 = vmatpush.msra.mxu0 0.0
  %1474 = vmatpush.msra.mxu0 0.0
  %1475 = vmatpush.msra.mxu0 0.0
  %1476 = vmatpush.msra.mxu0 0.0
  %1477 = vmatpush.msra.mxu0 0.0
  %1478 = vmatpush.msra.mxu0 0.0
  %1479 = vmatpush.msra.mxu0 0.0
  %1480 = vmatpush.msra.mxu0 %v1441
  %1481 = vmatpush.msra.mxu0 %v1440
  %1482 = vmatpush.msra.mxu0 %v1439
  %1483 = vmatpush.msra.mxu0 %v1438
  %1484 = vmatmul.f32.gmra.mxu0 %v1445
  %v1485 = vpop.f32.mrf.mxu0
  %v1486 = vadd.f32 0.0, %v1485
  %1487 = vmatmul.f32.gmra.mxu0 %v1448
  %v1488 = vpop.f32.mrf.mxu0
  %v1489 = vadd.f32 0.0, %v1488
  %1490 = vmatmul.f32.gmra.mxu0 %v1451
  %v1491 = vpop.f32.mrf.mxu0
  %v1492 = vadd.f32 0.0, %v1491
  %1493 = vmatmul.f32.gmra.mxu0 %v1454
  %v1494 = vpop.f32.mrf.mxu0
  %v1495 = vadd.f32 0.0, %v1494
  %1496 = vmatmul.f32.gmra.mxu0 %v1457
  %v1497 = vpop.f32.mrf.mxu0
  %v1498 = vadd.f32 0.0, %v1497
  %1499 = vmatmul.f32.gmra.mxu0 %v1460
  %v1500 = vpop.f32.mrf.mxu0
  %v1501 = vadd.f32 0.0, %v1500
  %1502 = vmatmul.f32.gmra.mxu0 %v1463
  %v1503 = vpop.f32.mrf.mxu0
  %v1504 = vadd.f32 0.0, %v1503
  %1505 = vmatmul.f32.gmra.mxu0 %v1466
  %v1506 = vpop.f32.mrf.mxu0
  %v1507 = vadd.f32 0.0, %v1506
  %1508 = vdwg.mxu0
  %1517 = vrot.lane.b32.xlu0 %v1486, 96
  %v1518 = vpop.permute.xlu0 %1517
  %1519 = vrot.lane.b32.xlu0 %v1489, 96
  %v1520 = vpop.permute.xlu0 %1519
  %1521 = vrot.lane.b32.xlu0 %v1492, 96
  %v1522 = vpop.permute.xlu0 %1521
  %1523 = vrot.lane.b32.xlu0 %v1495, 96
  %v1524 = vpop.permute.xlu0 %1523
  %1525 = vrot.lane.b32.xlu0 %v1498, 96
  %v1526 = vpop.permute.xlu0 %1525
  %1527 = vrot.lane.b32.xlu0 %v1501, 96
  %v1528 = vpop.permute.xlu0 %1527
  %1529 = vrot.lane.b32.xlu0 %v1504, 96
  %v1530 = vpop.permute.xlu0 %1529
  %1531 = vrot.lane.b32.xlu0 %v1507, 96
  %v1532 = vpop.permute.xlu0 %1531
  %1541 = vmatpush.msra.mxu0 0.0
  %1542 = vmatpush.msra.mxu0 0.0
  %1543 = vmatpush.msra.mxu0 0.0
  %1544 = vmatpush.msra.mxu0 0.0
  %1545 = vmatpush.msra.mxu0 0.0
  %1546 = vmatpush.msra.mxu0 0.0
  %1547 = vmatpush.msra.mxu0 0.0
  %1548 = vmatpush.msra.mxu0 0.0
  %1549 = vmatpush.msra.mxu0 %v1507
  %1550 = vmatpush.msra.mxu0 %v1504
  %1551 = vmatpush.msra.mxu0 %v1501
  %1552 = vmatpush.msra.mxu0 %v1498
  %1553 = vmatpush.msra.mxu0 %v1495
  %1554 = vmatpush.msra.mxu0 %v1492
  %1555 = vmatpush.msra.mxu0 %v1489
  %1556 = vmatpush.msra.mxu0 %v1486
  %1557 = vmatmul.f32.gmra.mxu0 %v159
  %v1558 = vpop.f32.mrf.mxu0
  %v1559 = vadd.f32 %v1518, %v1558
  %1560 = vmatmul.f32.gmra.mxu0 %v162
  %v1561 = vpop.f32.mrf.mxu0
  %v1562 = vadd.f32 %v1520, %v1561
  %1563 = vmatmul.f32.gmra.mxu0 %v165
  %v1564 = vpop.f32.mrf.mxu0
  %v1565 = vadd.f32 %v1522, %v1564
  %1566 = vmatmul.f32.gmra.mxu0 %v168
  %v1567 = vpop.f32.mrf.mxu0
  %v1568 = vadd.f32 %v1524, %v1567
  %1569 = vmatmul.f32.gmra.mxu0 %v171
  %v1570 = vpop.f32.mrf.mxu0
  %v1571 = vadd.f32 %v1526, %v1570
  %1572 = vmatmul.f32.gmra.mxu0 %v174
  %v1573 = vpop.f32.mrf.mxu0
  %v1574 = vadd.f32 %v1528, %v1573
  %1575 = vmatmul.f32.gmra.mxu0 %v177
  %v1576 = vpop.f32.mrf.mxu0
  %v1577 = vadd.f32 %v1530, %v1576
  %1578 = vmatmul.f32.gmra.mxu0 %v180
  %v1579 = vpop.f32.mrf.mxu0
  %v1580 = vadd.f32 %v1532, %v1579
  %1581 = vdwg.mxu0
  %v1583 = vperm.slane %v1443, 0
  %v1585 = vadd.f32 %v1559, %v1583
  %v1586 = vadd.f32 %v1562, %v1583
  %v1587 = vadd.f32 %v1565, %v1583
  %v1588 = vadd.f32 %v1568, %v1583
  %v1589 = vadd.f32 %v1571, %v1583
  %v1590 = vadd.f32 %v1574, %v1583
  %v1591 = vadd.f32 %v1577, %v1583
  %v1592 = vadd.f32 %v1580, %v1583
  %v1593 = vmax.f32 %v1585, 0.0
  %v1594 = vmax.f32 %v1586, 0.0
  %v1595 = vmax.f32 %v1587, 0.0
  %v1596 = vmax.f32 %v1588, 0.0
  %v1597 = vmax.f32 %v1589, 0.0
  %v1598 = vmax.f32 %v1590, 0.0
  %v1599 = vmax.f32 %v1591, 0.0
  %v1600 = vmax.f32 %v1592, 0.0
  %v1601 = vadd.f32 %v1265, %v1593
  %v1602 = vadd.f32 %v1266, %v1594
  %v1603 = vadd.f32 %v1267, %v1595
  %v1604 = vadd.f32 %v1268, %v1596
  %v1605 = vadd.f32 %v1269, %v1597
  %v1606 = vadd.f32 %v1270, %v1598
  %v1607 = vadd.f32 %v1271, %v1599
  %v1608 = vadd.f32 %v1272, %v1600
  %v1609 = vmul.f32 %v1601, 0.5
  %v1610 = vmul.f32 %v1602, 0.5
  %v1611 = vmul.f32 %v1603, 0.5
  %v1612 = vmul.f32 %v1604, 0.5
  %v1613 = vmul.f32 %v1605, 0.5
  %v1614 = vmul.f32 %v1606, 0.5
  %v1615 = vmul.f32 %v1607, 0.5
  %v1616 = vmul.f32 %v1608, 0.5
  %s1617 = scalar_lea.vmem %s4, 256
  %v1618 = vld [vmem:[%s1617] sm:$0xff]
  %v1619 = vld [vmem:[%s1617 + $0x8] sm:$0xff]
  %v1620 = vld [vmem:[%s1617 + $0x10] sm:$0xff]
  %v1621 = vld [vmem:[%s1617 + $0x18] sm:$0xff]
  %s1622 = scalar_lea.vmem %s5, 8
  %v1623 = vld [vmem:[%s1622] sm:$0x1]
  %v1625 = vsel %vm247, %v1609, 0
  %v1628 = vsel %vm247, %v1610, 0
  %v1631 = vsel %vm247, %v1611, 0
  %v1634 = vsel %vm247, %v1612, 0
  %v1637 = vsel %vm247, %v1613, 0
  %v1640 = vsel %vm247, %v1614, 0
  %v1643 = vsel %vm247, %v1615, 0
  %v1646 = vsel %vm247, %v1616, 0
  %1648 = vmatpush.msra.mxu0 0.0
  %1649 = vmatpush.msra.mxu0 0.0
  %1650 = vmatpush.msra.mxu0 0.0
  %1651 = vmatpush.msra.mxu0 0.0
  %1652 = vmatpush.msra.mxu0 0.0
  %1653 = vmatpush.msra.mxu0 0.0
  %1654 = vmatpush.msra.mxu0 0.0
  %1655 = vmatpush.msra.mxu0 0.0
  %1656 = vmatpush.msra.mxu0 0.0
  %1657 = vmatpush.msra.mxu0 0.0
  %1658 = vmatpush.msra.mxu0 0.0
  %1659 = vmatpush.msra.mxu0 0.0
  %1660 = vmatpush.msra.mxu0 %v1621
  %1661 = vmatpush.msra.mxu0 %v1620
  %1662 = vmatpush.msra.mxu0 %v1619
  %1663 = vmatpush.msra.mxu0 %v1618
  %1664 = vmatmul.f32.gmra.mxu0 %v1625
  %v1665 = vpop.f32.mrf.mxu0
  %v1666 = vadd.f32 0.0, %v1665
  %1667 = vmatmul.f32.gmra.mxu0 %v1628
  %v1668 = vpop.f32.mrf.mxu0
  %v1669 = vadd.f32 0.0, %v1668
  %1670 = vmatmul.f32.gmra.mxu0 %v1631
  %v1671 = vpop.f32.mrf.mxu0
  %v1672 = vadd.f32 0.0, %v1671
  %1673 = vmatmul.f32.gmra.mxu0 %v1634
  %v1674 = vpop.f32.mrf.mxu0
  %v1675 = vadd.f32 0.0, %v1674
  %1676 = vmatmul.f32.gmra.mxu0 %v1637
  %v1677 = vpop.f32.mrf.mxu0
  %v1678 = vadd.f32 0.0, %v1677
  %1679 = vmatmul.f32.gmra.mxu0 %v1640
  %v1680 = vpop.f32.mrf.mxu0
  %v1681 = vadd.f32 0.0, %v1680
  %1682 = vmatmul.f32.gmra.mxu0 %v1643
  %v1683 = vpop.f32.mrf.mxu0
  %v1684 = vadd.f32 0.0, %v1683
  %1685 = vmatmul.f32.gmra.mxu0 %v1646
  %v1686 = vpop.f32.mrf.mxu0
  %v1687 = vadd.f32 0.0, %v1686
  %1688 = vdwg.mxu0
  %1697 = vrot.lane.b32.xlu0 %v1666, 96
  %v1698 = vpop.permute.xlu0 %1697
  %1699 = vrot.lane.b32.xlu0 %v1669, 96
  %v1700 = vpop.permute.xlu0 %1699
  %1701 = vrot.lane.b32.xlu0 %v1672, 96
  %v1702 = vpop.permute.xlu0 %1701
  %1703 = vrot.lane.b32.xlu0 %v1675, 96
  %v1704 = vpop.permute.xlu0 %1703
  %1705 = vrot.lane.b32.xlu0 %v1678, 96
  %v1706 = vpop.permute.xlu0 %1705
  %1707 = vrot.lane.b32.xlu0 %v1681, 96
  %v1708 = vpop.permute.xlu0 %1707
  %1709 = vrot.lane.b32.xlu0 %v1684, 96
  %v1710 = vpop.permute.xlu0 %1709
  %1711 = vrot.lane.b32.xlu0 %v1687, 96
  %v1712 = vpop.permute.xlu0 %1711
  %1721 = vmatpush.msra.mxu0 0.0
  %1722 = vmatpush.msra.mxu0 0.0
  %1723 = vmatpush.msra.mxu0 0.0
  %1724 = vmatpush.msra.mxu0 0.0
  %1725 = vmatpush.msra.mxu0 0.0
  %1726 = vmatpush.msra.mxu0 0.0
  %1727 = vmatpush.msra.mxu0 0.0
  %1728 = vmatpush.msra.mxu0 0.0
  %1729 = vmatpush.msra.mxu0 %v1687
  %1730 = vmatpush.msra.mxu0 %v1684
  %1731 = vmatpush.msra.mxu0 %v1681
  %1732 = vmatpush.msra.mxu0 %v1678
  %1733 = vmatpush.msra.mxu0 %v1675
  %1734 = vmatpush.msra.mxu0 %v1672
  %1735 = vmatpush.msra.mxu0 %v1669
  %1736 = vmatpush.msra.mxu0 %v1666
  %1737 = vmatmul.f32.gmra.mxu0 %v159
  %v1738 = vpop.f32.mrf.mxu0
  %v1739 = vadd.f32 %v1698, %v1738
  %1740 = vmatmul.f32.gmra.mxu0 %v162
  %v1741 = vpop.f32.mrf.mxu0
  %v1742 = vadd.f32 %v1700, %v1741
  %1743 = vmatmul.f32.gmra.mxu0 %v165
  %v1744 = vpop.f32.mrf.mxu0
  %v1745 = vadd.f32 %v1702, %v1744
  %1746 = vmatmul.f32.gmra.mxu0 %v168
  %v1747 = vpop.f32.mrf.mxu0
  %v1748 = vadd.f32 %v1704, %v1747
  %1749 = vmatmul.f32.gmra.mxu0 %v171
  %v1750 = vpop.f32.mrf.mxu0
  %v1751 = vadd.f32 %v1706, %v1750
  %1752 = vmatmul.f32.gmra.mxu0 %v174
  %v1753 = vpop.f32.mrf.mxu0
  %v1754 = vadd.f32 %v1708, %v1753
  %1755 = vmatmul.f32.gmra.mxu0 %v177
  %v1756 = vpop.f32.mrf.mxu0
  %v1757 = vadd.f32 %v1710, %v1756
  %1758 = vmatmul.f32.gmra.mxu0 %v180
  %v1759 = vpop.f32.mrf.mxu0
  %v1760 = vadd.f32 %v1712, %v1759
  %1761 = vdwg.mxu0
  %v1763 = vperm.slane %v1623, 0
  %v1765 = vadd.f32 %v1739, %v1763
  %v1766 = vadd.f32 %v1742, %v1763
  %v1767 = vadd.f32 %v1745, %v1763
  %v1768 = vadd.f32 %v1748, %v1763
  %v1769 = vadd.f32 %v1751, %v1763
  %v1770 = vadd.f32 %v1754, %v1763
  %v1771 = vadd.f32 %v1757, %v1763
  %v1772 = vadd.f32 %v1760, %v1763
  %v1773 = vmax.f32 %v1765, 0.0
  %v1774 = vmax.f32 %v1766, 0.0
  %v1775 = vmax.f32 %v1767, 0.0
  %v1776 = vmax.f32 %v1768, 0.0
  %v1777 = vmax.f32 %v1769, 0.0
  %v1778 = vmax.f32 %v1770, 0.0
  %v1779 = vmax.f32 %v1771, 0.0
  %v1780 = vmax.f32 %v1772, 0.0
  %s1781 = scalar_lea.vmem %s4, 288
  %v1782 = vld [vmem:[%s1781] sm:$0xff]
  %v1783 = vld [vmem:[%s1781 + $0x8] sm:$0xff]
  %v1784 = vld [vmem:[%s1781 + $0x10] sm:$0xff]
  %v1785 = vld [vmem:[%s1781 + $0x18] sm:$0xff]
  %s1786 = scalar_lea.vmem %s5, 9
  %v1787 = vld [vmem:[%s1786] sm:$0x1]
  %v1789 = vsel %vm247, %v1773, 0
  %v1792 = vsel %vm247, %v1774, 0
  %v1795 = vsel %vm247, %v1775, 0
  %v1798 = vsel %vm247, %v1776, 0
  %v1801 = vsel %vm247, %v1777, 0
  %v1804 = vsel %vm247, %v1778, 0
  %v1807 = vsel %vm247, %v1779, 0
  %v1810 = vsel %vm247, %v1780, 0
  %1812 = vmatpush.msra.mxu0 0.0
  %1813 = vmatpush.msra.mxu0 0.0
  %1814 = vmatpush.msra.mxu0 0.0
  %1815 = vmatpush.msra.mxu0 0.0
  %1816 = vmatpush.msra.mxu0 0.0
  %1817 = vmatpush.msra.mxu0 0.0
  %1818 = vmatpush.msra.mxu0 0.0
  %1819 = vmatpush.msra.mxu0 0.0
  %1820 = vmatpush.msra.mxu0 0.0
  %1821 = vmatpush.msra.mxu0 0.0
  %1822 = vmatpush.msra.mxu0 0.0
  %1823 = vmatpush.msra.mxu0 0.0
  %1824 = vmatpush.msra.mxu0 %v1785
  %1825 = vmatpush.msra.mxu0 %v1784
  %1826 = vmatpush.msra.mxu0 %v1783
  %1827 = vmatpush.msra.mxu0 %v1782
  %1828 = vmatmul.f32.gmra.mxu0 %v1789
  %v1829 = vpop.f32.mrf.mxu0
  %v1830 = vadd.f32 0.0, %v1829
  %1831 = vmatmul.f32.gmra.mxu0 %v1792
  %v1832 = vpop.f32.mrf.mxu0
  %v1833 = vadd.f32 0.0, %v1832
  %1834 = vmatmul.f32.gmra.mxu0 %v1795
  %v1835 = vpop.f32.mrf.mxu0
  %v1836 = vadd.f32 0.0, %v1835
  %1837 = vmatmul.f32.gmra.mxu0 %v1798
  %v1838 = vpop.f32.mrf.mxu0
  %v1839 = vadd.f32 0.0, %v1838
  %1840 = vmatmul.f32.gmra.mxu0 %v1801
  %v1841 = vpop.f32.mrf.mxu0
  %v1842 = vadd.f32 0.0, %v1841
  %1843 = vmatmul.f32.gmra.mxu0 %v1804
  %v1844 = vpop.f32.mrf.mxu0
  %v1845 = vadd.f32 0.0, %v1844
  %1846 = vmatmul.f32.gmra.mxu0 %v1807
  %v1847 = vpop.f32.mrf.mxu0
  %v1848 = vadd.f32 0.0, %v1847
  %1849 = vmatmul.f32.gmra.mxu0 %v1810
  %v1850 = vpop.f32.mrf.mxu0
  %v1851 = vadd.f32 0.0, %v1850
  %1852 = vdwg.mxu0
  %1861 = vrot.lane.b32.xlu0 %v1830, 96
  %v1862 = vpop.permute.xlu0 %1861
  %1863 = vrot.lane.b32.xlu0 %v1833, 96
  %v1864 = vpop.permute.xlu0 %1863
  %1865 = vrot.lane.b32.xlu0 %v1836, 96
  %v1866 = vpop.permute.xlu0 %1865
  %1867 = vrot.lane.b32.xlu0 %v1839, 96
  %v1868 = vpop.permute.xlu0 %1867
  %1869 = vrot.lane.b32.xlu0 %v1842, 96
  %v1870 = vpop.permute.xlu0 %1869
  %1871 = vrot.lane.b32.xlu0 %v1845, 96
  %v1872 = vpop.permute.xlu0 %1871
  %1873 = vrot.lane.b32.xlu0 %v1848, 96
  %v1874 = vpop.permute.xlu0 %1873
  %1875 = vrot.lane.b32.xlu0 %v1851, 96
  %v1876 = vpop.permute.xlu0 %1875
  %1885 = vmatpush.msra.mxu0 0.0
  %1886 = vmatpush.msra.mxu0 0.0
  %1887 = vmatpush.msra.mxu0 0.0
  %1888 = vmatpush.msra.mxu0 0.0
  %1889 = vmatpush.msra.mxu0 0.0
  %1890 = vmatpush.msra.mxu0 0.0
  %1891 = vmatpush.msra.mxu0 0.0
  %1892 = vmatpush.msra.mxu0 0.0
  %1893 = vmatpush.msra.mxu0 %v1851
  %1894 = vmatpush.msra.mxu0 %v1848
  %1895 = vmatpush.msra.mxu0 %v1845
  %1896 = vmatpush.msra.mxu0 %v1842
  %1897 = vmatpush.msra.mxu0 %v1839
  %1898 = vmatpush.msra.mxu0 %v1836
  %1899 = vmatpush.msra.mxu0 %v1833
  %1900 = vmatpush.msra.mxu0 %v1830
  %1901 = vmatmul.f32.gmra.mxu0 %v159
  %v1902 = vpop.f32.mrf.mxu0
  %v1903 = vadd.f32 %v1862, %v1902
  %1904 = vmatmul.f32.gmra.mxu0 %v162
  %v1905 = vpop.f32.mrf.mxu0
  %v1906 = vadd.f32 %v1864, %v1905
  %1907 = vmatmul.f32.gmra.mxu0 %v165
  %v1908 = vpop.f32.mrf.mxu0
  %v1909 = vadd.f32 %v1866, %v1908
  %1910 = vmatmul.f32.gmra.mxu0 %v168
  %v1911 = vpop.f32.mrf.mxu0
  %v1912 = vadd.f32 %v1868, %v1911
  %1913 = vmatmul.f32.gmra.mxu0 %v171
  %v1914 = vpop.f32.mrf.mxu0
  %v1915 = vadd.f32 %v1870, %v1914
  %1916 = vmatmul.f32.gmra.mxu0 %v174
  %v1917 = vpop.f32.mrf.mxu0
  %v1918 = vadd.f32 %v1872, %v1917
  %1919 = vmatmul.f32.gmra.mxu0 %v177
  %v1920 = vpop.f32.mrf.mxu0
  %v1921 = vadd.f32 %v1874, %v1920
  %1922 = vmatmul.f32.gmra.mxu0 %v180
  %v1923 = vpop.f32.mrf.mxu0
  %v1924 = vadd.f32 %v1876, %v1923
  %1925 = vdwg.mxu0
  %v1927 = vperm.slane %v1787, 0
  %v1929 = vadd.f32 %v1903, %v1927
  %v1930 = vadd.f32 %v1906, %v1927
  %v1931 = vadd.f32 %v1909, %v1927
  %v1932 = vadd.f32 %v1912, %v1927
  %v1933 = vadd.f32 %v1915, %v1927
  %v1934 = vadd.f32 %v1918, %v1927
  %v1935 = vadd.f32 %v1921, %v1927
  %v1936 = vadd.f32 %v1924, %v1927
  %v1937 = vmax.f32 %v1929, 0.0
  %v1938 = vmax.f32 %v1930, 0.0
  %v1939 = vmax.f32 %v1931, 0.0
  %v1940 = vmax.f32 %v1932, 0.0
  %v1941 = vmax.f32 %v1933, 0.0
  %v1942 = vmax.f32 %v1934, 0.0
  %v1943 = vmax.f32 %v1935, 0.0
  %v1944 = vmax.f32 %v1936, 0.0
  %v1945 = vadd.f32 %v1609, %v1937
  %v1946 = vadd.f32 %v1610, %v1938
  %v1947 = vadd.f32 %v1611, %v1939
  %v1948 = vadd.f32 %v1612, %v1940
  %v1949 = vadd.f32 %v1613, %v1941
  %v1950 = vadd.f32 %v1614, %v1942
  %v1951 = vadd.f32 %v1615, %v1943
  %v1952 = vadd.f32 %v1616, %v1944
  %v1953 = vmul.f32 %v1945, 0.5
  %v1954 = vmul.f32 %v1946, 0.5
  %v1955 = vmul.f32 %v1947, 0.5
  %v1956 = vmul.f32 %v1948, 0.5
  %v1957 = vmul.f32 %v1949, 0.5
  %v1958 = vmul.f32 %v1950, 0.5
  %v1959 = vmul.f32 %v1951, 0.5
  %v1960 = vmul.f32 %v1952, 0.5
  %s1961 = scalar_lea.vmem %s4, 320
  %v1962 = vld [vmem:[%s1961] sm:$0xff]
  %v1963 = vld [vmem:[%s1961 + $0x8] sm:$0xff]
  %v1964 = vld [vmem:[%s1961 + $0x10] sm:$0xff]
  %v1965 = vld [vmem:[%s1961 + $0x18] sm:$0xff]
  %s1966 = scalar_lea.vmem %s5, 10
  %v1967 = vld [vmem:[%s1966] sm:$0x1]
  %v1969 = vsel %vm247, %v1953, 0
  %v1972 = vsel %vm247, %v1954, 0
  %v1975 = vsel %vm247, %v1955, 0
  %v1978 = vsel %vm247, %v1956, 0
  %v1981 = vsel %vm247, %v1957, 0
  %v1984 = vsel %vm247, %v1958, 0
  %v1987 = vsel %vm247, %v1959, 0
  %v1990 = vsel %vm247, %v1960, 0
  %1992 = vmatpush.msra.mxu0 0.0
  %1993 = vmatpush.msra.mxu0 0.0
  %1994 = vmatpush.msra.mxu0 0.0
  %1995 = vmatpush.msra.mxu0 0.0
  %1996 = vmatpush.msra.mxu0 0.0
  %1997 = vmatpush.msra.mxu0 0.0
  %1998 = vmatpush.msra.mxu0 0.0
  %1999 = vmatpush.msra.mxu0 0.0
  %2000 = vmatpush.msra.mxu0 0.0
  %2001 = vmatpush.msra.mxu0 0.0
  %2002 = vmatpush.msra.mxu0 0.0
  %2003 = vmatpush.msra.mxu0 0.0
  %2004 = vmatpush.msra.mxu0 %v1965
  %2005 = vmatpush.msra.mxu0 %v1964
  %2006 = vmatpush.msra.mxu0 %v1963
  %2007 = vmatpush.msra.mxu0 %v1962
  %2008 = vmatmul.f32.gmra.mxu0 %v1969
  %v2009 = vpop.f32.mrf.mxu0
  %v2010 = vadd.f32 0.0, %v2009
  %2011 = vmatmul.f32.gmra.mxu0 %v1972
  %v2012 = vpop.f32.mrf.mxu0
  %v2013 = vadd.f32 0.0, %v2012
  %2014 = vmatmul.f32.gmra.mxu0 %v1975
  %v2015 = vpop.f32.mrf.mxu0
  %v2016 = vadd.f32 0.0, %v2015
  %2017 = vmatmul.f32.gmra.mxu0 %v1978
  %v2018 = vpop.f32.mrf.mxu0
  %v2019 = vadd.f32 0.0, %v2018
  %2020 = vmatmul.f32.gmra.mxu0 %v1981
  %v2021 = vpop.f32.mrf.mxu0
  %v2022 = vadd.f32 0.0, %v2021
  %2023 = vmatmul.f32.gmra.mxu0 %v1984
  %v2024 = vpop.f32.mrf.mxu0
  %v2025 = vadd.f32 0.0, %v2024
  %2026 = vmatmul.f32.gmra.mxu0 %v1987
  %v2027 = vpop.f32.mrf.mxu0
  %v2028 = vadd.f32 0.0, %v2027
  %2029 = vmatmul.f32.gmra.mxu0 %v1990
  %v2030 = vpop.f32.mrf.mxu0
  %v2031 = vadd.f32 0.0, %v2030
  %2032 = vdwg.mxu0
  %2041 = vrot.lane.b32.xlu0 %v2010, 96
  %v2042 = vpop.permute.xlu0 %2041
  %2043 = vrot.lane.b32.xlu0 %v2013, 96
  %v2044 = vpop.permute.xlu0 %2043
  %2045 = vrot.lane.b32.xlu0 %v2016, 96
  %v2046 = vpop.permute.xlu0 %2045
  %2047 = vrot.lane.b32.xlu0 %v2019, 96
  %v2048 = vpop.permute.xlu0 %2047
  %2049 = vrot.lane.b32.xlu0 %v2022, 96
  %v2050 = vpop.permute.xlu0 %2049
  %2051 = vrot.lane.b32.xlu0 %v2025, 96
  %v2052 = vpop.permute.xlu0 %2051
  %2053 = vrot.lane.b32.xlu0 %v2028, 96
  %v2054 = vpop.permute.xlu0 %2053
  %2055 = vrot.lane.b32.xlu0 %v2031, 96
  %v2056 = vpop.permute.xlu0 %2055
  %2065 = vmatpush.msra.mxu0 0.0
  %2066 = vmatpush.msra.mxu0 0.0
  %2067 = vmatpush.msra.mxu0 0.0
  %2068 = vmatpush.msra.mxu0 0.0
  %2069 = vmatpush.msra.mxu0 0.0
  %2070 = vmatpush.msra.mxu0 0.0
  %2071 = vmatpush.msra.mxu0 0.0
  %2072 = vmatpush.msra.mxu0 0.0
  %2073 = vmatpush.msra.mxu0 %v2031
  %2074 = vmatpush.msra.mxu0 %v2028
  %2075 = vmatpush.msra.mxu0 %v2025
  %2076 = vmatpush.msra.mxu0 %v2022
  %2077 = vmatpush.msra.mxu0 %v2019
  %2078 = vmatpush.msra.mxu0 %v2016
  %2079 = vmatpush.msra.mxu0 %v2013
  %2080 = vmatpush.msra.mxu0 %v2010
  %2081 = vmatmul.f32.gmra.mxu0 %v159
  %v2082 = vpop.f32.mrf.mxu0
  %v2083 = vadd.f32 %v2042, %v2082
  %2084 = vmatmul.f32.gmra.mxu0 %v162
  %v2085 = vpop.f32.mrf.mxu0
  %v2086 = vadd.f32 %v2044, %v2085
  %2087 = vmatmul.f32.gmra.mxu0 %v165
  %v2088 = vpop.f32.mrf.mxu0
  %v2089 = vadd.f32 %v2046, %v2088
  %2090 = vmatmul.f32.gmra.mxu0 %v168
  %v2091 = vpop.f32.mrf.mxu0
  %v2092 = vadd.f32 %v2048, %v2091
  %2093 = vmatmul.f32.gmra.mxu0 %v171
  %v2094 = vpop.f32.mrf.mxu0
  %v2095 = vadd.f32 %v2050, %v2094
  %2096 = vmatmul.f32.gmra.mxu0 %v174
  %v2097 = vpop.f32.mrf.mxu0
  %v2098 = vadd.f32 %v2052, %v2097
  %2099 = vmatmul.f32.gmra.mxu0 %v177
  %v2100 = vpop.f32.mrf.mxu0
  %v2101 = vadd.f32 %v2054, %v2100
  %2102 = vmatmul.f32.gmra.mxu0 %v180
  %v2103 = vpop.f32.mrf.mxu0
  %v2104 = vadd.f32 %v2056, %v2103
  %2105 = vdwg.mxu0
  %v2107 = vperm.slane %v1967, 0
  %v2109 = vadd.f32 %v2083, %v2107
  %v2110 = vadd.f32 %v2086, %v2107
  %v2111 = vadd.f32 %v2089, %v2107
  %v2112 = vadd.f32 %v2092, %v2107
  %v2113 = vadd.f32 %v2095, %v2107
  %v2114 = vadd.f32 %v2098, %v2107
  %v2115 = vadd.f32 %v2101, %v2107
  %v2116 = vadd.f32 %v2104, %v2107
  %v2117 = vmax.f32 %v2109, 0.0
  %v2118 = vmax.f32 %v2110, 0.0
  %v2119 = vmax.f32 %v2111, 0.0
  %v2120 = vmax.f32 %v2112, 0.0
  %v2121 = vmax.f32 %v2113, 0.0
  %v2122 = vmax.f32 %v2114, 0.0
  %v2123 = vmax.f32 %v2115, 0.0
  %v2124 = vmax.f32 %v2116, 0.0
  %s2125 = scalar_lea.vmem %s4, 352
  %v2126 = vld [vmem:[%s2125] sm:$0xff]
  %v2127 = vld [vmem:[%s2125 + $0x8] sm:$0xff]
  %v2128 = vld [vmem:[%s2125 + $0x10] sm:$0xff]
  %v2129 = vld [vmem:[%s2125 + $0x18] sm:$0xff]
  %s2130 = scalar_lea.vmem %s5, 11
  %v2131 = vld [vmem:[%s2130] sm:$0x1]
  %v2133 = vsel %vm247, %v2117, 0
  %v2136 = vsel %vm247, %v2118, 0
  %v2139 = vsel %vm247, %v2119, 0
  %v2142 = vsel %vm247, %v2120, 0
  %v2145 = vsel %vm247, %v2121, 0
  %v2148 = vsel %vm247, %v2122, 0
  %v2151 = vsel %vm247, %v2123, 0
  %v2154 = vsel %vm247, %v2124, 0
  %2156 = vmatpush.msra.mxu0 0.0
  %2157 = vmatpush.msra.mxu0 0.0
  %2158 = vmatpush.msra.mxu0 0.0
  %2159 = vmatpush.msra.mxu0 0.0
  %2160 = vmatpush.msra.mxu0 0.0
  %2161 = vmatpush.msra.mxu0 0.0
  %2162 = vmatpush.msra.mxu0 0.0
  %2163 = vmatpush.msra.mxu0 0.0
  %2164 = vmatpush.msra.mxu0 0.0
  %2165 = vmatpush.msra.mxu0 0.0
  %2166 = vmatpush.msra.mxu0 0.0
  %2167 = vmatpush.msra.mxu0 0.0
  %2168 = vmatpush.msra.mxu0 %v2129
  %2169 = vmatpush.msra.mxu0 %v2128
  %2170 = vmatpush.msra.mxu0 %v2127
  %2171 = vmatpush.msra.mxu0 %v2126
  %2172 = vmatmul.f32.gmra.mxu0 %v2133
  %v2173 = vpop.f32.mrf.mxu0
  %v2174 = vadd.f32 0.0, %v2173
  %2175 = vmatmul.f32.gmra.mxu0 %v2136
  %v2176 = vpop.f32.mrf.mxu0
  %v2177 = vadd.f32 0.0, %v2176
  %2178 = vmatmul.f32.gmra.mxu0 %v2139
  %v2179 = vpop.f32.mrf.mxu0
  %v2180 = vadd.f32 0.0, %v2179
  %2181 = vmatmul.f32.gmra.mxu0 %v2142
  %v2182 = vpop.f32.mrf.mxu0
  %v2183 = vadd.f32 0.0, %v2182
  %2184 = vmatmul.f32.gmra.mxu0 %v2145
  %v2185 = vpop.f32.mrf.mxu0
  %v2186 = vadd.f32 0.0, %v2185
  %2187 = vmatmul.f32.gmra.mxu0 %v2148
  %v2188 = vpop.f32.mrf.mxu0
  %v2189 = vadd.f32 0.0, %v2188
  %2190 = vmatmul.f32.gmra.mxu0 %v2151
  %v2191 = vpop.f32.mrf.mxu0
  %v2192 = vadd.f32 0.0, %v2191
  %2193 = vmatmul.f32.gmra.mxu0 %v2154
  %v2194 = vpop.f32.mrf.mxu0
  %v2195 = vadd.f32 0.0, %v2194
  %2196 = vdwg.mxu0
  %2205 = vrot.lane.b32.xlu0 %v2174, 96
  %v2206 = vpop.permute.xlu0 %2205
  %2207 = vrot.lane.b32.xlu0 %v2177, 96
  %v2208 = vpop.permute.xlu0 %2207
  %2209 = vrot.lane.b32.xlu0 %v2180, 96
  %v2210 = vpop.permute.xlu0 %2209
  %2211 = vrot.lane.b32.xlu0 %v2183, 96
  %v2212 = vpop.permute.xlu0 %2211
  %2213 = vrot.lane.b32.xlu0 %v2186, 96
  %v2214 = vpop.permute.xlu0 %2213
  %2215 = vrot.lane.b32.xlu0 %v2189, 96
  %v2216 = vpop.permute.xlu0 %2215
  %2217 = vrot.lane.b32.xlu0 %v2192, 96
  %v2218 = vpop.permute.xlu0 %2217
  %2219 = vrot.lane.b32.xlu0 %v2195, 96
  %v2220 = vpop.permute.xlu0 %2219
  %2229 = vmatpush.msra.mxu0 0.0
  %2230 = vmatpush.msra.mxu0 0.0
  %2231 = vmatpush.msra.mxu0 0.0
  %2232 = vmatpush.msra.mxu0 0.0
  %2233 = vmatpush.msra.mxu0 0.0
  %2234 = vmatpush.msra.mxu0 0.0
  %2235 = vmatpush.msra.mxu0 0.0
  %2236 = vmatpush.msra.mxu0 0.0
  %2237 = vmatpush.msra.mxu0 %v2195
  %2238 = vmatpush.msra.mxu0 %v2192
  %2239 = vmatpush.msra.mxu0 %v2189
  %2240 = vmatpush.msra.mxu0 %v2186
  %2241 = vmatpush.msra.mxu0 %v2183
  %2242 = vmatpush.msra.mxu0 %v2180
  %2243 = vmatpush.msra.mxu0 %v2177
  %2244 = vmatpush.msra.mxu0 %v2174
  %2245 = vmatmul.f32.gmra.mxu0 %v159
  %v2246 = vpop.f32.mrf.mxu0
  %v2247 = vadd.f32 %v2206, %v2246
  %2248 = vmatmul.f32.gmra.mxu0 %v162
  %v2249 = vpop.f32.mrf.mxu0
  %v2250 = vadd.f32 %v2208, %v2249
  %2251 = vmatmul.f32.gmra.mxu0 %v165
  %v2252 = vpop.f32.mrf.mxu0
  %v2253 = vadd.f32 %v2210, %v2252
  %2254 = vmatmul.f32.gmra.mxu0 %v168
  %v2255 = vpop.f32.mrf.mxu0
  %v2256 = vadd.f32 %v2212, %v2255
  %2257 = vmatmul.f32.gmra.mxu0 %v171
  %v2258 = vpop.f32.mrf.mxu0
  %v2259 = vadd.f32 %v2214, %v2258
  %2260 = vmatmul.f32.gmra.mxu0 %v174
  %v2261 = vpop.f32.mrf.mxu0
  %v2262 = vadd.f32 %v2216, %v2261
  %2263 = vmatmul.f32.gmra.mxu0 %v177
  %v2264 = vpop.f32.mrf.mxu0
  %v2265 = vadd.f32 %v2218, %v2264
  %2266 = vmatmul.f32.gmra.mxu0 %v180
  %v2267 = vpop.f32.mrf.mxu0
  %v2268 = vadd.f32 %v2220, %v2267
  %2269 = vdwg.mxu0
  %v2271 = vperm.slane %v2131, 0
  %v2273 = vadd.f32 %v2247, %v2271
  %v2274 = vadd.f32 %v2250, %v2271
  %v2275 = vadd.f32 %v2253, %v2271
  %v2276 = vadd.f32 %v2256, %v2271
  %v2277 = vadd.f32 %v2259, %v2271
  %v2278 = vadd.f32 %v2262, %v2271
  %v2279 = vadd.f32 %v2265, %v2271
  %v2280 = vadd.f32 %v2268, %v2271
  %v2281 = vmax.f32 %v2273, 0.0
  %v2282 = vmax.f32 %v2274, 0.0
  %v2283 = vmax.f32 %v2275, 0.0
  %v2284 = vmax.f32 %v2276, 0.0
  %v2285 = vmax.f32 %v2277, 0.0
  %v2286 = vmax.f32 %v2278, 0.0
  %v2287 = vmax.f32 %v2279, 0.0
  %v2288 = vmax.f32 %v2280, 0.0
  %v2289 = vadd.f32 %v1953, %v2281
  %v2290 = vadd.f32 %v1954, %v2282
  %v2291 = vadd.f32 %v1955, %v2283
  %v2292 = vadd.f32 %v1956, %v2284
  %v2293 = vadd.f32 %v1957, %v2285
  %v2294 = vadd.f32 %v1958, %v2286
  %v2295 = vadd.f32 %v1959, %v2287
  %v2296 = vadd.f32 %v1960, %v2288
  %v2297 = vmul.f32 %v2289, 0.5
  %v2298 = vmul.f32 %v2290, 0.5
  %v2299 = vmul.f32 %v2291, 0.5
  %v2300 = vmul.f32 %v2292, 0.5
  %v2301 = vmul.f32 %v2293, 0.5
  %v2302 = vmul.f32 %v2294, 0.5
  %v2303 = vmul.f32 %v2295, 0.5
  %v2304 = vmul.f32 %v2296, 0.5
  %2305 = vst.msk [vmem:[%s8] sm:$0xff] %vm247, %v2297
  %2306 = vst.msk [vmem:[%s8 + $0x8] sm:$0xff] %vm247, %v2298
  %2307 = vst.msk [vmem:[%s8 + $0x10] sm:$0xff] %vm247, %v2299
  %2308 = vst.msk [vmem:[%s8 + $0x18] sm:$0xff] %vm247, %v2300
  %2309 = vst.msk [vmem:[%s8 + $0x20] sm:$0xff] %vm247, %v2301
  %2310 = vst.msk [vmem:[%s8 + $0x28] sm:$0xff] %vm247, %v2302
  %2311 = vst.msk [vmem:[%s8 + $0x30] sm:$0xff] %vm247, %v2303
  %2312 = vst.msk [vmem:[%s8 + $0x38] sm:$0xff] %vm247, %v2304
  %v2313 = vld [vmem:[%s6] sm:$0xff]
  %v2314 = vld [vmem:[%s6 + $0x8] sm:$0xff]
  %v2315 = vld [vmem:[%s6 + $0x10] sm:$0xff]
  %v2316 = vld [vmem:[%s6 + $0x18] sm:$0xff]
  %v2317 = vld [vmem:[%s6 + $0x20] sm:$0xff]
  %v2318 = vld [vmem:[%s6 + $0x28] sm:$0xff]
  %v2319 = vld [vmem:[%s6 + $0x30] sm:$0xff]
  %v2320 = vld [vmem:[%s6 + $0x38] sm:$0xff]
  %v2321 = vld [vmem:[%s7] sm:$0x1]
  %v2323 = vsel %vm247, %v2297, 0
  %v2326 = vsel %vm247, %v2298, 0
  %v2329 = vsel %vm247, %v2299, 0
  %v2332 = vsel %vm247, %v2300, 0
  %v2335 = vsel %vm247, %v2301, 0
  %v2338 = vsel %vm247, %v2302, 0
  %v2341 = vsel %vm247, %v2303, 0
  %v2344 = vsel %vm247, %v2304, 0
  %2346 = vmatpush.msra.mxu0 0.0
  %2347 = vmatpush.msra.mxu0 0.0
  %2348 = vmatpush.msra.mxu0 0.0
  %2349 = vmatpush.msra.mxu0 0.0
  %2350 = vmatpush.msra.mxu0 0.0
  %2351 = vmatpush.msra.mxu0 0.0
  %2352 = vmatpush.msra.mxu0 0.0
  %2353 = vmatpush.msra.mxu0 0.0
  %2354 = vmatpush.msra.mxu0 0.0
  %2355 = vmatpush.msra.mxu0 0.0
  %2356 = vmatpush.msra.mxu0 0.0
  %2357 = vmatpush.msra.mxu0 0.0
  %2358 = vmatpush.msra.mxu0 %v2319
  %2359 = vmatpush.msra.mxu0 %v2317
  %2360 = vmatpush.msra.mxu0 %v2315
  %2361 = vmatpush.msra.mxu0 %v2313
  %2362 = vmatmul.f32.gmra.mxu0 %v2323
  %v2363 = vpop.f32.mrf.mxu0
  %v2364 = vadd.f32 0.0, %v2363
  %2365 = vmatmul.f32.gmra.mxu0 %v2326
  %v2366 = vpop.f32.mrf.mxu0
  %v2367 = vadd.f32 0.0, %v2366
  %2368 = vmatmul.f32.gmra.mxu0 %v2329
  %v2369 = vpop.f32.mrf.mxu0
  %v2370 = vadd.f32 0.0, %v2369
  %2371 = vmatmul.f32.gmra.mxu0 %v2332
  %v2372 = vpop.f32.mrf.mxu0
  %v2373 = vadd.f32 0.0, %v2372
  %2374 = vmatmul.f32.gmra.mxu0 %v2335
  %v2375 = vpop.f32.mrf.mxu0
  %v2376 = vadd.f32 0.0, %v2375
  %2377 = vmatmul.f32.gmra.mxu0 %v2338
  %v2378 = vpop.f32.mrf.mxu0
  %v2379 = vadd.f32 0.0, %v2378
  %2380 = vmatmul.f32.gmra.mxu0 %v2341
  %v2381 = vpop.f32.mrf.mxu0
  %v2382 = vadd.f32 0.0, %v2381
  %2383 = vmatmul.f32.gmra.mxu0 %v2344
  %v2384 = vpop.f32.mrf.mxu0
  %v2385 = vadd.f32 0.0, %v2384
  %2386 = vdwg.mxu0
  %2387 = vmatpush.msra.mxu0 0.0
  %2388 = vmatpush.msra.mxu0 0.0
  %2389 = vmatpush.msra.mxu0 0.0
  %2390 = vmatpush.msra.mxu0 0.0
  %2391 = vmatpush.msra.mxu0 0.0
  %2392 = vmatpush.msra.mxu0 0.0
  %2393 = vmatpush.msra.mxu0 0.0
  %2394 = vmatpush.msra.mxu0 0.0
  %2395 = vmatpush.msra.mxu0 0.0
  %2396 = vmatpush.msra.mxu0 0.0
  %2397 = vmatpush.msra.mxu0 0.0
  %2398 = vmatpush.msra.mxu0 0.0
  %2399 = vmatpush.msra.mxu0 %v2320
  %2400 = vmatpush.msra.mxu0 %v2318
  %2401 = vmatpush.msra.mxu0 %v2316
  %2402 = vmatpush.msra.mxu0 %v2314
  %2403 = vmatmul.f32.gmra.mxu0 %v2323
  %v2404 = vpop.f32.mrf.mxu0
  %v2405 = vadd.f32 0.0, %v2404
  %2406 = vmatmul.f32.gmra.mxu0 %v2326
  %v2407 = vpop.f32.mrf.mxu0
  %v2408 = vadd.f32 0.0, %v2407
  %2409 = vmatmul.f32.gmra.mxu0 %v2329
  %v2410 = vpop.f32.mrf.mxu0
  %v2411 = vadd.f32 0.0, %v2410
  %2412 = vmatmul.f32.gmra.mxu0 %v2332
  %v2413 = vpop.f32.mrf.mxu0
  %v2414 = vadd.f32 0.0, %v2413
  %2415 = vmatmul.f32.gmra.mxu0 %v2335
  %v2416 = vpop.f32.mrf.mxu0
  %v2417 = vadd.f32 0.0, %v2416
  %2418 = vmatmul.f32.gmra.mxu0 %v2338
  %v2419 = vpop.f32.mrf.mxu0
  %v2420 = vadd.f32 0.0, %v2419
  %2421 = vmatmul.f32.gmra.mxu0 %v2341
  %v2422 = vpop.f32.mrf.mxu0
  %v2423 = vadd.f32 0.0, %v2422
  %2424 = vmatmul.f32.gmra.mxu0 %v2344
  %v2425 = vpop.f32.mrf.mxu0
  %v2426 = vadd.f32 0.0, %v2425
  %2427 = vdwg.mxu0
  %2428 = vmatpush.msra.mxu0 0.0
  %2429 = vmatpush.msra.mxu0 0.0
  %2430 = vmatpush.msra.mxu0 0.0
  %2431 = vmatpush.msra.mxu0 0.0
  %2432 = vmatpush.msra.mxu0 0.0
  %2433 = vmatpush.msra.mxu0 0.0
  %2434 = vmatpush.msra.mxu0 0.0
  %2435 = vmatpush.msra.mxu0 0.0
  %2436 = vmatpush.msra.mxu0 %v2385
  %2437 = vmatpush.msra.mxu0 %v2382
  %2438 = vmatpush.msra.mxu0 %v2379
  %2439 = vmatpush.msra.mxu0 %v2376
  %2440 = vmatpush.msra.mxu0 %v2373
  %2441 = vmatpush.msra.mxu0 %v2370
  %2442 = vmatpush.msra.mxu0 %v2367
  %2443 = vmatpush.msra.mxu0 %v2364
  %2444 = vmatmul.f32.gmra.mxu0 %v159
  %v2445 = vpop.f32.mrf.mxu0
  %v2446 = vadd.f32 %v2405, %v2445
  %2447 = vmatmul.f32.gmra.mxu0 %v162
  %v2448 = vpop.f32.mrf.mxu0
  %v2449 = vadd.f32 %v2408, %v2448
  %2450 = vmatmul.f32.gmra.mxu0 %v165
  %v2451 = vpop.f32.mrf.mxu0
  %v2452 = vadd.f32 %v2411, %v2451
  %2453 = vmatmul.f32.gmra.mxu0 %v168
  %v2454 = vpop.f32.mrf.mxu0
  %v2455 = vadd.f32 %v2414, %v2454
  %2456 = vmatmul.f32.gmra.mxu0 %v171
  %v2457 = vpop.f32.mrf.mxu0
  %v2458 = vadd.f32 %v2417, %v2457
  %2459 = vmatmul.f32.gmra.mxu0 %v174
  %v2460 = vpop.f32.mrf.mxu0
  %v2461 = vadd.f32 %v2420, %v2460
  %2462 = vmatmul.f32.gmra.mxu0 %v177
  %v2463 = vpop.f32.mrf.mxu0
  %v2464 = vadd.f32 %v2423, %v2463
  %2465 = vmatmul.f32.gmra.mxu0 %v180
  %v2466 = vpop.f32.mrf.mxu0
  %v2467 = vadd.f32 %v2426, %v2466
  %2468 = vdwg.mxu0
  %v2470 = vperm.slane %v2321, 0
  %v2472 = vadd.f32 %v2446, %v2470
  %v2473 = vadd.f32 %v2449, %v2470
  %v2474 = vadd.f32 %v2452, %v2470
  %v2475 = vadd.f32 %v2455, %v2470
  %v2476 = vadd.f32 %v2458, %v2470
  %v2477 = vadd.f32 %v2461, %v2470
  %v2478 = vadd.f32 %v2464, %v2470
  %v2479 = vadd.f32 %v2467, %v2470
  %2480 = vst [vmem:[%s9] sm:$0xff] %v2472
  %2481 = vst [vmem:[%s9 + $0x8] sm:$0xff] %v2473
  %2482 = vst [vmem:[%s9 + $0x10] sm:$0xff] %v2474
  %2483 = vst [vmem:[%s9 + $0x18] sm:$0xff] %v2475
  %2484 = vst [vmem:[%s9 + $0x20] sm:$0xff] %v2476
  %2485 = vst [vmem:[%s9 + $0x28] sm:$0xff] %v2477
  %2486 = vst [vmem:[%s9 + $0x30] sm:$0xff] %v2478
  %2487 = vst [vmem:[%s9 + $0x38] sm:$0xff] %v2479
  // Predicated region
  $region34: #{pixel2mesh_forward.6} parent=0 // pred_check
    _
  $region35: #{pixel2mesh_forward.6} parent=0 // pred_check_branch
    %2489 = sbr.rel (0) target = $region37
  $region36: #{pixel2mesh_forward.6} parent=0 // pred_region
    _
  $region37: #{pixel2mesh_forward.6} parent=0 // pred_fallthru
    _
  // Predicated region
  $region38: #{pixel2mesh_forward.6} parent=0 // pred_check
    _
  $region39: #{pixel2mesh_forward.6} parent=0 // pred_check_branch
    %2491 = sbr.rel (0) target = $region41
  $region40: #{pixel2mesh_forward.6} parent=0 // pred_region
    _
  $region41: #{pixel2mesh_forward.6} parent=0 // pred_fallthru
    _
  // Predicated region
  $region42: #{pixel2mesh_forward.6} parent=0 // pred_check
    _
  $region43: #{pixel2mesh_forward.6} parent=0 // pred_check_branch
    %2493 = sbr.rel (0) target = $region45
  $region44: #{pixel2mesh_forward.6} parent=0 // pred_region
    _
  $region45: #{pixel2mesh_forward.6} parent=0 // pred_fallthru
    _
  // Predicated region
  $region46: #{pixel2mesh_forward.6} parent=0 // pred_check
    _
  $region47: #{pixel2mesh_forward.6} parent=0 // pred_check_branch
    %2495 = sbr.rel (0) target = $region49
  $region48: #{pixel2mesh_forward.6} parent=0 // pred_region
    _
  $region49: #{pixel2mesh_forward.6} parent=0 // pred_fallthru
    _

// kernel: pixel2mesh_forward.7
$region0: #{pixel2mesh_forward.7}
  #allocation0 [shape = 'u32[]', space=smem, size = 0x4, offset = 0x4, fixed_abs, tag = 'smem constant byte address 0x4 - core index']
  #allocation1 [shape = 'u32[72,128]{1,0:T(1,128)}', space=vmem, size = 0x9000, scoped, tag = 'internal scratch']
  %s0 = inlined_call_operand.vmem [shape: f32[96,88], index: 0, kind: input, shape index: {}]
  %s1 = inlined_call_operand.vmem [shape: f32[96,96], index: 1, kind: input, shape index: {}]
  %s2 = inlined_call_operand.vmem [shape: f32[88,64], index: 2, kind: input, shape index: {}]
  %s3 = inlined_call_operand.vmem [shape: f32[1,32], index: 3, kind: input, shape index: {}]
  %s4 = inlined_call_operand.vmem [shape: f32[12,32,64], index: 4, kind: input, shape index: {}]
  %s5 = inlined_call_operand.vmem [shape: f32[12,1,32], index: 5, kind: input, shape index: {}]
  %s6 = inlined_call_operand.vmem [shape: f32[32,256], index: 6, kind: input, shape index: {}]
  %s7 = inlined_call_operand.vmem [shape: f32[1,128], index: 7, kind: input, shape index: {}]
  %s8 = inlined_call_operand.hbm [shape: f32[96,32], index: 8, kind: output, shape index: {0}]
  %s9 = inlined_call_operand.vmem [shape: f32[96,128], index: 9, kind: output, shape index: {1}]
  %10 = xla_tuple %s8, %s9
  %s11 = sld [smem:[#allocation0]]
  $region50: #{pixel2mesh_forward.7} parent=0
    _
  %s13 = ssub.s32 1, %s11
  %s14 = scalar_select 0, %s13, %s11
  $region1: #{pixel2mesh_forward.7} parent=0
    #allocation2 [shape = 'u8[49152]{0}', space=vmem, size = 0xc000, scoped, tag = 'output window, operand 0, single buffered']
    #allocation3 [shape = 's32[1]{0}', space=sflag, size = 0x4, scoped, tag = 'scoped memory for pixel2mesh_forward.7']
    %15 = vsyncpa [#allocation3], 0
    // Predicated region
    $region2: #{pixel2mesh_forward.7} parent=1 // pred_check
      _
    $region3: #{pixel2mesh_forward.7} parent=1 // pred_check_branch
      %17 = sbr.rel (0) target = $region5
    $region4: #{pixel2mesh_forward.7} parent=1 // pred_region
      _
    $region5: #{pixel2mesh_forward.7} parent=1 // pred_fallthru
      _
    // Predicated region
    $region6: #{pixel2mesh_forward.7} parent=1 // pred_check
      _
    $region7: #{pixel2mesh_forward.7} parent=1 // pred_check_branch
      %19 = sbr.rel (0) target = $region9
    $region8: #{pixel2mesh_forward.7} parent=1 // pred_region
      _
    $region9: #{pixel2mesh_forward.7} parent=1 // pred_fallthru
      _
    // Predicated region
    $region10: #{pixel2mesh_forward.7} parent=1 // pred_check
      _
    $region11: #{pixel2mesh_forward.7} parent=1 // pred_check_branch
      %21 = sbr.rel (0) target = $region13
    $region12: #{pixel2mesh_forward.7} parent=1 // pred_region
      _
    $region13: #{pixel2mesh_forward.7} parent=1 // pred_fallthru
      _
    // Predicated region
    $region14: #{pixel2mesh_forward.7} parent=1 // pred_check
      _
    $region15: #{pixel2mesh_forward.7} parent=1 // pred_check_branch
      %23 = sbr.rel (0) target = $region17
    $region16: #{pixel2mesh_forward.7} parent=1 // pred_region
      _
    $region17: #{pixel2mesh_forward.7} parent=1 // pred_fallthru
      _
    // Predicated region
    $region18: #{pixel2mesh_forward.7} parent=1 // pred_check
      _
    $region19: #{pixel2mesh_forward.7} parent=1 // pred_check_branch
      %25 = sbr.rel (0) target = $region21
    $region20: #{pixel2mesh_forward.7} parent=1 // pred_region
      _
    $region21: #{pixel2mesh_forward.7} parent=1 // pred_fallthru
      _
    // Predicated region
    $region22: #{pixel2mesh_forward.7} parent=1 // pred_check
      _
    $region23: #{pixel2mesh_forward.7} parent=1 // pred_check_branch
      %27 = sbr.rel (0) target = $region25
    $region24: #{pixel2mesh_forward.7} parent=1 // pred_region
      _
    $region25: #{pixel2mesh_forward.7} parent=1 // pred_fallthru
      _
    // Predicated region
    $region26: #{pixel2mesh_forward.7} parent=1 // pred_check
      _
    $region27: #{pixel2mesh_forward.7} parent=1 // pred_check_branch
      %29 = sbr.rel (0) target = $region29
    $region28: #{pixel2mesh_forward.7} parent=1 // pred_region
      _
    $region29: #{pixel2mesh_forward.7} parent=1 // pred_fallthru
      _
    // Predicated region
    $region30: #{pixel2mesh_forward.7} parent=1 // pred_check
      _
    $region31: #{pixel2mesh_forward.7} parent=1 // pred_check_branch
      %31 = sbr.rel (0) target = $region33
    $region32: #{pixel2mesh_forward.7} parent=1 // pred_region
      _
    $region33: #{pixel2mesh_forward.7} parent=1 // pred_fallthru
      _
    %v32 = vld [vmem:[%s1] sm:$0xff]
    %v33 = vld [vmem:[%s1 + $0x8] sm:$0xff]
    %v34 = vld [vmem:[%s1 + $0x10] sm:$0xff]
    %v35 = vld [vmem:[%s1 + $0x18] sm:$0xff]
    %v36 = vld [vmem:[%s1 + $0x20] sm:$0xff]
    %v37 = vld [vmem:[%s1 + $0x28] sm:$0xff]
    %v38 = vld [vmem:[%s1 + $0x30] sm:$0xff]
    %v39 = vld [vmem:[%s1 + $0x38] sm:$0xff]
    %v40 = vld [vmem:[%s1 + $0x40] sm:$0xff]
    %v41 = vld [vmem:[%s1 + $0x48] sm:$0xff]
    %v42 = vld [vmem:[%s1 + $0x50] sm:$0xff]
    %v43 = vld [vmem:[%s1 + $0x58] sm:$0xff]
    %v44 = vld [vmem:[%s0] sm:$0xff]
    %v45 = vld [vmem:[%s0 + $0x8] sm:$0xff]
    %v46 = vld [vmem:[%s0 + $0x10] sm:$0xff]
    %v47 = vld [vmem:[%s0 + $0x18] sm:$0xff]
    %v48 = vld [vmem:[%s0 + $0x20] sm:$0xff]
    %v49 = vld [vmem:[%s0 + $0x28] sm:$0xff]
    %v50 = vld [vmem:[%s0 + $0x30] sm:$0xff]
    %v51 = vld [vmem:[%s0 + $0x38] sm:$0xff]
    %v52 = vld [vmem:[%s0 + $0x40] sm:$0xff]
    %v53 = vld [vmem:[%s0 + $0x48] sm:$0xff]
    %v54 = vld [vmem:[%s0 + $0x50] sm:$0xff]
    %v55 = vld [vmem:[%s0 + $0x58] sm:$0xff]
    %v56 = vld [vmem:[%s2] sm:$0xff]
    %v57 = vld [vmem:[%s2 + $0x8] sm:$0xff]
    %v58 = vld [vmem:[%s2 + $0x10] sm:$0xff]
    %v59 = vld [vmem:[%s2 + $0x18] sm:$0xff]
    %v60 = vld [vmem:[%s2 + $0x20] sm:$0xff]
    %v61 = vld [vmem:[%s2 + $0x28] sm:$0xff]
    %v62 = vld [vmem:[%s2 + $0x30] sm:$0xff]
    %v63 = vld [vmem:[%s2 + $0x38] sm:$0xff]
    %v64 = vld [vmem:[%s2 + $0x40] sm:$0xff]
    %v65 = vld [vmem:[%s2 + $0x48] sm:$0xff]
    %v66 = vld [vmem:[%s2 + $0x50] sm:$0xff]
    %v67 = vld [vmem:[%s3] sm:$0x1]
    %vm68 = vcmask 719872
    %v70 = vsel %vm68, %v44, 0
    %v73 = vsel %vm68, %v45, 0
    %v76 = vsel %vm68, %v46, 0
    %v79 = vsel %vm68, %v47, 0
    %v82 = vsel %vm68, %v48, 0
    %v85 = vsel %vm68, %v49, 0
    %v88 = vsel %vm68, %v50, 0
    %v91 = vsel %vm68, %v51, 0
    %v94 = vsel %vm68, %v52, 0
    %v97 = vsel %vm68, %v53, 0
    %v100 = vsel %vm68, %v54, 0
    %v103 = vsel %vm68, %v55, 0
    %105 = vmatpush.msra.mxu0 0.0
    %106 = vmatpush.msra.mxu0 0.0
    %107 = vmatpush.msra.mxu0 0.0
    %108 = vmatpush.msra.mxu0 0.0
    %109 = vmatpush.msra.mxu0 0.0
    %110 = vmatpush.msra.mxu0 %v66
    %111 = vmatpush.msra.mxu0 %v65
    %112 = vmatpush.msra.mxu0 %v64
    %113 = vmatpush.msra.mxu0 %v63
    %114 = vmatpush.msra.mxu0 %v62
    %115 = vmatpush.msra.mxu0 %v61
    %116 = vmatpush.msra.mxu0 %v60
    %117 = vmatpush.msra.mxu0 %v59
    %118 = vmatpush.msra.mxu0 %v58
    %119 = vmatpush.msra.mxu0 %v57
    %120 = vmatpush.msra.mxu0 %v56
    %121 = vmatmul.f32.gmra.mxu0 %v70
    %v122 = vpop.f32.mrf.mxu0
    %v123 = vadd.f32 0.0, %v122
    %124 = vmatmul.f32.gmra.mxu0 %v73
    %v125 = vpop.f32.mrf.mxu0
    %v126 = vadd.f32 0.0, %v125
    %127 = vmatmul.f32.gmra.mxu0 %v76
    %v128 = vpop.f32.mrf.mxu0
    %v129 = vadd.f32 0.0, %v128
    %130 = vmatmul.f32.gmra.mxu0 %v79
    %v131 = vpop.f32.mrf.mxu0
    %v132 = vadd.f32 0.0, %v131
    %133 = vmatmul.f32.gmra.mxu0 %v82
    %v134 = vpop.f32.mrf.mxu0
    %v135 = vadd.f32 0.0, %v134
    %136 = vmatmul.f32.gmra.mxu0 %v85
    %v137 = vpop.f32.mrf.mxu0
    %v138 = vadd.f32 0.0, %v137
    %139 = vmatmul.f32.gmra.mxu0 %v88
    %v140 = vpop.f32.mrf.mxu0
    %v141 = vadd.f32 0.0, %v140
    %142 = vmatmul.f32.gmra.mxu0 %v91
    %v143 = vpop.f32.mrf.mxu0
    %v144 = vadd.f32 0.0, %v143
    %145 = vmatmul.f32.gmra.mxu0 %v94
    %v146 = vpop.f32.mrf.mxu0
    %v147 = vadd.f32 0.0, %v146
    %148 = vmatmul.f32.gmra.mxu0 %v97
    %v149 = vpop.f32.mrf.mxu0
    %v150 = vadd.f32 0.0, %v149
    %151 = vmatmul.f32.gmra.mxu0 %v100
    %v152 = vpop.f32.mrf.mxu0
    %v153 = vadd.f32 0.0, %v152
    %154 = vmatmul.f32.gmra.mxu0 %v103
    %v155 = vpop.f32.mrf.mxu0
    %v156 = vadd.f32 0.0, %v155
    %157 = vdwg.mxu0
    %170 = vrot.lane.b32.xlu0 %v123, 96
    %v171 = vpop.permute.xlu0 %170
    %172 = vrot.lane.b32.xlu0 %v126, 96
    %v173 = vpop.permute.xlu0 %172
    %174 = vrot.lane.b32.xlu0 %v129, 96
    %v175 = vpop.permute.xlu0 %174
    %176 = vrot.lane.b32.xlu0 %v132, 96
    %v177 = vpop.permute.xlu0 %176
    %178 = vrot.lane.b32.xlu0 %v135, 96
    %v179 = vpop.permute.xlu0 %178
    %180 = vrot.lane.b32.xlu0 %v138, 96
    %v181 = vpop.permute.xlu0 %180
    %182 = vrot.lane.b32.xlu0 %v141, 96
    %v183 = vpop.permute.xlu0 %182
    %184 = vrot.lane.b32.xlu0 %v144, 96
    %v185 = vpop.permute.xlu0 %184
    %186 = vrot.lane.b32.xlu0 %v147, 96
    %v187 = vpop.permute.xlu0 %186
    %188 = vrot.lane.b32.xlu0 %v150, 96
    %v189 = vpop.permute.xlu0 %188
    %190 = vrot.lane.b32.xlu0 %v153, 96
    %v191 = vpop.permute.xlu0 %190
    %192 = vrot.lane.b32.xlu0 %v156, 96
    %v193 = vpop.permute.xlu0 %192
    %vm206 = vcmask 785408
    %v208 = vsel %vm206, %v32, 0
    %v211 = vsel %vm206, %v33, 0
    %v214 = vsel %vm206, %v34, 0
    %v217 = vsel %vm206, %v35, 0
    %v220 = vsel %vm206, %v36, 0
    %v223 = vsel %vm206, %v37, 0
    %v226 = vsel %vm206, %v38, 0
    %v229 = vsel %vm206, %v39, 0
    %v232 = vsel %vm206, %v40, 0
    %v235 = vsel %vm206, %v41, 0
    %v238 = vsel %vm206, %v42, 0
    %v241 = vsel %vm206, %v43, 0
    %243 = vmatpush.msra.mxu0 0.0
    %244 = vmatpush.msra.mxu0 0.0
    %245 = vmatpush.msra.mxu0 0.0
    %246 = vmatpush.msra.mxu0 0.0
    %247 = vmatpush.msra.mxu0 %v156
    %248 = vmatpush.msra.mxu0 %v153
    %249 = vmatpush.msra.mxu0 %v150
    %250 = vmatpush.msra.mxu0 %v147
    %251 = vmatpush.msra.mxu0 %v144
    %252 = vmatpush.msra.mxu0 %v141
    %253 = vmatpush.msra.mxu0 %v138
    %254 = vmatpush.msra.mxu0 %v135
    %255 = vmatpush.msra.mxu0 %v132
    %256 = vmatpush.msra.mxu0 %v129
    %257 = vmatpush.msra.mxu0 %v126
    %258 = vmatpush.msra.mxu0 %v123
    %259 = vmatmul.f32.gmra.mxu0 %v208
    %v260 = vpop.f32.mrf.mxu0
    %v261 = vadd.f32 %v171, %v260
    %262 = vmatmul.f32.gmra.mxu0 %v211
    %v263 = vpop.f32.mrf.mxu0
    %v264 = vadd.f32 %v173, %v263
    %265 = vmatmul.f32.gmra.mxu0 %v214
    %v266 = vpop.f32.mrf.mxu0
    %v267 = vadd.f32 %v175, %v266
    %268 = vmatmul.f32.gmra.mxu0 %v217
    %v269 = vpop.f32.mrf.mxu0
    %v270 = vadd.f32 %v177, %v269
    %271 = vmatmul.f32.gmra.mxu0 %v220
    %v272 = vpop.f32.mrf.mxu0
    %v273 = vadd.f32 %v179, %v272
    %274 = vmatmul.f32.gmra.mxu0 %v223
    %v275 = vpop.f32.mrf.mxu0
    %v276 = vadd.f32 %v181, %v275
    %277 = vmatmul.f32.gmra.mxu0 %v226
    %v278 = vpop.f32.mrf.mxu0
    %v279 = vadd.f32 %v183, %v278
    %280 = vmatmul.f32.gmra.mxu0 %v229
    %v281 = vpop.f32.mrf.mxu0
    %v282 = vadd.f32 %v185, %v281
    %283 = vmatmul.f32.gmra.mxu0 %v232
    %v284 = vpop.f32.mrf.mxu0
    %v285 = vadd.f32 %v187, %v284
    %286 = vmatmul.f32.gmra.mxu0 %v235
    %v287 = vpop.f32.mrf.mxu0
    %v288 = vadd.f32 %v189, %v287
    %289 = vmatmul.f32.gmra.mxu0 %v238
    %v290 = vpop.f32.mrf.mxu0
    %v291 = vadd.f32 %v191, %v290
    %292 = vmatmul.f32.gmra.mxu0 %v241
    %v293 = vpop.f32.mrf.mxu0
    %v294 = vadd.f32 %v193, %v293
    %295 = vdwg.mxu0
    %v297 = vperm.slane %v67, 0
    %v299 = vadd.f32 %v261, %v297
    %v300 = vadd.f32 %v264, %v297
    %v301 = vadd.f32 %v267, %v297
    %v302 = vadd.f32 %v270, %v297
    %v303 = vadd.f32 %v273, %v297
    %v304 = vadd.f32 %v276, %v297
    %v305 = vadd.f32 %v279, %v297
    %v306 = vadd.f32 %v282, %v297
    %v307 = vadd.f32 %v285, %v297
    %v308 = vadd.f32 %v288, %v297
    %v309 = vadd.f32 %v291, %v297
    %v310 = vadd.f32 %v294, %v297
    %v311 = vmax.f32 %v299, 0.0
    %v312 = vmax.f32 %v300, 0.0
    %v313 = vmax.f32 %v301, 0.0
    %v314 = vmax.f32 %v302, 0.0
    %v315 = vmax.f32 %v303, 0.0
    %v316 = vmax.f32 %v304, 0.0
    %v317 = vmax.f32 %v305, 0.0
    %v318 = vmax.f32 %v306, 0.0
    %v319 = vmax.f32 %v307, 0.0
    %v320 = vmax.f32 %v308, 0.0
    %v321 = vmax.f32 %v309, 0.0
    %v322 = vmax.f32 %v310, 0.0
    %v323 = vld [vmem:[%s4] sm:$0xff]
    %v324 = vld [vmem:[%s4 + $0x8] sm:$0xff]
    %v325 = vld [vmem:[%s4 + $0x10] sm:$0xff]
    %v326 = vld [vmem:[%s4 + $0x18] sm:$0xff]
    %v327 = vld [vmem:[%s5] sm:$0x1]
    %vm328 = vcmask 261120
    %v330 = vsel %vm328, %v311, 0
    %v333 = vsel %vm328, %v312, 0
    %v336 = vsel %vm328, %v313, 0
    %v339 = vsel %vm328, %v314, 0
    %v342 = vsel %vm328, %v315, 0
    %v345 = vsel %vm328, %v316, 0
    %v348 = vsel %vm328, %v317, 0
    %v351 = vsel %vm328, %v318, 0
    %v354 = vsel %vm328, %v319, 0
    %v357 = vsel %vm328, %v320, 0
    %v360 = vsel %vm328, %v321, 0
    %v363 = vsel %vm328, %v322, 0
    %365 = vmatpush.msra.mxu0 0.0
    %366 = vmatpush.msra.mxu0 0.0
    %367 = vmatpush.msra.mxu0 0.0
    %368 = vmatpush.msra.mxu0 0.0
    %369 = vmatpush.msra.mxu0 0.0
    %370 = vmatpush.msra.mxu0 0.0
    %371 = vmatpush.msra.mxu0 0.0
    %372 = vmatpush.msra.mxu0 0.0
    %373 = vmatpush.msra.mxu0 0.0
    %374 = vmatpush.msra.mxu0 0.0
    %375 = vmatpush.msra.mxu0 0.0
    %376 = vmatpush.msra.mxu0 0.0
    %377 = vmatpush.msra.mxu0 %v326
    %378 = vmatpush.msra.mxu0 %v325
    %379 = vmatpush.msra.mxu0 %v324
    %380 = vmatpush.msra.mxu0 %v323
    %381 = vmatmul.f32.gmra.mxu0 %v330
    %v382 = vpop.f32.mrf.mxu0
    %v383 = vadd.f32 0.0, %v382
    %384 = vmatmul.f32.gmra.mxu0 %v333
    %v385 = vpop.f32.mrf.mxu0
    %v386 = vadd.f32 0.0, %v385
    %387 = vmatmul.f32.gmra.mxu0 %v336
    %v388 = vpop.f32.mrf.mxu0
    %v389 = vadd.f32 0.0, %v388
    %390 = vmatmul.f32.gmra.mxu0 %v339
    %v391 = vpop.f32.mrf.mxu0
    %v392 = vadd.f32 0.0, %v391
    %393 = vmatmul.f32.gmra.mxu0 %v342
    %v394 = vpop.f32.mrf.mxu0
    %v395 = vadd.f32 0.0, %v394
    %396 = vmatmul.f32.gmra.mxu0 %v345
    %v397 = vpop.f32.mrf.mxu0
    %v398 = vadd.f32 0.0, %v397
    %399 = vmatmul.f32.gmra.mxu0 %v348
    %v400 = vpop.f32.mrf.mxu0
    %v401 = vadd.f32 0.0, %v400
    %402 = vmatmul.f32.gmra.mxu0 %v351
    %v403 = vpop.f32.mrf.mxu0
    %v404 = vadd.f32 0.0, %v403
    %405 = vmatmul.f32.gmra.mxu0 %v354
    %v406 = vpop.f32.mrf.mxu0
    %v407 = vadd.f32 0.0, %v406
    %408 = vmatmul.f32.gmra.mxu0 %v357
    %v409 = vpop.f32.mrf.mxu0
    %v410 = vadd.f32 0.0, %v409
    %411 = vmatmul.f32.gmra.mxu0 %v360
    %v412 = vpop.f32.mrf.mxu0
    %v413 = vadd.f32 0.0, %v412
    %414 = vmatmul.f32.gmra.mxu0 %v363
    %v415 = vpop.f32.mrf.mxu0
    %v416 = vadd.f32 0.0, %v415
    %417 = vdwg.mxu0
    %430 = vrot.lane.b32.xlu0 %v383, 96
    %v431 = vpop.permute.xlu0 %430
    %432 = vrot.lane.b32.xlu0 %v386, 96
    %v433 = vpop.permute.xlu0 %432
    %434 = vrot.lane.b32.xlu0 %v389, 96
    %v435 = vpop.permute.xlu0 %434
    %436 = vrot.lane.b32.xlu0 %v392, 96
    %v437 = vpop.permute.xlu0 %436
    %438 = vrot.lane.b32.xlu0 %v395, 96
    %v439 = vpop.permute.xlu0 %438
    %440 = vrot.lane.b32.xlu0 %v398, 96
    %v441 = vpop.permute.xlu0 %440
    %442 = vrot.lane.b32.xlu0 %v401, 96
    %v443 = vpop.permute.xlu0 %442
    %444 = vrot.lane.b32.xlu0 %v404, 96
    %v445 = vpop.permute.xlu0 %444
    %446 = vrot.lane.b32.xlu0 %v407, 96
    %v447 = vpop.permute.xlu0 %446
    %448 = vrot.lane.b32.xlu0 %v410, 96
    %v449 = vpop.permute.xlu0 %448
    %450 = vrot.lane.b32.xlu0 %v413, 96
    %v451 = vpop.permute.xlu0 %450
    %452 = vrot.lane.b32.xlu0 %v416, 96
    %v453 = vpop.permute.xlu0 %452
    %466 = vmatpush.msra.mxu0 0.0
    %467 = vmatpush.msra.mxu0 0.0
    %468 = vmatpush.msra.mxu0 0.0
    %469 = vmatpush.msra.mxu0 0.0
    %470 = vmatpush.msra.mxu0 %v416
    %471 = vmatpush.msra.mxu0 %v413
    %472 = vmatpush.msra.mxu0 %v410
    %473 = vmatpush.msra.mxu0 %v407
    %474 = vmatpush.msra.mxu0 %v404
    %475 = vmatpush.msra.mxu0 %v401
    %476 = vmatpush.msra.mxu0 %v398
    %477 = vmatpush.msra.mxu0 %v395
    %478 = vmatpush.msra.mxu0 %v392
    %479 = vmatpush.msra.mxu0 %v389
    %480 = vmatpush.msra.mxu0 %v386
    %481 = vmatpush.msra.mxu0 %v383
    %482 = vmatmul.f32.gmra.mxu0 %v208
    %v483 = vpop.f32.mrf.mxu0
    %v484 = vadd.f32 %v431, %v483
    %485 = vmatmul.f32.gmra.mxu0 %v211
    %v486 = vpop.f32.mrf.mxu0
    %v487 = vadd.f32 %v433, %v486
    %488 = vmatmul.f32.gmra.mxu0 %v214
    %v489 = vpop.f32.mrf.mxu0
    %v490 = vadd.f32 %v435, %v489
    %491 = vmatmul.f32.gmra.mxu0 %v217
    %v492 = vpop.f32.mrf.mxu0
    %v493 = vadd.f32 %v437, %v492
    %494 = vmatmul.f32.gmra.mxu0 %v220
    %v495 = vpop.f32.mrf.mxu0
    %v496 = vadd.f32 %v439, %v495
    %497 = vmatmul.f32.gmra.mxu0 %v223
    %v498 = vpop.f32.mrf.mxu0
    %v499 = vadd.f32 %v441, %v498
    %500 = vmatmul.f32.gmra.mxu0 %v226
    %v501 = vpop.f32.mrf.mxu0
    %v502 = vadd.f32 %v443, %v501
    %503 = vmatmul.f32.gmra.mxu0 %v229
    %v504 = vpop.f32.mrf.mxu0
    %v505 = vadd.f32 %v445, %v504
    %506 = vmatmul.f32.gmra.mxu0 %v232
    %v507 = vpop.f32.mrf.mxu0
    %v508 = vadd.f32 %v447, %v507
    %509 = vmatmul.f32.gmra.mxu0 %v235
    %v510 = vpop.f32.mrf.mxu0
    %v511 = vadd.f32 %v449, %v510
    %512 = vmatmul.f32.gmra.mxu0 %v238
    %v513 = vpop.f32.mrf.mxu0
    %v514 = vadd.f32 %v451, %v513
    %515 = vmatmul.f32.gmra.mxu0 %v241
    %v516 = vpop.f32.mrf.mxu0
    %v517 = vadd.f32 %v453, %v516
    %518 = vdwg.mxu0
    %v520 = vperm.slane %v327, 0
    %v522 = vadd.f32 %v484, %v520
    %v523 = vadd.f32 %v487, %v520
    %v524 = vadd.f32 %v490, %v520
    %v525 = vadd.f32 %v493, %v520
    %v526 = vadd.f32 %v496, %v520
    %v527 = vadd.f32 %v499, %v520
    %v528 = vadd.f32 %v502, %v520
    %v529 = vadd.f32 %v505, %v520
    %v530 = vadd.f32 %v508, %v520
    %v531 = vadd.f32 %v511, %v520
    %v532 = vadd.f32 %v514, %v520
    %v533 = vadd.f32 %v517, %v520
    %v534 = vmax.f32 %v522, 0.0
    %v535 = vmax.f32 %v523, 0.0
    %v536 = vmax.f32 %v524, 0.0
    %v537 = vmax.f32 %v525, 0.0
    %v538 = vmax.f32 %v526, 0.0
    %v539 = vmax.f32 %v527, 0.0
    %v540 = vmax.f32 %v528, 0.0
    %v541 = vmax.f32 %v529, 0.0
    %v542 = vmax.f32 %v530, 0.0
    %v543 = vmax.f32 %v531, 0.0
    %v544 = vmax.f32 %v532, 0.0
    %v545 = vmax.f32 %v533, 0.0
    %s546 = scalar_lea.vmem %s4, 32
    %v547 = vld [vmem:[%s546] sm:$0xff]
    %v548 = vld [vmem:[%s546 + $0x8] sm:$0xff]
    %v549 = vld [vmem:[%s546 + $0x10] sm:$0xff]
    %v550 = vld [vmem:[%s546 + $0x18] sm:$0xff]
    %s551 = scalar_lea.vmem %s5, 1
    %v552 = vld [vmem:[%s551] sm:$0x1]
    %v554 = vsel %vm328, %v534, 0
    %v557 = vsel %vm328, %v535, 0
    %v560 = vsel %vm328, %v536, 0
    %v563 = vsel %vm328, %v537, 0
    %v566 = vsel %vm328, %v538, 0
    %v569 = vsel %vm328, %v539, 0
    %v572 = vsel %vm328, %v540, 0
    %v575 = vsel %vm328, %v541, 0
    %v578 = vsel %vm328, %v542, 0
    %v581 = vsel %vm328, %v543, 0
    %v584 = vsel %vm328, %v544, 0
    %v587 = vsel %vm328, %v545, 0
    %589 = vmatpush.msra.mxu0 0.0
    %590 = vmatpush.msra.mxu0 0.0
    %591 = vmatpush.msra.mxu0 0.0
    %592 = vmatpush.msra.mxu0 0.0
    %593 = vmatpush.msra.mxu0 0.0
    %594 = vmatpush.msra.mxu0 0.0
    %595 = vmatpush.msra.mxu0 0.0
    %596 = vmatpush.msra.mxu0 0.0
    %597 = vmatpush.msra.mxu0 0.0
    %598 = vmatpush.msra.mxu0 0.0
    %599 = vmatpush.msra.mxu0 0.0
    %600 = vmatpush.msra.mxu0 0.0
    %601 = vmatpush.msra.mxu0 %v550
    %602 = vmatpush.msra.mxu0 %v549
    %603 = vmatpush.msra.mxu0 %v548
    %604 = vmatpush.msra.mxu0 %v547
    %605 = vmatmul.f32.gmra.mxu0 %v554
    %v606 = vpop.f32.mrf.mxu0
    %v607 = vadd.f32 0.0, %v606
    %608 = vmatmul.f32.gmra.mxu0 %v557
    %v609 = vpop.f32.mrf.mxu0
    %v610 = vadd.f32 0.0, %v609
    %611 = vmatmul.f32.gmra.mxu0 %v560
    %v612 = vpop.f32.mrf.mxu0
    %v613 = vadd.f32 0.0, %v612
    %614 = vmatmul.f32.gmra.mxu0 %v563
    %v615 = vpop.f32.mrf.mxu0
    %v616 = vadd.f32 0.0, %v615
    %617 = vmatmul.f32.gmra.mxu0 %v566
    %v618 = vpop.f32.mrf.mxu0
    %v619 = vadd.f32 0.0, %v618
    %620 = vmatmul.f32.gmra.mxu0 %v569
    %v621 = vpop.f32.mrf.mxu0
    %v622 = vadd.f32 0.0, %v621
    %623 = vmatmul.f32.gmra.mxu0 %v572
    %v624 = vpop.f32.mrf.mxu0
    %v625 = vadd.f32 0.0, %v624
    %626 = vmatmul.f32.gmra.mxu0 %v575
    %v627 = vpop.f32.mrf.mxu0
    %v628 = vadd.f32 0.0, %v627
    %629 = vmatmul.f32.gmra.mxu0 %v578
    %v630 = vpop.f32.mrf.mxu0
    %v631 = vadd.f32 0.0, %v630
    %632 = vmatmul.f32.gmra.mxu0 %v581
    %v633 = vpop.f32.mrf.mxu0
    %v634 = vadd.f32 0.0, %v633
    %635 = vmatmul.f32.gmra.mxu0 %v584
    %v636 = vpop.f32.mrf.mxu0
    %v637 = vadd.f32 0.0, %v636
    %638 = vmatmul.f32.gmra.mxu0 %v587
    %v639 = vpop.f32.mrf.mxu0
    %v640 = vadd.f32 0.0, %v639
    %641 = vdwg.mxu0
    %654 = vrot.lane.b32.xlu0 %v607, 96
    %v655 = vpop.permute.xlu0 %654
    %656 = vrot.lane.b32.xlu0 %v610, 96
    %v657 = vpop.permute.xlu0 %656
    %658 = vrot.lane.b32.xlu0 %v613, 96
    %v659 = vpop.permute.xlu0 %658
    %660 = vrot.lane.b32.xlu0 %v616, 96
    %v661 = vpop.permute.xlu0 %660
    %662 = vrot.lane.b32.xlu0 %v619, 96
    %v663 = vpop.permute.xlu0 %662
    %664 = vrot.lane.b32.xlu0 %v622, 96
    %v665 = vpop.permute.xlu0 %664
    %666 = vrot.lane.b32.xlu0 %v625, 96
    %v667 = vpop.permute.xlu0 %666
    %668 = vrot.lane.b32.xlu0 %v628, 96
    %v669 = vpop.permute.xlu0 %668
    %670 = vrot.lane.b32.xlu0 %v631, 96
    %v671 = vpop.permute.xlu0 %670
    %672 = vrot.lane.b32.xlu0 %v634, 96
    %v673 = vpop.permute.xlu0 %672
    %674 = vrot.lane.b32.xlu0 %v637, 96
    %v675 = vpop.permute.xlu0 %674
    %676 = vrot.lane.b32.xlu0 %v640, 96
    %v677 = vpop.permute.xlu0 %676
    %690 = vmatpush.msra.mxu0 0.0
    %691 = vmatpush.msra.mxu0 0.0
    %692 = vmatpush.msra.mxu0 0.0
    %693 = vmatpush.msra.mxu0 0.0
    %694 = vmatpush.msra.mxu0 %v640
    %695 = vmatpush.msra.mxu0 %v637
    %696 = vmatpush.msra.mxu0 %v634
    %697 = vmatpush.msra.mxu0 %v631
    %698 = vmatpush.msra.mxu0 %v628
    %699 = vmatpush.msra.mxu0 %v625
    %700 = vmatpush.msra.mxu0 %v622
    %701 = vmatpush.msra.mxu0 %v619
    %702 = vmatpush.msra.mxu0 %v616
    %703 = vmatpush.msra.mxu0 %v613
    %704 = vmatpush.msra.mxu0 %v610
    %705 = vmatpush.msra.mxu0 %v607
    %706 = vmatmul.f32.gmra.mxu0 %v208
    %v707 = vpop.f32.mrf.mxu0
    %v708 = vadd.f32 %v655, %v707
    %709 = vmatmul.f32.gmra.mxu0 %v211
    %v710 = vpop.f32.mrf.mxu0
    %v711 = vadd.f32 %v657, %v710
    %712 = vmatmul.f32.gmra.mxu0 %v214
    %v713 = vpop.f32.mrf.mxu0
    %v714 = vadd.f32 %v659, %v713
    %715 = vmatmul.f32.gmra.mxu0 %v217
    %v716 = vpop.f32.mrf.mxu0
    %v717 = vadd.f32 %v661, %v716
    %718 = vmatmul.f32.gmra.mxu0 %v220
    %v719 = vpop.f32.mrf.mxu0
    %v720 = vadd.f32 %v663, %v719
    %721 = vmatmul.f32.gmra.mxu0 %v223
    %v722 = vpop.f32.mrf.mxu0
    %v723 = vadd.f32 %v665, %v722
    %724 = vmatmul.f32.gmra.mxu0 %v226
    %v725 = vpop.f32.mrf.mxu0
    %v726 = vadd.f32 %v667, %v725
    %727 = vmatmul.f32.gmra.mxu0 %v229
    %v728 = vpop.f32.mrf.mxu0
    %v729 = vadd.f32 %v669, %v728
    %730 = vmatmul.f32.gmra.mxu0 %v232
    %v731 = vpop.f32.mrf.mxu0
    %v732 = vadd.f32 %v671, %v731
    %733 = vmatmul.f32.gmra.mxu0 %v235
    %v734 = vpop.f32.mrf.mxu0
    %v735 = vadd.f32 %v673, %v734
    %736 = vmatmul.f32.gmra.mxu0 %v238
    %v737 = vpop.f32.mrf.mxu0
    %v738 = vadd.f32 %v675, %v737
    %739 = vmatmul.f32.gmra.mxu0 %v241
    %v740 = vpop.f32.mrf.mxu0
    %v741 = vadd.f32 %v677, %v740
    %742 = vdwg.mxu0
    %v744 = vperm.slane %v552, 0
    %v746 = vadd.f32 %v708, %v744
    %v747 = vadd.f32 %v711, %v744
    %v748 = vadd.f32 %v714, %v744
    %v749 = vadd.f32 %v717, %v744
    %v750 = vadd.f32 %v720, %v744
    %v751 = vadd.f32 %v723, %v744
    %v752 = vadd.f32 %v726, %v744
    %v753 = vadd.f32 %v729, %v744
    %v754 = vadd.f32 %v732, %v744
    %v755 = vadd.f32 %v735, %v744
    %v756 = vadd.f32 %v738, %v744
    %v757 = vadd.f32 %v741, %v744
    %v758 = vmax.f32 %v746, 0.0
    %v759 = vmax.f32 %v747, 0.0
    %v760 = vmax.f32 %v748, 0.0
    %v761 = vmax.f32 %v749, 0.0
    %v762 = vmax.f32 %v750, 0.0
    %v763 = vmax.f32 %v751, 0.0
    %v764 = vmax.f32 %v752, 0.0
    %v765 = vmax.f32 %v753, 0.0
    %v766 = vmax.f32 %v754, 0.0
    %v767 = vmax.f32 %v755, 0.0
    %v768 = vmax.f32 %v756, 0.0
    %v769 = vmax.f32 %v757, 0.0
    %v770 = vadd.f32 %v311, %v758
    %v771 = vadd.f32 %v312, %v759
    %v772 = vadd.f32 %v313, %v760
    %v773 = vadd.f32 %v314, %v761
    %v774 = vadd.f32 %v315, %v762
    %v775 = vadd.f32 %v316, %v763
    %v776 = vadd.f32 %v317, %v764
    %v777 = vadd.f32 %v318, %v765
    %v778 = vadd.f32 %v319, %v766
    %v779 = vadd.f32 %v320, %v767
    %v780 = vadd.f32 %v321, %v768
    %v781 = vadd.f32 %v322, %v769
    %v782 = vmul.f32 %v770, 0.5
    %v783 = vmul.f32 %v771, 0.5
    %v784 = vmul.f32 %v772, 0.5
    %v785 = vmul.f32 %v773, 0.5
    %v786 = vmul.f32 %v774, 0.5
    %v787 = vmul.f32 %v775, 0.5
    %v788 = vmul.f32 %v776, 0.5
    %v789 = vmul.f32 %v777, 0.5
    %v790 = vmul.f32 %v778, 0.5
    %v791 = vmul.f32 %v779, 0.5
    %v792 = vmul.f32 %v780, 0.5
    %v793 = vmul.f32 %v781, 0.5
    %s794 = scalar_lea.vmem %s4, 64
    %v795 = vld [vmem:[%s794] sm:$0xff]
    %v796 = vld [vmem:[%s794 + $0x8] sm:$0xff]
    %v797 = vld [vmem:[%s794 + $0x10] sm:$0xff]
    %v798 = vld [vmem:[%s794 + $0x18] sm:$0xff]
    %s799 = scalar_lea.vmem %s5, 2
    %v800 = vld [vmem:[%s799] sm:$0x1]
    %v802 = vsel %vm328, %v782, 0
    %v805 = vsel %vm328, %v783, 0
    %v808 = vsel %vm328, %v784, 0
    %v811 = vsel %vm328, %v785, 0
    %v814 = vsel %vm328, %v786, 0
    %v817 = vsel %vm328, %v787, 0
    %v820 = vsel %vm328, %v788, 0
    %v823 = vsel %vm328, %v789, 0
    %v826 = vsel %vm328, %v790, 0
    %v829 = vsel %vm328, %v791, 0
    %v832 = vsel %vm328, %v792, 0
    %v835 = vsel %vm328, %v793, 0
    %837 = vmatpush.msra.mxu0 0.0
    %838 = vmatpush.msra.mxu0 0.0
    %839 = vmatpush.msra.mxu0 0.0
    %840 = vmatpush.msra.mxu0 0.0
    %841 = vmatpush.msra.mxu0 0.0
    %842 = vmatpush.msra.mxu0 0.0
    %843 = vmatpush.msra.mxu0 0.0
    %844 = vmatpush.msra.mxu0 0.0
    %845 = vmatpush.msra.mxu0 0.0
    %846 = vmatpush.msra.mxu0 0.0
    %847 = vmatpush.msra.mxu0 0.0
    %848 = vmatpush.msra.mxu0 0.0
    %849 = vmatpush.msra.mxu0 %v798
    %850 = vmatpush.msra.mxu0 %v797
    %851 = vmatpush.msra.mxu0 %v796
    %852 = vmatpush.msra.mxu0 %v795
    %853 = vmatmul.f32.gmra.mxu0 %v802
    %v854 = vpop.f32.mrf.mxu0
    %v855 = vadd.f32 0.0, %v854
    %856 = vmatmul.f32.gmra.mxu0 %v805
    %v857 = vpop.f32.mrf.mxu0
    %v858 = vadd.f32 0.0, %v857
    %859 = vmatmul.f32.gmra.mxu0 %v808
    %v860 = vpop.f32.mrf.mxu0
    %v861 = vadd.f32 0.0, %v860
    %862 = vmatmul.f32.gmra.mxu0 %v811
    %v863 = vpop.f32.mrf.mxu0
    %v864 = vadd.f32 0.0, %v863
    %865 = vmatmul.f32.gmra.mxu0 %v814
    %v866 = vpop.f32.mrf.mxu0
    %v867 = vadd.f32 0.0, %v866
    %868 = vmatmul.f32.gmra.mxu0 %v817
    %v869 = vpop.f32.mrf.mxu0
    %v870 = vadd.f32 0.0, %v869
    %871 = vmatmul.f32.gmra.mxu0 %v820
    %v872 = vpop.f32.mrf.mxu0
    %v873 = vadd.f32 0.0, %v872
    %874 = vmatmul.f32.gmra.mxu0 %v823
    %v875 = vpop.f32.mrf.mxu0
    %v876 = vadd.f32 0.0, %v875
    %877 = vmatmul.f32.gmra.mxu0 %v826
    %v878 = vpop.f32.mrf.mxu0
    %v879 = vadd.f32 0.0, %v878
    %880 = vmatmul.f32.gmra.mxu0 %v829
    %v881 = vpop.f32.mrf.mxu0
    %v882 = vadd.f32 0.0, %v881
    %883 = vmatmul.f32.gmra.mxu0 %v832
    %v884 = vpop.f32.mrf.mxu0
    %v885 = vadd.f32 0.0, %v884
    %886 = vmatmul.f32.gmra.mxu0 %v835
    %v887 = vpop.f32.mrf.mxu0
    %v888 = vadd.f32 0.0, %v887
    %889 = vdwg.mxu0
    %902 = vrot.lane.b32.xlu0 %v855, 96
    %v903 = vpop.permute.xlu0 %902
    %904 = vrot.lane.b32.xlu0 %v858, 96
    %v905 = vpop.permute.xlu0 %904
    %906 = vrot.lane.b32.xlu0 %v861, 96
    %v907 = vpop.permute.xlu0 %906
    %908 = vrot.lane.b32.xlu0 %v864, 96
    %v909 = vpop.permute.xlu0 %908
    %910 = vrot.lane.b32.xlu0 %v867, 96
    %v911 = vpop.permute.xlu0 %910
    %912 = vrot.lane.b32.xlu0 %v870, 96
    %v913 = vpop.permute.xlu0 %912
    %914 = vrot.lane.b32.xlu0 %v873, 96
    %v915 = vpop.permute.xlu0 %914
    %916 = vrot.lane.b32.xlu0 %v876, 96
    %v917 = vpop.permute.xlu0 %916
    %918 = vrot.lane.b32.xlu0 %v879, 96
    %v919 = vpop.permute.xlu0 %918
    %920 = vrot.lane.b32.xlu0 %v882, 96
    %v921 = vpop.permute.xlu0 %920
    %922 = vrot.lane.b32.xlu0 %v885, 96
    %v923 = vpop.permute.xlu0 %922
    %924 = vrot.lane.b32.xlu0 %v888, 96
    %v925 = vpop.permute.xlu0 %924
    %938 = vmatpush.msra.mxu0 0.0
    %939 = vmatpush.msra.mxu0 0.0
    %940 = vmatpush.msra.mxu0 0.0
    %941 = vmatpush.msra.mxu0 0.0
    %942 = vmatpush.msra.mxu0 %v888
    %943 = vmatpush.msra.mxu0 %v885
    %944 = vmatpush.msra.mxu0 %v882
    %945 = vmatpush.msra.mxu0 %v879
    %946 = vmatpush.msra.mxu0 %v876
    %947 = vmatpush.msra.mxu0 %v873
    %948 = vmatpush.msra.mxu0 %v870
    %949 = vmatpush.msra.mxu0 %v867
    %950 = vmatpush.msra.mxu0 %v864
    %951 = vmatpush.msra.mxu0 %v861
    %952 = vmatpush.msra.mxu0 %v858
    %953 = vmatpush.msra.mxu0 %v855
    %954 = vmatmul.f32.gmra.mxu0 %v208
    %v955 = vpop.f32.mrf.mxu0
    %v956 = vadd.f32 %v903, %v955
    %957 = vmatmul.f32.gmra.mxu0 %v211
    %v958 = vpop.f32.mrf.mxu0
    %v959 = vadd.f32 %v905, %v958
    %960 = vmatmul.f32.gmra.mxu0 %v214
    %v961 = vpop.f32.mrf.mxu0
    %v962 = vadd.f32 %v907, %v961
    %963 = vmatmul.f32.gmra.mxu0 %v217
    %v964 = vpop.f32.mrf.mxu0
    %v965 = vadd.f32 %v909, %v964
    %966 = vmatmul.f32.gmra.mxu0 %v220
    %v967 = vpop.f32.mrf.mxu0
    %v968 = vadd.f32 %v911, %v967
    %969 = vmatmul.f32.gmra.mxu0 %v223
    %v970 = vpop.f32.mrf.mxu0
    %v971 = vadd.f32 %v913, %v970
    %972 = vmatmul.f32.gmra.mxu0 %v226
    %v973 = vpop.f32.mrf.mxu0
    %v974 = vadd.f32 %v915, %v973
    %975 = vmatmul.f32.gmra.mxu0 %v229
    %v976 = vpop.f32.mrf.mxu0
    %v977 = vadd.f32 %v917, %v976
    %978 = vmatmul.f32.gmra.mxu0 %v232
    %v979 = vpop.f32.mrf.mxu0
    %v980 = vadd.f32 %v919, %v979
    %981 = vmatmul.f32.gmra.mxu0 %v235
    %v982 = vpop.f32.mrf.mxu0
    %v983 = vadd.f32 %v921, %v982
    %984 = vmatmul.f32.gmra.mxu0 %v238
    %v985 = vpop.f32.mrf.mxu0
    %v986 = vadd.f32 %v923, %v985
    %987 = vmatmul.f32.gmra.mxu0 %v241
    %v988 = vpop.f32.mrf.mxu0
    %v989 = vadd.f32 %v925, %v988
    %990 = vdwg.mxu0
    %v992 = vperm.slane %v800, 0
    %v994 = vadd.f32 %v956, %v992
    %v995 = vadd.f32 %v959, %v992
    %v996 = vadd.f32 %v962, %v992
    %v997 = vadd.f32 %v965, %v992
    %v998 = vadd.f32 %v968, %v992
    %v999 = vadd.f32 %v971, %v992
    %v1000 = vadd.f32 %v974, %v992
    %v1001 = vadd.f32 %v977, %v992
    %v1002 = vadd.f32 %v980, %v992
    %v1003 = vadd.f32 %v983, %v992
    %v1004 = vadd.f32 %v986, %v992
    %v1005 = vadd.f32 %v989, %v992
    %v1006 = vmax.f32 %v994, 0.0
    %v1007 = vmax.f32 %v995, 0.0
    %v1008 = vmax.f32 %v996, 0.0
    %v1009 = vmax.f32 %v997, 0.0
    %v1010 = vmax.f32 %v998, 0.0
    %v1011 = vmax.f32 %v999, 0.0
    %v1012 = vmax.f32 %v1000, 0.0
    %v1013 = vmax.f32 %v1001, 0.0
    %v1014 = vmax.f32 %v1002, 0.0
    %v1015 = vmax.f32 %v1003, 0.0
    %v1016 = vmax.f32 %v1004, 0.0
    %v1017 = vmax.f32 %v1005, 0.0
    %s1018 = scalar_lea.vmem %s4, 96
    %v1019 = vld [vmem:[%s1018] sm:$0xff]
    %v1020 = vld [vmem:[%s1018 + $0x8] sm:$0xff]
    %v1021 = vld [vmem:[%s1018 + $0x10] sm:$0xff]
    %v1022 = vld [vmem:[%s1018 + $0x18] sm:$0xff]
    %s1023 = scalar_lea.vmem %s5, 3
    %v1024 = vld [vmem:[%s1023] sm:$0x1]
    %v1026 = vsel %vm328, %v1006, 0
    %v1029 = vsel %vm328, %v1007, 0
    %v1032 = vsel %vm328, %v1008, 0
    %v1035 = vsel %vm328, %v1009, 0
    %v1038 = vsel %vm328, %v1010, 0
    %v1041 = vsel %vm328, %v1011, 0
    %v1044 = vsel %vm328, %v1012, 0
    %v1047 = vsel %vm328, %v1013, 0
    %v1050 = vsel %vm328, %v1014, 0
    %v1053 = vsel %vm328, %v1015, 0
    %v1056 = vsel %vm328, %v1016, 0
    %v1059 = vsel %vm328, %v1017, 0
    %1061 = vmatpush.msra.mxu0 0.0
    %1062 = vmatpush.msra.mxu0 0.0
    %1063 = vmatpush.msra.mxu0 0.0
    %1064 = vmatpush.msra.mxu0 0.0
    %1065 = vmatpush.msra.mxu0 0.0
    %1066 = vmatpush.msra.mxu0 0.0
    %1067 = vmatpush.msra.mxu0 0.0
    %1068 = vmatpush.msra.mxu0 0.0
    %1069 = vmatpush.msra.mxu0 0.0
    %1070 = vmatpush.msra.mxu0 0.0
    %1071 = vmatpush.msra.mxu0 0.0
    %1072 = vmatpush.msra.mxu0 0.0
    %1073 = vmatpush.msra.mxu0 %v1022
    %1074 = vmatpush.msra.mxu0 %v1021
    %1075 = vmatpush.msra.mxu0 %v1020
    %1076 = vmatpush.msra.mxu0 %v1019
    %1077 = vmatmul.f32.gmra.mxu0 %v1026
    %v1078 = vpop.f32.mrf.mxu0
    %v1079 = vadd.f32 0.0, %v1078
    %1080 = vmatmul.f32.gmra.mxu0 %v1029
    %v1081 = vpop.f32.mrf.mxu0
    %v1082 = vadd.f32 0.0, %v1081
    %1083 = vmatmul.f32.gmra.mxu0 %v1032
    %v1084 = vpop.f32.mrf.mxu0
    %v1085 = vadd.f32 0.0, %v1084
    %1086 = vmatmul.f32.gmra.mxu0 %v1035
    %v1087 = vpop.f32.mrf.mxu0
    %v1088 = vadd.f32 0.0, %v1087
    %1089 = vmatmul.f32.gmra.mxu0 %v1038
    %v1090 = vpop.f32.mrf.mxu0
    %v1091 = vadd.f32 0.0, %v1090
    %1092 = vmatmul.f32.gmra.mxu0 %v1041
    %v1093 = vpop.f32.mrf.mxu0
    %v1094 = vadd.f32 0.0, %v1093
    %1095 = vmatmul.f32.gmra.mxu0 %v1044
    %v1096 = vpop.f32.mrf.mxu0
    %v1097 = vadd.f32 0.0, %v1096
    %1098 = vmatmul.f32.gmra.mxu0 %v1047
    %v1099 = vpop.f32.mrf.mxu0
    %v1100 = vadd.f32 0.0, %v1099
    %1101 = vmatmul.f32.gmra.mxu0 %v1050
    %v1102 = vpop.f32.mrf.mxu0
    %v1103 = vadd.f32 0.0, %v1102
    %1104 = vmatmul.f32.gmra.mxu0 %v1053
    %v1105 = vpop.f32.mrf.mxu0
    %v1106 = vadd.f32 0.0, %v1105
    %1107 = vmatmul.f32.gmra.mxu0 %v1056
    %v1108 = vpop.f32.mrf.mxu0
    %v1109 = vadd.f32 0.0, %v1108
    %1110 = vmatmul.f32.gmra.mxu0 %v1059
    %v1111 = vpop.f32.mrf.mxu0
    %v1112 = vadd.f32 0.0, %v1111
    %1113 = vdwg.mxu0
    %1126 = vrot.lane.b32.xlu0 %v1079, 96
    %v1127 = vpop.permute.xlu0 %1126
    %1128 = vrot.lane.b32.xlu0 %v1082, 96
    %v1129 = vpop.permute.xlu0 %1128
    %1130 = vrot.lane.b32.xlu0 %v1085, 96
    %v1131 = vpop.permute.xlu0 %1130
    %1132 = vrot.lane.b32.xlu0 %v1088, 96
    %v1133 = vpop.permute.xlu0 %1132
    %1134 = vrot.lane.b32.xlu0 %v1091, 96
    %v1135 = vpop.permute.xlu0 %1134
    %1136 = vrot.lane.b32.xlu0 %v1094, 96
    %v1137 = vpop.permute.xlu0 %1136
    %1138 = vrot.lane.b32.xlu0 %v1097, 96
    %v1139 = vpop.permute.xlu0 %1138
    %1140 = vrot.lane.b32.xlu0 %v1100, 96
    %v1141 = vpop.permute.xlu0 %1140
    %1142 = vrot.lane.b32.xlu0 %v1103, 96
    %v1143 = vpop.permute.xlu0 %1142
    %1144 = vrot.lane.b32.xlu0 %v1106, 96
    %v1145 = vpop.permute.xlu0 %1144
    %1146 = vrot.lane.b32.xlu0 %v1109, 96
    %v1147 = vpop.permute.xlu0 %1146
    %1148 = vrot.lane.b32.xlu0 %v1112, 96
    %v1149 = vpop.permute.xlu0 %1148
    %1162 = vmatpush.msra.mxu0 0.0
    %1163 = vmatpush.msra.mxu0 0.0
    %1164 = vmatpush.msra.mxu0 0.0
    %1165 = vmatpush.msra.mxu0 0.0
    %1166 = vmatpush.msra.mxu0 %v1112
    %1167 = vmatpush.msra.mxu0 %v1109
    %1168 = vmatpush.msra.mxu0 %v1106
    %1169 = vmatpush.msra.mxu0 %v1103
    %1170 = vmatpush.msra.mxu0 %v1100
    %1171 = vmatpush.msra.mxu0 %v1097
    %1172 = vmatpush.msra.mxu0 %v1094
    %1173 = vmatpush.msra.mxu0 %v1091
    %1174 = vmatpush.msra.mxu0 %v1088
    %1175 = vmatpush.msra.mxu0 %v1085
    %1176 = vmatpush.msra.mxu0 %v1082
    %1177 = vmatpush.msra.mxu0 %v1079
    %1178 = vmatmul.f32.gmra.mxu0 %v208
    %v1179 = vpop.f32.mrf.mxu0
    %v1180 = vadd.f32 %v1127, %v1179
    %1181 = vmatmul.f32.gmra.mxu0 %v211
    %v1182 = vpop.f32.mrf.mxu0
    %v1183 = vadd.f32 %v1129, %v1182
    %1184 = vmatmul.f32.gmra.mxu0 %v214
    %v1185 = vpop.f32.mrf.mxu0
    %v1186 = vadd.f32 %v1131, %v1185
    %1187 = vmatmul.f32.gmra.mxu0 %v217
    %v1188 = vpop.f32.mrf.mxu0
    %v1189 = vadd.f32 %v1133, %v1188
    %1190 = vmatmul.f32.gmra.mxu0 %v220
    %v1191 = vpop.f32.mrf.mxu0
    %v1192 = vadd.f32 %v1135, %v1191
    %1193 = vmatmul.f32.gmra.mxu0 %v223
    %v1194 = vpop.f32.mrf.mxu0
    %v1195 = vadd.f32 %v1137, %v1194
    %1196 = vmatmul.f32.gmra.mxu0 %v226
    %v1197 = vpop.f32.mrf.mxu0
    %v1198 = vadd.f32 %v1139, %v1197
    %1199 = vmatmul.f32.gmra.mxu0 %v229
    %v1200 = vpop.f32.mrf.mxu0
    %v1201 = vadd.f32 %v1141, %v1200
    %1202 = vmatmul.f32.gmra.mxu0 %v232
    %v1203 = vpop.f32.mrf.mxu0
    %v1204 = vadd.f32 %v1143, %v1203
    %1205 = vmatmul.f32.gmra.mxu0 %v235
    %v1206 = vpop.f32.mrf.mxu0
    %v1207 = vadd.f32 %v1145, %v1206
    %1208 = vmatmul.f32.gmra.mxu0 %v238
    %v1209 = vpop.f32.mrf.mxu0
    %v1210 = vadd.f32 %v1147, %v1209
    %1211 = vmatmul.f32.gmra.mxu0 %v241
    %v1212 = vpop.f32.mrf.mxu0
    %v1213 = vadd.f32 %v1149, %v1212
    %1214 = vdwg.mxu0
    %v1216 = vperm.slane %v1024, 0
    %v1218 = vadd.f32 %v1180, %v1216
    %v1219 = vadd.f32 %v1183, %v1216
    %v1220 = vadd.f32 %v1186, %v1216
    %v1221 = vadd.f32 %v1189, %v1216
    %v1222 = vadd.f32 %v1192, %v1216
    %v1223 = vadd.f32 %v1195, %v1216
    %v1224 = vadd.f32 %v1198, %v1216
    %v1225 = vadd.f32 %v1201, %v1216
    %v1226 = vadd.f32 %v1204, %v1216
    %v1227 = vadd.f32 %v1207, %v1216
    %v1228 = vadd.f32 %v1210, %v1216
    %v1229 = vadd.f32 %v1213, %v1216
    %v1230 = vmax.f32 %v1218, 0.0
    %v1231 = vmax.f32 %v1219, 0.0
    %v1232 = vmax.f32 %v1220, 0.0
    %v1233 = vmax.f32 %v1221, 0.0
    %v1234 = vmax.f32 %v1222, 0.0
    %v1235 = vmax.f32 %v1223, 0.0
    %v1236 = vmax.f32 %v1224, 0.0
    %v1237 = vmax.f32 %v1225, 0.0
    %v1238 = vmax.f32 %v1226, 0.0
    %v1239 = vmax.f32 %v1227, 0.0
    %v1240 = vmax.f32 %v1228, 0.0
    %v1241 = vmax.f32 %v1229, 0.0
    %v1242 = vadd.f32 %v782, %v1230
    %v1243 = vadd.f32 %v783, %v1231
    %v1244 = vadd.f32 %v784, %v1232
    %v1245 = vadd.f32 %v785, %v1233
    %v1246 = vadd.f32 %v786, %v1234
    %v1247 = vadd.f32 %v787, %v1235
    %v1248 = vadd.f32 %v788, %v1236
    %v1249 = vadd.f32 %v789, %v1237
    %v1250 = vadd.f32 %v790, %v1238
    %v1251 = vadd.f32 %v791, %v1239
    %v1252 = vadd.f32 %v792, %v1240
    %v1253 = vadd.f32 %v793, %v1241
    %v1254 = vmul.f32 %v1242, 0.5
    %v1255 = vmul.f32 %v1243, 0.5
    %v1256 = vmul.f32 %v1244, 0.5
    %v1257 = vmul.f32 %v1245, 0.5
    %v1258 = vmul.f32 %v1246, 0.5
    %v1259 = vmul.f32 %v1247, 0.5
    %v1260 = vmul.f32 %v1248, 0.5
    %v1261 = vmul.f32 %v1249, 0.5
    %v1262 = vmul.f32 %v1250, 0.5
    %v1263 = vmul.f32 %v1251, 0.5
    %v1264 = vmul.f32 %v1252, 0.5
    %v1265 = vmul.f32 %v1253, 0.5
    %s1266 = scalar_lea.vmem %s4, 128
    %v1267 = vld [vmem:[%s1266] sm:$0xff]
    %v1268 = vld [vmem:[%s1266 + $0x8] sm:$0xff]
    %v1269 = vld [vmem:[%s1266 + $0x10] sm:$0xff]
    %v1270 = vld [vmem:[%s1266 + $0x18] sm:$0xff]
    %s1271 = scalar_lea.vmem %s5, 4
    %v1272 = vld [vmem:[%s1271] sm:$0x1]
    %v1274 = vsel %vm328, %v1254, 0
    %v1277 = vsel %vm328, %v1255, 0
    %v1280 = vsel %vm328, %v1256, 0
    %v1283 = vsel %vm328, %v1257, 0
    %v1286 = vsel %vm328, %v1258, 0
    %v1289 = vsel %vm328, %v1259, 0
    %v1292 = vsel %vm328, %v1260, 0
    %v1295 = vsel %vm328, %v1261, 0
    %v1298 = vsel %vm328, %v1262, 0
    %v1301 = vsel %vm328, %v1263, 0
    %v1304 = vsel %vm328, %v1264, 0
    %v1307 = vsel %vm328, %v1265, 0
    %1309 = vmatpush.msra.mxu0 0.0
    %1310 = vmatpush.msra.mxu0 0.0
    %1311 = vmatpush.msra.mxu0 0.0
    %1312 = vmatpush.msra.mxu0 0.0
    %1313 = vmatpush.msra.mxu0 0.0
    %1314 = vmatpush.msra.mxu0 0.0
    %1315 = vmatpush.msra.mxu0 0.0
    %1316 = vmatpush.msra.mxu0 0.0
    %1317 = vmatpush.msra.mxu0 0.0
    %1318 = vmatpush.msra.mxu0 0.0
    %1319 = vmatpush.msra.mxu0 0.0
    %1320 = vmatpush.msra.mxu0 0.0
    %1321 = vmatpush.msra.mxu0 %v1270
    %1322 = vmatpush.msra.mxu0 %v1269
    %1323 = vmatpush.msra.mxu0 %v1268
    %1324 = vmatpush.msra.mxu0 %v1267
    %1325 = vmatmul.f32.gmra.mxu0 %v1274
    %v1326 = vpop.f32.mrf.mxu0
    %v1327 = vadd.f32 0.0, %v1326
    %1328 = vmatmul.f32.gmra.mxu0 %v1277
    %v1329 = vpop.f32.mrf.mxu0
    %v1330 = vadd.f32 0.0, %v1329
    %1331 = vmatmul.f32.gmra.mxu0 %v1280
    %v1332 = vpop.f32.mrf.mxu0
    %v1333 = vadd.f32 0.0, %v1332
    %1334 = vmatmul.f32.gmra.mxu0 %v1283
    %v1335 = vpop.f32.mrf.mxu0
    %v1336 = vadd.f32 0.0, %v1335
    %1337 = vmatmul.f32.gmra.mxu0 %v1286
    %v1338 = vpop.f32.mrf.mxu0
    %v1339 = vadd.f32 0.0, %v1338
    %1340 = vmatmul.f32.gmra.mxu0 %v1289
    %v1341 = vpop.f32.mrf.mxu0
    %v1342 = vadd.f32 0.0, %v1341
    %1343 = vmatmul.f32.gmra.mxu0 %v1292
    %v1344 = vpop.f32.mrf.mxu0
    %v1345 = vadd.f32 0.0, %v1344
    %1346 = vmatmul.f32.gmra.mxu0 %v1295
    %v1347 = vpop.f32.mrf.mxu0
    %v1348 = vadd.f32 0.0, %v1347
    %1349 = vmatmul.f32.gmra.mxu0 %v1298
    %v1350 = vpop.f32.mrf.mxu0
    %v1351 = vadd.f32 0.0, %v1350
    %1352 = vmatmul.f32.gmra.mxu0 %v1301
    %v1353 = vpop.f32.mrf.mxu0
    %v1354 = vadd.f32 0.0, %v1353
    %1355 = vmatmul.f32.gmra.mxu0 %v1304
    %v1356 = vpop.f32.mrf.mxu0
    %v1357 = vadd.f32 0.0, %v1356
    %1358 = vmatmul.f32.gmra.mxu0 %v1307
    %v1359 = vpop.f32.mrf.mxu0
    %v1360 = vadd.f32 0.0, %v1359
    %1361 = vdwg.mxu0
    %1374 = vrot.lane.b32.xlu0 %v1327, 96
    %v1375 = vpop.permute.xlu0 %1374
    %1376 = vrot.lane.b32.xlu0 %v1330, 96
    %v1377 = vpop.permute.xlu0 %1376
    %1378 = vrot.lane.b32.xlu0 %v1333, 96
    %v1379 = vpop.permute.xlu0 %1378
    %1380 = vrot.lane.b32.xlu0 %v1336, 96
    %v1381 = vpop.permute.xlu0 %1380
    %1382 = vrot.lane.b32.xlu0 %v1339, 96
    %v1383 = vpop.permute.xlu0 %1382
    %1384 = vrot.lane.b32.xlu0 %v1342, 96
    %v1385 = vpop.permute.xlu0 %1384
    %1386 = vrot.lane.b32.xlu0 %v1345, 96
    %v1387 = vpop.permute.xlu0 %1386
    %1388 = vrot.lane.b32.xlu0 %v1348, 96
    %v1389 = vpop.permute.xlu0 %1388
    %1390 = vrot.lane.b32.xlu0 %v1351, 96
    %v1391 = vpop.permute.xlu0 %1390
    %1392 = vrot.lane.b32.xlu0 %v1354, 96
    %v1393 = vpop.permute.xlu0 %1392
    %1394 = vrot.lane.b32.xlu0 %v1357, 96
    %v1395 = vpop.permute.xlu0 %1394
    %1396 = vrot.lane.b32.xlu0 %v1360, 96
    %v1397 = vpop.permute.xlu0 %1396
    %1410 = vmatpush.msra.mxu0 0.0
    %1411 = vmatpush.msra.mxu0 0.0
    %1412 = vmatpush.msra.mxu0 0.0
    %1413 = vmatpush.msra.mxu0 0.0
    %1414 = vmatpush.msra.mxu0 %v1360
    %1415 = vmatpush.msra.mxu0 %v1357
    %1416 = vmatpush.msra.mxu0 %v1354
    %1417 = vmatpush.msra.mxu0 %v1351
    %1418 = vmatpush.msra.mxu0 %v1348
    %1419 = vmatpush.msra.mxu0 %v1345
    %1420 = vmatpush.msra.mxu0 %v1342
    %1421 = vmatpush.msra.mxu0 %v1339
    %1422 = vmatpush.msra.mxu0 %v1336
    %1423 = vmatpush.msra.mxu0 %v1333
    %1424 = vmatpush.msra.mxu0 %v1330
    %1425 = vmatpush.msra.mxu0 %v1327
    %1426 = vmatmul.f32.gmra.mxu0 %v208
    %v1427 = vpop.f32.mrf.mxu0
    %v1428 = vadd.f32 %v1375, %v1427
    %1429 = vmatmul.f32.gmra.mxu0 %v211
    %v1430 = vpop.f32.mrf.mxu0
    %v1431 = vadd.f32 %v1377, %v1430
    %1432 = vmatmul.f32.gmra.mxu0 %v214
    %v1433 = vpop.f32.mrf.mxu0
    %v1434 = vadd.f32 %v1379, %v1433
    %1435 = vmatmul.f32.gmra.mxu0 %v217
    %v1436 = vpop.f32.mrf.mxu0
    %v1437 = vadd.f32 %v1381, %v1436
    %1438 = vmatmul.f32.gmra.mxu0 %v220
    %v1439 = vpop.f32.mrf.mxu0
    %v1440 = vadd.f32 %v1383, %v1439
    %1441 = vmatmul.f32.gmra.mxu0 %v223
    %v1442 = vpop.f32.mrf.mxu0
    %v1443 = vadd.f32 %v1385, %v1442
    %1444 = vmatmul.f32.gmra.mxu0 %v226
    %v1445 = vpop.f32.mrf.mxu0
    %v1446 = vadd.f32 %v1387, %v1445
    %1447 = vmatmul.f32.gmra.mxu0 %v229
    %v1448 = vpop.f32.mrf.mxu0
    %v1449 = vadd.f32 %v1389, %v1448
    %1450 = vmatmul.f32.gmra.mxu0 %v232
    %v1451 = vpop.f32.mrf.mxu0
    %v1452 = vadd.f32 %v1391, %v1451
    %1453 = vmatmul.f32.gmra.mxu0 %v235
    %v1454 = vpop.f32.mrf.mxu0
    %v1455 = vadd.f32 %v1393, %v1454
    %1456 = vmatmul.f32.gmra.mxu0 %v238
    %v1457 = vpop.f32.mrf.mxu0
    %v1458 = vadd.f32 %v1395, %v1457
    %1459 = vmatmul.f32.gmra.mxu0 %v241
    %v1460 = vpop.f32.mrf.mxu0
    %v1461 = vadd.f32 %v1397, %v1460
    %1462 = vdwg.mxu0
    %v1464 = vperm.slane %v1272, 0
    %v1466 = vadd.f32 %v1428, %v1464
    %v1467 = vadd.f32 %v1431, %v1464
    %v1468 = vadd.f32 %v1434, %v1464
    %v1469 = vadd.f32 %v1437, %v1464
    %v1470 = vadd.f32 %v1440, %v1464
    %v1471 = vadd.f32 %v1443, %v1464
    %v1472 = vadd.f32 %v1446, %v1464
    %v1473 = vadd.f32 %v1449, %v1464
    %v1474 = vadd.f32 %v1452, %v1464
    %v1475 = vadd.f32 %v1455, %v1464
    %v1476 = vadd.f32 %v1458, %v1464
    %v1477 = vadd.f32 %v1461, %v1464
    %v1478 = vmax.f32 %v1466, 0.0
    %v1479 = vmax.f32 %v1467, 0.0
    %v1480 = vmax.f32 %v1468, 0.0
    %v1481 = vmax.f32 %v1469, 0.0
    %v1482 = vmax.f32 %v1470, 0.0
    %v1483 = vmax.f32 %v1471, 0.0
    %v1484 = vmax.f32 %v1472, 0.0
    %v1485 = vmax.f32 %v1473, 0.0
    %v1486 = vmax.f32 %v1474, 0.0
    %v1487 = vmax.f32 %v1475, 0.0
    %v1488 = vmax.f32 %v1476, 0.0
    %v1489 = vmax.f32 %v1477, 0.0
    %s1490 = scalar_lea.vmem %s4, 160
    %v1491 = vld [vmem:[%s1490] sm:$0xff]
    %v1492 = vld [vmem:[%s1490 + $0x8] sm:$0xff]
    %v1493 = vld [vmem:[%s1490 + $0x10] sm:$0xff]
    %v1494 = vld [vmem:[%s1490 + $0x18] sm:$0xff]
    %s1495 = scalar_lea.vmem %s5, 5
    %v1496 = vld [vmem:[%s1495] sm:$0x1]
    %v1498 = vsel %vm328, %v1478, 0
    %v1501 = vsel %vm328, %v1479, 0
    %v1504 = vsel %vm328, %v1480, 0
    %v1507 = vsel %vm328, %v1481, 0
    %v1510 = vsel %vm328, %v1482, 0
    %v1513 = vsel %vm328, %v1483, 0
    %v1516 = vsel %vm328, %v1484, 0
    %v1519 = vsel %vm328, %v1485, 0
    %v1522 = vsel %vm328, %v1486, 0
    %v1525 = vsel %vm328, %v1487, 0
    %v1528 = vsel %vm328, %v1488, 0
    %v1531 = vsel %vm328, %v1489, 0
    %1533 = vmatpush.msra.mxu0 0.0
    %1534 = vmatpush.msra.mxu0 0.0
    %1535 = vmatpush.msra.mxu0 0.0
    %1536 = vmatpush.msra.mxu0 0.0
    %1537 = vmatpush.msra.mxu0 0.0
    %1538 = vmatpush.msra.mxu0 0.0
    %1539 = vmatpush.msra.mxu0 0.0
    %1540 = vmatpush.msra.mxu0 0.0
    %1541 = vmatpush.msra.mxu0 0.0
    %1542 = vmatpush.msra.mxu0 0.0
    %1543 = vmatpush.msra.mxu0 0.0
    %1544 = vmatpush.msra.mxu0 0.0
    %1545 = vmatpush.msra.mxu0 %v1494
    %1546 = vmatpush.msra.mxu0 %v1493
    %1547 = vmatpush.msra.mxu0 %v1492
    %1548 = vmatpush.msra.mxu0 %v1491
    %1549 = vmatmul.f32.gmra.mxu0 %v1498
    %v1550 = vpop.f32.mrf.mxu0
    %v1551 = vadd.f32 0.0, %v1550
    %1552 = vmatmul.f32.gmra.mxu0 %v1501
    %v1553 = vpop.f32.mrf.mxu0
    %v1554 = vadd.f32 0.0, %v1553
    %1555 = vmatmul.f32.gmra.mxu0 %v1504
    %v1556 = vpop.f32.mrf.mxu0
    %v1557 = vadd.f32 0.0, %v1556
    %1558 = vmatmul.f32.gmra.mxu0 %v1507
    %v1559 = vpop.f32.mrf.mxu0
    %v1560 = vadd.f32 0.0, %v1559
    %1561 = vmatmul.f32.gmra.mxu0 %v1510
    %v1562 = vpop.f32.mrf.mxu0
    %v1563 = vadd.f32 0.0, %v1562
    %1564 = vmatmul.f32.gmra.mxu0 %v1513
    %v1565 = vpop.f32.mrf.mxu0
    %v1566 = vadd.f32 0.0, %v1565
    %1567 = vmatmul.f32.gmra.mxu0 %v1516
    %v1568 = vpop.f32.mrf.mxu0
    %v1569 = vadd.f32 0.0, %v1568
    %1570 = vmatmul.f32.gmra.mxu0 %v1519
    %v1571 = vpop.f32.mrf.mxu0
    %v1572 = vadd.f32 0.0, %v1571
    %1573 = vmatmul.f32.gmra.mxu0 %v1522
    %v1574 = vpop.f32.mrf.mxu0
    %v1575 = vadd.f32 0.0, %v1574
    %1576 = vmatmul.f32.gmra.mxu0 %v1525
    %v1577 = vpop.f32.mrf.mxu0
    %v1578 = vadd.f32 0.0, %v1577
    %1579 = vmatmul.f32.gmra.mxu0 %v1528
    %v1580 = vpop.f32.mrf.mxu0
    %v1581 = vadd.f32 0.0, %v1580
    %1582 = vmatmul.f32.gmra.mxu0 %v1531
    %v1583 = vpop.f32.mrf.mxu0
    %v1584 = vadd.f32 0.0, %v1583
    %1585 = vdwg.mxu0
    %1598 = vrot.lane.b32.xlu0 %v1551, 96
    %v1599 = vpop.permute.xlu0 %1598
    %1600 = vrot.lane.b32.xlu0 %v1554, 96
    %v1601 = vpop.permute.xlu0 %1600
    %1602 = vrot.lane.b32.xlu0 %v1557, 96
    %v1603 = vpop.permute.xlu0 %1602
    %1604 = vrot.lane.b32.xlu0 %v1560, 96
    %v1605 = vpop.permute.xlu0 %1604
    %1606 = vrot.lane.b32.xlu0 %v1563, 96
    %v1607 = vpop.permute.xlu0 %1606
    %1608 = vrot.lane.b32.xlu0 %v1566, 96
    %v1609 = vpop.permute.xlu0 %1608
    %1610 = vrot.lane.b32.xlu0 %v1569, 96
    %v1611 = vpop.permute.xlu0 %1610
    %1612 = vrot.lane.b32.xlu0 %v1572, 96
    %v1613 = vpop.permute.xlu0 %1612
    %1614 = vrot.lane.b32.xlu0 %v1575, 96
    %v1615 = vpop.permute.xlu0 %1614
    %1616 = vrot.lane.b32.xlu0 %v1578, 96
    %v1617 = vpop.permute.xlu0 %1616
    %1618 = vrot.lane.b32.xlu0 %v1581, 96
    %v1619 = vpop.permute.xlu0 %1618
    %1620 = vrot.lane.b32.xlu0 %v1584, 96
    %v1621 = vpop.permute.xlu0 %1620
    %1634 = vmatpush.msra.mxu0 0.0
    %1635 = vmatpush.msra.mxu0 0.0
    %1636 = vmatpush.msra.mxu0 0.0
    %1637 = vmatpush.msra.mxu0 0.0
    %1638 = vmatpush.msra.mxu0 %v1584
    %1639 = vmatpush.msra.mxu0 %v1581
    %1640 = vmatpush.msra.mxu0 %v1578
    %1641 = vmatpush.msra.mxu0 %v1575
    %1642 = vmatpush.msra.mxu0 %v1572
    %1643 = vmatpush.msra.mxu0 %v1569
    %1644 = vmatpush.msra.mxu0 %v1566
    %1645 = vmatpush.msra.mxu0 %v1563
    %1646 = vmatpush.msra.mxu0 %v1560
    %1647 = vmatpush.msra.mxu0 %v1557
    %1648 = vmatpush.msra.mxu0 %v1554
    %1649 = vmatpush.msra.mxu0 %v1551
    %1650 = vmatmul.f32.gmra.mxu0 %v208
    %v1651 = vpop.f32.mrf.mxu0
    %v1652 = vadd.f32 %v1599, %v1651
    %1653 = vmatmul.f32.gmra.mxu0 %v211
    %v1654 = vpop.f32.mrf.mxu0
    %v1655 = vadd.f32 %v1601, %v1654
    %1656 = vmatmul.f32.gmra.mxu0 %v214
    %v1657 = vpop.f32.mrf.mxu0
    %v1658 = vadd.f32 %v1603, %v1657
    %1659 = vmatmul.f32.gmra.mxu0 %v217
    %v1660 = vpop.f32.mrf.mxu0
    %v1661 = vadd.f32 %v1605, %v1660
    %1662 = vmatmul.f32.gmra.mxu0 %v220
    %v1663 = vpop.f32.mrf.mxu0
    %v1664 = vadd.f32 %v1607, %v1663
    %1665 = vmatmul.f32.gmra.mxu0 %v223
    %v1666 = vpop.f32.mrf.mxu0
    %v1667 = vadd.f32 %v1609, %v1666
    %1668 = vmatmul.f32.gmra.mxu0 %v226
    %v1669 = vpop.f32.mrf.mxu0
    %v1670 = vadd.f32 %v1611, %v1669
    %1671 = vmatmul.f32.gmra.mxu0 %v229
    %v1672 = vpop.f32.mrf.mxu0
    %v1673 = vadd.f32 %v1613, %v1672
    %1674 = vmatmul.f32.gmra.mxu0 %v232
    %v1675 = vpop.f32.mrf.mxu0
    %v1676 = vadd.f32 %v1615, %v1675
    %1677 = vmatmul.f32.gmra.mxu0 %v235
    %v1678 = vpop.f32.mrf.mxu0
    %v1679 = vadd.f32 %v1617, %v1678
    %1680 = vmatmul.f32.gmra.mxu0 %v238
    %v1681 = vpop.f32.mrf.mxu0
    %v1682 = vadd.f32 %v1619, %v1681
    %1683 = vmatmul.f32.gmra.mxu0 %v241
    %v1684 = vpop.f32.mrf.mxu0
    %v1685 = vadd.f32 %v1621, %v1684
    %1686 = vdwg.mxu0
    %v1688 = vperm.slane %v1496, 0
    %v1690 = vadd.f32 %v1652, %v1688
    %v1691 = vadd.f32 %v1655, %v1688
    %v1692 = vadd.f32 %v1658, %v1688
    %v1693 = vadd.f32 %v1661, %v1688
    %v1694 = vadd.f32 %v1664, %v1688
    %v1695 = vadd.f32 %v1667, %v1688
    %v1696 = vadd.f32 %v1670, %v1688
    %v1697 = vadd.f32 %v1673, %v1688
    %v1698 = vadd.f32 %v1676, %v1688
    %v1699 = vadd.f32 %v1679, %v1688
    %v1700 = vadd.f32 %v1682, %v1688
    %v1701 = vadd.f32 %v1685, %v1688
    %v1702 = vmax.f32 %v1690, 0.0
    %v1703 = vmax.f32 %v1691, 0.0
    %v1704 = vmax.f32 %v1692, 0.0
    %v1705 = vmax.f32 %v1693, 0.0
    %v1706 = vmax.f32 %v1694, 0.0
    %v1707 = vmax.f32 %v1695, 0.0
    %v1708 = vmax.f32 %v1696, 0.0
    %v1709 = vmax.f32 %v1697, 0.0
    %v1710 = vmax.f32 %v1698, 0.0
    %v1711 = vmax.f32 %v1699, 0.0
    %v1712 = vmax.f32 %v1700, 0.0
    %v1713 = vmax.f32 %v1701, 0.0
    %v1714 = vadd.f32 %v1254, %v1702
    %v1715 = vadd.f32 %v1255, %v1703
    %v1716 = vadd.f32 %v1256, %v1704
    %v1717 = vadd.f32 %v1257, %v1705
    %v1718 = vadd.f32 %v1258, %v1706
    %v1719 = vadd.f32 %v1259, %v1707
    %v1720 = vadd.f32 %v1260, %v1708
    %v1721 = vadd.f32 %v1261, %v1709
    %v1722 = vadd.f32 %v1262, %v1710
    %v1723 = vadd.f32 %v1263, %v1711
    %v1724 = vadd.f32 %v1264, %v1712
    %v1725 = vadd.f32 %v1265, %v1713
    %v1726 = vmul.f32 %v1714, 0.5
    %v1727 = vmul.f32 %v1715, 0.5
    %v1728 = vmul.f32 %v1716, 0.5
    %v1729 = vmul.f32 %v1717, 0.5
    %v1730 = vmul.f32 %v1718, 0.5
    %v1731 = vmul.f32 %v1719, 0.5
    %v1732 = vmul.f32 %v1720, 0.5
    %v1733 = vmul.f32 %v1721, 0.5
    %v1734 = vmul.f32 %v1722, 0.5
    %v1735 = vmul.f32 %v1723, 0.5
    %v1736 = vmul.f32 %v1724, 0.5
    %v1737 = vmul.f32 %v1725, 0.5
    %s1738 = scalar_lea.vmem %s4, 192
    %v1739 = vld [vmem:[%s1738] sm:$0xff]
    %v1740 = vld [vmem:[%s1738 + $0x8] sm:$0xff]
    %v1741 = vld [vmem:[%s1738 + $0x10] sm:$0xff]
    %v1742 = vld [vmem:[%s1738 + $0x18] sm:$0xff]
    %s1743 = scalar_lea.vmem %s5, 6
    %v1744 = vld [vmem:[%s1743] sm:$0x1]
    %v1746 = vsel %vm328, %v1726, 0
    %v1749 = vsel %vm328, %v1727, 0
    %v1752 = vsel %vm328, %v1728, 0
    %v1755 = vsel %vm328, %v1729, 0
    %v1758 = vsel %vm328, %v1730, 0
    %v1761 = vsel %vm328, %v1731, 0
    %v1764 = vsel %vm328, %v1732, 0
    %v1767 = vsel %vm328, %v1733, 0
    %v1770 = vsel %vm328, %v1734, 0
    %v1773 = vsel %vm328, %v1735, 0
    %v1776 = vsel %vm328, %v1736, 0
    %v1779 = vsel %vm328, %v1737, 0
    %1781 = vmatpush.msra.mxu0 0.0
    %1782 = vmatpush.msra.mxu0 0.0
    %1783 = vmatpush.msra.mxu0 0.0
    %1784 = vmatpush.msra.mxu0 0.0
    %1785 = vmatpush.msra.mxu0 0.0
    %1786 = vmatpush.msra.mxu0 0.0
    %1787 = vmatpush.msra.mxu0 0.0
    %1788 = vmatpush.msra.mxu0 0.0
    %1789 = vmatpush.msra.mxu0 0.0
    %1790 = vmatpush.msra.mxu0 0.0
    %1791 = vmatpush.msra.mxu0 0.0
    %1792 = vmatpush.msra.mxu0 0.0
    %1793 = vmatpush.msra.mxu0 %v1742
    %1794 = vmatpush.msra.mxu0 %v1741
    %1795 = vmatpush.msra.mxu0 %v1740
    %1796 = vmatpush.msra.mxu0 %v1739
    %1797 = vmatmul.f32.gmra.mxu0 %v1746
    %v1798 = vpop.f32.mrf.mxu0
    %v1799 = vadd.f32 0.0, %v1798
    %1800 = vmatmul.f32.gmra.mxu0 %v1749
    %v1801 = vpop.f32.mrf.mxu0
    %v1802 = vadd.f32 0.0, %v1801
    %1803 = vmatmul.f32.gmra.mxu0 %v1752
    %v1804 = vpop.f32.mrf.mxu0
    %v1805 = vadd.f32 0.0, %v1804
    %1806 = vmatmul.f32.gmra.mxu0 %v1755
    %v1807 = vpop.f32.mrf.mxu0
    %v1808 = vadd.f32 0.0, %v1807
    %1809 = vmatmul.f32.gmra.mxu0 %v1758
    %v1810 = vpop.f32.mrf.mxu0
    %v1811 = vadd.f32 0.0, %v1810
    %1812 = vmatmul.f32.gmra.mxu0 %v1761
    %v1813 = vpop.f32.mrf.mxu0
    %v1814 = vadd.f32 0.0, %v1813
    %1815 = vmatmul.f32.gmra.mxu0 %v1764
    %v1816 = vpop.f32.mrf.mxu0
    %v1817 = vadd.f32 0.0, %v1816
    %1818 = vmatmul.f32.gmra.mxu0 %v1767
    %v1819 = vpop.f32.mrf.mxu0
    %v1820 = vadd.f32 0.0, %v1819
    %1821 = vmatmul.f32.gmra.mxu0 %v1770
    %v1822 = vpop.f32.mrf.mxu0
    %v1823 = vadd.f32 0.0, %v1822
    %1824 = vmatmul.f32.gmra.mxu0 %v1773
    %v1825 = vpop.f32.mrf.mxu0
    %v1826 = vadd.f32 0.0, %v1825
    %1827 = vmatmul.f32.gmra.mxu0 %v1776
    %v1828 = vpop.f32.mrf.mxu0
    %v1829 = vadd.f32 0.0, %v1828
    %1830 = vmatmul.f32.gmra.mxu0 %v1779
    %v1831 = vpop.f32.mrf.mxu0
    %v1832 = vadd.f32 0.0, %v1831
    %1833 = vdwg.mxu0
    %1846 = vrot.lane.b32.xlu0 %v1799, 96
    %v1847 = vpop.permute.xlu0 %1846
    %1848 = vrot.lane.b32.xlu0 %v1802, 96
    %v1849 = vpop.permute.xlu0 %1848
    %1850 = vrot.lane.b32.xlu0 %v1805, 96
    %v1851 = vpop.permute.xlu0 %1850
    %1852 = vrot.lane.b32.xlu0 %v1808, 96
    %v1853 = vpop.permute.xlu0 %1852
    %1854 = vrot.lane.b32.xlu0 %v1811, 96
    %v1855 = vpop.permute.xlu0 %1854
    %1856 = vrot.lane.b32.xlu0 %v1814, 96
    %v1857 = vpop.permute.xlu0 %1856
    %1858 = vrot.lane.b32.xlu0 %v1817, 96
    %v1859 = vpop.permute.xlu0 %1858
    %1860 = vrot.lane.b32.xlu0 %v1820, 96
    %v1861 = vpop.permute.xlu0 %1860
    %1862 = vrot.lane.b32.xlu0 %v1823, 96
    %v1863 = vpop.permute.xlu0 %1862
    %1864 = vrot.lane.b32.xlu0 %v1826, 96
    %v1865 = vpop.permute.xlu0 %1864
    %1866 = vrot.lane.b32.xlu0 %v1829, 96
    %v1867 = vpop.permute.xlu0 %1866
    %1868 = vrot.lane.b32.xlu0 %v1832, 96
    %v1869 = vpop.permute.xlu0 %1868
    %1882 = vmatpush.msra.mxu0 0.0
    %1883 = vmatpush.msra.mxu0 0.0
    %1884 = vmatpush.msra.mxu0 0.0
    %1885 = vmatpush.msra.mxu0 0.0
    %1886 = vmatpush.msra.mxu0 %v1832
    %1887 = vmatpush.msra.mxu0 %v1829
    %1888 = vmatpush.msra.mxu0 %v1826
    %1889 = vmatpush.msra.mxu0 %v1823
    %1890 = vmatpush.msra.mxu0 %v1820
    %1891 = vmatpush.msra.mxu0 %v1817
    %1892 = vmatpush.msra.mxu0 %v1814
    %1893 = vmatpush.msra.mxu0 %v1811
    %1894 = vmatpush.msra.mxu0 %v1808
    %1895 = vmatpush.msra.mxu0 %v1805
    %1896 = vmatpush.msra.mxu0 %v1802
    %1897 = vmatpush.msra.mxu0 %v1799
    %1898 = vmatmul.f32.gmra.mxu0 %v208
    %v1899 = vpop.f32.mrf.mxu0
    %v1900 = vadd.f32 %v1847, %v1899
    %1901 = vmatmul.f32.gmra.mxu0 %v211
    %v1902 = vpop.f32.mrf.mxu0
    %v1903 = vadd.f32 %v1849, %v1902
    %1904 = vmatmul.f32.gmra.mxu0 %v214
    %v1905 = vpop.f32.mrf.mxu0
    %v1906 = vadd.f32 %v1851, %v1905
    %1907 = vmatmul.f32.gmra.mxu0 %v217
    %v1908 = vpop.f32.mrf.mxu0
    %v1909 = vadd.f32 %v1853, %v1908
    %1910 = vmatmul.f32.gmra.mxu0 %v220
    %v1911 = vpop.f32.mrf.mxu0
    %v1912 = vadd.f32 %v1855, %v1911
    %1913 = vmatmul.f32.gmra.mxu0 %v223
    %v1914 = vpop.f32.mrf.mxu0
    %v1915 = vadd.f32 %v1857, %v1914
    %1916 = vmatmul.f32.gmra.mxu0 %v226
    %v1917 = vpop.f32.mrf.mxu0
    %v1918 = vadd.f32 %v1859, %v1917
    %1919 = vmatmul.f32.gmra.mxu0 %v229
    %v1920 = vpop.f32.mrf.mxu0
    %v1921 = vadd.f32 %v1861, %v1920
    %1922 = vmatmul.f32.gmra.mxu0 %v232
    %v1923 = vpop.f32.mrf.mxu0
    %v1924 = vadd.f32 %v1863, %v1923
    %1925 = vmatmul.f32.gmra.mxu0 %v235
    %v1926 = vpop.f32.mrf.mxu0
    %v1927 = vadd.f32 %v1865, %v1926
    %1928 = vmatmul.f32.gmra.mxu0 %v238
    %v1929 = vpop.f32.mrf.mxu0
    %v1930 = vadd.f32 %v1867, %v1929
    %1931 = vmatmul.f32.gmra.mxu0 %v241
    %v1932 = vpop.f32.mrf.mxu0
    %v1933 = vadd.f32 %v1869, %v1932
    %1934 = vdwg.mxu0
    %v1936 = vperm.slane %v1744, 0
    %v1938 = vadd.f32 %v1900, %v1936
    %v1939 = vadd.f32 %v1903, %v1936
    %v1940 = vadd.f32 %v1906, %v1936
    %v1941 = vadd.f32 %v1909, %v1936
    %v1942 = vadd.f32 %v1912, %v1936
    %v1943 = vadd.f32 %v1915, %v1936
    %v1944 = vadd.f32 %v1918, %v1936
    %v1945 = vadd.f32 %v1921, %v1936
    %v1946 = vadd.f32 %v1924, %v1936
    %v1947 = vadd.f32 %v1927, %v1936
    %v1948 = vadd.f32 %v1930, %v1936
    %v1949 = vadd.f32 %v1933, %v1936
    %v1950 = vmax.f32 %v1938, 0.0
    %v1951 = vmax.f32 %v1939, 0.0
    %v1952 = vmax.f32 %v1940, 0.0
    %v1953 = vmax.f32 %v1941, 0.0
    %v1954 = vmax.f32 %v1942, 0.0
    %v1955 = vmax.f32 %v1943, 0.0
    %v1956 = vmax.f32 %v1944, 0.0
    %v1957 = vmax.f32 %v1945, 0.0
    %v1958 = vmax.f32 %v1946, 0.0
    %v1959 = vmax.f32 %v1947, 0.0
    %v1960 = vmax.f32 %v1948, 0.0
    %v1961 = vmax.f32 %v1949, 0.0
    %s1962 = scalar_lea.vmem %s4, 224
    %v1963 = vld [vmem:[%s1962] sm:$0xff]
    %v1964 = vld [vmem:[%s1962 + $0x8] sm:$0xff]
    %v1965 = vld [vmem:[%s1962 + $0x10] sm:$0xff]
    %v1966 = vld [vmem:[%s1962 + $0x18] sm:$0xff]
    %s1967 = scalar_lea.vmem %s5, 7
    %v1968 = vld [vmem:[%s1967] sm:$0x1]
    %v1970 = vsel %vm328, %v1950, 0
    %v1973 = vsel %vm328, %v1951, 0
    %v1976 = vsel %vm328, %v1952, 0
    %v1979 = vsel %vm328, %v1953, 0
    %v1982 = vsel %vm328, %v1954, 0
    %v1985 = vsel %vm328, %v1955, 0
    %v1988 = vsel %vm328, %v1956, 0
    %v1991 = vsel %vm328, %v1957, 0
    %v1994 = vsel %vm328, %v1958, 0
    %v1997 = vsel %vm328, %v1959, 0
    %v2000 = vsel %vm328, %v1960, 0
    %v2003 = vsel %vm328, %v1961, 0
    %2005 = vmatpush.msra.mxu0 0.0
    %2006 = vmatpush.msra.mxu0 0.0
    %2007 = vmatpush.msra.mxu0 0.0
    %2008 = vmatpush.msra.mxu0 0.0
    %2009 = vmatpush.msra.mxu0 0.0
    %2010 = vmatpush.msra.mxu0 0.0
    %2011 = vmatpush.msra.mxu0 0.0
    %2012 = vmatpush.msra.mxu0 0.0
    %2013 = vmatpush.msra.mxu0 0.0
    %2014 = vmatpush.msra.mxu0 0.0
    %2015 = vmatpush.msra.mxu0 0.0
    %2016 = vmatpush.msra.mxu0 0.0
    %2017 = vmatpush.msra.mxu0 %v1966
    %2018 = vmatpush.msra.mxu0 %v1965
    %2019 = vmatpush.msra.mxu0 %v1964
    %2020 = vmatpush.msra.mxu0 %v1963
    %2021 = vmatmul.f32.gmra.mxu0 %v1970
    %v2022 = vpop.f32.mrf.mxu0
    %v2023 = vadd.f32 0.0, %v2022
    %2024 = vmatmul.f32.gmra.mxu0 %v1973
    %v2025 = vpop.f32.mrf.mxu0
    %v2026 = vadd.f32 0.0, %v2025
    %2027 = vmatmul.f32.gmra.mxu0 %v1976
    %v2028 = vpop.f32.mrf.mxu0
    %v2029 = vadd.f32 0.0, %v2028
    %2030 = vmatmul.f32.gmra.mxu0 %v1979
    %v2031 = vpop.f32.mrf.mxu0
    %v2032 = vadd.f32 0.0, %v2031
    %2033 = vmatmul.f32.gmra.mxu0 %v1982
    %v2034 = vpop.f32.mrf.mxu0
    %v2035 = vadd.f32 0.0, %v2034
    %2036 = vmatmul.f32.gmra.mxu0 %v1985
    %v2037 = vpop.f32.mrf.mxu0
    %v2038 = vadd.f32 0.0, %v2037
    %2039 = vmatmul.f32.gmra.mxu0 %v1988
    %v2040 = vpop.f32.mrf.mxu0
    %v2041 = vadd.f32 0.0, %v2040
    %2042 = vmatmul.f32.gmra.mxu0 %v1991
    %v2043 = vpop.f32.mrf.mxu0
    %v2044 = vadd.f32 0.0, %v2043
    %2045 = vmatmul.f32.gmra.mxu0 %v1994
    %v2046 = vpop.f32.mrf.mxu0
    %v2047 = vadd.f32 0.0, %v2046
    %2048 = vmatmul.f32.gmra.mxu0 %v1997
    %v2049 = vpop.f32.mrf.mxu0
    %v2050 = vadd.f32 0.0, %v2049
    %2051 = vmatmul.f32.gmra.mxu0 %v2000
    %v2052 = vpop.f32.mrf.mxu0
    %v2053 = vadd.f32 0.0, %v2052
    %2054 = vmatmul.f32.gmra.mxu0 %v2003
    %v2055 = vpop.f32.mrf.mxu0
    %v2056 = vadd.f32 0.0, %v2055
    %2057 = vdwg.mxu0
    %2070 = vrot.lane.b32.xlu0 %v2023, 96
    %v2071 = vpop.permute.xlu0 %2070
    %2072 = vrot.lane.b32.xlu0 %v2026, 96
    %v2073 = vpop.permute.xlu0 %2072
    %2074 = vrot.lane.b32.xlu0 %v2029, 96
    %v2075 = vpop.permute.xlu0 %2074
    %2076 = vrot.lane.b32.xlu0 %v2032, 96
    %v2077 = vpop.permute.xlu0 %2076
    %2078 = vrot.lane.b32.xlu0 %v2035, 96
    %v2079 = vpop.permute.xlu0 %2078
    %2080 = vrot.lane.b32.xlu0 %v2038, 96
    %v2081 = vpop.permute.xlu0 %2080
    %2082 = vrot.lane.b32.xlu0 %v2041, 96
    %v2083 = vpop.permute.xlu0 %2082
    %2084 = vrot.lane.b32.xlu0 %v2044, 96
    %v2085 = vpop.permute.xlu0 %2084
    %2086 = vrot.lane.b32.xlu0 %v2047, 96
    %v2087 = vpop.permute.xlu0 %2086
    %2088 = vrot.lane.b32.xlu0 %v2050, 96
    %v2089 = vpop.permute.xlu0 %2088
    %2090 = vrot.lane.b32.xlu0 %v2053, 96
    %v2091 = vpop.permute.xlu0 %2090
    %2092 = vrot.lane.b32.xlu0 %v2056, 96
    %v2093 = vpop.permute.xlu0 %2092
    %2106 = vmatpush.msra.mxu0 0.0
    %2107 = vmatpush.msra.mxu0 0.0
    %2108 = vmatpush.msra.mxu0 0.0
    %2109 = vmatpush.msra.mxu0 0.0
    %2110 = vmatpush.msra.mxu0 %v2056
    %2111 = vmatpush.msra.mxu0 %v2053
    %2112 = vmatpush.msra.mxu0 %v2050
    %2113 = vmatpush.msra.mxu0 %v2047
    %2114 = vmatpush.msra.mxu0 %v2044
    %2115 = vmatpush.msra.mxu0 %v2041
    %2116 = vmatpush.msra.mxu0 %v2038
    %2117 = vmatpush.msra.mxu0 %v2035
    %2118 = vmatpush.msra.mxu0 %v2032
    %2119 = vmatpush.msra.mxu0 %v2029
    %2120 = vmatpush.msra.mxu0 %v2026
    %2121 = vmatpush.msra.mxu0 %v2023
    %2122 = vmatmul.f32.gmra.mxu0 %v208
    %v2123 = vpop.f32.mrf.mxu0
    %v2124 = vadd.f32 %v2071, %v2123
    %2125 = vmatmul.f32.gmra.mxu0 %v211
    %v2126 = vpop.f32.mrf.mxu0
    %v2127 = vadd.f32 %v2073, %v2126
    %2128 = vmatmul.f32.gmra.mxu0 %v214
    %v2129 = vpop.f32.mrf.mxu0
    %v2130 = vadd.f32 %v2075, %v2129
    %2131 = vmatmul.f32.gmra.mxu0 %v217
    %v2132 = vpop.f32.mrf.mxu0
    %v2133 = vadd.f32 %v2077, %v2132
    %2134 = vmatmul.f32.gmra.mxu0 %v220
    %v2135 = vpop.f32.mrf.mxu0
    %v2136 = vadd.f32 %v2079, %v2135
    %2137 = vmatmul.f32.gmra.mxu0 %v223
    %v2138 = vpop.f32.mrf.mxu0
    %v2139 = vadd.f32 %v2081, %v2138
    %2140 = vmatmul.f32.gmra.mxu0 %v226
    %v2141 = vpop.f32.mrf.mxu0
    %v2142 = vadd.f32 %v2083, %v2141
    %2143 = vmatmul.f32.gmra.mxu0 %v229
    %v2144 = vpop.f32.mrf.mxu0
    %v2145 = vadd.f32 %v2085, %v2144
    %2146 = vmatmul.f32.gmra.mxu0 %v232
    %v2147 = vpop.f32.mrf.mxu0
    %v2148 = vadd.f32 %v2087, %v2147
    %2149 = vmatmul.f32.gmra.mxu0 %v235
    %v2150 = vpop.f32.mrf.mxu0
    %v2151 = vadd.f32 %v2089, %v2150
    %2152 = vmatmul.f32.gmra.mxu0 %v238
    %v2153 = vpop.f32.mrf.mxu0
    %v2154 = vadd.f32 %v2091, %v2153
    %2155 = vmatmul.f32.gmra.mxu0 %v241
    %v2156 = vpop.f32.mrf.mxu0
    %v2157 = vadd.f32 %v2093, %v2156
    %2158 = vdwg.mxu0
    %v2160 = vperm.slane %v1968, 0
    %v2162 = vadd.f32 %v2124, %v2160
    %v2163 = vadd.f32 %v2127, %v2160
    %v2164 = vadd.f32 %v2130, %v2160
    %v2165 = vadd.f32 %v2133, %v2160
    %v2166 = vadd.f32 %v2136, %v2160
    %v2167 = vadd.f32 %v2139, %v2160
    %v2168 = vadd.f32 %v2142, %v2160
    %v2169 = vadd.f32 %v2145, %v2160
    %v2170 = vadd.f32 %v2148, %v2160
    %v2171 = vadd.f32 %v2151, %v2160
    %v2172 = vadd.f32 %v2154, %v2160
    %v2173 = vadd.f32 %v2157, %v2160
    %v2174 = vmax.f32 %v2162, 0.0
    %v2175 = vmax.f32 %v2163, 0.0
    %v2176 = vmax.f32 %v2164, 0.0
    %v2177 = vmax.f32 %v2165, 0.0
    %v2178 = vmax.f32 %v2166, 0.0
    %v2179 = vmax.f32 %v2167, 0.0
    %v2180 = vmax.f32 %v2168, 0.0
    %v2181 = vmax.f32 %v2169, 0.0
    %v2182 = vmax.f32 %v2170, 0.0
    %v2183 = vmax.f32 %v2171, 0.0
    %v2184 = vmax.f32 %v2172, 0.0
    %v2185 = vmax.f32 %v2173, 0.0
    %v2186 = vadd.f32 %v1726, %v2174
    %v2187 = vadd.f32 %v1727, %v2175
    %v2188 = vadd.f32 %v1728, %v2176
    %v2189 = vadd.f32 %v1729, %v2177
    %v2190 = vadd.f32 %v1730, %v2178
    %v2191 = vadd.f32 %v1731, %v2179
    %v2192 = vadd.f32 %v1732, %v2180
    %v2193 = vadd.f32 %v1733, %v2181
    %v2194 = vadd.f32 %v1734, %v2182
    %v2195 = vadd.f32 %v1735, %v2183
    %v2196 = vadd.f32 %v1736, %v2184
    %v2197 = vadd.f32 %v1737, %v2185
    %v2198 = vmul.f32 %v2186, 0.5
    %v2199 = vmul.f32 %v2187, 0.5
    %v2200 = vmul.f32 %v2188, 0.5
    %v2201 = vmul.f32 %v2189, 0.5
    %v2202 = vmul.f32 %v2190, 0.5
    %v2203 = vmul.f32 %v2191, 0.5
    %v2204 = vmul.f32 %v2192, 0.5
    %v2205 = vmul.f32 %v2193, 0.5
    %v2206 = vmul.f32 %v2194, 0.5
    %v2207 = vmul.f32 %v2195, 0.5
    %v2208 = vmul.f32 %v2196, 0.5
    %v2209 = vmul.f32 %v2197, 0.5
    %s2210 = scalar_lea.vmem %s4, 256
    %v2211 = vld [vmem:[%s2210] sm:$0xff]
    %v2212 = vld [vmem:[%s2210 + $0x8] sm:$0xff]
    %v2213 = vld [vmem:[%s2210 + $0x10] sm:$0xff]
    %v2214 = vld [vmem:[%s2210 + $0x18] sm:$0xff]
    %s2215 = scalar_lea.vmem %s5, 8
    %v2216 = vld [vmem:[%s2215] sm:$0x1]
    %v2218 = vsel %vm328, %v2198, 0
    %v2221 = vsel %vm328, %v2199, 0
    %v2224 = vsel %vm328, %v2200, 0
    %v2227 = vsel %vm328, %v2201, 0
    %v2230 = vsel %vm328, %v2202, 0
    %v2233 = vsel %vm328, %v2203, 0
    %v2236 = vsel %vm328, %v2204, 0
    %v2239 = vsel %vm328, %v2205, 0
    %v2242 = vsel %vm328, %v2206, 0
    %v2245 = vsel %vm328, %v2207, 0
    %v2248 = vsel %vm328, %v2208, 0
    %v2251 = vsel %vm328, %v2209, 0
    %2253 = vmatpush.msra.mxu0 0.0
    %2254 = vmatpush.msra.mxu0 0.0
    %2255 = vmatpush.msra.mxu0 0.0
    %2256 = vmatpush.msra.mxu0 0.0
    %2257 = vmatpush.msra.mxu0 0.0
    %2258 = vmatpush.msra.mxu0 0.0
    %2259 = vmatpush.msra.mxu0 0.0
    %2260 = vmatpush.msra.mxu0 0.0
    %2261 = vmatpush.msra.mxu0 0.0
    %2262 = vmatpush.msra.mxu0 0.0
    %2263 = vmatpush.msra.mxu0 0.0
    %2264 = vmatpush.msra.mxu0 0.0
    %2265 = vmatpush.msra.mxu0 %v2214
    %2266 = vmatpush.msra.mxu0 %v2213
    %2267 = vmatpush.msra.mxu0 %v2212
    %2268 = vmatpush.msra.mxu0 %v2211
    %2269 = vmatmul.f32.gmra.mxu0 %v2218
    %v2270 = vpop.f32.mrf.mxu0
    %v2271 = vadd.f32 0.0, %v2270
    %2272 = vmatmul.f32.gmra.mxu0 %v2221
    %v2273 = vpop.f32.mrf.mxu0
    %v2274 = vadd.f32 0.0, %v2273
    %2275 = vmatmul.f32.gmra.mxu0 %v2224
    %v2276 = vpop.f32.mrf.mxu0
    %v2277 = vadd.f32 0.0, %v2276
    %2278 = vmatmul.f32.gmra.mxu0 %v2227
    %v2279 = vpop.f32.mrf.mxu0
    %v2280 = vadd.f32 0.0, %v2279
    %2281 = vmatmul.f32.gmra.mxu0 %v2230
    %v2282 = vpop.f32.mrf.mxu0
    %v2283 = vadd.f32 0.0, %v2282
    %2284 = vmatmul.f32.gmra.mxu0 %v2233
    %v2285 = vpop.f32.mrf.mxu0
    %v2286 = vadd.f32 0.0, %v2285
    %2287 = vmatmul.f32.gmra.mxu0 %v2236
    %v2288 = vpop.f32.mrf.mxu0
    %v2289 = vadd.f32 0.0, %v2288
    %2290 = vmatmul.f32.gmra.mxu0 %v2239
    %v2291 = vpop.f32.mrf.mxu0
    %v2292 = vadd.f32 0.0, %v2291
    %2293 = vmatmul.f32.gmra.mxu0 %v2242
    %v2294 = vpop.f32.mrf.mxu0
    %v2295 = vadd.f32 0.0, %v2294
    %2296 = vmatmul.f32.gmra.mxu0 %v2245
    %v2297 = vpop.f32.mrf.mxu0
    %v2298 = vadd.f32 0.0, %v2297
    %2299 = vmatmul.f32.gmra.mxu0 %v2248
    %v2300 = vpop.f32.mrf.mxu0
    %v2301 = vadd.f32 0.0, %v2300
    %2302 = vmatmul.f32.gmra.mxu0 %v2251
    %v2303 = vpop.f32.mrf.mxu0
    %v2304 = vadd.f32 0.0, %v2303
    %2305 = vdwg.mxu0
    %2318 = vrot.lane.b32.xlu0 %v2271, 96
    %v2319 = vpop.permute.xlu0 %2318
    %2320 = vrot.lane.b32.xlu0 %v2274, 96
    %v2321 = vpop.permute.xlu0 %2320
    %2322 = vrot.lane.b32.xlu0 %v2277, 96
    %v2323 = vpop.permute.xlu0 %2322
    %2324 = vrot.lane.b32.xlu0 %v2280, 96
    %v2325 = vpop.permute.xlu0 %2324
    %2326 = vrot.lane.b32.xlu0 %v2283, 96
    %v2327 = vpop.permute.xlu0 %2326
    %2328 = vrot.lane.b32.xlu0 %v2286, 96
    %v2329 = vpop.permute.xlu0 %2328
    %2330 = vrot.lane.b32.xlu0 %v2289, 96
    %v2331 = vpop.permute.xlu0 %2330
    %2332 = vrot.lane.b32.xlu0 %v2292, 96
    %v2333 = vpop.permute.xlu0 %2332
    %2334 = vrot.lane.b32.xlu0 %v2295, 96
    %v2335 = vpop.permute.xlu0 %2334
    %2336 = vrot.lane.b32.xlu0 %v2298, 96
    %v2337 = vpop.permute.xlu0 %2336
    %2338 = vrot.lane.b32.xlu0 %v2301, 96
    %v2339 = vpop.permute.xlu0 %2338
    %2340 = vrot.lane.b32.xlu0 %v2304, 96
    %v2341 = vpop.permute.xlu0 %2340
    %2354 = vmatpush.msra.mxu0 0.0
    %2355 = vmatpush.msra.mxu0 0.0
    %2356 = vmatpush.msra.mxu0 0.0
    %2357 = vmatpush.msra.mxu0 0.0
    %2358 = vmatpush.msra.mxu0 %v2304
    %2359 = vmatpush.msra.mxu0 %v2301
    %2360 = vmatpush.msra.mxu0 %v2298
    %2361 = vmatpush.msra.mxu0 %v2295
    %2362 = vmatpush.msra.mxu0 %v2292
    %2363 = vmatpush.msra.mxu0 %v2289
    %2364 = vmatpush.msra.mxu0 %v2286
    %2365 = vmatpush.msra.mxu0 %v2283
    %2366 = vmatpush.msra.mxu0 %v2280
    %2367 = vmatpush.msra.mxu0 %v2277
    %2368 = vmatpush.msra.mxu0 %v2274
    %2369 = vmatpush.msra.mxu0 %v2271
    %2370 = vmatmul.f32.gmra.mxu0 %v208
    %v2371 = vpop.f32.mrf.mxu0
    %v2372 = vadd.f32 %v2319, %v2371
    %2373 = vmatmul.f32.gmra.mxu0 %v211
    %v2374 = vpop.f32.mrf.mxu0
    %v2375 = vadd.f32 %v2321, %v2374
    %2376 = vmatmul.f32.gmra.mxu0 %v214
    %v2377 = vpop.f32.mrf.mxu0
    %v2378 = vadd.f32 %v2323, %v2377
    %2379 = vmatmul.f32.gmra.mxu0 %v217
    %v2380 = vpop.f32.mrf.mxu0
    %v2381 = vadd.f32 %v2325, %v2380
    %2382 = vmatmul.f32.gmra.mxu0 %v220
    %v2383 = vpop.f32.mrf.mxu0
    %v2384 = vadd.f32 %v2327, %v2383
    %2385 = vmatmul.f32.gmra.mxu0 %v223
    %v2386 = vpop.f32.mrf.mxu0
    %v2387 = vadd.f32 %v2329, %v2386
    %2388 = vmatmul.f32.gmra.mxu0 %v226
    %v2389 = vpop.f32.mrf.mxu0
    %v2390 = vadd.f32 %v2331, %v2389
    %2391 = vmatmul.f32.gmra.mxu0 %v229
    %v2392 = vpop.f32.mrf.mxu0
    %v2393 = vadd.f32 %v2333, %v2392
    %2394 = vmatmul.f32.gmra.mxu0 %v232
    %v2395 = vpop.f32.mrf.mxu0
    %v2396 = vadd.f32 %v2335, %v2395
    %2397 = vmatmul.f32.gmra.mxu0 %v235
    %v2398 = vpop.f32.mrf.mxu0
    %v2399 = vadd.f32 %v2337, %v2398
    %2400 = vmatmul.f32.gmra.mxu0 %v238
    %v2401 = vpop.f32.mrf.mxu0
    %v2402 = vadd.f32 %v2339, %v2401
    %2403 = vmatmul.f32.gmra.mxu0 %v241
    %v2404 = vpop.f32.mrf.mxu0
    %v2405 = vadd.f32 %v2341, %v2404
    %2406 = vdwg.mxu0
    %v2408 = vperm.slane %v2216, 0
    %v2410 = vadd.f32 %v2372, %v2408
    %v2411 = vadd.f32 %v2375, %v2408
    %v2412 = vadd.f32 %v2378, %v2408
    %v2413 = vadd.f32 %v2381, %v2408
    %v2414 = vadd.f32 %v2384, %v2408
    %v2415 = vadd.f32 %v2387, %v2408
    %v2416 = vadd.f32 %v2390, %v2408
    %v2417 = vadd.f32 %v2393, %v2408
    %v2418 = vadd.f32 %v2396, %v2408
    %v2419 = vadd.f32 %v2399, %v2408
    %v2420 = vadd.f32 %v2402, %v2408
    %v2421 = vadd.f32 %v2405, %v2408
    %v2422 = vmax.f32 %v2410, 0.0
    %v2423 = vmax.f32 %v2411, 0.0
    %v2424 = vmax.f32 %v2412, 0.0
    %v2425 = vmax.f32 %v2413, 0.0
    %v2426 = vmax.f32 %v2414, 0.0
    %v2427 = vmax.f32 %v2415, 0.0
    %v2428 = vmax.f32 %v2416, 0.0
    %v2429 = vmax.f32 %v2417, 0.0
    %v2430 = vmax.f32 %v2418, 0.0
    %v2431 = vmax.f32 %v2419, 0.0
    %v2432 = vmax.f32 %v2420, 0.0
    %v2433 = vmax.f32 %v2421, 0.0
    %s2434 = scalar_lea.vmem %s4, 288
    %v2435 = vld [vmem:[%s2434] sm:$0xff]
    %v2436 = vld [vmem:[%s2434 + $0x8] sm:$0xff]
    %v2437 = vld [vmem:[%s2434 + $0x10] sm:$0xff]
    %v2438 = vld [vmem:[%s2434 + $0x18] sm:$0xff]
    %s2439 = scalar_lea.vmem %s5, 9
    %v2440 = vld [vmem:[%s2439] sm:$0x1]
    %v2442 = vsel %vm328, %v2422, 0
    %v2445 = vsel %vm328, %v2423, 0
    %v2448 = vsel %vm328, %v2424, 0
    %v2451 = vsel %vm328, %v2425, 0
    %v2454 = vsel %vm328, %v2426, 0
    %v2457 = vsel %vm328, %v2427, 0
    %v2460 = vsel %vm328, %v2428, 0
    %v2463 = vsel %vm328, %v2429, 0
    %v2466 = vsel %vm328, %v2430, 0
    %v2469 = vsel %vm328, %v2431, 0
    %v2472 = vsel %vm328, %v2432, 0
    %v2475 = vsel %vm328, %v2433, 0
    %2477 = vmatpush.msra.mxu0 0.0
    %2478 = vmatpush.msra.mxu0 0.0
    %2479 = vmatpush.msra.mxu0 0.0
    %2480 = vmatpush.msra.mxu0 0.0
    %2481 = vmatpush.msra.mxu0 0.0
    %2482 = vmatpush.msra.mxu0 0.0
    %2483 = vmatpush.msra.mxu0 0.0
    %2484 = vmatpush.msra.mxu0 0.0
    %2485 = vmatpush.msra.mxu0 0.0
    %2486 = vmatpush.msra.mxu0 0.0
    %2487 = vmatpush.msra.mxu0 0.0
    %2488 = vmatpush.msra.mxu0 0.0
    %2489 = vmatpush.msra.mxu0 %v2438
    %2490 = vmatpush.msra.mxu0 %v2437
    %2491 = vmatpush.msra.mxu0 %v2436
    %2492 = vmatpush.msra.mxu0 %v2435
    %2493 = vmatmul.f32.gmra.mxu0 %v2442
    %v2494 = vpop.f32.mrf.mxu0
    %v2495 = vadd.f32 0.0, %v2494
    %2496 = vmatmul.f32.gmra.mxu0 %v2445
    %v2497 = vpop.f32.mrf.mxu0
    %v2498 = vadd.f32 0.0, %v2497
    %2499 = vmatmul.f32.gmra.mxu0 %v2448
    %v2500 = vpop.f32.mrf.mxu0
    %v2501 = vadd.f32 0.0, %v2500
    %2502 = vmatmul.f32.gmra.mxu0 %v2451
    %v2503 = vpop.f32.mrf.mxu0
    %v2504 = vadd.f32 0.0, %v2503
    %2505 = vmatmul.f32.gmra.mxu0 %v2454
    %v2506 = vpop.f32.mrf.mxu0
    %v2507 = vadd.f32 0.0, %v2506
    %2508 = vmatmul.f32.gmra.mxu0 %v2457
    %v2509 = vpop.f32.mrf.mxu0
    %v2510 = vadd.f32 0.0, %v2509
    %2511 = vmatmul.f32.gmra.mxu0 %v2460
    %v2512 = vpop.f32.mrf.mxu0
    %v2513 = vadd.f32 0.0, %v2512
    %2514 = vmatmul.f32.gmra.mxu0 %v2463
    %v2515 = vpop.f32.mrf.mxu0
    %v2516 = vadd.f32 0.0, %v2515
    %2517 = vmatmul.f32.gmra.mxu0 %v2466
    %v2518 = vpop.f32.mrf.mxu0
    %v2519 = vadd.f32 0.0, %v2518
    %2520 = vmatmul.f32.gmra.mxu0 %v2469
    %v2521 = vpop.f32.mrf.mxu0
    %v2522 = vadd.f32 0.0, %v2521
    %2523 = vmatmul.f32.gmra.mxu0 %v2472
    %v2524 = vpop.f32.mrf.mxu0
    %v2525 = vadd.f32 0.0, %v2524
    %2526 = vmatmul.f32.gmra.mxu0 %v2475
    %v2527 = vpop.f32.mrf.mxu0
    %v2528 = vadd.f32 0.0, %v2527
    %2529 = vdwg.mxu0
    %2542 = vrot.lane.b32.xlu0 %v2495, 96
    %v2543 = vpop.permute.xlu0 %2542
    %2544 = vrot.lane.b32.xlu0 %v2498, 96
    %v2545 = vpop.permute.xlu0 %2544
    %2546 = vrot.lane.b32.xlu0 %v2501, 96
    %v2547 = vpop.permute.xlu0 %2546
    %2548 = vrot.lane.b32.xlu0 %v2504, 96
    %v2549 = vpop.permute.xlu0 %2548
    %2550 = vrot.lane.b32.xlu0 %v2507, 96
    %v2551 = vpop.permute.xlu0 %2550
    %2552 = vrot.lane.b32.xlu0 %v2510, 96
    %v2553 = vpop.permute.xlu0 %2552
    %2554 = vrot.lane.b32.xlu0 %v2513, 96
    %v2555 = vpop.permute.xlu0 %2554
    %2556 = vrot.lane.b32.xlu0 %v2516, 96
    %v2557 = vpop.permute.xlu0 %2556
    %2558 = vrot.lane.b32.xlu0 %v2519, 96
    %v2559 = vpop.permute.xlu0 %2558
    %2560 = vrot.lane.b32.xlu0 %v2522, 96
    %v2561 = vpop.permute.xlu0 %2560
    %2562 = vrot.lane.b32.xlu0 %v2525, 96
    %v2563 = vpop.permute.xlu0 %2562
    %2564 = vrot.lane.b32.xlu0 %v2528, 96
    %v2565 = vpop.permute.xlu0 %2564
    %2578 = vmatpush.msra.mxu0 0.0
    %2579 = vmatpush.msra.mxu0 0.0
    %2580 = vmatpush.msra.mxu0 0.0
    %2581 = vmatpush.msra.mxu0 0.0
    %2582 = vmatpush.msra.mxu0 %v2528
    %2583 = vmatpush.msra.mxu0 %v2525
    %2584 = vmatpush.msra.mxu0 %v2522
    %2585 = vmatpush.msra.mxu0 %v2519
    %2586 = vmatpush.msra.mxu0 %v2516
    %2587 = vmatpush.msra.mxu0 %v2513
    %2588 = vmatpush.msra.mxu0 %v2510
    %2589 = vmatpush.msra.mxu0 %v2507
    %2590 = vmatpush.msra.mxu0 %v2504
    %2591 = vmatpush.msra.mxu0 %v2501
    %2592 = vmatpush.msra.mxu0 %v2498
    %2593 = vmatpush.msra.mxu0 %v2495
    %2594 = vmatmul.f32.gmra.mxu0 %v208
    %v2595 = vpop.f32.mrf.mxu0
    %v2596 = vadd.f32 %v2543, %v2595
    %2597 = vmatmul.f32.gmra.mxu0 %v211
    %v2598 = vpop.f32.mrf.mxu0
    %v2599 = vadd.f32 %v2545, %v2598
    %2600 = vmatmul.f32.gmra.mxu0 %v214
    %v2601 = vpop.f32.mrf.mxu0
    %v2602 = vadd.f32 %v2547, %v2601
    %2603 = vmatmul.f32.gmra.mxu0 %v217
    %v2604 = vpop.f32.mrf.mxu0
    %v2605 = vadd.f32 %v2549, %v2604
    %2606 = vmatmul.f32.gmra.mxu0 %v220
    %v2607 = vpop.f32.mrf.mxu0
    %v2608 = vadd.f32 %v2551, %v2607
    %2609 = vmatmul.f32.gmra.mxu0 %v223
    %v2610 = vpop.f32.mrf.mxu0
    %v2611 = vadd.f32 %v2553, %v2610
    %2612 = vmatmul.f32.gmra.mxu0 %v226
    %v2613 = vpop.f32.mrf.mxu0
    %v2614 = vadd.f32 %v2555, %v2613
    %2615 = vmatmul.f32.gmra.mxu0 %v229
    %v2616 = vpop.f32.mrf.mxu0
    %v2617 = vadd.f32 %v2557, %v2616
    %2618 = vmatmul.f32.gmra.mxu0 %v232
    %v2619 = vpop.f32.mrf.mxu0
    %v2620 = vadd.f32 %v2559, %v2619
    %2621 = vmatmul.f32.gmra.mxu0 %v235
    %v2622 = vpop.f32.mrf.mxu0
    %v2623 = vadd.f32 %v2561, %v2622
    %2624 = vmatmul.f32.gmra.mxu0 %v238
    %v2625 = vpop.f32.mrf.mxu0
    %v2626 = vadd.f32 %v2563, %v2625
    %2627 = vmatmul.f32.gmra.mxu0 %v241
    %v2628 = vpop.f32.mrf.mxu0
    %v2629 = vadd.f32 %v2565, %v2628
    %2630 = vdwg.mxu0
    %v2632 = vperm.slane %v2440, 0
    %v2634 = vadd.f32 %v2596, %v2632
    %v2635 = vadd.f32 %v2599, %v2632
    %v2636 = vadd.f32 %v2602, %v2632
    %v2637 = vadd.f32 %v2605, %v2632
    %v2638 = vadd.f32 %v2608, %v2632
    %v2639 = vadd.f32 %v2611, %v2632
    %v2640 = vadd.f32 %v2614, %v2632
    %v2641 = vadd.f32 %v2617, %v2632
    %v2642 = vadd.f32 %v2620, %v2632
    %v2643 = vadd.f32 %v2623, %v2632
    %v2644 = vadd.f32 %v2626, %v2632
    %v2645 = vadd.f32 %v2629, %v2632
    %v2646 = vmax.f32 %v2634, 0.0
    %v2647 = vmax.f32 %v2635, 0.0
    %v2648 = vmax.f32 %v2636, 0.0
    %v2649 = vmax.f32 %v2637, 0.0
    %v2650 = vmax.f32 %v2638, 0.0
    %v2651 = vmax.f32 %v2639, 0.0
    %v2652 = vmax.f32 %v2640, 0.0
    %v2653 = vmax.f32 %v2641, 0.0
    %v2654 = vmax.f32 %v2642, 0.0
    %v2655 = vmax.f32 %v2643, 0.0
    %v2656 = vmax.f32 %v2644, 0.0
    %v2657 = vmax.f32 %v2645, 0.0
    %v2658 = vadd.f32 %v2198, %v2646
    %v2659 = vadd.f32 %v2199, %v2647
    %v2660 = vadd.f32 %v2200, %v2648
    %v2661 = vadd.f32 %v2201, %v2649
    %v2662 = vadd.f32 %v2202, %v2650
    %v2663 = vadd.f32 %v2203, %v2651
    %v2664 = vadd.f32 %v2204, %v2652
    %v2665 = vadd.f32 %v2205, %v2653
    %v2666 = vadd.f32 %v2206, %v2654
    %v2667 = vadd.f32 %v2207, %v2655
    %v2668 = vadd.f32 %v2208, %v2656
    %v2669 = vadd.f32 %v2209, %v2657
    %v2670 = vmul.f32 %v2658, 0.5
    %v2671 = vmul.f32 %v2659, 0.5
    %v2672 = vmul.f32 %v2660, 0.5
    %v2673 = vmul.f32 %v2661, 0.5
    %v2674 = vmul.f32 %v2662, 0.5
    %v2675 = vmul.f32 %v2663, 0.5
    %v2676 = vmul.f32 %v2664, 0.5
    %v2677 = vmul.f32 %v2665, 0.5
    %v2678 = vmul.f32 %v2666, 0.5
    %v2679 = vmul.f32 %v2667, 0.5
    %v2680 = vmul.f32 %v2668, 0.5
    %v2681 = vmul.f32 %v2669, 0.5
    %s2682 = scalar_lea.vmem %s4, 320
    %v2683 = vld [vmem:[%s2682] sm:$0xff]
    %v2684 = vld [vmem:[%s2682 + $0x8] sm:$0xff]
    %v2685 = vld [vmem:[%s2682 + $0x10] sm:$0xff]
    %v2686 = vld [vmem:[%s2682 + $0x18] sm:$0xff]
    %s2687 = scalar_lea.vmem %s5, 10
    %v2688 = vld [vmem:[%s2687] sm:$0x1]
    %v2690 = vsel %vm328, %v2670, 0
    %v2693 = vsel %vm328, %v2671, 0
    %v2696 = vsel %vm328, %v2672, 0
    %v2699 = vsel %vm328, %v2673, 0
    %v2702 = vsel %vm328, %v2674, 0
    %v2705 = vsel %vm328, %v2675, 0
    %v2708 = vsel %vm328, %v2676, 0
    %v2711 = vsel %vm328, %v2677, 0
    %v2714 = vsel %vm328, %v2678, 0
    %v2717 = vsel %vm328, %v2679, 0
    %v2720 = vsel %vm328, %v2680, 0
    %v2723 = vsel %vm328, %v2681, 0
    %2725 = vmatpush.msra.mxu0 0.0
    %2726 = vmatpush.msra.mxu0 0.0
    %2727 = vmatpush.msra.mxu0 0.0
    %2728 = vmatpush.msra.mxu0 0.0
    %2729 = vmatpush.msra.mxu0 0.0
    %2730 = vmatpush.msra.mxu0 0.0
    %2731 = vmatpush.msra.mxu0 0.0
    %2732 = vmatpush.msra.mxu0 0.0
    %2733 = vmatpush.msra.mxu0 0.0
    %2734 = vmatpush.msra.mxu0 0.0
    %2735 = vmatpush.msra.mxu0 0.0
    %2736 = vmatpush.msra.mxu0 0.0
    %2737 = vmatpush.msra.mxu0 %v2686
    %2738 = vmatpush.msra.mxu0 %v2685
    %2739 = vmatpush.msra.mxu0 %v2684
    %2740 = vmatpush.msra.mxu0 %v2683
    %2741 = vmatmul.f32.gmra.mxu0 %v2690
    %v2742 = vpop.f32.mrf.mxu0
    %v2743 = vadd.f32 0.0, %v2742
    %2744 = vmatmul.f32.gmra.mxu0 %v2693
    %v2745 = vpop.f32.mrf.mxu0
    %v2746 = vadd.f32 0.0, %v2745
    %2747 = vmatmul.f32.gmra.mxu0 %v2696
    %v2748 = vpop.f32.mrf.mxu0
    %v2749 = vadd.f32 0.0, %v2748
    %2750 = vmatmul.f32.gmra.mxu0 %v2699
    %v2751 = vpop.f32.mrf.mxu0
    %v2752 = vadd.f32 0.0, %v2751
    %2753 = vmatmul.f32.gmra.mxu0 %v2702
    %v2754 = vpop.f32.mrf.mxu0
    %v2755 = vadd.f32 0.0, %v2754
    %2756 = vmatmul.f32.gmra.mxu0 %v2705
    %v2757 = vpop.f32.mrf.mxu0
    %v2758 = vadd.f32 0.0, %v2757
    %2759 = vmatmul.f32.gmra.mxu0 %v2708
    %v2760 = vpop.f32.mrf.mxu0
    %v2761 = vadd.f32 0.0, %v2760
    %2762 = vmatmul.f32.gmra.mxu0 %v2711
    %v2763 = vpop.f32.mrf.mxu0
    %v2764 = vadd.f32 0.0, %v2763
    %2765 = vmatmul.f32.gmra.mxu0 %v2714
    %v2766 = vpop.f32.mrf.mxu0
    %v2767 = vadd.f32 0.0, %v2766
    %2768 = vmatmul.f32.gmra.mxu0 %v2717
    %v2769 = vpop.f32.mrf.mxu0
    %v2770 = vadd.f32 0.0, %v2769
    %2771 = vmatmul.f32.gmra.mxu0 %v2720
    %v2772 = vpop.f32.mrf.mxu0
    %v2773 = vadd.f32 0.0, %v2772
    %2774 = vmatmul.f32.gmra.mxu0 %v2723
    %v2775 = vpop.f32.mrf.mxu0
    %v2776 = vadd.f32 0.0, %v2775
    %2777 = vdwg.mxu0
    %2790 = vrot.lane.b32.xlu0 %v2743, 96
    %v2791 = vpop.permute.xlu0 %2790
    %2792 = vrot.lane.b32.xlu0 %v2746, 96
    %v2793 = vpop.permute.xlu0 %2792
    %2794 = vrot.lane.b32.xlu0 %v2749, 96
    %v2795 = vpop.permute.xlu0 %2794
    %2796 = vrot.lane.b32.xlu0 %v2752, 96
    %v2797 = vpop.permute.xlu0 %2796
    %2798 = vrot.lane.b32.xlu0 %v2755, 96
    %v2799 = vpop.permute.xlu0 %2798
    %2800 = vrot.lane.b32.xlu0 %v2758, 96
    %v2801 = vpop.permute.xlu0 %2800
    %2802 = vrot.lane.b32.xlu0 %v2761, 96
    %v2803 = vpop.permute.xlu0 %2802
    %2804 = vrot.lane.b32.xlu0 %v2764, 96
    %v2805 = vpop.permute.xlu0 %2804
    %2806 = vrot.lane.b32.xlu0 %v2767, 96
    %v2807 = vpop.permute.xlu0 %2806
    %2808 = vrot.lane.b32.xlu0 %v2770, 96
    %v2809 = vpop.permute.xlu0 %2808
    %2810 = vrot.lane.b32.xlu0 %v2773, 96
    %v2811 = vpop.permute.xlu0 %2810
    %2812 = vrot.lane.b32.xlu0 %v2776, 96
    %v2813 = vpop.permute.xlu0 %2812
    %2826 = vmatpush.msra.mxu0 0.0
    %2827 = vmatpush.msra.mxu0 0.0
    %2828 = vmatpush.msra.mxu0 0.0
    %2829 = vmatpush.msra.mxu0 0.0
    %2830 = vmatpush.msra.mxu0 %v2776
    %2831 = vmatpush.msra.mxu0 %v2773
    %2832 = vmatpush.msra.mxu0 %v2770
    %2833 = vmatpush.msra.mxu0 %v2767
    %2834 = vmatpush.msra.mxu0 %v2764
    %2835 = vmatpush.msra.mxu0 %v2761
    %2836 = vmatpush.msra.mxu0 %v2758
    %2837 = vmatpush.msra.mxu0 %v2755
    %2838 = vmatpush.msra.mxu0 %v2752
    %2839 = vmatpush.msra.mxu0 %v2749
    %2840 = vmatpush.msra.mxu0 %v2746
    %2841 = vmatpush.msra.mxu0 %v2743
    %2842 = vmatmul.f32.gmra.mxu0 %v208
    %v2843 = vpop.f32.mrf.mxu0
    %v2844 = vadd.f32 %v2791, %v2843
    %2845 = vmatmul.f32.gmra.mxu0 %v211
    %v2846 = vpop.f32.mrf.mxu0
    %v2847 = vadd.f32 %v2793, %v2846
    %2848 = vmatmul.f32.gmra.mxu0 %v214
    %v2849 = vpop.f32.mrf.mxu0
    %v2850 = vadd.f32 %v2795, %v2849
    %2851 = vmatmul.f32.gmra.mxu0 %v217
    %v2852 = vpop.f32.mrf.mxu0
    %v2853 = vadd.f32 %v2797, %v2852
    %2854 = vmatmul.f32.gmra.mxu0 %v220
    %v2855 = vpop.f32.mrf.mxu0
    %v2856 = vadd.f32 %v2799, %v2855
    %2857 = vmatmul.f32.gmra.mxu0 %v223
    %v2858 = vpop.f32.mrf.mxu0
    %v2859 = vadd.f32 %v2801, %v2858
    %2860 = vmatmul.f32.gmra.mxu0 %v226
    %v2861 = vpop.f32.mrf.mxu0
    %v2862 = vadd.f32 %v2803, %v2861
    %2863 = vmatmul.f32.gmra.mxu0 %v229
    %v2864 = vpop.f32.mrf.mxu0
    %v2865 = vadd.f32 %v2805, %v2864
    %2866 = vmatmul.f32.gmra.mxu0 %v232
    %v2867 = vpop.f32.mrf.mxu0
    %v2868 = vadd.f32 %v2807, %v2867
    %2869 = vmatmul.f32.gmra.mxu0 %v235
    %v2870 = vpop.f32.mrf.mxu0
    %v2871 = vadd.f32 %v2809, %v2870
    %2872 = vmatmul.f32.gmra.mxu0 %v238
    %v2873 = vpop.f32.mrf.mxu0
    %v2874 = vadd.f32 %v2811, %v2873
    %2875 = vmatmul.f32.gmra.mxu0 %v241
    %v2876 = vpop.f32.mrf.mxu0
    %v2877 = vadd.f32 %v2813, %v2876
    %2878 = vdwg.mxu0
    %v2880 = vperm.slane %v2688, 0
    %v2882 = vadd.f32 %v2844, %v2880
    %v2883 = vadd.f32 %v2847, %v2880
    %v2884 = vadd.f32 %v2850, %v2880
    %v2885 = vadd.f32 %v2853, %v2880
    %v2886 = vadd.f32 %v2856, %v2880
    %v2887 = vadd.f32 %v2859, %v2880
    %v2888 = vadd.f32 %v2862, %v2880
    %v2889 = vadd.f32 %v2865, %v2880
    %v2890 = vadd.f32 %v2868, %v2880
    %v2891 = vadd.f32 %v2871, %v2880
    %v2892 = vadd.f32 %v2874, %v2880
    %v2893 = vadd.f32 %v2877, %v2880
    %v2894 = vmax.f32 %v2882, 0.0
    %v2895 = vmax.f32 %v2883, 0.0
    %v2896 = vmax.f32 %v2884, 0.0
    %v2897 = vmax.f32 %v2885, 0.0
    %v2898 = vmax.f32 %v2886, 0.0
    %v2899 = vmax.f32 %v2887, 0.0
    %v2900 = vmax.f32 %v2888, 0.0
    %v2901 = vmax.f32 %v2889, 0.0
    %v2902 = vmax.f32 %v2890, 0.0
    %v2903 = vmax.f32 %v2891, 0.0
    %v2904 = vmax.f32 %v2892, 0.0
    %v2905 = vmax.f32 %v2893, 0.0
    %s2906 = scalar_lea.vmem %s4, 352
    %v2907 = vld [vmem:[%s2906] sm:$0xff]
    %v2908 = vld [vmem:[%s2906 + $0x8] sm:$0xff]
    %v2909 = vld [vmem:[%s2906 + $0x10] sm:$0xff]
    %v2910 = vld [vmem:[%s2906 + $0x18] sm:$0xff]
    %s2911 = scalar_lea.vmem %s5, 11
    %v2912 = vld [vmem:[%s2911] sm:$0x1]
    %v2914 = vsel %vm328, %v2894, 0
    %v2917 = vsel %vm328, %v2895, 0
    %v2920 = vsel %vm328, %v2896, 0
    %v2923 = vsel %vm328, %v2897, 0
    %v2926 = vsel %vm328, %v2898, 0
    %v2929 = vsel %vm328, %v2899, 0
    %v2932 = vsel %vm328, %v2900, 0
    %v2935 = vsel %vm328, %v2901, 0
    %v2938 = vsel %vm328, %v2902, 0
    %v2941 = vsel %vm328, %v2903, 0
    %v2944 = vsel %vm328, %v2904, 0
    %v2947 = vsel %vm328, %v2905, 0
    %2949 = vmatpush.msra.mxu0 0.0
    %2950 = vmatpush.msra.mxu0 0.0
    %2951 = vmatpush.msra.mxu0 0.0
    %2952 = vmatpush.msra.mxu0 0.0
    %2953 = vmatpush.msra.mxu0 0.0
    %2954 = vmatpush.msra.mxu0 0.0
    %2955 = vmatpush.msra.mxu0 0.0
    %2956 = vmatpush.msra.mxu0 0.0
    %2957 = vmatpush.msra.mxu0 0.0
    %2958 = vmatpush.msra.mxu0 0.0
    %2959 = vmatpush.msra.mxu0 0.0
    %2960 = vmatpush.msra.mxu0 0.0
    %2961 = vmatpush.msra.mxu0 %v2910
    %2962 = vmatpush.msra.mxu0 %v2909
    %2963 = vmatpush.msra.mxu0 %v2908
    %2964 = vmatpush.msra.mxu0 %v2907
    %2965 = vmatmul.f32.gmra.mxu0 %v2914
    %v2966 = vpop.f32.mrf.mxu0
    %v2967 = vadd.f32 0.0, %v2966
    %2968 = vmatmul.f32.gmra.mxu0 %v2917
    %v2969 = vpop.f32.mrf.mxu0
    %v2970 = vadd.f32 0.0, %v2969
    %2971 = vmatmul.f32.gmra.mxu0 %v2920
    %v2972 = vpop.f32.mrf.mxu0
    %v2973 = vadd.f32 0.0, %v2972
    %2974 = vmatmul.f32.gmra.mxu0 %v2923
    %v2975 = vpop.f32.mrf.mxu0
    %v2976 = vadd.f32 0.0, %v2975
    %2977 = vmatmul.f32.gmra.mxu0 %v2926
    %v2978 = vpop.f32.mrf.mxu0
    %v2979 = vadd.f32 0.0, %v2978
    %2980 = vmatmul.f32.gmra.mxu0 %v2929
    %v2981 = vpop.f32.mrf.mxu0
    %v2982 = vadd.f32 0.0, %v2981
    %2983 = vmatmul.f32.gmra.mxu0 %v2932
    %v2984 = vpop.f32.mrf.mxu0
    %v2985 = vadd.f32 0.0, %v2984
    %2986 = vmatmul.f32.gmra.mxu0 %v2935
    %v2987 = vpop.f32.mrf.mxu0
    %v2988 = vadd.f32 0.0, %v2987
    %2989 = vmatmul.f32.gmra.mxu0 %v2938
    %v2990 = vpop.f32.mrf.mxu0
    %v2991 = vadd.f32 0.0, %v2990
    %2992 = vmatmul.f32.gmra.mxu0 %v2941
    %v2993 = vpop.f32.mrf.mxu0
    %v2994 = vadd.f32 0.0, %v2993
    %2995 = vmatmul.f32.gmra.mxu0 %v2944
    %v2996 = vpop.f32.mrf.mxu0
    %v2997 = vadd.f32 0.0, %v2996
    %2998 = vmatmul.f32.gmra.mxu0 %v2947
    %v2999 = vpop.f32.mrf.mxu0
    %v3000 = vadd.f32 0.0, %v2999
    %3001 = vdwg.mxu0
    %3014 = vrot.lane.b32.xlu0 %v2967, 96
    %v3015 = vpop.permute.xlu0 %3014
    %3016 = vrot.lane.b32.xlu0 %v2970, 96
    %v3017 = vpop.permute.xlu0 %3016
    %3018 = vrot.lane.b32.xlu0 %v2973, 96
    %v3019 = vpop.permute.xlu0 %3018
    %3020 = vrot.lane.b32.xlu0 %v2976, 96
    %v3021 = vpop.permute.xlu0 %3020
    %3022 = vrot.lane.b32.xlu0 %v2979, 96
    %v3023 = vpop.permute.xlu0 %3022
    %3024 = vrot.lane.b32.xlu0 %v2982, 96
    %v3025 = vpop.permute.xlu0 %3024
    %3026 = vrot.lane.b32.xlu0 %v2985, 96
    %v3027 = vpop.permute.xlu0 %3026
    %3028 = vrot.lane.b32.xlu0 %v2988, 96
    %v3029 = vpop.permute.xlu0 %3028
    %3030 = vrot.lane.b32.xlu0 %v2991, 96
    %v3031 = vpop.permute.xlu0 %3030
    %3032 = vrot.lane.b32.xlu0 %v2994, 96
    %v3033 = vpop.permute.xlu0 %3032
    %3034 = vrot.lane.b32.xlu0 %v2997, 96
    %v3035 = vpop.permute.xlu0 %3034
    %3036 = vrot.lane.b32.xlu0 %v3000, 96
    %v3037 = vpop.permute.xlu0 %3036
    %3050 = vmatpush.msra.mxu0 0.0
    %3051 = vmatpush.msra.mxu0 0.0
    %3052 = vmatpush.msra.mxu0 0.0
    %3053 = vmatpush.msra.mxu0 0.0
    %3054 = vmatpush.msra.mxu0 %v3000
    %3055 = vmatpush.msra.mxu0 %v2997
    %3056 = vmatpush.msra.mxu0 %v2994
    %3057 = vmatpush.msra.mxu0 %v2991
    %3058 = vmatpush.msra.mxu0 %v2988
    %3059 = vmatpush.msra.mxu0 %v2985
    %3060 = vmatpush.msra.mxu0 %v2982
    %3061 = vmatpush.msra.mxu0 %v2979
    %3062 = vmatpush.msra.mxu0 %v2976
    %3063 = vmatpush.msra.mxu0 %v2973
    %3064 = vmatpush.msra.mxu0 %v2970
    %3065 = vmatpush.msra.mxu0 %v2967
    %3066 = vmatmul.f32.gmra.mxu0 %v208
    %v3067 = vpop.f32.mrf.mxu0
    %v3068 = vadd.f32 %v3015, %v3067
    %3069 = vmatmul.f32.gmra.mxu0 %v211
    %v3070 = vpop.f32.mrf.mxu0
    %v3071 = vadd.f32 %v3017, %v3070
    %3072 = vmatmul.f32.gmra.mxu0 %v214
    %v3073 = vpop.f32.mrf.mxu0
    %v3074 = vadd.f32 %v3019, %v3073
    %3075 = vmatmul.f32.gmra.mxu0 %v217
    %v3076 = vpop.f32.mrf.mxu0
    %v3077 = vadd.f32 %v3021, %v3076
    %3078 = vmatmul.f32.gmra.mxu0 %v220
    %v3079 = vpop.f32.mrf.mxu0
    %v3080 = vadd.f32 %v3023, %v3079
    %3081 = vmatmul.f32.gmra.mxu0 %v223
    %v3082 = vpop.f32.mrf.mxu0
    %v3083 = vadd.f32 %v3025, %v3082
    %3084 = vmatmul.f32.gmra.mxu0 %v226
    %v3085 = vpop.f32.mrf.mxu0
    %v3086 = vadd.f32 %v3027, %v3085
    %3087 = vmatmul.f32.gmra.mxu0 %v229
    %v3088 = vpop.f32.mrf.mxu0
    %v3089 = vadd.f32 %v3029, %v3088
    %3090 = vmatmul.f32.gmra.mxu0 %v232
    %v3091 = vpop.f32.mrf.mxu0
    %v3092 = vadd.f32 %v3031, %v3091
    %3093 = vmatmul.f32.gmra.mxu0 %v235
    %v3094 = vpop.f32.mrf.mxu0
    %v3095 = vadd.f32 %v3033, %v3094
    %3096 = vmatmul.f32.gmra.mxu0 %v238
    %v3097 = vpop.f32.mrf.mxu0
    %v3098 = vadd.f32 %v3035, %v3097
    %3099 = vmatmul.f32.gmra.mxu0 %v241
    %v3100 = vpop.f32.mrf.mxu0
    %v3101 = vadd.f32 %v3037, %v3100
    %3102 = vdwg.mxu0
    %v3104 = vperm.slane %v2912, 0
    %v3106 = vadd.f32 %v3068, %v3104
    %v3107 = vadd.f32 %v3071, %v3104
    %v3108 = vadd.f32 %v3074, %v3104
    %v3109 = vadd.f32 %v3077, %v3104
    %v3110 = vadd.f32 %v3080, %v3104
    %v3111 = vadd.f32 %v3083, %v3104
    %v3112 = vadd.f32 %v3086, %v3104
    %v3113 = vadd.f32 %v3089, %v3104
    %v3114 = vadd.f32 %v3092, %v3104
    %v3115 = vadd.f32 %v3095, %v3104
    %v3116 = vadd.f32 %v3098, %v3104
    %v3117 = vadd.f32 %v3101, %v3104
    %v3118 = vmax.f32 %v3106, 0.0
    %v3119 = vmax.f32 %v3107, 0.0
    %v3120 = vmax.f32 %v3108, 0.0
    %v3121 = vmax.f32 %v3109, 0.0
    %v3122 = vmax.f32 %v3110, 0.0
    %v3123 = vmax.f32 %v3111, 0.0
    %v3124 = vmax.f32 %v3112, 0.0
    %v3125 = vmax.f32 %v3113, 0.0
    %v3126 = vmax.f32 %v3114, 0.0
    %v3127 = vmax.f32 %v3115, 0.0
    %v3128 = vmax.f32 %v3116, 0.0
    %v3129 = vmax.f32 %v3117, 0.0
    %v3130 = vadd.f32 %v2670, %v3118
    %v3131 = vadd.f32 %v2671, %v3119
    %v3132 = vadd.f32 %v2672, %v3120
    %v3133 = vadd.f32 %v2673, %v3121
    %v3134 = vadd.f32 %v2674, %v3122
    %v3135 = vadd.f32 %v2675, %v3123
    %v3136 = vadd.f32 %v2676, %v3124
    %v3137 = vadd.f32 %v2677, %v3125
    %v3138 = vadd.f32 %v2678, %v3126
    %v3139 = vadd.f32 %v2679, %v3127
    %v3140 = vadd.f32 %v2680, %v3128
    %v3141 = vadd.f32 %v2681, %v3129
    %v3142 = vmul.f32 %v3130, 0.5
    %v3143 = vmul.f32 %v3131, 0.5
    %v3144 = vmul.f32 %v3132, 0.5
    %v3145 = vmul.f32 %v3133, 0.5
    %v3146 = vmul.f32 %v3134, 0.5
    %v3147 = vmul.f32 %v3135, 0.5
    %v3148 = vmul.f32 %v3136, 0.5
    %v3149 = vmul.f32 %v3137, 0.5
    %v3150 = vmul.f32 %v3138, 0.5
    %v3151 = vmul.f32 %v3139, 0.5
    %v3152 = vmul.f32 %v3140, 0.5
    %v3153 = vmul.f32 %v3141, 0.5
    %3154 = vst.msk [vmem:[#allocation2] sm:$0xff] %vm328, %v3142
    %3155 = vst.msk [vmem:[#allocation2 + $0x8] sm:$0xff] %vm328, %v3143
    %3156 = vst.msk [vmem:[#allocation2 + $0x10] sm:$0xff] %vm328, %v3144
    %3157 = vst.msk [vmem:[#allocation2 + $0x18] sm:$0xff] %vm328, %v3145
    %3158 = vst.msk [vmem:[#allocation2 + $0x20] sm:$0xff] %vm328, %v3146
    %3159 = vst.msk [vmem:[#allocation2 + $0x28] sm:$0xff] %vm328, %v3147
    %3160 = vst.msk [vmem:[#allocation2 + $0x30] sm:$0xff] %vm328, %v3148
    %3161 = vst.msk [vmem:[#allocation2 + $0x38] sm:$0xff] %vm328, %v3149
    %3162 = vst.msk [vmem:[#allocation2 + $0x40] sm:$0xff] %vm328, %v3150
    %3163 = vst.msk [vmem:[#allocation2 + $0x48] sm:$0xff] %vm328, %v3151
    %3164 = vst.msk [vmem:[#allocation2 + $0x50] sm:$0xff] %vm328, %v3152
    %3165 = vst.msk [vmem:[#allocation2 + $0x58] sm:$0xff] %vm328, %v3153
    %v3166 = vld [vmem:[%s6] sm:$0xff]
    %v3167 = vld [vmem:[%s6 + $0x8] sm:$0xff]
    %v3168 = vld [vmem:[%s6 + $0x10] sm:$0xff]
    %v3169 = vld [vmem:[%s6 + $0x18] sm:$0xff]
    %v3170 = vld [vmem:[%s6 + $0x20] sm:$0xff]
    %v3171 = vld [vmem:[%s6 + $0x28] sm:$0xff]
    %v3172 = vld [vmem:[%s6 + $0x30] sm:$0xff]
    %v3173 = vld [vmem:[%s6 + $0x38] sm:$0xff]
    %v3174 = vld [vmem:[%s7] sm:$0x1]
    %v3176 = vsel %vm328, %v3142, 0
    %v3179 = vsel %vm328, %v3143, 0
    %v3182 = vsel %vm328, %v3144, 0
    %v3185 = vsel %vm328, %v3145, 0
    %v3188 = vsel %vm328, %v3146, 0
    %v3191 = vsel %vm328, %v3147, 0
    %v3194 = vsel %vm328, %v3148, 0
    %v3197 = vsel %vm328, %v3149, 0
    %v3200 = vsel %vm328, %v3150, 0
    %v3203 = vsel %vm328, %v3151, 0
    %v3206 = vsel %vm328, %v3152, 0
    %v3209 = vsel %vm328, %v3153, 0
    %3211 = vmatpush.msra.mxu0 0.0
    %3212 = vmatpush.msra.mxu0 0.0
    %3213 = vmatpush.msra.mxu0 0.0
    %3214 = vmatpush.msra.mxu0 0.0
    %3215 = vmatpush.msra.mxu0 0.0
    %3216 = vmatpush.msra.mxu0 0.0
    %3217 = vmatpush.msra.mxu0 0.0
    %3218 = vmatpush.msra.mxu0 0.0
    %3219 = vmatpush.msra.mxu0 0.0
    %3220 = vmatpush.msra.mxu0 0.0
    %3221 = vmatpush.msra.mxu0 0.0
    %3222 = vmatpush.msra.mxu0 0.0
    %3223 = vmatpush.msra.mxu0 %v3172
    %3224 = vmatpush.msra.mxu0 %v3170
    %3225 = vmatpush.msra.mxu0 %v3168
    %3226 = vmatpush.msra.mxu0 %v3166
    %3227 = vmatmul.f32.gmra.mxu0 %v3176
    %v3228 = vpop.f32.mrf.mxu0
    %v3229 = vadd.f32 0.0, %v3228
    %3230 = vmatmul.f32.gmra.mxu0 %v3179
    %v3231 = vpop.f32.mrf.mxu0
    %v3232 = vadd.f32 0.0, %v3231
    %3233 = vmatmul.f32.gmra.mxu0 %v3182
    %v3234 = vpop.f32.mrf.mxu0
    %v3235 = vadd.f32 0.0, %v3234
    %3236 = vmatmul.f32.gmra.mxu0 %v3185
    %v3237 = vpop.f32.mrf.mxu0
    %v3238 = vadd.f32 0.0, %v3237
    %3239 = vmatmul.f32.gmra.mxu0 %v3188
    %v3240 = vpop.f32.mrf.mxu0
    %v3241 = vadd.f32 0.0, %v3240
    %3242 = vmatmul.f32.gmra.mxu0 %v3191
    %v3243 = vpop.f32.mrf.mxu0
    %v3244 = vadd.f32 0.0, %v3243
    %3245 = vmatmul.f32.gmra.mxu0 %v3194
    %v3246 = vpop.f32.mrf.mxu0
    %v3247 = vadd.f32 0.0, %v3246
    %3248 = vmatmul.f32.gmra.mxu0 %v3197
    %v3249 = vpop.f32.mrf.mxu0
    %v3250 = vadd.f32 0.0, %v3249
    %3251 = vmatmul.f32.gmra.mxu0 %v3200
    %v3252 = vpop.f32.mrf.mxu0
    %v3253 = vadd.f32 0.0, %v3252
    %3254 = vmatmul.f32.gmra.mxu0 %v3203
    %v3255 = vpop.f32.mrf.mxu0
    %v3256 = vadd.f32 0.0, %v3255
    %3257 = vmatmul.f32.gmra.mxu0 %v3206
    %v3258 = vpop.f32.mrf.mxu0
    %v3259 = vadd.f32 0.0, %v3258
    %3260 = vmatmul.f32.gmra.mxu0 %v3209
    %v3261 = vpop.f32.mrf.mxu0
    %v3262 = vadd.f32 0.0, %v3261
    %3263 = vdwg.mxu0
    %3264 = vmatpush.msra.mxu0 0.0
    %3265 = vmatpush.msra.mxu0 0.0
    %3266 = vmatpush.msra.mxu0 0.0
    %3267 = vmatpush.msra.mxu0 0.0
    %3268 = vmatpush.msra.mxu0 0.0
    %3269 = vmatpush.msra.mxu0 0.0
    %3270 = vmatpush.msra.mxu0 0.0
    %3271 = vmatpush.msra.mxu0 0.0
    %3272 = vmatpush.msra.mxu0 0.0
    %3273 = vmatpush.msra.mxu0 0.0
    %3274 = vmatpush.msra.mxu0 0.0
    %3275 = vmatpush.msra.mxu0 0.0
    %3276 = vmatpush.msra.mxu0 %v3173
    %3277 = vmatpush.msra.mxu0 %v3171
    %3278 = vmatpush.msra.mxu0 %v3169
    %3279 = vmatpush.msra.mxu0 %v3167
    %3280 = vmatmul.f32.gmra.mxu0 %v3176
    %v3281 = vpop.f32.mrf.mxu0
    %v3282 = vadd.f32 0.0, %v3281
    %3283 = vmatmul.f32.gmra.mxu0 %v3179
    %v3284 = vpop.f32.mrf.mxu0
    %v3285 = vadd.f32 0.0, %v3284
    %3286 = vmatmul.f32.gmra.mxu0 %v3182
    %v3287 = vpop.f32.mrf.mxu0
    %v3288 = vadd.f32 0.0, %v3287
    %3289 = vmatmul.f32.gmra.mxu0 %v3185
    %v3290 = vpop.f32.mrf.mxu0
    %v3291 = vadd.f32 0.0, %v3290
    %3292 = vmatmul.f32.gmra.mxu0 %v3188
    %v3293 = vpop.f32.mrf.mxu0
    %v3294 = vadd.f32 0.0, %v3293
    %3295 = vmatmul.f32.gmra.mxu0 %v3191
    %v3296 = vpop.f32.mrf.mxu0
    %v3297 = vadd.f32 0.0, %v3296
    %3298 = vmatmul.f32.gmra.mxu0 %v3194
    %v3299 = vpop.f32.mrf.mxu0
    %v3300 = vadd.f32 0.0, %v3299
    %3301 = vmatmul.f32.gmra.mxu0 %v3197
    %v3302 = vpop.f32.mrf.mxu0
    %v3303 = vadd.f32 0.0, %v3302
    %3304 = vmatmul.f32.gmra.mxu0 %v3200
    %v3305 = vpop.f32.mrf.mxu0
    %v3306 = vadd.f32 0.0, %v3305
    %3307 = vmatmul.f32.gmra.mxu0 %v3203
    %v3308 = vpop.f32.mrf.mxu0
    %v3309 = vadd.f32 0.0, %v3308
    %3310 = vmatmul.f32.gmra.mxu0 %v3206
    %v3311 = vpop.f32.mrf.mxu0
    %v3312 = vadd.f32 0.0, %v3311
    %3313 = vmatmul.f32.gmra.mxu0 %v3209
    %v3314 = vpop.f32.mrf.mxu0
    %v3315 = vadd.f32 0.0, %v3314
    %3316 = vdwg.mxu0
    %3317 = vmatpush.msra.mxu0 0.0
    %3318 = vmatpush.msra.mxu0 0.0
    %3319 = vmatpush.msra.mxu0 0.0
    %3320 = vmatpush.msra.mxu0 0.0
    %3321 = vmatpush.msra.mxu0 %v3262
    %3322 = vmatpush.msra.mxu0 %v3259
    %3323 = vmatpush.msra.mxu0 %v3256
    %3324 = vmatpush.msra.mxu0 %v3253
    %3325 = vmatpush.msra.mxu0 %v3250
    %3326 = vmatpush.msra.mxu0 %v3247
    %3327 = vmatpush.msra.mxu0 %v3244
    %3328 = vmatpush.msra.mxu0 %v3241
    %3329 = vmatpush.msra.mxu0 %v3238
    %3330 = vmatpush.msra.mxu0 %v3235
    %3331 = vmatpush.msra.mxu0 %v3232
    %3332 = vmatpush.msra.mxu0 %v3229
    %3333 = vmatmul.f32.gmra.mxu0 %v208
    %v3334 = vpop.f32.mrf.mxu0
    %v3335 = vadd.f32 %v3282, %v3334
    %3336 = vmatmul.f32.gmra.mxu0 %v211
    %v3337 = vpop.f32.mrf.mxu0
    %v3338 = vadd.f32 %v3285, %v3337
    %3339 = vmatmul.f32.gmra.mxu0 %v214
    %v3340 = vpop.f32.mrf.mxu0
    %v3341 = vadd.f32 %v3288, %v3340
    %3342 = vmatmul.f32.gmra.mxu0 %v217
    %v3343 = vpop.f32.mrf.mxu0
    %v3344 = vadd.f32 %v3291, %v3343
    %3345 = vmatmul.f32.gmra.mxu0 %v220
    %v3346 = vpop.f32.mrf.mxu0
    %v3347 = vadd.f32 %v3294, %v3346
    %3348 = vmatmul.f32.gmra.mxu0 %v223
    %v3349 = vpop.f32.mrf.mxu0
    %v3350 = vadd.f32 %v3297, %v3349
    %3351 = vmatmul.f32.gmra.mxu0 %v226
    %v3352 = vpop.f32.mrf.mxu0
    %v3353 = vadd.f32 %v3300, %v3352
    %3354 = vmatmul.f32.gmra.mxu0 %v229
    %v3355 = vpop.f32.mrf.mxu0
    %v3356 = vadd.f32 %v3303, %v3355
    %3357 = vmatmul.f32.gmra.mxu0 %v232
    %v3358 = vpop.f32.mrf.mxu0
    %v3359 = vadd.f32 %v3306, %v3358
    %3360 = vmatmul.f32.gmra.mxu0 %v235
    %v3361 = vpop.f32.mrf.mxu0
    %v3362 = vadd.f32 %v3309, %v3361
    %3363 = vmatmul.f32.gmra.mxu0 %v238
    %v3364 = vpop.f32.mrf.mxu0
    %v3365 = vadd.f32 %v3312, %v3364
    %3366 = vmatmul.f32.gmra.mxu0 %v241
    %v3367 = vpop.f32.mrf.mxu0
    %v3368 = vadd.f32 %v3315, %v3367
    %3369 = vdwg.mxu0
    %v3371 = vperm.slane %v3174, 0
    %v3373 = vadd.f32 %v3335, %v3371
    %v3374 = vadd.f32 %v3338, %v3371
    %v3375 = vadd.f32 %v3341, %v3371
    %v3376 = vadd.f32 %v3344, %v3371
    %v3377 = vadd.f32 %v3347, %v3371
    %v3378 = vadd.f32 %v3350, %v3371
    %v3379 = vadd.f32 %v3353, %v3371
    %v3380 = vadd.f32 %v3356, %v3371
    %v3381 = vadd.f32 %v3359, %v3371
    %v3382 = vadd.f32 %v3362, %v3371
    %v3383 = vadd.f32 %v3365, %v3371
    %v3384 = vadd.f32 %v3368, %v3371
    %3385 = vst [vmem:[%s9] sm:$0xff] %v3373
    %3386 = vst [vmem:[%s9 + $0x8] sm:$0xff] %v3374
    %3387 = vst [vmem:[%s9 + $0x10] sm:$0xff] %v3375
    %3388 = vst [vmem:[%s9 + $0x18] sm:$0xff] %v3376
    %3389 = vst [vmem:[%s9 + $0x20] sm:$0xff] %v3377
    %3390 = vst [vmem:[%s9 + $0x28] sm:$0xff] %v3378
    %3391 = vst [vmem:[%s9 + $0x30] sm:$0xff] %v3379
    %3392 = vst [vmem:[%s9 + $0x38] sm:$0xff] %v3380
    %3393 = vst [vmem:[%s9 + $0x40] sm:$0xff] %v3381
    %3394 = vst [vmem:[%s9 + $0x48] sm:$0xff] %v3382
    %3395 = vst [vmem:[%s9 + $0x50] sm:$0xff] %v3383
    %3396 = vst [vmem:[%s9 + $0x58] sm:$0xff] %v3384
    // Predicated region
    $region34: #{pixel2mesh_forward.7} parent=1 // pred_check
      _
    $region35: #{pixel2mesh_forward.7} parent=1 // pred_check_branch
      %3398 = sbr.rel (0) target = $region37
    $region36: #{pixel2mesh_forward.7} parent=1 // pred_region
      %3400 = vsyncadd [#allocation3], 0
      %s3401 = sshll.u32 [#allocation2], 4
      %s3402 = int_to_ptr.vmem [resolvable:$true] %s3401
      %s3403 = sshll.u32 %s8, 4
      %s3404 = int_to_ptr.hbm [resolvable:$true] %s3403
      %3409 = dma.vmem_to_hbm [thread:$0]  %s3402, 1536, %s3404, [#allocation3], 128, 128, 8
    $region37: #{pixel2mesh_forward.7} parent=1 // pred_fallthru
      _
    // Predicated region
    $region38: #{pixel2mesh_forward.7} parent=1 // pred_check
      _
    $region39: #{pixel2mesh_forward.7} parent=1 // pred_check_branch
      %3411 = sbr.rel (0) target = $region41
    $region40: #{pixel2mesh_forward.7} parent=1 // pred_region
      _
    $region41: #{pixel2mesh_forward.7} parent=1 // pred_fallthru
      _
    // Predicated region
    $region42: #{pixel2mesh_forward.7} parent=1 // pred_check
      _
    $region43: #{pixel2mesh_forward.7} parent=1 // pred_check_branch
      %3413 = sbr.rel (0) target = $region45
    $region44: #{pixel2mesh_forward.7} parent=1 // pred_region
      %3415 = dma.done [#allocation3], 1536
    $region45: #{pixel2mesh_forward.7} parent=1 // pred_fallthru
      _
    // Predicated region
    $region46: #{pixel2mesh_forward.7} parent=1 // pred_check
      _
    $region47: #{pixel2mesh_forward.7} parent=1 // pred_check_branch
      %3417 = sbr.rel (0) target = $region49
    $region48: #{pixel2mesh_forward.7} parent=1 // pred_region
      _
    $region49: #{pixel2mesh_forward.7} parent=1 // pred_fallthru
      _
    %3418 = vsyncpa [#allocation3], 1

</llo_original>
